<compile_context>
chip_gen: v5e
topology: v5e:2x2
jax: 0.10.0
libtpu: 0.0.40
codegen_flags: <defaults>
</compile_context>

<pallas_src>
import jax
import jax.numpy as jnp
from jax import lax
from jax.experimental import pallas as pl
from jax.experimental.pallas import tpu as pltpu

F32 = jnp.float32
BF16 = jnp.bfloat16
BN_EPS = 1e-5
VMEM_SPEC = pl.BlockSpec(memory_space=pltpu.MemorySpace.VMEM)


def _vmem_call(kernel, out_shape, *args):
    # Every operand is KB-scale: each fused kernel runs with grid=() and all arrays
    # fully resident in VMEM (block == full array), well under every chip's scoped
    # VMEM default now that the banded/replication matrices are gone.
    return pl.pallas_call(
        kernel,
        out_shape=out_shape,
        in_specs=[VMEM_SPEC] * len(args),
        out_specs=VMEM_SPEC,
    )(*args)


def _bn_relu_masked(z, gamma, beta, mask, n_valid):
    """Train-mode BatchNorm (+ReLU): per-sublane-row stats over masked lanes, f32."""
    zm = z * mask
    inv_n = 1.0 / float(n_valid)
    s = jnp.sum(zm, axis=-1, keepdims=True)
    sq = jnp.sum(zm * zm, axis=-1, keepdims=True)
    mean = s * inv_n
    var = sq * inv_n - mean * mean          # biased variance (torch train-mode BN)
    scale = gamma * lax.rsqrt(var + BN_EPS)
    shift = beta - mean * scale
    return jnp.maximum(zm * scale + shift, 0.0) * mask


# ----------------------- kernel 1: fused Conv1d stack ----------------------- #

def _make_seq_kernel(E, K, left, n_valid, total_lanes):
    """Fused Conv1d('same') + BN1d + ReLU, twice, on an (E, B*S) masked segment layout.

    Each batch owns a 128-aligned segment of S lanes; lanes [left, left+L) hold the
    embedded sequence and the rest are zeros (= the 'same' conv zero padding).
    Each conv layer = K lane rolls stacked on sublanes + one bf16 matmul over ALL
    batches at once.
    """

    def conv_bn_relu(h, w_bf16, gamma, beta, mask):
        taps = []
        for j in range(K):
            sh = (left - j) % total_lanes
            taps.append(h if sh == 0 else pltpu.roll(h, sh, 1))
        stack = jnp.concatenate(taps, axis=0)                        # (K*E, B*S)
        z = jnp.dot(w_bf16, stack.astype(BF16),
                    preferred_element_type=F32)                      # (E, B*S)
        return _bn_relu_masked(z, gamma, beta, mask, n_valid)

    def kernel(xp_ref, w1_ref, w2_ref, bn_ref, mask_ref, o_ref):
        hp = xp_ref[...]                                             # (E, B*S) f32
        mask = mask_ref[...]                                         # (1, B*S) f32
        bn = bn_ref[...]                                             # (E, 4) [g1,b1,g2,b2]
        h1 = conv_bn_relu(hp, w1_ref[...], bn[:, 0:1], bn[:, 1:2], mask)
        o_ref[...] = conv_bn_relu(h1, w2_ref[...], bn[:, 2:3], bn[:, 3:4], mask)

    return kernel


# ------------- kernel 2: fused Conv2d stack + Flatten + Linear -------------- #

def _make_head_kernel(B, E, n_classes, K1, K2, Ho1, Ho2):
    """Fused Conv2d+BN2d+ReLU (x2) + Flatten + Linear on a (channels, B*E*E) layout.

    Lane index = b*E*E + i*E + j; a (dh, dw) 'valid' conv tap is a single lane roll
    by dh*E + dw, stacked on sublanes, so each conv layer is one dense bf16 matmul.
    Out-of-range / cross-batch lanes are killed by the validity masks before the
    BatchNorm statistics.
    """
    HW = E * E
    total = B * HW
    n1 = B * Ho1 * Ho1                      # BatchNorm2d counts N*Ho*Wo
    n2 = B * Ho2 * Ho2

    def width_stack(h, Kw):
        ws = [h if dw == 0 else pltpu.roll(h, (-dw) % total, 1) for dw in range(Kw)]
        return jnp.concatenate(ws, axis=0)

    def height_stack(s1, Kh):
        hs = [s1 if dh == 0 else pltpu.roll(s1, (-dh * E) % total, 1) for dh in range(Kh)]
        return jnp.concatenate(hs, axis=0)

    def kernel(xs_ref, w1_ref, w2_ref, bn1_ref, bn2_ref, m1_ref, m2_ref,
               wb_ref, seg_ref, ones_ref, bl_ref, o_ref):
        m1 = m1_ref[...]                                             # (1, B*HW)
        m2 = m2_ref[...]
        bn1 = bn1_ref[...]                                           # (C1, 2)
        bn2 = bn2_ref[...]                                           # (C2, 2)

        # conv12d (valid): width taps pre-stacked in the wrapper (C_in == 1), height
        # taps are in-kernel lane rolls of the (K1, B*HW) stack.
        s1 = height_stack(xs_ref[...], K1)                           # (K1*K1, B*HW)
        z1 = jnp.dot(w1_ref[...], s1.astype(BF16),
                     preferred_element_type=F32)                     # (C1, B*HW)
        h1 = _bn_relu_masked(z1, bn1[:, 0:1], bn1[:, 1:2], m1, n1)

        # conv22d (valid): dense (C2, K2*K2*C1) weight against the full tap stack
        # (replaces the former 97%-sparse banded matmul).
        s2 = height_stack(width_stack(h1, K2), K2)                   # (K2*K2*C1, B*HW)
        z2 = jnp.dot(w2_ref[...], s2.astype(BF16),
                     preferred_element_type=F32)                     # (C2, B*HW)
        h2 = _bn_relu_masked(z2, bn2[:, 0:1], bn2[:, 1:2], m2, n2)

        # Flatten (NCHW) + LazyLinear without width-1 gathers: the linear weight is
        # pre-scattered onto the (class*channel, lane) grid; one VPU product, a
        # class-group sublane sum and a per-batch lane sum finish the job.
        h_rep = jnp.concatenate([h2] * n_classes, axis=0)            # (n_cls*C2, B*HW)
        prod = wb_ref[...] * h_rep                                   # (n_cls*C2, B*HW)
        per_lane = jnp.dot(seg_ref[...], prod,
                           preferred_element_type=F32)               # (n_cls, B*HW)
        logits = jnp.dot(per_lane, ones_ref[...],
                         preferred_element_type=F32)                 # (n_cls, B)
        o_ref[...] = logits + bl_ref[...]

    return kernel


# ------------------------------ model wrapper ------------------------------ #

class GeneClassifierPallas:
    """Pallas port of GeneClassifier.forward (logits path)."""

    def __init__(self, nucleotides, n_classes, emb_dim=32, k=5, key=None):
        self.abc = list(nucleotides)
        self.k = k
        e = self.emb_dim = emb_dim
        self.n_classes = n_classes
        k1 = e // 2                       # Conv1d kernel size ('same')
        k2d_1 = e // 2                    # conv12d kernel size (valid)
        k2d_2 = e // 4                    # conv22d kernel size (valid)
        ho1 = e - k2d_1 + 1
        ho2 = ho1 - k2d_2 + 1
        self.k1, self.k2d_1, self.k2d_2, self.ho1, self.ho2 = k1, k2d_1, k2d_2, ho1, ho2

        keys = jax.random.split(key, 7)
        s = 0.1

        # nn.Embedding(len(abc)+1, emb_dim)
        self.emb_table = jax.random.normal(keys[0], (len(self.abc) + 1, e), F32) * s

        # conv1/conv2: Conv1d(E, E, E//2, padding='same'), torch layout (O, C, K)
        # -> (O, K*C) bf16 matrices matching the in-kernel tap/sublane stacking order.
        w1 = jax.random.normal(keys[1], (e, e, k1), F32) * s
        w2 = jax.random.normal(keys[2], (e, e, k1), F32) * s
        self.w1m = jnp.transpose(w1, (0, 2, 1)).reshape(e, k1 * e).astype(BF16)
        self.w2m = jnp.transpose(w2, (0, 2, 1)).reshape(e, k1 * e).astype(BF16)
        # Conv biases omitted: a per-channel bias right before train-mode BatchNorm is
        # exactly cancelled by the mean subtraction (no effect on the output).
        # BatchNorm affine params (torch default gamma=1, beta=0), packed (E, 4).
        self.bn_seq = jnp.concatenate(
            [jnp.ones((e, 1), F32), jnp.zeros((e, 1), F32),
             jnp.ones((e, 1), F32), jnp.zeros((e, 1), F32)], axis=-1)

        # conv12d: Conv2d(1, E, E//2) -> dense (C1, Kh*Kw), column = dh*Kw + dw.
        w12 = jax.random.normal(keys[3], (e, 1, k2d_1, k2d_1), F32) * s
        self.w1_2d = w12[:, 0].reshape(e, k2d_1 * k2d_1).astype(BF16)
        self.bn1_2d = jnp.concatenate(
            [jnp.ones((e, 1), F32), jnp.zeros((e, 1), F32)], axis=-1)

        # conv22d: Conv2d(E, 2E, E//4) -> dense (C2, Kh*Kw*C1),
        # column = dh*(Kw*C1) + dw*C1 + c1 (matches in-kernel height/width stacking).
        w22 = jax.random.normal(keys[4], (2 * e, e, k2d_2, k2d_2), F32) * s
        self.w2_2d = jnp.transpose(w22, (0, 2, 3, 1)).reshape(
            2 * e, k2d_2 * k2d_2 * e).astype(BF16)
        self.bn2_2d = jnp.concatenate(
            [jnp.ones((2 * e, 1), F32), jnp.zeros((2 * e, 1), F32)], axis=-1)

        # LazyLinear(n_classes): in_features = 2E*Ho2*Wo2 (NCHW flatten order).
        # Scatter the weight onto the per-sample (class, channel, E, E) lane grid so
        # the in-kernel flatten+linear needs no gathers.
        wl = jax.random.normal(keys[5], (2 * e * ho2 * ho2, n_classes), F32) * s
        wl_r = jnp.transpose(wl.reshape(2 * e, ho2, ho2, n_classes), (3, 0, 1, 2))
        scat = jnp.zeros((n_classes, 2 * e, e, e), F32)
        scat = scat.at[:, :, :ho2, :ho2].set(wl_r)
        self.wb_one = scat.reshape(n_classes * 2 * e, e * e)         # (n_cls*C2, E*E)
        grp = jnp.arange(n_classes * 2 * e) // (2 * e)
        self.seg = (grp[None, :] == jnp.arange(n_classes)[:, None]).astype(F32)
        self.b_lin = jax.random.normal(keys[6], (n_classes, 1), F32) * s

        self._fwd = jax.jit(self._forward)

    # --- string tokenization (mirrors the torch forward preamble; host glue) ---
    def tokenize(self, x):
        l = max(len(s) for s in x)
        pad_id = len(self.abc)
        rows = [[self.abc.index(c) for c in s] + [pad_id] * (l - len(s)) for s in x]
        toks = jnp.asarray(rows, jnp.int32)
        if toks.shape[1] < self.emb_dim:
            # Faithful to the PyTorch F.pad(x, (0,0,0,E-L)) call (pads the batch dim).
            extra = self.emb_dim - toks.shape[1]
            toks = jnp.concatenate(
                [toks, jnp.full((extra, toks.shape[1]), pad_id, jnp.int32)], axis=0)
        return toks

    def _forward(self, toks):
        B, L = toks.shape
        e, k1 = self.emb_dim, self.k1
        left = (k1 - 1) // 2                               # torch 'same' left pad
        S = pl.cdiv(L + k1 - 1, 128) * 128                 # 128-aligned per-batch segment

        # ---- kernel 1: embedded sequence in a masked (E, B*S) segment layout ----
        h = jnp.take(self.emb_table, toks, axis=0)         # (B, L, E) embedding gather
        h = jnp.transpose(h, (0, 2, 1))                    # (B, E, L) channels-first
        hp = jnp.zeros((B, e, S), F32).at[:, :, left:left + L].set(h)
        hp = jnp.transpose(hp, (1, 0, 2)).reshape(e, B * S)

        col = jnp.arange(S)
        seg_mask = ((col >= left) & (col < left + L)).astype(F32)
        mask_seq = jnp.tile(seg_mask, (B,))[None, :]       # (1, B*S)

        seq_kernel = _make_seq_kernel(e, k1, left, B * L, B * S)
        hseq = _vmem_call(seq_kernel, jax.ShapeDtypeStruct((e, B * S), F32),
                          hp, self.w1m, self.w2m, self.bn_seq, mask_seq)

        # ---- SVD glue (XLA) ----
        x = jnp.transpose(hseq.reshape(e, B, S), (1, 2, 0))[:, left:left + L, :]  # (B,L,E)
        # TODO(synk): torch.linalg.svd has no Pallas equivalent; jnp.linalg.svd (XLA) is
        # used and V column signs may differ from PyTorch (inherent SVD sign ambiguity).
        _, d, vh = jnp.linalg.svd(x, full_matrices=False)  # d: (B,E), vh: (B,E,E)
        # bmm(d.unsqueeze(-1).expand(-1,-1,E), vh) == outer(d, column-sums of vh)
        x2 = d[:, :, None] * jnp.sum(vh, axis=1)[:, None, :]           # (B, E, E)

        # ---- kernel 2: head on a (channels, B*E*E) lane grid ----
        xflat = x2.reshape(B * e * e)                      # lane = b*E*E + i*E + j
        # Pre-stack conv12d's width taps in XLA (C_in == 1): keeps every in-kernel
        # roll on a >= 8-sublane operand.
        xs = jnp.stack([jnp.roll(xflat, -dw) for dw in range(self.k2d_1)], axis=0)

        p = jnp.arange(e * e)
        ii, jj = p // e, p % e
        m1 = jnp.tile(((ii < self.ho1) & (jj < self.ho1)).astype(F32), (B,))[None, :]
        m2 = jnp.tile(((ii < self.ho2) & (jj < self.ho2)).astype(F32), (B,))[None, :]
        wb = jnp.tile(self.wb_one, (1, B))                 # (n_cls*C2, B*E*E)
        ones_blk = jnp.repeat(jnp.eye(B, dtype=F32), e * e, axis=0)    # (B*E*E, B)

        head_kernel = _make_head_kernel(B, e, self.n_classes, self.k2d_1, self.k2d_2,
                                        self.ho1, self.ho2)
        logits_t = _vmem_call(head_kernel,
                              jax.ShapeDtypeStruct((self.n_classes, B), F32),
                              xs, self.w1_2d, self.w2_2d, self.bn1_2d, self.bn2_2d,
                              m1, m2, wb, self.seg, ones_blk, self.b_lin)
        return logits_t.T                                  # (B, n_classes)

    def __call__(self, x, logits=True):
        out = self._fwd(self.tokenize(x))
        return out if logits else jax.nn.softmax(out, axis=-1)


# ----------------------------------- main ----------------------------------- #

if __name__ == "__main__":
    key = jax.random.PRNGKey(0)
    k_data, k_params = jax.random.split(key)

    abc = ["A", "C", "G", "T"]
    n_classes = 4
    emb_dim = 16          # small but consistent with the module (E//2, E//4 kernels)

    # Deterministic input strings (batch=2, lengths 64 and 50 — exercises the pad token).
    lengths = [64, 50]
    seqs = []
    for i, ln in enumerate(lengths):
        idx = jax.random.randint(jax.random.fold_in(k_data, i), (ln,), 0, len(abc))
        seqs.append("".join(abc[int(t)] for t in idx))

    model = GeneClassifierPallas(abc, n_classes, emb_dim=emb_dim, key=k_params)
    logits = model(seqs)                 # (2, n_classes)
    jax.block_until_ready(logits)
    assert logits.shape == (2, n_classes)
    assert bool(jnp.all(jnp.isfinite(logits)))
    print("KERNEL_OK")
</pallas_src>

<mosaic_0001>
module attributes {stable_mosaic.version = 11 : i64} {
  func.func @kernel(%arg0: memref<16x256xf32, #tpu.memory_space<vmem>>, %arg1: memref<16x128xbf16, #tpu.memory_space<vmem>>, %arg2: memref<16x128xbf16, #tpu.memory_space<vmem>>, %arg3: memref<16x4xf32, #tpu.memory_space<vmem>>, %arg4: memref<1x256xf32, #tpu.memory_space<vmem>>, %arg5: memref<16x256xf32, #tpu.memory_space<vmem>>) attributes {dimension_semantics = [], scalar_prefetch = 0 : i64, scratch_operands = 0 : i64, tpu.core_type = #tpu.core_type<tc>} {
    %c0 = arith.constant 0 : index
    %c0_0 = arith.constant 0 : index
    %0 = vector.load %arg0[%c0, %c0_0] : memref<16x256xf32, #tpu.memory_space<vmem>>, vector<16x256xf32>
    %c0_1 = arith.constant 0 : index
    %c0_2 = arith.constant 0 : index
    %1 = vector.load %arg4[%c0_1, %c0_2] : memref<1x256xf32, #tpu.memory_space<vmem>>, vector<1x256xf32>
    %c0_3 = arith.constant 0 : index
    %c0_4 = arith.constant 0 : index
    %2 = vector.load %arg3[%c0_3, %c0_4] : memref<16x4xf32, #tpu.memory_space<vmem>>, vector<16x4xf32>
    %c0_5 = arith.constant 0 : index
    %c0_6 = arith.constant 0 : index
    %3 = vector.load %arg1[%c0_5, %c0_6] : memref<16x128xbf16, #tpu.memory_space<vmem>>, vector<16x128xbf16>
    %4 = vector.extract_strided_slice %2 {offsets = [0, 0], sizes = [16, 1], strides = [1, 1]} : vector<16x4xf32> to vector<16x1xf32>
    %5 = vector.extract_strided_slice %2 {offsets = [0, 1], sizes = [16, 1], strides = [1, 1]} : vector<16x4xf32> to vector<16x1xf32>
    %c3_i32 = arith.constant 3 : i32
    %6 = tpu.dynamic_rotate %0 by %c3_i32 dim 1 : vector<16x256xf32>, i32 -> vector<16x256xf32>
    %c2_i32 = arith.constant 2 : i32
    %7 = tpu.dynamic_rotate %0 by %c2_i32 dim 1 : vector<16x256xf32>, i32 -> vector<16x256xf32>
    %c1_i32 = arith.constant 1 : i32
    %8 = tpu.dynamic_rotate %0 by %c1_i32 dim 1 : vector<16x256xf32>, i32 -> vector<16x256xf32>
    %c255_i32 = arith.constant 255 : i32
    %9 = tpu.dynamic_rotate %0 by %c255_i32 dim 1 : vector<16x256xf32>, i32 -> vector<16x256xf32>
    %c254_i32 = arith.constant 254 : i32
    %10 = tpu.dynamic_rotate %0 by %c254_i32 dim 1 : vector<16x256xf32>, i32 -> vector<16x256xf32>
    %c253_i32 = arith.constant 253 : i32
    %11 = tpu.dynamic_rotate %0 by %c253_i32 dim 1 : vector<16x256xf32>, i32 -> vector<16x256xf32>
    %c252_i32 = arith.constant 252 : i32
    %12 = tpu.dynamic_rotate %0 by %c252_i32 dim 1 : vector<16x256xf32>, i32 -> vector<16x256xf32>
    %13 = tpu.concatenate %6, %7, %8, %0, %9, %10, %11, %12 in 0 : vector<16x256xf32>, vector<16x256xf32>, vector<16x256xf32>, vector<16x256xf32>, vector<16x256xf32>, vector<16x256xf32>, vector<16x256xf32>, vector<16x256xf32> -> vector<128x256xf32>
    %14 = arith.truncf %13 : vector<128x256xf32> to vector<128x256xbf16>
    %cst = arith.constant dense<0.000000e+00> : vector<16x256xf32>
    %15 = tpu.matmul %3, %14, %cst {dimension_numbers = #tpu.dot_dimension_numbers<[1], [0], [0], [1], [0, 0, 1, 1], [], []>} : vector<16x128xbf16>, vector<128x256xbf16>, vector<16x256xf32> -> vector<16x256xf32>
    %16 = vector.broadcast %1 : vector<1x256xf32> to vector<16x256xf32>
    %17 = arith.mulf %15, %16 : vector<16x256xf32>
    %cst_7 = arith.constant dense<0.000000e+00> : vector<16xf32>
    %18 = vector.multi_reduction <add>, %17, %cst_7 [1] : vector<16x256xf32> to vector<16xf32>
    %19 = vector.shape_cast %18 : vector<16xf32> to vector<16x1xf32>
    %20 = arith.mulf %17, %17 : vector<16x256xf32>
    %cst_8 = arith.constant dense<0.000000e+00> : vector<16xf32>
    %21 = vector.multi_reduction <add>, %20, %cst_8 [1] : vector<16x256xf32> to vector<16xf32>
    %22 = vector.shape_cast %21 : vector<16xf32> to vector<16x1xf32>
    %cst_9 = arith.constant 7.812500e-03 : f32
    %23 = vector.broadcast %cst_9 : f32 to vector<16x1xf32>
    %24 = arith.mulf %19, %23 : vector<16x1xf32>
    %cst_10 = arith.constant 7.812500e-03 : f32
    %25 = vector.broadcast %cst_10 : f32 to vector<16x1xf32>
    %26 = arith.mulf %22, %25 : vector<16x1xf32>
    %27 = arith.mulf %24, %24 : vector<16x1xf32>
    %28 = arith.subf %26, %27 : vector<16x1xf32>
    %cst_11 = arith.constant 9.99999974E-6 : f32
    %29 = vector.broadcast %cst_11 : f32 to vector<16x1xf32>
    %30 = arith.addf %28, %29 : vector<16x1xf32>
    %31 = math.rsqrt %30 : vector<16x1xf32>
    %32 = arith.mulf %4, %31 : vector<16x1xf32>
    %33 = arith.mulf %24, %32 : vector<16x1xf32>
    %34 = arith.subf %5, %33 : vector<16x1xf32>
    %35 = vector.broadcast %32 : vector<16x1xf32> to vector<16x256xf32>
    %36 = arith.mulf %17, %35 : vector<16x256xf32>
    %37 = vector.broadcast %34 : vector<16x1xf32> to vector<16x256xf32>
    %38 = arith.addf %36, %37 : vector<16x256xf32>
    %cst_12 = arith.constant 0.000000e+00 : f32
    %39 = vector.broadcast %cst_12 : f32 to vector<16x256xf32>
    %40 = arith.maximumf %38, %39 : vector<16x256xf32>
    %41 = vector.broadcast %1 : vector<1x256xf32> to vector<16x256xf32>
    %42 = arith.mulf %40, %41 : vector<16x256xf32>
    %c0_13 = arith.constant 0 : index
    %c0_14 = arith.constant 0 : index
    %43 = vector.load %arg2[%c0_13, %c0_14] : memref<16x128xbf16, #tpu.memory_space<vmem>>, vector<16x128xbf16>
    %44 = vector.extract_strided_slice %2 {offsets = [0, 2], sizes = [16, 1], strides = [1, 1]} : vector<16x4xf32> to vector<16x1xf32>
    %45 = vector.extract_strided_slice %2 {offsets = [0, 3], sizes = [16, 1], strides = [1, 1]} : vector<16x4xf32> to vector<16x1xf32>
    %c3_i32_15 = arith.constant 3 : i32
    %46 = tpu.dynamic_rotate %42 by %c3_i32_15 dim 1 : vector<16x256xf32>, i32 -> vector<16x256xf32>
    %c2_i32_16 = arith.constant 2 : i32
    %47 = tpu.dynamic_rotate %42 by %c2_i32_16 dim 1 : vector<16x256xf32>, i32 -> vector<16x256xf32>
    %c1_i32_17 = arith.constant 1 : i32
    %48 = tpu.dynamic_rotate %42 by %c1_i32_17 dim 1 : vector<16x256xf32>, i32 -> vector<16x256xf32>
    %c255_i32_18 = arith.constant 255 : i32
    %49 = tpu.dynamic_rotate %42 by %c255_i32_18 dim 1 : vector<16x256xf32>, i32 -> vector<16x256xf32>
    %c254_i32_19 = arith.constant 254 : i32
    %50 = tpu.dynamic_rotate %42 by %c254_i32_19 dim 1 : vector<16x256xf32>, i32 -> vector<16x256xf32>
    %c253_i32_20 = arith.constant 253 : i32
    %51 = tpu.dynamic_rotate %42 by %c253_i32_20 dim 1 : vector<16x256xf32>, i32 -> vector<16x256xf32>
    %c252_i32_21 = arith.constant 252 : i32
    %52 = tpu.dynamic_rotate %42 by %c252_i32_21 dim 1 : vector<16x256xf32>, i32 -> vector<16x256xf32>
    %53 = tpu.concatenate %46, %47, %48, %42, %49, %50, %51, %52 in 0 : vector<16x256xf32>, vector<16x256xf32>, vector<16x256xf32>, vector<16x256xf32>, vector<16x256xf32>, vector<16x256xf32>, vector<16x256xf32>, vector<16x256xf32> -> vector<128x256xf32>
    %54 = arith.truncf %53 : vector<128x256xf32> to vector<128x256xbf16>
    %cst_22 = arith.constant dense<0.000000e+00> : vector<16x256xf32>
    %55 = tpu.matmul %43, %54, %cst_22 {dimension_numbers = #tpu.dot_dimension_numbers<[1], [0], [0], [1], [0, 0, 1, 1], [], []>} : vector<16x128xbf16>, vector<128x256xbf16>, vector<16x256xf32> -> vector<16x256xf32>
    %56 = vector.broadcast %1 : vector<1x256xf32> to vector<16x256xf32>
    %57 = arith.mulf %55, %56 : vector<16x256xf32>
    %cst_23 = arith.constant dense<0.000000e+00> : vector<16xf32>
    %58 = vector.multi_reduction <add>, %57, %cst_23 [1] : vector<16x256xf32> to vector<16xf32>
    %59 = vector.shape_cast %58 : vector<16xf32> to vector<16x1xf32>
    %60 = arith.mulf %57, %57 : vector<16x256xf32>
    %cst_24 = arith.constant dense<0.000000e+00> : vector<16xf32>
    %61 = vector.multi_reduction <add>, %60, %cst_24 [1] : vector<16x256xf32> to vector<16xf32>
    %62 = vector.shape_cast %61 : vector<16xf32> to vector<16x1xf32>
    %cst_25 = arith.constant 7.812500e-03 : f32
    %63 = vector.broadcast %cst_25 : f32 to vector<16x1xf32>
    %64 = arith.mulf %59, %63 : vector<16x1xf32>
    %cst_26 = arith.constant 7.812500e-03 : f32
    %65 = vector.broadcast %cst_26 : f32 to vector<16x1xf32>
    %66 = arith.mulf %62, %65 : vector<16x1xf32>
    %67 = arith.mulf %64, %64 : vector<16x1xf32>
    %68 = arith.subf %66, %67 : vector<16x1xf32>
    %cst_27 = arith.constant 9.99999974E-6 : f32
    %69 = vector.broadcast %cst_27 : f32 to vector<16x1xf32>
    %70 = arith.addf %68, %69 : vector<16x1xf32>
    %71 = math.rsqrt %70 : vector<16x1xf32>
    %72 = arith.mulf %44, %71 : vector<16x1xf32>
    %73 = arith.mulf %64, %72 : vector<16x1xf32>
    %74 = arith.subf %45, %73 : vector<16x1xf32>
    %75 = vector.broadcast %72 : vector<16x1xf32> to vector<16x256xf32>
    %76 = arith.mulf %57, %75 : vector<16x256xf32>
    %77 = vector.broadcast %74 : vector<16x1xf32> to vector<16x256xf32>
    %78 = arith.addf %76, %77 : vector<16x256xf32>
    %cst_28 = arith.constant 0.000000e+00 : f32
    %79 = vector.broadcast %cst_28 : f32 to vector<16x256xf32>
    %80 = arith.maximumf %78, %79 : vector<16x256xf32>
    %81 = vector.broadcast %1 : vector<1x256xf32> to vector<16x256xf32>
    %82 = arith.mulf %80, %81 : vector<16x256xf32>
    %c0_29 = arith.constant 0 : index
    %c0_30 = arith.constant 0 : index
    %83 = vector.load %arg5[%c0_29, %c0_30] : memref<16x256xf32, #tpu.memory_space<vmem>>, vector<16x256xf32>
    tpu.vector_store %arg5[%c0_29, %c0_30], %82 {strides = array<i32>} : memref<16x256xf32, #tpu.memory_space<vmem>>, vector<16x256xf32>,
    return
  }
}

module attributes {stable_mosaic.version = 11 : i64} {
  func.func @kernel(%arg0: memref<8x512xf32, #tpu.memory_space<vmem>>, %arg1: memref<16x64xbf16, #tpu.memory_space<vmem>>, %arg2: memref<32x256xbf16, #tpu.memory_space<vmem>>, %arg3: memref<16x2xf32, #tpu.memory_space<vmem>>, %arg4: memref<32x2xf32, #tpu.memory_space<vmem>>, %arg5: memref<1x512xf32, #tpu.memory_space<vmem>>, %arg6: memref<1x512xf32, #tpu.memory_space<vmem>>, %arg7: memref<128x512xf32, #tpu.memory_space<vmem>>, %arg8: memref<4x128xf32, #tpu.memory_space<vmem>>, %arg9: memref<512x2xf32, #tpu.memory_space<vmem>>, %arg10: memref<4x1xf32, #tpu.memory_space<vmem>>, %arg11: memref<4x2xf32, #tpu.memory_space<vmem>>) attributes {dimension_semantics = [], scalar_prefetch = 0 : i64, scratch_operands = 0 : i64, tpu.core_type = #tpu.core_type<tc>} {
    %c0 = arith.constant 0 : index
    %c0_0 = arith.constant 0 : index
    %0 = vector.load %arg5[%c0, %c0_0] : memref<1x512xf32, #tpu.memory_space<vmem>>, vector<1x512xf32>
    %c0_1 = arith.constant 0 : index
    %c0_2 = arith.constant 0 : index
    %1 = vector.load %arg6[%c0_1, %c0_2] : memref<1x512xf32, #tpu.memory_space<vmem>>, vector<1x512xf32>
    %c0_3 = arith.constant 0 : index
    %c0_4 = arith.constant 0 : index
    %2 = vector.load %arg3[%c0_3, %c0_4] : memref<16x2xf32, #tpu.memory_space<vmem>>, vector<16x2xf32>
    %c0_5 = arith.constant 0 : index
    %c0_6 = arith.constant 0 : index
    %3 = vector.load %arg4[%c0_5, %c0_6] : memref<32x2xf32, #tpu.memory_space<vmem>>, vector<32x2xf32>
    %c0_7 = arith.constant 0 : index
    %c0_8 = arith.constant 0 : index
    %4 = vector.load %arg0[%c0_7, %c0_8] : memref<8x512xf32, #tpu.memory_space<vmem>>, vector<8x512xf32>
    %c496_i32 = arith.constant 496 : i32
    %5 = tpu.dynamic_rotate %4 by %c496_i32 dim 1 : vector<8x512xf32>, i32 -> vector<8x512xf32>
    %c480_i32 = arith.constant 480 : i32
    %6 = tpu.dynamic_rotate %4 by %c480_i32 dim 1 : vector<8x512xf32>, i32 -> vector<8x512xf32>
    %c464_i32 = arith.constant 464 : i32
    %7 = tpu.dynamic_rotate %4 by %c464_i32 dim 1 : vector<8x512xf32>, i32 -> vector<8x512xf32>
    %c448_i32 = arith.constant 448 : i32
    %8 = tpu.dynamic_rotate %4 by %c448_i32 dim 1 : vector<8x512xf32>, i32 -> vector<8x512xf32>
    %c432_i32 = arith.constant 432 : i32
    %9 = tpu.dynamic_rotate %4 by %c432_i32 dim 1 : vector<8x512xf32>, i32 -> vector<8x512xf32>
    %c416_i32 = arith.constant 416 : i32
    %10 = tpu.dynamic_rotate %4 by %c416_i32 dim 1 : vector<8x512xf32>, i32 -> vector<8x512xf32>
    %c400_i32 = arith.constant 400 : i32
    %11 = tpu.dynamic_rotate %4 by %c400_i32 dim 1 : vector<8x512xf32>, i32 -> vector<8x512xf32>
    %12 = tpu.concatenate %4, %5, %6, %7, %8, %9, %10, %11 in 0 : vector<8x512xf32>, vector<8x512xf32>, vector<8x512xf32>, vector<8x512xf32>, vector<8x512xf32>, vector<8x512xf32>, vector<8x512xf32>, vector<8x512xf32> -> vector<64x512xf32>
    %c0_9 = arith.constant 0 : index
    %c0_10 = arith.constant 0 : index
    %13 = vector.load %arg1[%c0_9, %c0_10] : memref<16x64xbf16, #tpu.memory_space<vmem>>, vector<16x64xbf16>
    %14 = arith.truncf %12 : vector<64x512xf32> to vector<64x512xbf16>
    %cst = arith.constant dense<0.000000e+00> : vector<16x512xf32>
    %15 = tpu.matmul %13, %14, %cst {dimension_numbers = #tpu.dot_dimension_numbers<[1], [0], [0], [1], [0, 0, 1, 1], [], []>} : vector<16x64xbf16>, vector<64x512xbf16>, vector<16x512xf32> -> vector<16x512xf32>
    %16 = vector.extract_strided_slice %2 {offsets = [0, 0], sizes = [16, 1], strides = [1, 1]} : vector<16x2xf32> to vector<16x1xf32>
    %17 = vector.extract_strided_slice %2 {offsets = [0, 1], sizes = [16, 1], strides = [1, 1]} : vector<16x2xf32> to vector<16x1xf32>
    %18 = vector.broadcast %0 : vector<1x512xf32> to vector<16x512xf32>
    %19 = arith.mulf %15, %18 : vector<16x512xf32>
    %cst_11 = arith.constant dense<0.000000e+00> : vector<16xf32>
    %20 = vector.multi_reduction <add>, %19, %cst_11 [1] : vector<16x512xf32> to vector<16xf32>
    %21 = vector.shape_cast %20 : vector<16xf32> to vector<16x1xf32>
    %22 = arith.mulf %19, %19 : vector<16x512xf32>
    %cst_12 = arith.constant dense<0.000000e+00> : vector<16xf32>
    %23 = vector.multi_reduction <add>, %22, %cst_12 [1] : vector<16x512xf32> to vector<16xf32>
    %24 = vector.shape_cast %23 : vector<16xf32> to vector<16x1xf32>
    %cst_13 = arith.constant 0.00617283955 : f32
    %25 = vector.broadcast %cst_13 : f32 to vector<16x1xf32>
    %26 = arith.mulf %21, %25 : vector<16x1xf32>
    %cst_14 = arith.constant 0.00617283955 : f32
    %27 = vector.broadcast %cst_14 : f32 to vector<16x1xf32>
    %28 = arith.mulf %24, %27 : vector<16x1xf32>
    %29 = arith.mulf %26, %26 : vector<16x1xf32>
    %30 = arith.subf %28, %29 : vector<16x1xf32>
    %cst_15 = arith.constant 9.99999974E-6 : f32
    %31 = vector.broadcast %cst_15 : f32 to vector<16x1xf32>
    %32 = arith.addf %30, %31 : vector<16x1xf32>
    %33 = math.rsqrt %32 : vector<16x1xf32>
    %34 = arith.mulf %16, %33 : vector<16x1xf32>
    %35 = arith.mulf %26, %34 : vector<16x1xf32>
    %36 = arith.subf %17, %35 : vector<16x1xf32>
    %37 = vector.broadcast %34 : vector<16x1xf32> to vector<16x512xf32>
    %38 = arith.mulf %19, %37 : vector<16x512xf32>
    %39 = vector.broadcast %36 : vector<16x1xf32> to vector<16x512xf32>
    %40 = arith.addf %38, %39 : vector<16x512xf32>
    %cst_16 = arith.constant 0.000000e+00 : f32
    %41 = vector.broadcast %cst_16 : f32 to vector<16x512xf32>
    %42 = arith.maximumf %40, %41 : vector<16x512xf32>
    %43 = vector.broadcast %0 : vector<1x512xf32> to vector<16x512xf32>
    %44 = arith.mulf %42, %43 : vector<16x512xf32>
    %c511_i32 = arith.constant 511 : i32
    %45 = tpu.dynamic_rotate %44 by %c511_i32 dim 1 : vector<16x512xf32>, i32 -> vector<16x512xf32>
    %c510_i32 = arith.constant 510 : i32
    %46 = tpu.dynamic_rotate %44 by %c510_i32 dim 1 : vector<16x512xf32>, i32 -> vector<16x512xf32>
    %c509_i32 = arith.constant 509 : i32
    %47 = tpu.dynamic_rotate %44 by %c509_i32 dim 1 : vector<16x512xf32>, i32 -> vector<16x512xf32>
    %48 = tpu.concatenate %44, %45, %46, %47 in 0 : vector<16x512xf32>, vector<16x512xf32>, vector<16x512xf32>, vector<16x512xf32> -> vector<64x512xf32>
    %c496_i32_17 = arith.constant 496 : i32
    %49 = tpu.dynamic_rotate %48 by %c496_i32_17 dim 1 : vector<64x512xf32>, i32 -> vector<64x512xf32>
    %c480_i32_18 = arith.constant 480 : i32
    %50 = tpu.dynamic_rotate %48 by %c480_i32_18 dim 1 : vector<64x512xf32>, i32 -> vector<64x512xf32>
    %c464_i32_19 = arith.constant 464 : i32
    %51 = tpu.dynamic_rotate %48 by %c464_i32_19 dim 1 : vector<64x512xf32>, i32 -> vector<64x512xf32>
    %52 = tpu.concatenate %48, %49, %50, %51 in 0 : vector<64x512xf32>, vector<64x512xf32>, vector<64x512xf32>, vector<64x512xf32> -> vector<256x512xf32>
    %c0_20 = arith.constant 0 : index
    %c0_21 = arith.constant 0 : index
    %53 = vector.load %arg2[%c0_20, %c0_21] : memref<32x256xbf16, #tpu.memory_space<vmem>>, vector<32x256xbf16>
    %54 = arith.truncf %52 : vector<256x512xf32> to vector<256x512xbf16>
    %cst_22 = arith.constant dense<0.000000e+00> : vector<32x512xf32>
    %55 = tpu.matmul %53, %54, %cst_22 {dimension_numbers = #tpu.dot_dimension_numbers<[1], [0], [0], [1], [0, 0, 1, 1], [], []>} : vector<32x256xbf16>, vector<256x512xbf16>, vector<32x512xf32> -> vector<32x512xf32>
    %56 = vector.extract_strided_slice %3 {offsets = [0, 0], sizes = [32, 1], strides = [1, 1]} : vector<32x2xf32> to vector<32x1xf32>
    %57 = vector.extract_strided_slice %3 {offsets = [0, 1], sizes = [32, 1], strides = [1, 1]} : vector<32x2xf32> to vector<32x1xf32>
    %58 = vector.broadcast %1 : vector<1x512xf32> to vector<32x512xf32>
    %59 = arith.mulf %55, %58 : vector<32x512xf32>
    %cst_23 = arith.constant dense<0.000000e+00> : vector<32xf32>
    %60 = vector.multi_reduction <add>, %59, %cst_23 [1] : vector<32x512xf32> to vector<32xf32>
    %61 = vector.shape_cast %60 : vector<32xf32> to vector<32x1xf32>
    %62 = arith.mulf %59, %59 : vector<32x512xf32>
    %cst_24 = arith.constant dense<0.000000e+00> : vector<32xf32>
    %63 = vector.multi_reduction <add>, %62, %cst_24 [1] : vector<32x512xf32> to vector<32xf32>
    %64 = vector.shape_cast %63 : vector<32xf32> to vector<32x1xf32>
    %cst_25 = arith.constant 0.013888889 : f32
    %65 = vector.broadcast %cst_25 : f32 to vector<32x1xf32>
    %66 = arith.mulf %61, %65 : vector<32x1xf32>
    %cst_26 = arith.constant 0.013888889 : f32
    %67 = vector.broadcast %cst_26 : f32 to vector<32x1xf32>
    %68 = arith.mulf %64, %67 : vector<32x1xf32>
    %69 = arith.mulf %66, %66 : vector<32x1xf32>
    %70 = arith.subf %68, %69 : vector<32x1xf32>
    %cst_27 = arith.constant 9.99999974E-6 : f32
    %71 = vector.broadcast %cst_27 : f32 to vector<32x1xf32>
    %72 = arith.addf %70, %71 : vector<32x1xf32>
    %73 = math.rsqrt %72 : vector<32x1xf32>
    %74 = arith.mulf %56, %73 : vector<32x1xf32>
    %75 = arith.mulf %66, %74 : vector<32x1xf32>
    %76 = arith.subf %57, %75 : vector<32x1xf32>
    %77 = vector.broadcast %74 : vector<32x1xf32> to vector<32x512xf32>
    %78 = arith.mulf %59, %77 : vector<32x512xf32>
    %79 = vector.broadcast %76 : vector<32x1xf32> to vector<32x512xf32>
    %80 = arith.addf %78, %79 : vector<32x512xf32>
    %cst_28 = arith.constant 0.000000e+00 : f32
    %81 = vector.broadcast %cst_28 : f32 to vector<32x512xf32>
    %82 = arith.maximumf %80, %81 : vector<32x512xf32>
    %83 = vector.broadcast %1 : vector<1x512xf32> to vector<32x512xf32>
    %84 = arith.mulf %82, %83 : vector<32x512xf32>
    %85 = tpu.concatenate %84, %84, %84, %84 in 0 : vector<32x512xf32>, vector<32x512xf32>, vector<32x512xf32>, vector<32x512xf32> -> vector<128x512xf32>
    %c0_29 = arith.constant 0 : index
    %c0_30 = arith.constant 0 : index
    %86 = vector.load %arg7[%c0_29, %c0_30] : memref<128x512xf32, #tpu.memory_space<vmem>>, vector<128x512xf32>
    %87 = arith.mulf %86, %85 : vector<128x512xf32>
    %c0_31 = arith.constant 0 : index
    %c0_32 = arith.constant 0 : index
    %88 = vector.load %arg8[%c0_31, %c0_32] : memref<4x128xf32, #tpu.memory_space<vmem>>, vector<4x128xf32>
    %cst_33 = arith.constant dense<0.000000e+00> : vector<4x512xf32>
    %89 = tpu.matmul %88, %87, %cst_33 {dimension_numbers = #tpu.dot_dimension_numbers<[1], [0], [0], [1], [0, 0, 1, 1], [], []>} : vector<4x128xf32>, vector<128x512xf32>, vector<4x512xf32> -> vector<4x512xf32>
    %c0_34 = arith.constant 0 : index
    %c0_35 = arith.constant 0 : index
    %90 = vector.load %arg9[%c0_34, %c0_35] : memref<512x2xf32, #tpu.memory_space<vmem>>, vector<512x2xf32>
    %cst_36 = arith.constant dense<0.000000e+00> : vector<4x2xf32>
    %91 = tpu.matmul %89, %90, %cst_36 {dimension_numbers = #tpu.dot_dimension_numbers<[1], [0], [0], [1], [0, 0, 1, 1], [], []>} : vector<4x512xf32>, vector<512x2xf32>, vector<4x2xf32> -> vector<4x2xf32>
    %c0_37 = arith.constant 0 : index
    %c0_38 = arith.constant 0 : index
    %92 = vector.load %arg10[%c0_37, %c0_38] : memref<4x1xf32, #tpu.memory_space<vmem>>, vector<4x1xf32>
    %93 = vector.broadcast %92 : vector<4x1xf32> to vector<4x2xf32>
    %94 = arith.addf %91, %93 : vector<4x2xf32>
    %c0_39 = arith.constant 0 : index
    %c0_40 = arith.constant 0 : index
    %95 = vector.load %arg11[%c0_39, %c0_40] : memref<4x2xf32, #tpu.memory_space<vmem>>, vector<4x2xf32>
    tpu.vector_store %arg11[%c0_39, %c0_40], %94 {strides = array<i32>} : memref<4x2xf32, #tpu.memory_space<vmem>>, vector<4x2xf32>,
    return
  }
}

</mosaic_0001>

<llo_original>
// kernel: tile.22
$region0: #{tile.22}
  #allocation0 [shape = 's32[1]{0}', space=sflag, size = 0x4, scoped, tag = 'scoped memory for tile.22']
  %s0 = inlined_call_operand.vmem [shape: f32[128], index: 0, kind: input, shape index: {}]
  %s1 = inlined_call_operand.vmem [shape: f32[2,128], index: 1, kind: output, shape index: {}]
  // Predicated region
  $region2: #{tile.22} parent=0 // pred_check
    _
  $region3: #{tile.22} parent=0 // pred_check_branch
    %3 = sbr.rel (0) target = $region5
  $region4: #{tile.22} parent=0 // pred_region
    _
  $region5: #{tile.22} parent=0 // pred_fallthru
    _
  %v4 = vld [vmem:[%s0] ss:$0 sm:$0xff]
  %5 = vst [vmem:[%s1] sm:$0x3] %v4

// kernel: custom-call.31
$region0: #{custom-call.31}
  %s0 = inlined_call_operand.vmem [shape: f32[2,64,16], index: 0, kind: input, shape index: {}]
  %s1 = inlined_call_operand.vmem [shape: f32[2,64,16], index: 1, kind: output, shape index: {0}]
  %s2 = inlined_call_operand.hbm [shape: f32[2,16], index: 2, kind: output, shape index: {1}]
  %3 = xla_tuple %s1, %s2
  $region1: #{custom-call.31} parent=0
    #allocation0 [shape = 'u8[65536]{0}', space=vmem, size = 0x10000, scoped, tag = 'operand span for operand 0']
    #allocation1 [shape = 'u8[65536]{0}', space=vmem, size = 0x10000, scoped, tag = 'operand span for operand 1']
    #allocation2 [shape = 'u8[4096]{0}', space=vmem, size = 0x1000, scoped, tag = 'operand span for operand 2']
    #allocation3 [shape = 'u8[2048]{0}', space=vmem, size = 0x800, scoped, tag = 'packed  for operand 2']
    #allocation4 [shape = 's32[2]{0}', space=sflag, size = 0x8, scoped, tag = 'scoped memory for custom-call.31']
    %4 = vsyncpa [#allocation4], 0
    %s5 = scalar_lea.sflag [#allocation4], 1
    %6 = vsyncpa %s5, 0
    loop: start=0, step=1, limit=4
    $region2: #{custom-call.31} parent=1 // loop_pre_header
      _
    $region3: #{custom-call.31} parent=1 // loop_header
      %s8 = sphi 0, %s12
      %p9 = scmp.ge.s32.totalorder %s8, 4
      %s15 = sphi 0, %s34
      %s16 = sphi 0, %s30
      %s17 = sphi 0, %s26
      %s18 = sphi 0, %s15
      %s19 = sphi 0, %s16
      %s20 = sphi 0, %s17
      %s21 = sphi 0, %s18
      %s22 = sphi 0, %s19
      %s23 = sphi 0, %s20
      %s49 = sphi 0, %s51
      %s52 = sphi 0, %s49
      %s53 = sphi 0, %s52
      %s69 = sphi 0, %s53
    $region4: #{custom-call.31} parent=1 // loop_header_branch
      %11 = sbr.rel (%p9) target = $region8
    $region5: #{custom-call.31} parent=1 // loop_body
      %s13 = ssub.s32 %s8, 1
      %s14 = ssub.s32 %s8, 2
      %s24 = sadd.s32 1, %s17
      %p25 = scmp.ge.s32.totalorder %s24, 1
      %s26 = scalar_select %p25, 0, %s24
      %s27 = sadd.s32 1, %s16
      %s28 = scalar_select %p25, %s27, %s16
      %p29 = scmp.ge.s32.totalorder %s28, 1
      %s30 = scalar_select %p29, 0, %s28
      %s31 = sadd.s32 1, %s15
      %s32 = scalar_select %p29, %s31, %s15
      %p33 = scmp.ge.s32.totalorder %s32, 2
      %s34 = scalar_select %p33, 0, %s32
      %p35 = scmp.lt.s32.totalorder %s15, 0
      %s36 = ssub.s32 0, %s15
      %s37 = scalar_select %p35, %s36, %s15
      %s38 = sshrl.u32 %s37, 3
      %s39 = ssub.s32 0, %s38
      %s40 = scalar_select %p35, %s39, %s38
      %p41 = scmp.lt.s32.totalorder %s34, 0
      %s42 = ssub.s32 0, %s34
      %s43 = scalar_select %p41, %s42, %s34
      %s44 = sshrl.u32 %s43, 3
      %s45 = ssub.s32 0, %s44
      %s46 = scalar_select %p41, %s45, %s44
      %s47 = ssub.s32 %s40, %s46
      %p48 = scmp.eq.s32.totalorder %s47, 0
      %s50 = sadd.s32 %s49, 1
      %s51 = scalar_select %p48, %s49, %s50
      %p54 = pneg %p48
      %p55 = scmp.eq.s32.totalorder %s8, 1
      %p56 = por %p54, %p55
      %p57 = scmp.ne.s32.totalorder %s49, %s52
      %p58 = scmp.eq.s32.totalorder %s8, 0
      %p59 = por %p57, %p58
      %p60 = scmp.ne.s32.totalorder %s49, %s52
      %p61 = scmp.eq.s32.totalorder %s13, 1
      %p62 = por %p60, %p61
      %p63 = scmp.ne.s32.totalorder %s52, %s53
      %p64 = scmp.eq.s32.totalorder %s13, 0
      %p65 = por %p63, %p64
      %p66 = scmp.ne.s32.totalorder %s52, %s53
      %p67 = scmp.eq.s32.totalorder %s14, 1
      %p68 = por %p66, %p67
      %p70 = scmp.ne.s32.totalorder %s53, %s69
      %p71 = scmp.eq.s32.totalorder %s14, 0
      %p72 = por %p70, %p71
      %p73 = scmp.le.s32.totalorder 1, %s8
      %p74 = scmp.lt.s32.totalorder %s8, 3
      %p75 = pnand %p73, %p74
      %p76 = pneg %p75
      // Predicated region
      $region9: #{custom-call.31} parent=5 // pred_check
        _
      $region10: #{custom-call.31} parent=5 // pred_check_branch
        %78 = sbr.rel (%p75) target = $region12
      $region11: #{custom-call.31} parent=5 // pred_region
        %s79 = ssub.s32 %s8, 1
      $region12: #{custom-call.31} parent=5 // pred_fallthru
        _
      %p80 = scmp.lt.s32.totalorder %s8, 2
      // Predicated region
      $region13: #{custom-call.31} parent=5 // pred_check
        %p81 = pneg %p80
      $region14: #{custom-call.31} parent=5 // pred_check_branch
        %83 = sbr.rel (%p81) target = $region16
      $region15: #{custom-call.31} parent=5 // pred_region
        %s84 = sand.u32 %s8, 1
        %s85 = sand.u32 %s8, 1
        %s86 = smul.addr %s85, 64
        %s87 = scalar_lea.vmem [#allocation0], %s86
        %s88 = smul.u32 8, %s16
        %s89 = sadd.s32 %s17, %s88
        %s90 = smul.addr %s15, 8
        %s91 = sadd.s32 %s89, %s90
        %s92 = smul.addr %s91, 8
        %s93 = scalar_lea.vmem %s0, %s92
        // Predicated region
        $region17: #{custom-call.31} parent=15 // pred_check
          _
        $region18: #{custom-call.31} parent=15 // pred_check_branch
          %95 = sbr.rel (0) target = $region20
        $region19: #{custom-call.31} parent=15 // pred_region
          // Predicated region
          $region21: #{custom-call.31} parent=19 // pred_check
            _
          $region22: #{custom-call.31} parent=19 // pred_check_branch
            %97 = sbr.rel (0) target = $region24
          $region23: #{custom-call.31} parent=19 // pred_region
            // Predicated region
            $region36: #{custom-call.31} parent=23 // pred_check
              _
            $region37: #{custom-call.31} parent=23 // pred_check_branch
              %127 = sbr.rel (0) target = $region39
            $region38: #{custom-call.31} parent=23 // pred_region
              loop: start=0, step=1, limit=1
              $region40: #{custom-call.31} parent=38 // loop_pre_header
                _
              $region41: #{custom-call.31} parent=38 // loop_header
                %s129 = sphi 0, %s133
                %p130 = scmp.ge.s32.totalorder %s129, 1
                %s134 = sphi %s93, %s93
                %s135 = sphi %s87, %s87
              $region42: #{custom-call.31} parent=38 // loop_header_branch
                %132 = sbr.rel (%p130) target = $region46
              $region43: #{custom-call.31} parent=38 // loop_body
                %v136 = vld [vmem:[%s134] sm:$0xff]
                %137 = vst [vmem:[%s135] sm:$0xff] %v136
                %v138 = vld [vmem:[%s134 + $0x8] sm:$0xff]
                %139 = vst [vmem:[%s135 + $0x8] sm:$0xff] %v138
                %v140 = vld [vmem:[%s134 + $0x10] sm:$0xff]
                %141 = vst [vmem:[%s135 + $0x10] sm:$0xff] %v140
                %v142 = vld [vmem:[%s134 + $0x18] sm:$0xff]
                %143 = vst [vmem:[%s135 + $0x18] sm:$0xff] %v142
                %v144 = vld [vmem:[%s134 + $0x20] sm:$0xff]
                %145 = vst [vmem:[%s135 + $0x20] sm:$0xff] %v144
                %v146 = vld [vmem:[%s134 + $0x28] sm:$0xff]
                %147 = vst [vmem:[%s135 + $0x28] sm:$0xff] %v146
                %v148 = vld [vmem:[%s134 + $0x30] sm:$0xff]
                %149 = vst [vmem:[%s135 + $0x30] sm:$0xff] %v148
                %v150 = vld [vmem:[%s134 + $0x38] sm:$0xff]
                %151 = vst [vmem:[%s135 + $0x38] sm:$0xff] %v150
              $region44: #{custom-call.31} parent=38 // loop_footer
                %s133 = sadd.s32 1, %s129
              $region45: #{custom-call.31} parent=38 // loop_footer_branch
                %128 = sbr.rel target = $region41
              $region46: #{custom-call.31} parent=38 // loop_exit
                _
            $region39: #{custom-call.31} parent=23 // pred_fallthru
              _
            // Predicated region
            $region47: #{custom-call.31} parent=23 // pred_check
              _
            $region48: #{custom-call.31} parent=23 // pred_check_branch
              %153 = sbr.rel target = $region50
            $region49: #{custom-call.31} parent=23 // pred_region
              _
            $region50: #{custom-call.31} parent=23 // pred_fallthru
              _
          $region24: #{custom-call.31} parent=19 // pred_fallthru
            _
          // Predicated region
          $region25: #{custom-call.31} parent=19 // pred_check
            _
          $region26: #{custom-call.31} parent=19 // pred_check_branch
            %99 = sbr.rel target = $region28
          $region27: #{custom-call.31} parent=19 // pred_region
            %s101 = ssub.s32 256, 1
            loop: start=0, step=1, limit=1
            $region29: #{custom-call.31} parent=27 // loop_pre_header
              _
            $region30: #{custom-call.31} parent=27 // loop_header
              %s103 = sphi 0, %s107
              %p104 = scmp.ge.s32.totalorder %s103, 1
              %s108 = sphi %s93, %s93
              %s109 = sphi %s87, %s87
            $region31: #{custom-call.31} parent=27 // loop_header_branch
              %106 = sbr.rel (%p104) target = $region35
            $region32: #{custom-call.31} parent=27 // loop_body
              %v110 = vld [vmem:[%s108] sm:%s101]
              %111 = vst [vmem:[%s109] sm:%s101] %v110
              %v112 = vld [vmem:[%s108 + $0x8] sm:%s101]
              %113 = vst [vmem:[%s109 + $0x8] sm:%s101] %v112
              %v114 = vld [vmem:[%s108 + $0x10] sm:%s101]
              %115 = vst [vmem:[%s109 + $0x10] sm:%s101] %v114
              %v116 = vld [vmem:[%s108 + $0x18] sm:%s101]
              %117 = vst [vmem:[%s109 + $0x18] sm:%s101] %v116
              %v118 = vld [vmem:[%s108 + $0x20] sm:%s101]
              %119 = vst [vmem:[%s109 + $0x20] sm:%s101] %v118
              %v120 = vld [vmem:[%s108 + $0x28] sm:%s101]
              %121 = vst [vmem:[%s109 + $0x28] sm:%s101] %v120
              %v122 = vld [vmem:[%s108 + $0x30] sm:%s101]
              %123 = vst [vmem:[%s109 + $0x30] sm:%s101] %v122
              %v124 = vld [vmem:[%s108 + $0x38] sm:%s101]
              %125 = vst [vmem:[%s109 + $0x38] sm:%s101] %v124
            $region33: #{custom-call.31} parent=27 // loop_footer
              %s107 = sadd.s32 1, %s103
            $region34: #{custom-call.31} parent=27 // loop_footer_branch
              %102 = sbr.rel target = $region30
            $region35: #{custom-call.31} parent=27 // loop_exit
              _
          $region28: #{custom-call.31} parent=19 // pred_fallthru
            _
        $region20: #{custom-call.31} parent=15 // pred_fallthru
          _
        %154 = vnop
      $region16: #{custom-call.31} parent=5 // pred_fallthru
        _
      %p155 = scmp.le.s32.totalorder 1, %s8
      %p156 = scmp.lt.s32.totalorder %s8, 3
      %p157 = pnand %p155, %p156
      %p158 = pneg %p157
      // Predicated region
      $region51: #{custom-call.31} parent=5 // pred_check
        _
      $region52: #{custom-call.31} parent=5 // pred_check_branch
        %160 = sbr.rel (%p157) target = $region54
      $region53: #{custom-call.31} parent=5 // pred_region
        #allocation5 [shape = 'f32[64,128]{1,0}', space=vmem, size = 0x8000, scoped, tag = 'scratch for Householder reflectors']
        %s161 = ssub.s32 %s8, 1
        %s162 = sand.u32 %s13, 1
        %s163 = sand.u32 %s13, 1
        %s164 = smul.addr %s163, 64
        %s165 = scalar_lea.vmem [#allocation0], %s164
        %s166 = sand.u32 %s13, 1
        %s167 = sand.u32 %s13, 1
        %s168 = smul.addr %s167, 64
        %s169 = scalar_lea.vmem [#allocation0], %s168
        %s170 = sand.u32 %s13, 1
        %s171 = sand.u32 %s13, 1
        %s172 = smul.addr %s171, 64
        %s173 = scalar_lea.vmem [#allocation1], %s172
        %p174 = pneg %p65
        %p175 = pneg %p62
        %s176 = sand.u32 %s52, 1
        %s177 = scalar_lea.sflag [#allocation4], %s176
        %s178 = sand.u32 %s52, 1
        %s179 = smul.addr %s178, 2
        %s180 = scalar_lea.vmem [#allocation3], %s179
        %s181 = smul.u32 8, %s19
        %s182 = smul.u32 8, %s19
        %p183 = scmp.lt.s32.totalorder %s18, 0
        %s184 = ssub.s32 0, %s18
        %s185 = scalar_select %p183, %s184, %s18
        %s186 = sshrl.u32 %s185, 3
        %s187 = ssub.s32 0, %s186
        %s188 = scalar_select %p183, %s187, %s186
        %s189 = sand.u32 %s18, 7
        %s190 = scalar_lea.vmem [#allocation2], %s189
        %v191 = vld [vmem:[%s165] sm:$0xff]
        %192 = vst [vmem:[%s173] sm:$0xff] %v191
        %s193 = scalar_lea.vmem %s173, 8 [#allocation1]
        %s194 = scalar_lea.vmem %s165, 8 [#allocation0]
        %v195 = vld [vmem:[%s194] sm:$0xff]
        %196 = vst [vmem:[%s193] sm:$0xff] %v195
        %s197 = scalar_lea.vmem %s173, 16 [#allocation1]
        %s198 = scalar_lea.vmem %s165, 16 [#allocation0]
        %v199 = vld [vmem:[%s198] sm:$0xff]
        %200 = vst [vmem:[%s197] sm:$0xff] %v199
        %s201 = scalar_lea.vmem %s173, 24 [#allocation1]
        %s202 = scalar_lea.vmem %s165, 24 [#allocation0]
        %v203 = vld [vmem:[%s202] sm:$0xff]
        %204 = vst [vmem:[%s201] sm:$0xff] %v203
        %s205 = scalar_lea.vmem %s173, 32 [#allocation1]
        %s206 = scalar_lea.vmem %s165, 32 [#allocation0]
        %v207 = vld [vmem:[%s206] sm:$0xff]
        %208 = vst [vmem:[%s205] sm:$0xff] %v207
        %s209 = scalar_lea.vmem %s173, 40 [#allocation1]
        %s210 = scalar_lea.vmem %s165, 40 [#allocation0]
        %v211 = vld [vmem:[%s210] sm:$0xff]
        %212 = vst [vmem:[%s209] sm:$0xff] %v211
        %s213 = scalar_lea.vmem %s173, 48 [#allocation1]
        %s214 = scalar_lea.vmem %s165, 48 [#allocation0]
        %v215 = vld [vmem:[%s214] sm:$0xff]
        %216 = vst [vmem:[%s213] sm:$0xff] %v215
        %s217 = scalar_lea.vmem %s173, 56 [#allocation1]
        %s218 = scalar_lea.vmem %s165, 56 [#allocation0]
        %v219 = vld [vmem:[%s218] sm:$0xff]
        %220 = vst [vmem:[%s217] sm:$0xff] %v219
        %221 = vst [vmem:[%s190] sm:$0x1] 0.0
        loop: start=0, step=1, limit=16
        $region55: #{custom-call.31} parent=53 // loop_pre_header
          _
        $region56: #{custom-call.31} parent=53 // loop_header
          %s223 = sphi 0, %s227
          %p224 = scmp.ge.s32.totalorder %s223, 16
        $region57: #{custom-call.31} parent=53 // loop_header_branch
          %226 = sbr.rel (%p224) target = $region61
        $region58: #{custom-call.31} parent=53 // loop_body
          %v228 = vld [vmem:[%s173] sm:$0xff]
          %v229 = vlaneseq
          %v230 = vshrl.u32 %v229, 7
          %v232 = vstv %s223
          %vm233 = vcmp.gt.s32.totalorder %v230, %v232
          %v234 = vsel %vm233, %v228, 0.0
          %v235 = vmul.f32 %v234, %v234
          %s236 = scalar_lea.vmem %s173, 8 [#allocation1]
          %v237 = vld [vmem:[%s236] sm:$0xff]
          %v238 = vlaneseq
          %v239 = vshrl.u32 %v238, 7
          %v240 = vadd.s32 %v239, 8
          %v241 = vstv %s223
          %vm242 = vcmp.gt.s32.totalorder %v240, %v241
          %v243 = vsel %vm242, %v237, 0.0
          %v244 = vmul.f32 %v243, %v243
          %v245 = vadd.f32 %v235, %v244
          %s246 = scalar_lea.vmem %s173, 16 [#allocation1]
          %v247 = vld [vmem:[%s246] sm:$0xff]
          %v248 = vlaneseq
          %v249 = vshrl.u32 %v248, 7
          %v250 = vadd.s32 %v249, 16
          %v251 = vstv %s223
          %vm252 = vcmp.gt.s32.totalorder %v250, %v251
          %v253 = vsel %vm252, %v247, 0.0
          %v254 = vmul.f32 %v253, %v253
          %v255 = vadd.f32 %v245, %v254
          %s256 = scalar_lea.vmem %s173, 24 [#allocation1]
          %v257 = vld [vmem:[%s256] sm:$0xff]
          %v258 = vlaneseq
          %v259 = vshrl.u32 %v258, 7
          %v260 = vadd.s32 %v259, 24
          %v261 = vstv %s223
          %vm262 = vcmp.gt.s32.totalorder %v260, %v261
          %v263 = vsel %vm262, %v257, 0.0
          %v264 = vmul.f32 %v263, %v263
          %v265 = vadd.f32 %v255, %v264
          %s266 = scalar_lea.vmem %s173, 32 [#allocation1]
          %v267 = vld [vmem:[%s266] sm:$0xff]
          %v268 = vlaneseq
          %v269 = vshrl.u32 %v268, 7
          %v270 = vadd.s32 %v269, 32
          %v271 = vstv %s223
          %vm272 = vcmp.gt.s32.totalorder %v270, %v271
          %v273 = vsel %vm272, %v267, 0.0
          %v274 = vmul.f32 %v273, %v273
          %v275 = vadd.f32 %v265, %v274
          %s276 = scalar_lea.vmem %s173, 40 [#allocation1]
          %v277 = vld [vmem:[%s276] sm:$0xff]
          %v278 = vlaneseq
          %v279 = vshrl.u32 %v278, 7
          %v280 = vadd.s32 %v279, 40
          %v281 = vstv %s223
          %vm282 = vcmp.gt.s32.totalorder %v280, %v281
          %v283 = vsel %vm282, %v277, 0.0
          %v284 = vmul.f32 %v283, %v283
          %v285 = vadd.f32 %v275, %v284
          %s286 = scalar_lea.vmem %s173, 48 [#allocation1]
          %v287 = vld [vmem:[%s286] sm:$0xff]
          %v288 = vlaneseq
          %v289 = vshrl.u32 %v288, 7
          %v290 = vadd.s32 %v289, 48
          %v291 = vstv %s223
          %vm292 = vcmp.gt.s32.totalorder %v290, %v291
          %v293 = vsel %vm292, %v287, 0.0
          %v294 = vmul.f32 %v293, %v293
          %v295 = vadd.f32 %v285, %v294
          %s296 = scalar_lea.vmem %s173, 56 [#allocation1]
          %v297 = vld [vmem:[%s296] sm:$0xff]
          %v298 = vlaneseq
          %v299 = vshrl.u32 %v298, 7
          %v300 = vadd.s32 %v299, 56
          %v301 = vstv %s223
          %vm302 = vcmp.gt.s32.totalorder %v300, %v301
          %vm303 = vcmp.lt.s32.totalorder %v300, 64
          %vm304 = vmand %vm302, %vm303
          %v305 = vsel %vm304, %v297, 0.0
          %v306 = vmul.f32 %v305, %v305
          %v307 = vadd.f32 %v295, %v306
          %v308 = vrot.slane %v307, 4
          %v309 = vadd.f32 %v307, %v308
          %v310 = vrot.slane %v309, 2
          %v311 = vadd.f32 %v309, %v310
          %v312 = vrot.slane %v311, 1
          %v313 = vadd.f32 %v311, %v312
          %v314 = vrsqrt.pop %v313
          %v315 = vmul.f32 %v314, %v313
          %v316 = vmul.f32 %v315, %v314
          %v317 = vmul.f32 0.5, %v316
          %v318 = vsub.f32 1.5, %v317
          %v319 = vmul.f32 %v314, %v318
          %v320 = vmul.f32 %v313, %v319
          %vm321 = vcmp.eq.f32.partialorder %v313, inf
          %v322 = vsel %vm321, %v313, %v320
          %vm323 = vcmp.eq.f32.partialorder %v313, 0.0
          %v324 = vand.u32 %v313, 2147483648
          %v325 = vsel %vm323, %v324, %v322
          %vm326 = vcmp.eq.f32.partialorder %v313, 0.0
          %s327 = sshrl.u32 %s223, 3
          %s328 = sand.u32 %s223, 7
          %s329 = smul.addr %s327, 8
          %s330 = sadd.s32 %s328, %s329
          %s331 = scalar_lea.vmem %s173, %s330 [#allocation1]
          %v332 = vld [vmem:[%s331] ss:$0 sm:$0xff]
          %v333 = vand.u32 2147483647, %v332
          %v334 = vmax.f32 %v333, 0.0
          %v335 = vand.u32 2147483647, %v325
          %v336 = vmax.f32 %v334, %v335
          %v337 = vrcp.pop %v336
          %v338 = vmul.f32 %v336, %v337
          %v339 = vsub.f32 1.0, %v338
          %v340 = vmul.f32 %v337, %v339
          %v341 = vadd.f32 %v337, %v340
          %vm342 = vweird.f32 %v336
          %vm343 = vweird.f32 %v337
          %vm344 = vmor %vm342, %vm343
          %v345 = vsel %vm344, %v337, %v341
          %v346 = vand.u32 2147483647, %v336
          %vm347 = vcmp.eq.f32.partialorder %v346, 8.507059e+37
          %v348 = vand.u32 %v336, 2147483648
          %v349 = vor.u32 1.1754944e-38, %v348
          %v350 = vsel %vm347, %v349, %v345
          %v351 = vmul.f32 %v333, %v350
          %v352 = vmul.f32 %v351, %v351
          %v353 = vrcp.pop %v336
          %v354 = vmul.f32 %v336, %v353
          %v355 = vsub.f32 1.0, %v354
          %v356 = vmul.f32 %v353, %v355
          %v357 = vadd.f32 %v353, %v356
          %vm358 = vweird.f32 %v336
          %vm359 = vweird.f32 %v353
          %vm360 = vmor %vm358, %vm359
          %v361 = vsel %vm360, %v353, %v357
          %v362 = vand.u32 2147483647, %v336
          %vm363 = vcmp.eq.f32.partialorder %v362, 8.507059e+37
          %v364 = vand.u32 %v336, 2147483648
          %v365 = vor.u32 1.1754944e-38, %v364
          %v366 = vsel %vm363, %v365, %v361
          %v367 = vmul.f32 0.0, %v366
          %v368 = vmul.f32 %v367, %v367
          %v369 = vadd.f32 %v352, %v368
          %v370 = vrcp.pop %v336
          %v371 = vmul.f32 %v336, %v370
          %v372 = vsub.f32 1.0, %v371
          %v373 = vmul.f32 %v370, %v372
          %v374 = vadd.f32 %v370, %v373
          %vm375 = vweird.f32 %v336
          %vm376 = vweird.f32 %v370
          %vm377 = vmor %vm375, %vm376
          %v378 = vsel %vm377, %v370, %v374
          %v379 = vand.u32 2147483647, %v336
          %vm380 = vcmp.eq.f32.partialorder %v379, 8.507059e+37
          %v381 = vand.u32 %v336, 2147483648
          %v382 = vor.u32 1.1754944e-38, %v381
          %v383 = vsel %vm380, %v382, %v378
          %v384 = vmul.f32 %v335, %v383
          %v385 = vmul.f32 %v384, %v384
          %v386 = vadd.f32 %v369, %v385
          %vm387 = vcmp.eq.f32.partialorder %v336, 0.0
          %v388 = vrsqrt.pop %v386
          %v389 = vmul.f32 %v388, %v386
          %v390 = vmul.f32 %v389, %v388
          %v391 = vmul.f32 0.5, %v390
          %v392 = vsub.f32 1.5, %v391
          %v393 = vmul.f32 %v388, %v392
          %v394 = vmul.f32 %v386, %v393
          %vm395 = vcmp.eq.f32.partialorder %v386, inf
          %v396 = vsel %vm395, %v386, %v394
          %vm397 = vcmp.eq.f32.partialorder %v386, 0.0
          %v398 = vand.u32 %v386, 2147483648
          %v399 = vsel %vm397, %v398, %v396
          %v400 = vmul.f32 %v336, %v399
          %v401 = vsel %vm387, 0.0, %v400
          %vm402 = vcmp.lt.f32.partialorder %v332, 0.0
          %v403 = vxor.u32 %v401, 2147483648
          %v404 = vsel %vm402, %v401, %v403
          %v405 = vsub.f32 %v404, %v332
          %v406 = vrcp.pop %v404
          %v407 = vmul.f32 %v404, %v406
          %v408 = vsub.f32 1.0, %v407
          %v409 = vmul.f32 %v406, %v408
          %v410 = vadd.f32 %v406, %v409
          %vm411 = vweird.f32 %v404
          %vm412 = vweird.f32 %v406
          %vm413 = vmor %vm411, %vm412
          %v414 = vsel %vm413, %v406, %v410
          %v415 = vand.u32 2147483647, %v404
          %vm416 = vcmp.eq.f32.partialorder %v415, 8.507059e+37
          %v417 = vand.u32 %v404, 2147483648
          %v418 = vor.u32 1.1754944e-38, %v417
          %v419 = vsel %vm416, %v418, %v414
          %v420 = vmul.f32 %v405, %v419
          %v421 = vsel %vm326, %v332, %v404
          %v422 = vsel %vm326, 0.0, %v420
          %v423 = vsub.f32 %v332, %v421
          %s424 = smov %s173
          %v425 = vlaneseq
          %v426 = vshrl.u32 %v425, 7
          %v427 = vmov %v426
          %v428 = vld [vmem:[%s424] sm:$0xff]
          %v430 = vstv %s223
          %vm431 = vcmp.gt.s32.totalorder %v427, %v430
          %v432 = vsel %vm431, %v428, 0.0
          %v433 = vrcp.pop %v423
          %v434 = vmul.f32 %v423, %v433
          %v435 = vsub.f32 1.0, %v434
          %v436 = vmul.f32 %v433, %v435
          %v437 = vadd.f32 %v433, %v436
          %vm438 = vweird.f32 %v423
          %vm439 = vweird.f32 %v433
          %vm440 = vmor %vm438, %vm439
          %v441 = vsel %vm440, %v433, %v437
          %v442 = vand.u32 2147483647, %v423
          %vm443 = vcmp.eq.f32.partialorder %v442, 8.507059e+37
          %v444 = vand.u32 %v423, 2147483648
          %v445 = vor.u32 1.1754944e-38, %v444
          %v446 = vsel %vm443, %v445, %v441
          %v447 = vmul.f32 %v432, %v446
          %v448 = vsel %vm326, 0.0, %v447
          %v449 = vstv %s223
          %v450 = vlaneseq
          %v451 = vand.u32 %v450, 127
          %vm452 = vcmp.eq.s32.totalorder %v451, %v449
          %v453 = vsel %vm452, %v448, 0.0
          %454 = vadd.xlane.f32.xlu0 %v453
          %v455 = vpop.xlane.xlu0 %454
          %456 = vst [vmem:[#allocation5] sm:$0xff] %v455
          %s457 = scalar_lea.vmem %s424, 8
          %v458 = vld [vmem:[%s457] sm:$0xff]
          %v459 = vadd.s32 %v427, 8
          %v460 = vstv %s223
          %vm461 = vcmp.gt.s32.totalorder %v459, %v460
          %v462 = vsel %vm461, %v458, 0.0
          %v463 = vrcp.pop %v423
          %v464 = vmul.f32 %v423, %v463
          %v465 = vsub.f32 1.0, %v464
          %v466 = vmul.f32 %v463, %v465
          %v467 = vadd.f32 %v463, %v466
          %vm468 = vweird.f32 %v423
          %vm469 = vweird.f32 %v463
          %vm470 = vmor %vm468, %vm469
          %v471 = vsel %vm470, %v463, %v467
          %v472 = vand.u32 2147483647, %v423
          %vm473 = vcmp.eq.f32.partialorder %v472, 8.507059e+37
          %v474 = vand.u32 %v423, 2147483648
          %v475 = vor.u32 1.1754944e-38, %v474
          %v476 = vsel %vm473, %v475, %v471
          %v477 = vmul.f32 %v462, %v476
          %v478 = vsel %vm326, 0.0, %v477
          %v479 = vstv %s223
          %v480 = vlaneseq
          %v481 = vand.u32 %v480, 127
          %vm482 = vcmp.eq.s32.totalorder %v481, %v479
          %v483 = vsel %vm482, %v478, 0.0
          %484 = vadd.xlane.f32.xlu0 %v483
          %v485 = vpop.xlane.xlu0 %484
          %s486 = scalar_lea.vmem [#allocation5], 8
          %487 = vst [vmem:[%s486] sm:$0xff] %v485
          %s488 = scalar_lea.vmem %s424, 16
          %v489 = vld [vmem:[%s488] sm:$0xff]
          %v490 = vadd.s32 %v427, 16
          %v491 = vstv %s223
          %vm492 = vcmp.gt.s32.totalorder %v490, %v491
          %v493 = vsel %vm492, %v489, 0.0
          %v494 = vrcp.pop %v423
          %v495 = vmul.f32 %v423, %v494
          %v496 = vsub.f32 1.0, %v495
          %v497 = vmul.f32 %v494, %v496
          %v498 = vadd.f32 %v494, %v497
          %vm499 = vweird.f32 %v423
          %vm500 = vweird.f32 %v494
          %vm501 = vmor %vm499, %vm500
          %v502 = vsel %vm501, %v494, %v498
          %v503 = vand.u32 2147483647, %v423
          %vm504 = vcmp.eq.f32.partialorder %v503, 8.507059e+37
          %v505 = vand.u32 %v423, 2147483648
          %v506 = vor.u32 1.1754944e-38, %v505
          %v507 = vsel %vm504, %v506, %v502
          %v508 = vmul.f32 %v493, %v507
          %v509 = vsel %vm326, 0.0, %v508
          %v510 = vstv %s223
          %v511 = vlaneseq
          %v512 = vand.u32 %v511, 127
          %vm513 = vcmp.eq.s32.totalorder %v512, %v510
          %v514 = vsel %vm513, %v509, 0.0
          %515 = vadd.xlane.f32.xlu0 %v514
          %v516 = vpop.xlane.xlu0 %515
          %s517 = scalar_lea.vmem [#allocation5], 16
          %518 = vst [vmem:[%s517] sm:$0xff] %v516
          %s519 = scalar_lea.vmem %s424, 24
          %v520 = vld [vmem:[%s519] sm:$0xff]
          %v521 = vadd.s32 %v427, 24
          %v522 = vstv %s223
          %vm523 = vcmp.gt.s32.totalorder %v521, %v522
          %v524 = vsel %vm523, %v520, 0.0
          %v525 = vrcp.pop %v423
          %v526 = vmul.f32 %v423, %v525
          %v527 = vsub.f32 1.0, %v526
          %v528 = vmul.f32 %v525, %v527
          %v529 = vadd.f32 %v525, %v528
          %vm530 = vweird.f32 %v423
          %vm531 = vweird.f32 %v525
          %vm532 = vmor %vm530, %vm531
          %v533 = vsel %vm532, %v525, %v529
          %v534 = vand.u32 2147483647, %v423
          %vm535 = vcmp.eq.f32.partialorder %v534, 8.507059e+37
          %v536 = vand.u32 %v423, 2147483648
          %v537 = vor.u32 1.1754944e-38, %v536
          %v538 = vsel %vm535, %v537, %v533
          %v539 = vmul.f32 %v524, %v538
          %v540 = vsel %vm326, 0.0, %v539
          %v541 = vstv %s223
          %v542 = vlaneseq
          %v543 = vand.u32 %v542, 127
          %vm544 = vcmp.eq.s32.totalorder %v543, %v541
          %v545 = vsel %vm544, %v540, 0.0
          %546 = vadd.xlane.f32.xlu0 %v545
          %v547 = vpop.xlane.xlu0 %546
          %s548 = scalar_lea.vmem [#allocation5], 24
          %549 = vst [vmem:[%s548] sm:$0xff] %v547
          %s550 = scalar_lea.vmem %s424, 32
          %v551 = vld [vmem:[%s550] sm:$0xff]
          %v552 = vadd.s32 %v427, 32
          %v553 = vstv %s223
          %vm554 = vcmp.gt.s32.totalorder %v552, %v553
          %v555 = vsel %vm554, %v551, 0.0
          %v556 = vrcp.pop %v423
          %v557 = vmul.f32 %v423, %v556
          %v558 = vsub.f32 1.0, %v557
          %v559 = vmul.f32 %v556, %v558
          %v560 = vadd.f32 %v556, %v559
          %vm561 = vweird.f32 %v423
          %vm562 = vweird.f32 %v556
          %vm563 = vmor %vm561, %vm562
          %v564 = vsel %vm563, %v556, %v560
          %v565 = vand.u32 2147483647, %v423
          %vm566 = vcmp.eq.f32.partialorder %v565, 8.507059e+37
          %v567 = vand.u32 %v423, 2147483648
          %v568 = vor.u32 1.1754944e-38, %v567
          %v569 = vsel %vm566, %v568, %v564
          %v570 = vmul.f32 %v555, %v569
          %v571 = vsel %vm326, 0.0, %v570
          %v572 = vstv %s223
          %v573 = vlaneseq
          %v574 = vand.u32 %v573, 127
          %vm575 = vcmp.eq.s32.totalorder %v574, %v572
          %v576 = vsel %vm575, %v571, 0.0
          %577 = vadd.xlane.f32.xlu0 %v576
          %v578 = vpop.xlane.xlu0 %577
          %s579 = scalar_lea.vmem [#allocation5], 32
          %580 = vst [vmem:[%s579] sm:$0xff] %v578
          %s581 = scalar_lea.vmem %s424, 40
          %v582 = vld [vmem:[%s581] sm:$0xff]
          %v583 = vadd.s32 %v427, 40
          %v584 = vstv %s223
          %vm585 = vcmp.gt.s32.totalorder %v583, %v584
          %v586 = vsel %vm585, %v582, 0.0
          %v587 = vrcp.pop %v423
          %v588 = vmul.f32 %v423, %v587
          %v589 = vsub.f32 1.0, %v588
          %v590 = vmul.f32 %v587, %v589
          %v591 = vadd.f32 %v587, %v590
          %vm592 = vweird.f32 %v423
          %vm593 = vweird.f32 %v587
          %vm594 = vmor %vm592, %vm593
          %v595 = vsel %vm594, %v587, %v591
          %v596 = vand.u32 2147483647, %v423
          %vm597 = vcmp.eq.f32.partialorder %v596, 8.507059e+37
          %v598 = vand.u32 %v423, 2147483648
          %v599 = vor.u32 1.1754944e-38, %v598
          %v600 = vsel %vm597, %v599, %v595
          %v601 = vmul.f32 %v586, %v600
          %v602 = vsel %vm326, 0.0, %v601
          %v603 = vstv %s223
          %v604 = vlaneseq
          %v605 = vand.u32 %v604, 127
          %vm606 = vcmp.eq.s32.totalorder %v605, %v603
          %v607 = vsel %vm606, %v602, 0.0
          %608 = vadd.xlane.f32.xlu0 %v607
          %v609 = vpop.xlane.xlu0 %608
          %s610 = scalar_lea.vmem [#allocation5], 40
          %611 = vst [vmem:[%s610] sm:$0xff] %v609
          %s612 = scalar_lea.vmem %s424, 48
          %v613 = vld [vmem:[%s612] sm:$0xff]
          %v614 = vadd.s32 %v427, 48
          %v615 = vstv %s223
          %vm616 = vcmp.gt.s32.totalorder %v614, %v615
          %v617 = vsel %vm616, %v613, 0.0
          %v618 = vrcp.pop %v423
          %v619 = vmul.f32 %v423, %v618
          %v620 = vsub.f32 1.0, %v619
          %v621 = vmul.f32 %v618, %v620
          %v622 = vadd.f32 %v618, %v621
          %vm623 = vweird.f32 %v423
          %vm624 = vweird.f32 %v618
          %vm625 = vmor %vm623, %vm624
          %v626 = vsel %vm625, %v618, %v622
          %v627 = vand.u32 2147483647, %v423
          %vm628 = vcmp.eq.f32.partialorder %v627, 8.507059e+37
          %v629 = vand.u32 %v423, 2147483648
          %v630 = vor.u32 1.1754944e-38, %v629
          %v631 = vsel %vm628, %v630, %v626
          %v632 = vmul.f32 %v617, %v631
          %v633 = vsel %vm326, 0.0, %v632
          %v634 = vstv %s223
          %v635 = vlaneseq
          %v636 = vand.u32 %v635, 127
          %vm637 = vcmp.eq.s32.totalorder %v636, %v634
          %v638 = vsel %vm637, %v633, 0.0
          %639 = vadd.xlane.f32.xlu0 %v638
          %v640 = vpop.xlane.xlu0 %639
          %s641 = scalar_lea.vmem [#allocation5], 48
          %642 = vst [vmem:[%s641] sm:$0xff] %v640
          %s643 = scalar_lea.vmem %s424, 56
          %v644 = vld [vmem:[%s643] sm:$0xff]
          %v645 = vadd.s32 %v427, 56
          %v646 = vstv %s223
          %vm647 = vcmp.gt.s32.totalorder %v645, %v646
          %vm648 = vcmp.lt.s32.totalorder %v645, 64
          %vm649 = vmand %vm647, %vm648
          %v650 = vsel %vm649, %v644, 0.0
          %v651 = vrcp.pop %v423
          %v652 = vmul.f32 %v423, %v651
          %v653 = vsub.f32 1.0, %v652
          %v654 = vmul.f32 %v651, %v653
          %v655 = vadd.f32 %v651, %v654
          %vm656 = vweird.f32 %v423
          %vm657 = vweird.f32 %v651
          %vm658 = vmor %vm656, %vm657
          %v659 = vsel %vm658, %v651, %v655
          %v660 = vand.u32 2147483647, %v423
          %vm661 = vcmp.eq.f32.partialorder %v660, 8.507059e+37
          %v662 = vand.u32 %v423, 2147483648
          %v663 = vor.u32 1.1754944e-38, %v662
          %v664 = vsel %vm661, %v663, %v659
          %v665 = vmul.f32 %v650, %v664
          %v666 = vsel %vm326, 0.0, %v665
          %v667 = vstv %s223
          %v668 = vlaneseq
          %v669 = vand.u32 %v668, 127
          %vm670 = vcmp.eq.s32.totalorder %v669, %v667
          %v671 = vsel %vm670, %v666, 0.0
          %672 = vadd.xlane.f32.xlu0 %v671
          %v673 = vpop.xlane.xlu0 %672
          %s674 = scalar_lea.vmem [#allocation5], 56
          %675 = vst [vmem:[%s674] sm:$0xff] %v673
          %s676 = scalar_lea.vmem [#allocation5], %s223
          %677 = vst [vmem:[%s676] sm:$0x1] 1.0
          %v678 = vstv %s223
          %v679 = vlaneseq
          %v680 = vand.u32 %v679, 127
          %vm681 = vcmp.eq.s32.totalorder %v680, %v678
          %v682 = vsel %vm681, %v422, 0.0
          %683 = vadd.xlane.f32.xlu0 %v682
          %v684 = vpop.xlane.xlu0 %683
          %v685 = vstv %s223
          %v686 = vlaneseq
          %v687 = vand.u32 %v686, 127
          %vm688 = vcmp.eq.s32.totalorder %v687, %v685
          %v689 = vld [vmem:[%s190] ss:$0 sm:$0xff]
          %v690 = vsel %vm688, %v684, %v689
          %691 = vst [vmem:[%s190] sm:$0x1] %v690
          %s692 = smov %s173
          %s693 = smov [#allocation5]
          %v694 = vlaneseq
          %v695 = vshrl.u32 %v694, 7
          %v696 = vmov %v695
          %v698 = vld [vmem:[%s693] sm:$0xff]
          %v699 = vld [vmem:[%s692] sm:$0xff]
          %v700 = vmul.f32 %v698, %v699
          %v701 = vadd.s32 %v696, 8
          %s702 = scalar_lea.vmem %s693, 8
          %v703 = vld [vmem:[%s702] sm:$0xff]
          %s704 = scalar_lea.vmem %s692, 8
          %v705 = vld [vmem:[%s704] sm:$0xff]
          %v706 = vmul.f32 %v703, %v705
          %v707 = vadd.f32 %v700, %v706
          %v708 = vadd.s32 %v696, 16
          %s709 = scalar_lea.vmem %s693, 16
          %v710 = vld [vmem:[%s709] sm:$0xff]
          %s711 = scalar_lea.vmem %s692, 16
          %v712 = vld [vmem:[%s711] sm:$0xff]
          %v713 = vmul.f32 %v710, %v712
          %v714 = vadd.f32 %v707, %v713
          %v715 = vadd.s32 %v696, 24
          %s716 = scalar_lea.vmem %s693, 24
          %v717 = vld [vmem:[%s716] sm:$0xff]
          %s718 = scalar_lea.vmem %s692, 24
          %v719 = vld [vmem:[%s718] sm:$0xff]
          %v720 = vmul.f32 %v717, %v719
          %v721 = vadd.f32 %v714, %v720
          %v722 = vadd.s32 %v696, 32
          %s723 = scalar_lea.vmem %s693, 32
          %v724 = vld [vmem:[%s723] sm:$0xff]
          %s725 = scalar_lea.vmem %s692, 32
          %v726 = vld [vmem:[%s725] sm:$0xff]
          %v727 = vmul.f32 %v724, %v726
          %v728 = vadd.f32 %v721, %v727
          %v729 = vadd.s32 %v696, 40
          %s730 = scalar_lea.vmem %s693, 40
          %v731 = vld [vmem:[%s730] sm:$0xff]
          %s732 = scalar_lea.vmem %s692, 40
          %v733 = vld [vmem:[%s732] sm:$0xff]
          %v734 = vmul.f32 %v731, %v733
          %v735 = vadd.f32 %v728, %v734
          %v736 = vadd.s32 %v696, 48
          %s737 = scalar_lea.vmem %s693, 48
          %v738 = vld [vmem:[%s737] sm:$0xff]
          %s739 = scalar_lea.vmem %s692, 48
          %v740 = vld [vmem:[%s739] sm:$0xff]
          %v741 = vmul.f32 %v738, %v740
          %v742 = vadd.f32 %v735, %v741
          %v743 = vadd.s32 %v696, 56
          %s744 = scalar_lea.vmem %s693, 56
          %v745 = vld [vmem:[%s744] sm:$0xff]
          %s746 = scalar_lea.vmem %s692, 56
          %v747 = vld [vmem:[%s746] sm:$0xff]
          %v748 = vmul.f32 %v745, %v747
          %vm749 = vcmp.lt.s32.totalorder %v743, 64
          %v750 = vsel %vm749, %v748, 0.0
          %v751 = vadd.f32 %v742, %v750
          %v752 = vrot.slane %v751, 4
          %v753 = vadd.f32 %v751, %v752
          %v754 = vrot.slane %v753, 2
          %v755 = vadd.f32 %v753, %v754
          %v756 = vrot.slane %v755, 1
          %v757 = vadd.f32 %v755, %v756
          %s758 = smov %s692
          %s759 = smov %s693
          %v760 = vlaneseq
          %v761 = vshrl.u32 %v760, 7
          %v762 = vmov %v761
          %v763 = vmul.f32 %v757, %v684
          %v765 = vlaneseq
          %v766 = vand.u32 %v765, 127
          %v767 = vld [vmem:[%s759] sm:$0xff]
          %v768 = vmul.f32 %v767, %v763
          %v769 = vld [vmem:[%s758] sm:$0xff]
          %v770 = vstv %s223
          %vm771 = vcmp.gt.s32.totalorder %v766, %v770
          %v772 = vsub.f32 %v769, %v768
          %v773 = vsel %vm771, %v772, %v769
          %v774 = vstv %s223
          %v775 = vlaneseq
          %v776 = vand.u32 %v775, 127
          %vm777 = vcmp.eq.s32.totalorder %v776, %v774
          %v778 = vstv %s223
          %vm779 = vcmp.ge.s32.totalorder %v762, %v778
          %vm780 = vmand %vm777, %vm779
          %v781 = vsel %vm780, %v767, %v773
          %782 = vst [vmem:[%s758] sm:$0xff] %v781
          %v783 = vadd.s32 %v762, 8
          %v784 = vlaneseq
          %v785 = vand.u32 %v784, 127
          %s786 = scalar_lea.vmem %s759, 8
          %v787 = vld [vmem:[%s786] sm:$0xff]
          %v788 = vmul.f32 %v787, %v763
          %s789 = scalar_lea.vmem %s758, 8
          %v790 = vld [vmem:[%s789] sm:$0xff]
          %v791 = vstv %s223
          %vm792 = vcmp.gt.s32.totalorder %v785, %v791
          %v793 = vsub.f32 %v790, %v788
          %v794 = vsel %vm792, %v793, %v790
          %v795 = vstv %s223
          %v796 = vlaneseq
          %v797 = vand.u32 %v796, 127
          %vm798 = vcmp.eq.s32.totalorder %v797, %v795
          %v799 = vstv %s223
          %vm800 = vcmp.ge.s32.totalorder %v783, %v799
          %vm801 = vmand %vm798, %vm800
          %v802 = vsel %vm801, %v787, %v794
          %803 = vst [vmem:[%s789] sm:$0xff] %v802
          %v804 = vadd.s32 %v762, 16
          %v805 = vlaneseq
          %v806 = vand.u32 %v805, 127
          %s807 = scalar_lea.vmem %s759, 16
          %v808 = vld [vmem:[%s807] sm:$0xff]
          %v809 = vmul.f32 %v808, %v763
          %s810 = scalar_lea.vmem %s758, 16
          %v811 = vld [vmem:[%s810] sm:$0xff]
          %v812 = vstv %s223
          %vm813 = vcmp.gt.s32.totalorder %v806, %v812
          %v814 = vsub.f32 %v811, %v809
          %v815 = vsel %vm813, %v814, %v811
          %v816 = vstv %s223
          %v817 = vlaneseq
          %v818 = vand.u32 %v817, 127
          %vm819 = vcmp.eq.s32.totalorder %v818, %v816
          %v820 = vstv %s223
          %vm821 = vcmp.ge.s32.totalorder %v804, %v820
          %vm822 = vmand %vm819, %vm821
          %v823 = vsel %vm822, %v808, %v815
          %824 = vst [vmem:[%s810] sm:$0xff] %v823
          %v825 = vadd.s32 %v762, 24
          %v826 = vlaneseq
          %v827 = vand.u32 %v826, 127
          %s828 = scalar_lea.vmem %s759, 24
          %v829 = vld [vmem:[%s828] sm:$0xff]
          %v830 = vmul.f32 %v829, %v763
          %s831 = scalar_lea.vmem %s758, 24
          %v832 = vld [vmem:[%s831] sm:$0xff]
          %v833 = vstv %s223
          %vm834 = vcmp.gt.s32.totalorder %v827, %v833
          %v835 = vsub.f32 %v832, %v830
          %v836 = vsel %vm834, %v835, %v832
          %v837 = vstv %s223
          %v838 = vlaneseq
          %v839 = vand.u32 %v838, 127
          %vm840 = vcmp.eq.s32.totalorder %v839, %v837
          %v841 = vstv %s223
          %vm842 = vcmp.ge.s32.totalorder %v825, %v841
          %vm843 = vmand %vm840, %vm842
          %v844 = vsel %vm843, %v829, %v836
          %845 = vst [vmem:[%s831] sm:$0xff] %v844
          %v846 = vadd.s32 %v762, 32
          %v847 = vlaneseq
          %v848 = vand.u32 %v847, 127
          %s849 = scalar_lea.vmem %s759, 32
          %v850 = vld [vmem:[%s849] sm:$0xff]
          %v851 = vmul.f32 %v850, %v763
          %s852 = scalar_lea.vmem %s758, 32
          %v853 = vld [vmem:[%s852] sm:$0xff]
          %v854 = vstv %s223
          %vm855 = vcmp.gt.s32.totalorder %v848, %v854
          %v856 = vsub.f32 %v853, %v851
          %v857 = vsel %vm855, %v856, %v853
          %v858 = vstv %s223
          %v859 = vlaneseq
          %v860 = vand.u32 %v859, 127
          %vm861 = vcmp.eq.s32.totalorder %v860, %v858
          %v862 = vstv %s223
          %vm863 = vcmp.ge.s32.totalorder %v846, %v862
          %vm864 = vmand %vm861, %vm863
          %v865 = vsel %vm864, %v850, %v857
          %866 = vst [vmem:[%s852] sm:$0xff] %v865
          %v867 = vadd.s32 %v762, 40
          %v868 = vlaneseq
          %v869 = vand.u32 %v868, 127
          %s870 = scalar_lea.vmem %s759, 40
          %v871 = vld [vmem:[%s870] sm:$0xff]
          %v872 = vmul.f32 %v871, %v763
          %s873 = scalar_lea.vmem %s758, 40
          %v874 = vld [vmem:[%s873] sm:$0xff]
          %v875 = vstv %s223
          %vm876 = vcmp.gt.s32.totalorder %v869, %v875
          %v877 = vsub.f32 %v874, %v872
          %v878 = vsel %vm876, %v877, %v874
          %v879 = vstv %s223
          %v880 = vlaneseq
          %v881 = vand.u32 %v880, 127
          %vm882 = vcmp.eq.s32.totalorder %v881, %v879
          %v883 = vstv %s223
          %vm884 = vcmp.ge.s32.totalorder %v867, %v883
          %vm885 = vmand %vm882, %vm884
          %v886 = vsel %vm885, %v871, %v878
          %887 = vst [vmem:[%s873] sm:$0xff] %v886
          %v888 = vadd.s32 %v762, 48
          %v889 = vlaneseq
          %v890 = vand.u32 %v889, 127
          %s891 = scalar_lea.vmem %s759, 48
          %v892 = vld [vmem:[%s891] sm:$0xff]
          %v893 = vmul.f32 %v892, %v763
          %s894 = scalar_lea.vmem %s758, 48
          %v895 = vld [vmem:[%s894] sm:$0xff]
          %v896 = vstv %s223
          %vm897 = vcmp.gt.s32.totalorder %v890, %v896
          %v898 = vsub.f32 %v895, %v893
          %v899 = vsel %vm897, %v898, %v895
          %v900 = vstv %s223
          %v901 = vlaneseq
          %v902 = vand.u32 %v901, 127
          %vm903 = vcmp.eq.s32.totalorder %v902, %v900
          %v904 = vstv %s223
          %vm905 = vcmp.ge.s32.totalorder %v888, %v904
          %vm906 = vmand %vm903, %vm905
          %v907 = vsel %vm906, %v892, %v899
          %908 = vst [vmem:[%s894] sm:$0xff] %v907
          %v909 = vadd.s32 %v762, 56
          %v910 = vlaneseq
          %v911 = vand.u32 %v910, 127
          %s912 = scalar_lea.vmem %s759, 56
          %v913 = vld [vmem:[%s912] sm:$0xff]
          %v914 = vmul.f32 %v913, %v763
          %s915 = scalar_lea.vmem %s758, 56
          %v916 = vld [vmem:[%s915] sm:$0xff]
          %v917 = vstv %s223
          %vm918 = vcmp.gt.s32.totalorder %v911, %v917
          %v919 = vsub.f32 %v916, %v914
          %v920 = vsel %vm918, %v919, %v916
          %v921 = vstv %s223
          %v922 = vlaneseq
          %v923 = vand.u32 %v922, 127
          %vm924 = vcmp.eq.s32.totalorder %v923, %v921
          %v925 = vstv %s223
          %vm926 = vcmp.ge.s32.totalorder %v909, %v925
          %vm927 = vmand %vm924, %vm926
          %v928 = vsel %vm927, %v913, %v920
          %929 = vst [vmem:[%s915] sm:$0xff] %v928
          %s930 = scalar_lea.vmem %s758, %s223
          %v931 = vld [vmem:[%s930] ss:$0 sm:$0xff]
          %v932 = vstv %s223
          %v933 = vlaneseq
          %v934 = vand.u32 %v933, 127
          %vm935 = vcmp.eq.s32.totalorder %v934, %v932
          %v936 = vsel %vm935, %v421, %v931
          %937 = vst [vmem:[%s930] sm:$0x1] %v936
        $region59: #{custom-call.31} parent=53 // loop_footer
          %s227 = sadd.s32 1, %s223
        $region60: #{custom-call.31} parent=53 // loop_footer_branch
          %222 = sbr.rel target = $region56
        $region61: #{custom-call.31} parent=53 // loop_exit
          _
        %s939 = ssub.s32 4, 1
        %v940 = vld [vmem:[#allocation2] sm:%s939]
        %s942 = ssub.s32 4, 1
        %943 = vst [vmem:[%s180] sm:%s942] %v940
        %s944 = sand.u32 %s13, 1
        %s945 = sand.u32 %s13, 1
        %s946 = smul.addr %s945, 64
        %s947 = scalar_lea.vmem [#allocation1], %s946
        %s948 = sand.u32 %s52, 1
        %s949 = scalar_lea.sflag [#allocation4], %s948
        %s950 = sand.u32 %s52, 1
        %s951 = smul.addr %s950, 2
        %s952 = scalar_lea.vmem [#allocation3], %s951
        %s953 = smul.u32 8, %s19
        %s954 = sadd.s32 %s20, %s953
        %s955 = smul.addr %s18, 8
        %s956 = sadd.s32 %s954, %s955
        %s957 = smul.addr %s956, 8
        %s958 = scalar_lea.vmem %s1, %s957
        // Predicated region
        $region62: #{custom-call.31} parent=53 // pred_check
          _
        $region63: #{custom-call.31} parent=53 // pred_check_branch
          %960 = sbr.rel (0) target = $region65
        $region64: #{custom-call.31} parent=53 // pred_region
          // Predicated region
          $region66: #{custom-call.31} parent=64 // pred_check
            _
          $region67: #{custom-call.31} parent=64 // pred_check_branch
            %962 = sbr.rel (0) target = $region69
          $region68: #{custom-call.31} parent=64 // pred_region
            // Predicated region
            $region81: #{custom-call.31} parent=68 // pred_check
              _
            $region82: #{custom-call.31} parent=68 // pred_check_branch
              %992 = sbr.rel (0) target = $region84
            $region83: #{custom-call.31} parent=68 // pred_region
              loop: start=0, step=1, limit=1
              $region85: #{custom-call.31} parent=83 // loop_pre_header
                _
              $region86: #{custom-call.31} parent=83 // loop_header
                %s994 = sphi 0, %s998
                %p995 = scmp.ge.s32.totalorder %s994, 1
                %s999 = sphi %s947, %s947
                %s1000 = sphi %s958, %s958
              $region87: #{custom-call.31} parent=83 // loop_header_branch
                %997 = sbr.rel (%p995) target = $region91
              $region88: #{custom-call.31} parent=83 // loop_body
                %v1001 = vld [vmem:[%s999] sm:$0xff]
                %1002 = vst [vmem:[%s1000] sm:$0xff] %v1001
                %v1003 = vld [vmem:[%s999 + $0x8] sm:$0xff]
                %1004 = vst [vmem:[%s1000 + $0x8] sm:$0xff] %v1003
                %v1005 = vld [vmem:[%s999 + $0x10] sm:$0xff]
                %1006 = vst [vmem:[%s1000 + $0x10] sm:$0xff] %v1005
                %v1007 = vld [vmem:[%s999 + $0x18] sm:$0xff]
                %1008 = vst [vmem:[%s1000 + $0x18] sm:$0xff] %v1007
                %v1009 = vld [vmem:[%s999 + $0x20] sm:$0xff]
                %1010 = vst [vmem:[%s1000 + $0x20] sm:$0xff] %v1009
                %v1011 = vld [vmem:[%s999 + $0x28] sm:$0xff]
                %1012 = vst [vmem:[%s1000 + $0x28] sm:$0xff] %v1011
                %v1013 = vld [vmem:[%s999 + $0x30] sm:$0xff]
                %1014 = vst [vmem:[%s1000 + $0x30] sm:$0xff] %v1013
                %v1015 = vld [vmem:[%s999 + $0x38] sm:$0xff]
                %1016 = vst [vmem:[%s1000 + $0x38] sm:$0xff] %v1015
              $region89: #{custom-call.31} parent=83 // loop_footer
                %s998 = sadd.s32 1, %s994
              $region90: #{custom-call.31} parent=83 // loop_footer_branch
                %993 = sbr.rel target = $region86
              $region91: #{custom-call.31} parent=83 // loop_exit
                _
            $region84: #{custom-call.31} parent=68 // pred_fallthru
              _
            // Predicated region
            $region92: #{custom-call.31} parent=68 // pred_check
              _
            $region93: #{custom-call.31} parent=68 // pred_check_branch
              %1018 = sbr.rel target = $region95
            $region94: #{custom-call.31} parent=68 // pred_region
              _
            $region95: #{custom-call.31} parent=68 // pred_fallthru
              _
          $region69: #{custom-call.31} parent=64 // pred_fallthru
            _
          // Predicated region
          $region70: #{custom-call.31} parent=64 // pred_check
            _
          $region71: #{custom-call.31} parent=64 // pred_check_branch
            %964 = sbr.rel target = $region73
          $region72: #{custom-call.31} parent=64 // pred_region
            %s966 = ssub.s32 256, 1
            loop: start=0, step=1, limit=1
            $region74: #{custom-call.31} parent=72 // loop_pre_header
              _
            $region75: #{custom-call.31} parent=72 // loop_header
              %s968 = sphi 0, %s972
              %p969 = scmp.ge.s32.totalorder %s968, 1
              %s973 = sphi %s947, %s947
              %s974 = sphi %s958, %s958
            $region76: #{custom-call.31} parent=72 // loop_header_branch
              %971 = sbr.rel (%p969) target = $region80
            $region77: #{custom-call.31} parent=72 // loop_body
              %v975 = vld [vmem:[%s973] sm:%s966]
              %976 = vst [vmem:[%s974] sm:%s966] %v975
              %v977 = vld [vmem:[%s973 + $0x8] sm:%s966]
              %978 = vst [vmem:[%s974 + $0x8] sm:%s966] %v977
              %v979 = vld [vmem:[%s973 + $0x10] sm:%s966]
              %980 = vst [vmem:[%s974 + $0x10] sm:%s966] %v979
              %v981 = vld [vmem:[%s973 + $0x18] sm:%s966]
              %982 = vst [vmem:[%s974 + $0x18] sm:%s966] %v981
              %v983 = vld [vmem:[%s973 + $0x20] sm:%s966]
              %984 = vst [vmem:[%s974 + $0x20] sm:%s966] %v983
              %v985 = vld [vmem:[%s973 + $0x28] sm:%s966]
              %986 = vst [vmem:[%s974 + $0x28] sm:%s966] %v985
              %v987 = vld [vmem:[%s973 + $0x30] sm:%s966]
              %988 = vst [vmem:[%s974 + $0x30] sm:%s966] %v987
              %v989 = vld [vmem:[%s973 + $0x38] sm:%s966]
              %990 = vst [vmem:[%s974 + $0x38] sm:%s966] %v989
            $region78: #{custom-call.31} parent=72 // loop_footer
              %s972 = sadd.s32 1, %s968
            $region79: #{custom-call.31} parent=72 // loop_footer_branch
              %967 = sbr.rel target = $region75
            $region80: #{custom-call.31} parent=72 // loop_exit
              _
          $region73: #{custom-call.31} parent=64 // pred_fallthru
            _
        $region65: #{custom-call.31} parent=53 // pred_fallthru
          _
        %1019 = vnop
        // Predicated region
        $region96: #{custom-call.31} parent=53 // pred_check
          %p1020 = pneg %p62
        $region97: #{custom-call.31} parent=53 // pred_check_branch
          %1022 = sbr.rel (%p1020) target = $region99
        $region98: #{custom-call.31} parent=53 // pred_region
          %p1023 = scmp.lt.s32.totalorder %s18, 0
          %s1024 = ssub.s32 0, %s18
          %s1025 = scalar_select %p1023, %s1024, %s18
          %s1026 = sshrl.u32 %s1025, 3
          %s1027 = ssub.s32 0, %s1026
          %s1028 = scalar_select %p1023, %s1027, %s1026
          %1030 = vsyncadd %s949, 0
          %s1031 = smul.addr %s1028, 2
          %s1032 = scalar_lea.hbm %s2, %s1031
          %s1034 = sshll.u32 %s952, 4
          %s1035 = int_to_ptr.vmem [resolvable:$true] %s1034
          %s1036 = sshll.u32 %s1032, 4
          %s1037 = int_to_ptr.hbm [resolvable:$true] %s1036
          %1039 = dma.vmem_to_hbm [thread:$0]  %s1035, 32, %s1037, %s949
        $region99: #{custom-call.31} parent=53 // pred_fallthru
          _
      $region54: #{custom-call.31} parent=5 // pred_fallthru
        _
      %p1040 = scmp.le.s32.totalorder 2, %s8
      // Predicated region
      $region100: #{custom-call.31} parent=5 // pred_check
        %p1041 = pneg %p1040
      $region101: #{custom-call.31} parent=5 // pred_check_branch
        %1043 = sbr.rel (%p1041) target = $region103
      $region102: #{custom-call.31} parent=5 // pred_region
        %s1044 = ssub.s32 %s8, 2
        %s1045 = sand.u32 %s14, 1
        %s1046 = sand.u32 %s14, 1
        %s1047 = smul.addr %s1046, 64
        %s1048 = scalar_lea.vmem [#allocation1], %s1047
        // Predicated region
        $region104: #{custom-call.31} parent=102 // pred_check
          %p1049 = pneg %p68
        $region105: #{custom-call.31} parent=102 // pred_check_branch
          %1051 = sbr.rel (%p1049) target = $region107
        $region106: #{custom-call.31} parent=102 // pred_region
          %s1052 = sand.u32 %s53, 1
          %s1053 = scalar_lea.sflag [#allocation4], %s1052
          %s1054 = sand.u32 %s53, 1
          %s1055 = smul.addr %s1054, 2
          %s1056 = scalar_lea.vmem [#allocation3], %s1055
          %1058 = dma.done %s1053, 32
        $region107: #{custom-call.31} parent=102 // pred_fallthru
          _
      $region103: #{custom-call.31} parent=5 // pred_fallthru
        _
    $region6: #{custom-call.31} parent=1 // loop_footer
      %s12 = sadd.s32 1, %s8
    $region7: #{custom-call.31} parent=1 // loop_footer_branch
      %7 = sbr.rel target = $region3
    $region8: #{custom-call.31} parent=1 // loop_exit
      _
    %1059 = vsyncpa [#allocation4], 1
    %s1060 = scalar_lea.sflag [#allocation4], 1
    %1061 = vsyncpa %s1060, 1

// kernel: custom-call.69
$region0: #{custom-call.69}
  %s0 = inlined_call_operand.vmem [shape: f32[2,32,16], index: 0, kind: input, shape index: {}]
  %s1 = inlined_call_operand.vmem [shape: f32[2,32,16], index: 1, kind: output, shape index: {0}]
  %s2 = inlined_call_operand.vmem [shape: f32[2,16], index: 2, kind: output, shape index: {1}]
  %3 = xla_tuple %s1, %s2
  $region1: #{custom-call.69} parent=0
    #allocation0 [shape = 'u8[32768]{0}', space=vmem, size = 0x8000, scoped, tag = 'operand span for operand 0']
    #allocation1 [shape = 'u8[32768]{0}', space=vmem, size = 0x8000, scoped, tag = 'operand span for operand 1']
    #allocation2 [shape = 'u8[4096]{0}', space=vmem, size = 0x1000, scoped, tag = 'operand span for operand 2']
    #allocation3 [shape = 'u8[2048]{0}', space=vmem, size = 0x800, scoped, tag = 'packed  for operand 2']
    loop: start=0, step=1, limit=4
    $region2: #{custom-call.69} parent=1 // loop_pre_header
      _
    $region3: #{custom-call.69} parent=1 // loop_header
      %s5 = sphi 0, %s9
      %p6 = scmp.ge.s32.totalorder %s5, 4
      %s12 = sphi 0, %s31
      %s13 = sphi 0, %s27
      %s14 = sphi 0, %s23
      %s15 = sphi 0, %s12
      %s16 = sphi 0, %s13
      %s17 = sphi 0, %s14
      %s18 = sphi 0, %s15
      %s19 = sphi 0, %s16
      %s20 = sphi 0, %s17
      %s46 = sphi 0, %s48
      %s49 = sphi 0, %s46
      %s50 = sphi 0, %s49
      %s66 = sphi 0, %s50
    $region4: #{custom-call.69} parent=1 // loop_header_branch
      %8 = sbr.rel (%p6) target = $region8
    $region5: #{custom-call.69} parent=1 // loop_body
      %s10 = ssub.s32 %s5, 1
      %s11 = ssub.s32 %s5, 2
      %s21 = sadd.s32 1, %s14
      %p22 = scmp.ge.s32.totalorder %s21, 1
      %s23 = scalar_select %p22, 0, %s21
      %s24 = sadd.s32 1, %s13
      %s25 = scalar_select %p22, %s24, %s13
      %p26 = scmp.ge.s32.totalorder %s25, 1
      %s27 = scalar_select %p26, 0, %s25
      %s28 = sadd.s32 1, %s12
      %s29 = scalar_select %p26, %s28, %s12
      %p30 = scmp.ge.s32.totalorder %s29, 2
      %s31 = scalar_select %p30, 0, %s29
      %p32 = scmp.lt.s32.totalorder %s12, 0
      %s33 = ssub.s32 0, %s12
      %s34 = scalar_select %p32, %s33, %s12
      %s35 = sshrl.u32 %s34, 3
      %s36 = ssub.s32 0, %s35
      %s37 = scalar_select %p32, %s36, %s35
      %p38 = scmp.lt.s32.totalorder %s31, 0
      %s39 = ssub.s32 0, %s31
      %s40 = scalar_select %p38, %s39, %s31
      %s41 = sshrl.u32 %s40, 3
      %s42 = ssub.s32 0, %s41
      %s43 = scalar_select %p38, %s42, %s41
      %s44 = ssub.s32 %s37, %s43
      %p45 = scmp.eq.s32.totalorder %s44, 0
      %s47 = sadd.s32 %s46, 1
      %s48 = scalar_select %p45, %s46, %s47
      %p51 = pneg %p45
      %p52 = scmp.eq.s32.totalorder %s5, 1
      %p53 = por %p51, %p52
      %p54 = scmp.ne.s32.totalorder %s46, %s49
      %p55 = scmp.eq.s32.totalorder %s5, 0
      %p56 = por %p54, %p55
      %p57 = scmp.ne.s32.totalorder %s46, %s49
      %p58 = scmp.eq.s32.totalorder %s10, 1
      %p59 = por %p57, %p58
      %p60 = scmp.ne.s32.totalorder %s49, %s50
      %p61 = scmp.eq.s32.totalorder %s10, 0
      %p62 = por %p60, %p61
      %p63 = scmp.ne.s32.totalorder %s49, %s50
      %p64 = scmp.eq.s32.totalorder %s11, 1
      %p65 = por %p63, %p64
      %p67 = scmp.ne.s32.totalorder %s50, %s66
      %p68 = scmp.eq.s32.totalorder %s11, 0
      %p69 = por %p67, %p68
      %p70 = scmp.le.s32.totalorder 1, %s5
      %p71 = scmp.lt.s32.totalorder %s5, 3
      %p72 = pnand %p70, %p71
      %p73 = pneg %p72
      // Predicated region
      $region9: #{custom-call.69} parent=5 // pred_check
        _
      $region10: #{custom-call.69} parent=5 // pred_check_branch
        %75 = sbr.rel (%p72) target = $region12
      $region11: #{custom-call.69} parent=5 // pred_region
        %s76 = ssub.s32 %s5, 1
      $region12: #{custom-call.69} parent=5 // pred_fallthru
        _
      %p77 = scmp.lt.s32.totalorder %s5, 2
      // Predicated region
      $region13: #{custom-call.69} parent=5 // pred_check
        %p78 = pneg %p77
      $region14: #{custom-call.69} parent=5 // pred_check_branch
        %80 = sbr.rel (%p78) target = $region16
      $region15: #{custom-call.69} parent=5 // pred_region
        %s81 = sand.u32 %s5, 1
        %s82 = sand.u32 %s5, 1
        %s83 = smul.addr %s82, 32
        %s84 = scalar_lea.vmem [#allocation0], %s83
        %s85 = smul.u32 4, %s13
        %s86 = sadd.s32 %s14, %s85
        %s87 = smul.addr %s12, 4
        %s88 = sadd.s32 %s86, %s87
        %s89 = smul.addr %s88, 8
        %s90 = scalar_lea.vmem %s0, %s89
        // Predicated region
        $region17: #{custom-call.69} parent=15 // pred_check
          _
        $region18: #{custom-call.69} parent=15 // pred_check_branch
          %92 = sbr.rel (0) target = $region20
        $region19: #{custom-call.69} parent=15 // pred_region
          // Predicated region
          $region21: #{custom-call.69} parent=19 // pred_check
            _
          $region22: #{custom-call.69} parent=19 // pred_check_branch
            %94 = sbr.rel (0) target = $region24
          $region23: #{custom-call.69} parent=19 // pred_region
            // Predicated region
            $region36: #{custom-call.69} parent=23 // pred_check
              _
            $region37: #{custom-call.69} parent=23 // pred_check_branch
              %116 = sbr.rel (0) target = $region39
            $region38: #{custom-call.69} parent=23 // pred_region
              loop: start=0, step=1, limit=1
              $region40: #{custom-call.69} parent=38 // loop_pre_header
                _
              $region41: #{custom-call.69} parent=38 // loop_header
                %s118 = sphi 0, %s122
                %p119 = scmp.ge.s32.totalorder %s118, 1
                %s123 = sphi %s90, %s90
                %s124 = sphi %s84, %s84
              $region42: #{custom-call.69} parent=38 // loop_header_branch
                %121 = sbr.rel (%p119) target = $region46
              $region43: #{custom-call.69} parent=38 // loop_body
                %v125 = vld [vmem:[%s123] sm:$0xff]
                %126 = vst [vmem:[%s124] sm:$0xff] %v125
                %v127 = vld [vmem:[%s123 + $0x8] sm:$0xff]
                %128 = vst [vmem:[%s124 + $0x8] sm:$0xff] %v127
                %v129 = vld [vmem:[%s123 + $0x10] sm:$0xff]
                %130 = vst [vmem:[%s124 + $0x10] sm:$0xff] %v129
                %v131 = vld [vmem:[%s123 + $0x18] sm:$0xff]
                %132 = vst [vmem:[%s124 + $0x18] sm:$0xff] %v131
              $region44: #{custom-call.69} parent=38 // loop_footer
                %s122 = sadd.s32 1, %s118
              $region45: #{custom-call.69} parent=38 // loop_footer_branch
                %117 = sbr.rel target = $region41
              $region46: #{custom-call.69} parent=38 // loop_exit
                _
            $region39: #{custom-call.69} parent=23 // pred_fallthru
              _
            // Predicated region
            $region47: #{custom-call.69} parent=23 // pred_check
              _
            $region48: #{custom-call.69} parent=23 // pred_check_branch
              %134 = sbr.rel target = $region50
            $region49: #{custom-call.69} parent=23 // pred_region
              _
            $region50: #{custom-call.69} parent=23 // pred_fallthru
              _
          $region24: #{custom-call.69} parent=19 // pred_fallthru
            _
          // Predicated region
          $region25: #{custom-call.69} parent=19 // pred_check
            _
          $region26: #{custom-call.69} parent=19 // pred_check_branch
            %96 = sbr.rel target = $region28
          $region27: #{custom-call.69} parent=19 // pred_region
            %s98 = ssub.s32 256, 1
            loop: start=0, step=1, limit=1
            $region29: #{custom-call.69} parent=27 // loop_pre_header
              _
            $region30: #{custom-call.69} parent=27 // loop_header
              %s100 = sphi 0, %s104
              %p101 = scmp.ge.s32.totalorder %s100, 1
              %s105 = sphi %s90, %s90
              %s106 = sphi %s84, %s84
            $region31: #{custom-call.69} parent=27 // loop_header_branch
              %103 = sbr.rel (%p101) target = $region35
            $region32: #{custom-call.69} parent=27 // loop_body
              %v107 = vld [vmem:[%s105] sm:%s98]
              %108 = vst [vmem:[%s106] sm:%s98] %v107
              %v109 = vld [vmem:[%s105 + $0x8] sm:%s98]
              %110 = vst [vmem:[%s106 + $0x8] sm:%s98] %v109
              %v111 = vld [vmem:[%s105 + $0x10] sm:%s98]
              %112 = vst [vmem:[%s106 + $0x10] sm:%s98] %v111
              %v113 = vld [vmem:[%s105 + $0x18] sm:%s98]
              %114 = vst [vmem:[%s106 + $0x18] sm:%s98] %v113
            $region33: #{custom-call.69} parent=27 // loop_footer
              %s104 = sadd.s32 1, %s100
            $region34: #{custom-call.69} parent=27 // loop_footer_branch
              %99 = sbr.rel target = $region30
            $region35: #{custom-call.69} parent=27 // loop_exit
              _
          $region28: #{custom-call.69} parent=19 // pred_fallthru
            _
        $region20: #{custom-call.69} parent=15 // pred_fallthru
          _
        %135 = vnop
      $region16: #{custom-call.69} parent=5 // pred_fallthru
        _
      %p136 = scmp.le.s32.totalorder 1, %s5
      %p137 = scmp.lt.s32.totalorder %s5, 3
      %p138 = pnand %p136, %p137
      %p139 = pneg %p138
      // Predicated region
      $region51: #{custom-call.69} parent=5 // pred_check
        _
      $region52: #{custom-call.69} parent=5 // pred_check_branch
        %141 = sbr.rel (%p138) target = $region54
      $region53: #{custom-call.69} parent=5 // pred_region
        #allocation4 [shape = 'f32[32,128]{1,0}', space=vmem, size = 0x4000, scoped, tag = 'scratch for Householder reflectors']
        %s142 = ssub.s32 %s5, 1
        %s143 = sand.u32 %s10, 1
        %s144 = sand.u32 %s10, 1
        %s145 = smul.addr %s144, 32
        %s146 = scalar_lea.vmem [#allocation0], %s145
        %s147 = sand.u32 %s10, 1
        %s148 = sand.u32 %s10, 1
        %s149 = smul.addr %s148, 32
        %s150 = scalar_lea.vmem [#allocation0], %s149
        %s151 = sand.u32 %s10, 1
        %s152 = sand.u32 %s10, 1
        %s153 = smul.addr %s152, 32
        %s154 = scalar_lea.vmem [#allocation1], %s153
        %p155 = pneg %p62
        %p156 = pneg %p59
        %s157 = sand.u32 %s49, 1
        %s158 = sand.u32 %s49, 1
        %s159 = smul.addr %s158, 2
        %s160 = scalar_lea.vmem [#allocation3], %s159
        %s161 = smul.u32 4, %s16
        %s162 = smul.u32 4, %s16
        %p163 = scmp.lt.s32.totalorder %s15, 0
        %s164 = ssub.s32 0, %s15
        %s165 = scalar_select %p163, %s164, %s15
        %s166 = sshrl.u32 %s165, 3
        %s167 = ssub.s32 0, %s166
        %s168 = scalar_select %p163, %s167, %s166
        %s169 = sand.u32 %s15, 7
        %s170 = scalar_lea.vmem [#allocation2], %s169
        %v171 = vld [vmem:[%s146] sm:$0xff]
        %172 = vst [vmem:[%s154] sm:$0xff] %v171
        %s173 = scalar_lea.vmem %s154, 8 [#allocation1]
        %s174 = scalar_lea.vmem %s146, 8 [#allocation0]
        %v175 = vld [vmem:[%s174] sm:$0xff]
        %176 = vst [vmem:[%s173] sm:$0xff] %v175
        %s177 = scalar_lea.vmem %s154, 16 [#allocation1]
        %s178 = scalar_lea.vmem %s146, 16 [#allocation0]
        %v179 = vld [vmem:[%s178] sm:$0xff]
        %180 = vst [vmem:[%s177] sm:$0xff] %v179
        %s181 = scalar_lea.vmem %s154, 24 [#allocation1]
        %s182 = scalar_lea.vmem %s146, 24 [#allocation0]
        %v183 = vld [vmem:[%s182] sm:$0xff]
        %184 = vst [vmem:[%s181] sm:$0xff] %v183
        %185 = vst [vmem:[%s170] sm:$0x1] 0.0
        loop: start=0, step=1, limit=16
        $region55: #{custom-call.69} parent=53 // loop_pre_header
          _
        $region56: #{custom-call.69} parent=53 // loop_header
          %s187 = sphi 0, %s191
          %p188 = scmp.ge.s32.totalorder %s187, 16
        $region57: #{custom-call.69} parent=53 // loop_header_branch
          %190 = sbr.rel (%p188) target = $region61
        $region58: #{custom-call.69} parent=53 // loop_body
          %v192 = vld [vmem:[%s154] sm:$0xff]
          %v193 = vlaneseq
          %v194 = vshrl.u32 %v193, 7
          %v196 = vstv %s187
          %vm197 = vcmp.gt.s32.totalorder %v194, %v196
          %v198 = vsel %vm197, %v192, 0.0
          %v199 = vmul.f32 %v198, %v198
          %s200 = scalar_lea.vmem %s154, 8 [#allocation1]
          %v201 = vld [vmem:[%s200] sm:$0xff]
          %v202 = vlaneseq
          %v203 = vshrl.u32 %v202, 7
          %v204 = vadd.s32 %v203, 8
          %v205 = vstv %s187
          %vm206 = vcmp.gt.s32.totalorder %v204, %v205
          %v207 = vsel %vm206, %v201, 0.0
          %v208 = vmul.f32 %v207, %v207
          %v209 = vadd.f32 %v199, %v208
          %s210 = scalar_lea.vmem %s154, 16 [#allocation1]
          %v211 = vld [vmem:[%s210] sm:$0xff]
          %v212 = vlaneseq
          %v213 = vshrl.u32 %v212, 7
          %v214 = vadd.s32 %v213, 16
          %v215 = vstv %s187
          %vm216 = vcmp.gt.s32.totalorder %v214, %v215
          %v217 = vsel %vm216, %v211, 0.0
          %v218 = vmul.f32 %v217, %v217
          %v219 = vadd.f32 %v209, %v218
          %s220 = scalar_lea.vmem %s154, 24 [#allocation1]
          %v221 = vld [vmem:[%s220] sm:$0xff]
          %v222 = vlaneseq
          %v223 = vshrl.u32 %v222, 7
          %v224 = vadd.s32 %v223, 24
          %v225 = vstv %s187
          %vm226 = vcmp.gt.s32.totalorder %v224, %v225
          %vm227 = vcmp.lt.s32.totalorder %v224, 32
          %vm228 = vmand %vm226, %vm227
          %v229 = vsel %vm228, %v221, 0.0
          %v230 = vmul.f32 %v229, %v229
          %v231 = vadd.f32 %v219, %v230
          %v232 = vrot.slane %v231, 4
          %v233 = vadd.f32 %v231, %v232
          %v234 = vrot.slane %v233, 2
          %v235 = vadd.f32 %v233, %v234
          %v236 = vrot.slane %v235, 1
          %v237 = vadd.f32 %v235, %v236
          %v238 = vrsqrt.pop %v237
          %v239 = vmul.f32 %v238, %v237
          %v240 = vmul.f32 %v239, %v238
          %v241 = vmul.f32 0.5, %v240
          %v242 = vsub.f32 1.5, %v241
          %v243 = vmul.f32 %v238, %v242
          %v244 = vmul.f32 %v237, %v243
          %vm245 = vcmp.eq.f32.partialorder %v237, inf
          %v246 = vsel %vm245, %v237, %v244
          %vm247 = vcmp.eq.f32.partialorder %v237, 0.0
          %v248 = vand.u32 %v237, 2147483648
          %v249 = vsel %vm247, %v248, %v246
          %vm250 = vcmp.eq.f32.partialorder %v237, 0.0
          %s251 = sshrl.u32 %s187, 3
          %s252 = sand.u32 %s187, 7
          %s253 = smul.addr %s251, 8
          %s254 = sadd.s32 %s252, %s253
          %s255 = scalar_lea.vmem %s154, %s254 [#allocation1]
          %v256 = vld [vmem:[%s255] ss:$0 sm:$0xff]
          %v257 = vand.u32 2147483647, %v256
          %v258 = vmax.f32 %v257, 0.0
          %v259 = vand.u32 2147483647, %v249
          %v260 = vmax.f32 %v258, %v259
          %v261 = vrcp.pop %v260
          %v262 = vmul.f32 %v260, %v261
          %v263 = vsub.f32 1.0, %v262
          %v264 = vmul.f32 %v261, %v263
          %v265 = vadd.f32 %v261, %v264
          %vm266 = vweird.f32 %v260
          %vm267 = vweird.f32 %v261
          %vm268 = vmor %vm266, %vm267
          %v269 = vsel %vm268, %v261, %v265
          %v270 = vand.u32 2147483647, %v260
          %vm271 = vcmp.eq.f32.partialorder %v270, 8.507059e+37
          %v272 = vand.u32 %v260, 2147483648
          %v273 = vor.u32 1.1754944e-38, %v272
          %v274 = vsel %vm271, %v273, %v269
          %v275 = vmul.f32 %v257, %v274
          %v276 = vmul.f32 %v275, %v275
          %v277 = vrcp.pop %v260
          %v278 = vmul.f32 %v260, %v277
          %v279 = vsub.f32 1.0, %v278
          %v280 = vmul.f32 %v277, %v279
          %v281 = vadd.f32 %v277, %v280
          %vm282 = vweird.f32 %v260
          %vm283 = vweird.f32 %v277
          %vm284 = vmor %vm282, %vm283
          %v285 = vsel %vm284, %v277, %v281
          %v286 = vand.u32 2147483647, %v260
          %vm287 = vcmp.eq.f32.partialorder %v286, 8.507059e+37
          %v288 = vand.u32 %v260, 2147483648
          %v289 = vor.u32 1.1754944e-38, %v288
          %v290 = vsel %vm287, %v289, %v285
          %v291 = vmul.f32 0.0, %v290
          %v292 = vmul.f32 %v291, %v291
          %v293 = vadd.f32 %v276, %v292
          %v294 = vrcp.pop %v260
          %v295 = vmul.f32 %v260, %v294
          %v296 = vsub.f32 1.0, %v295
          %v297 = vmul.f32 %v294, %v296
          %v298 = vadd.f32 %v294, %v297
          %vm299 = vweird.f32 %v260
          %vm300 = vweird.f32 %v294
          %vm301 = vmor %vm299, %vm300
          %v302 = vsel %vm301, %v294, %v298
          %v303 = vand.u32 2147483647, %v260
          %vm304 = vcmp.eq.f32.partialorder %v303, 8.507059e+37
          %v305 = vand.u32 %v260, 2147483648
          %v306 = vor.u32 1.1754944e-38, %v305
          %v307 = vsel %vm304, %v306, %v302
          %v308 = vmul.f32 %v259, %v307
          %v309 = vmul.f32 %v308, %v308
          %v310 = vadd.f32 %v293, %v309
          %vm311 = vcmp.eq.f32.partialorder %v260, 0.0
          %v312 = vrsqrt.pop %v310
          %v313 = vmul.f32 %v312, %v310
          %v314 = vmul.f32 %v313, %v312
          %v315 = vmul.f32 0.5, %v314
          %v316 = vsub.f32 1.5, %v315
          %v317 = vmul.f32 %v312, %v316
          %v318 = vmul.f32 %v310, %v317
          %vm319 = vcmp.eq.f32.partialorder %v310, inf
          %v320 = vsel %vm319, %v310, %v318
          %vm321 = vcmp.eq.f32.partialorder %v310, 0.0
          %v322 = vand.u32 %v310, 2147483648
          %v323 = vsel %vm321, %v322, %v320
          %v324 = vmul.f32 %v260, %v323
          %v325 = vsel %vm311, 0.0, %v324
          %vm326 = vcmp.lt.f32.partialorder %v256, 0.0
          %v327 = vxor.u32 %v325, 2147483648
          %v328 = vsel %vm326, %v325, %v327
          %v329 = vsub.f32 %v328, %v256
          %v330 = vrcp.pop %v328
          %v331 = vmul.f32 %v328, %v330
          %v332 = vsub.f32 1.0, %v331
          %v333 = vmul.f32 %v330, %v332
          %v334 = vadd.f32 %v330, %v333
          %vm335 = vweird.f32 %v328
          %vm336 = vweird.f32 %v330
          %vm337 = vmor %vm335, %vm336
          %v338 = vsel %vm337, %v330, %v334
          %v339 = vand.u32 2147483647, %v328
          %vm340 = vcmp.eq.f32.partialorder %v339, 8.507059e+37
          %v341 = vand.u32 %v328, 2147483648
          %v342 = vor.u32 1.1754944e-38, %v341
          %v343 = vsel %vm340, %v342, %v338
          %v344 = vmul.f32 %v329, %v343
          %v345 = vsel %vm250, %v256, %v328
          %v346 = vsel %vm250, 0.0, %v344
          %v347 = vsub.f32 %v256, %v345
          %s348 = smov %s154
          %v349 = vlaneseq
          %v350 = vshrl.u32 %v349, 7
          %v351 = vmov %v350
          %v352 = vld [vmem:[%s348] sm:$0xff]
          %v354 = vstv %s187
          %vm355 = vcmp.gt.s32.totalorder %v351, %v354
          %v356 = vsel %vm355, %v352, 0.0
          %v357 = vrcp.pop %v347
          %v358 = vmul.f32 %v347, %v357
          %v359 = vsub.f32 1.0, %v358
          %v360 = vmul.f32 %v357, %v359
          %v361 = vadd.f32 %v357, %v360
          %vm362 = vweird.f32 %v347
          %vm363 = vweird.f32 %v357
          %vm364 = vmor %vm362, %vm363
          %v365 = vsel %vm364, %v357, %v361
          %v366 = vand.u32 2147483647, %v347
          %vm367 = vcmp.eq.f32.partialorder %v366, 8.507059e+37
          %v368 = vand.u32 %v347, 2147483648
          %v369 = vor.u32 1.1754944e-38, %v368
          %v370 = vsel %vm367, %v369, %v365
          %v371 = vmul.f32 %v356, %v370
          %v372 = vsel %vm250, 0.0, %v371
          %v373 = vstv %s187
          %v374 = vlaneseq
          %v375 = vand.u32 %v374, 127
          %vm376 = vcmp.eq.s32.totalorder %v375, %v373
          %v377 = vsel %vm376, %v372, 0.0
          %378 = vadd.xlane.f32.xlu0 %v377
          %v379 = vpop.xlane.xlu0 %378
          %380 = vst [vmem:[#allocation4] sm:$0xff] %v379
          %s381 = scalar_lea.vmem %s348, 8
          %v382 = vld [vmem:[%s381] sm:$0xff]
          %v383 = vadd.s32 %v351, 8
          %v384 = vstv %s187
          %vm385 = vcmp.gt.s32.totalorder %v383, %v384
          %v386 = vsel %vm385, %v382, 0.0
          %v387 = vrcp.pop %v347
          %v388 = vmul.f32 %v347, %v387
          %v389 = vsub.f32 1.0, %v388
          %v390 = vmul.f32 %v387, %v389
          %v391 = vadd.f32 %v387, %v390
          %vm392 = vweird.f32 %v347
          %vm393 = vweird.f32 %v387
          %vm394 = vmor %vm392, %vm393
          %v395 = vsel %vm394, %v387, %v391
          %v396 = vand.u32 2147483647, %v347
          %vm397 = vcmp.eq.f32.partialorder %v396, 8.507059e+37
          %v398 = vand.u32 %v347, 2147483648
          %v399 = vor.u32 1.1754944e-38, %v398
          %v400 = vsel %vm397, %v399, %v395
          %v401 = vmul.f32 %v386, %v400
          %v402 = vsel %vm250, 0.0, %v401
          %v403 = vstv %s187
          %v404 = vlaneseq
          %v405 = vand.u32 %v404, 127
          %vm406 = vcmp.eq.s32.totalorder %v405, %v403
          %v407 = vsel %vm406, %v402, 0.0
          %408 = vadd.xlane.f32.xlu0 %v407
          %v409 = vpop.xlane.xlu0 %408
          %s410 = scalar_lea.vmem [#allocation4], 8
          %411 = vst [vmem:[%s410] sm:$0xff] %v409
          %s412 = scalar_lea.vmem %s348, 16
          %v413 = vld [vmem:[%s412] sm:$0xff]
          %v414 = vadd.s32 %v351, 16
          %v415 = vstv %s187
          %vm416 = vcmp.gt.s32.totalorder %v414, %v415
          %v417 = vsel %vm416, %v413, 0.0
          %v418 = vrcp.pop %v347
          %v419 = vmul.f32 %v347, %v418
          %v420 = vsub.f32 1.0, %v419
          %v421 = vmul.f32 %v418, %v420
          %v422 = vadd.f32 %v418, %v421
          %vm423 = vweird.f32 %v347
          %vm424 = vweird.f32 %v418
          %vm425 = vmor %vm423, %vm424
          %v426 = vsel %vm425, %v418, %v422
          %v427 = vand.u32 2147483647, %v347
          %vm428 = vcmp.eq.f32.partialorder %v427, 8.507059e+37
          %v429 = vand.u32 %v347, 2147483648
          %v430 = vor.u32 1.1754944e-38, %v429
          %v431 = vsel %vm428, %v430, %v426
          %v432 = vmul.f32 %v417, %v431
          %v433 = vsel %vm250, 0.0, %v432
          %v434 = vstv %s187
          %v435 = vlaneseq
          %v436 = vand.u32 %v435, 127
          %vm437 = vcmp.eq.s32.totalorder %v436, %v434
          %v438 = vsel %vm437, %v433, 0.0
          %439 = vadd.xlane.f32.xlu0 %v438
          %v440 = vpop.xlane.xlu0 %439
          %s441 = scalar_lea.vmem [#allocation4], 16
          %442 = vst [vmem:[%s441] sm:$0xff] %v440
          %s443 = scalar_lea.vmem %s348, 24
          %v444 = vld [vmem:[%s443] sm:$0xff]
          %v445 = vadd.s32 %v351, 24
          %v446 = vstv %s187
          %vm447 = vcmp.gt.s32.totalorder %v445, %v446
          %vm448 = vcmp.lt.s32.totalorder %v445, 32
          %vm449 = vmand %vm447, %vm448
          %v450 = vsel %vm449, %v444, 0.0
          %v451 = vrcp.pop %v347
          %v452 = vmul.f32 %v347, %v451
          %v453 = vsub.f32 1.0, %v452
          %v454 = vmul.f32 %v451, %v453
          %v455 = vadd.f32 %v451, %v454
          %vm456 = vweird.f32 %v347
          %vm457 = vweird.f32 %v451
          %vm458 = vmor %vm456, %vm457
          %v459 = vsel %vm458, %v451, %v455
          %v460 = vand.u32 2147483647, %v347
          %vm461 = vcmp.eq.f32.partialorder %v460, 8.507059e+37
          %v462 = vand.u32 %v347, 2147483648
          %v463 = vor.u32 1.1754944e-38, %v462
          %v464 = vsel %vm461, %v463, %v459
          %v465 = vmul.f32 %v450, %v464
          %v466 = vsel %vm250, 0.0, %v465
          %v467 = vstv %s187
          %v468 = vlaneseq
          %v469 = vand.u32 %v468, 127
          %vm470 = vcmp.eq.s32.totalorder %v469, %v467
          %v471 = vsel %vm470, %v466, 0.0
          %472 = vadd.xlane.f32.xlu0 %v471
          %v473 = vpop.xlane.xlu0 %472
          %s474 = scalar_lea.vmem [#allocation4], 24
          %475 = vst [vmem:[%s474] sm:$0xff] %v473
          %s476 = scalar_lea.vmem [#allocation4], %s187
          %477 = vst [vmem:[%s476] sm:$0x1] 1.0
          %v478 = vstv %s187
          %v479 = vlaneseq
          %v480 = vand.u32 %v479, 127
          %vm481 = vcmp.eq.s32.totalorder %v480, %v478
          %v482 = vsel %vm481, %v346, 0.0
          %483 = vadd.xlane.f32.xlu0 %v482
          %v484 = vpop.xlane.xlu0 %483
          %v485 = vstv %s187
          %v486 = vlaneseq
          %v487 = vand.u32 %v486, 127
          %vm488 = vcmp.eq.s32.totalorder %v487, %v485
          %v489 = vld [vmem:[%s170] ss:$0 sm:$0xff]
          %v490 = vsel %vm488, %v484, %v489
          %491 = vst [vmem:[%s170] sm:$0x1] %v490
          %s492 = smov %s154
          %s493 = smov [#allocation4]
          %v494 = vlaneseq
          %v495 = vshrl.u32 %v494, 7
          %v496 = vmov %v495
          %v498 = vld [vmem:[%s493] sm:$0xff]
          %v499 = vld [vmem:[%s492] sm:$0xff]
          %v500 = vmul.f32 %v498, %v499
          %v501 = vadd.s32 %v496, 8
          %s502 = scalar_lea.vmem %s493, 8
          %v503 = vld [vmem:[%s502] sm:$0xff]
          %s504 = scalar_lea.vmem %s492, 8
          %v505 = vld [vmem:[%s504] sm:$0xff]
          %v506 = vmul.f32 %v503, %v505
          %v507 = vadd.f32 %v500, %v506
          %v508 = vadd.s32 %v496, 16
          %s509 = scalar_lea.vmem %s493, 16
          %v510 = vld [vmem:[%s509] sm:$0xff]
          %s511 = scalar_lea.vmem %s492, 16
          %v512 = vld [vmem:[%s511] sm:$0xff]
          %v513 = vmul.f32 %v510, %v512
          %v514 = vadd.f32 %v507, %v513
          %v515 = vadd.s32 %v496, 24
          %s516 = scalar_lea.vmem %s493, 24
          %v517 = vld [vmem:[%s516] sm:$0xff]
          %s518 = scalar_lea.vmem %s492, 24
          %v519 = vld [vmem:[%s518] sm:$0xff]
          %v520 = vmul.f32 %v517, %v519
          %vm521 = vcmp.lt.s32.totalorder %v515, 32
          %v522 = vsel %vm521, %v520, 0.0
          %v523 = vadd.f32 %v514, %v522
          %v524 = vrot.slane %v523, 4
          %v525 = vadd.f32 %v523, %v524
          %v526 = vrot.slane %v525, 2
          %v527 = vadd.f32 %v525, %v526
          %v528 = vrot.slane %v527, 1
          %v529 = vadd.f32 %v527, %v528
          %s530 = smov %s492
          %s531 = smov %s493
          %v532 = vlaneseq
          %v533 = vshrl.u32 %v532, 7
          %v534 = vmov %v533
          %v535 = vmul.f32 %v529, %v484
          %v537 = vlaneseq
          %v538 = vand.u32 %v537, 127
          %v539 = vld [vmem:[%s531] sm:$0xff]
          %v540 = vmul.f32 %v539, %v535
          %v541 = vld [vmem:[%s530] sm:$0xff]
          %v542 = vstv %s187
          %vm543 = vcmp.gt.s32.totalorder %v538, %v542
          %v544 = vsub.f32 %v541, %v540
          %v545 = vsel %vm543, %v544, %v541
          %v546 = vstv %s187
          %v547 = vlaneseq
          %v548 = vand.u32 %v547, 127
          %vm549 = vcmp.eq.s32.totalorder %v548, %v546
          %v550 = vstv %s187
          %vm551 = vcmp.ge.s32.totalorder %v534, %v550
          %vm552 = vmand %vm549, %vm551
          %v553 = vsel %vm552, %v539, %v545
          %554 = vst [vmem:[%s530] sm:$0xff] %v553
          %v555 = vadd.s32 %v534, 8
          %v556 = vlaneseq
          %v557 = vand.u32 %v556, 127
          %s558 = scalar_lea.vmem %s531, 8
          %v559 = vld [vmem:[%s558] sm:$0xff]
          %v560 = vmul.f32 %v559, %v535
          %s561 = scalar_lea.vmem %s530, 8
          %v562 = vld [vmem:[%s561] sm:$0xff]
          %v563 = vstv %s187
          %vm564 = vcmp.gt.s32.totalorder %v557, %v563
          %v565 = vsub.f32 %v562, %v560
          %v566 = vsel %vm564, %v565, %v562
          %v567 = vstv %s187
          %v568 = vlaneseq
          %v569 = vand.u32 %v568, 127
          %vm570 = vcmp.eq.s32.totalorder %v569, %v567
          %v571 = vstv %s187
          %vm572 = vcmp.ge.s32.totalorder %v555, %v571
          %vm573 = vmand %vm570, %vm572
          %v574 = vsel %vm573, %v559, %v566
          %575 = vst [vmem:[%s561] sm:$0xff] %v574
          %v576 = vadd.s32 %v534, 16
          %v577 = vlaneseq
          %v578 = vand.u32 %v577, 127
          %s579 = scalar_lea.vmem %s531, 16
          %v580 = vld [vmem:[%s579] sm:$0xff]
          %v581 = vmul.f32 %v580, %v535
          %s582 = scalar_lea.vmem %s530, 16
          %v583 = vld [vmem:[%s582] sm:$0xff]
          %v584 = vstv %s187
          %vm585 = vcmp.gt.s32.totalorder %v578, %v584
          %v586 = vsub.f32 %v583, %v581
          %v587 = vsel %vm585, %v586, %v583
          %v588 = vstv %s187
          %v589 = vlaneseq
          %v590 = vand.u32 %v589, 127
          %vm591 = vcmp.eq.s32.totalorder %v590, %v588
          %v592 = vstv %s187
          %vm593 = vcmp.ge.s32.totalorder %v576, %v592
          %vm594 = vmand %vm591, %vm593
          %v595 = vsel %vm594, %v580, %v587
          %596 = vst [vmem:[%s582] sm:$0xff] %v595
          %v597 = vadd.s32 %v534, 24
          %v598 = vlaneseq
          %v599 = vand.u32 %v598, 127
          %s600 = scalar_lea.vmem %s531, 24
          %v601 = vld [vmem:[%s600] sm:$0xff]
          %v602 = vmul.f32 %v601, %v535
          %s603 = scalar_lea.vmem %s530, 24
          %v604 = vld [vmem:[%s603] sm:$0xff]
          %v605 = vstv %s187
          %vm606 = vcmp.gt.s32.totalorder %v599, %v605
          %v607 = vsub.f32 %v604, %v602
          %v608 = vsel %vm606, %v607, %v604
          %v609 = vstv %s187
          %v610 = vlaneseq
          %v611 = vand.u32 %v610, 127
          %vm612 = vcmp.eq.s32.totalorder %v611, %v609
          %v613 = vstv %s187
          %vm614 = vcmp.ge.s32.totalorder %v597, %v613
          %vm615 = vmand %vm612, %vm614
          %v616 = vsel %vm615, %v601, %v608
          %617 = vst [vmem:[%s603] sm:$0xff] %v616
          %s618 = scalar_lea.vmem %s530, %s187
          %v619 = vld [vmem:[%s618] ss:$0 sm:$0xff]
          %v620 = vstv %s187
          %v621 = vlaneseq
          %v622 = vand.u32 %v621, 127
          %vm623 = vcmp.eq.s32.totalorder %v622, %v620
          %v624 = vsel %vm623, %v345, %v619
          %625 = vst [vmem:[%s618] sm:$0x1] %v624
        $region59: #{custom-call.69} parent=53 // loop_footer
          %s191 = sadd.s32 1, %s187
        $region60: #{custom-call.69} parent=53 // loop_footer_branch
          %186 = sbr.rel target = $region56
        $region61: #{custom-call.69} parent=53 // loop_exit
          _
        %s627 = ssub.s32 4, 1
        %v628 = vld [vmem:[#allocation2] sm:%s627]
        %s630 = ssub.s32 4, 1
        %631 = vst [vmem:[%s160] sm:%s630] %v628
        %s632 = sand.u32 %s10, 1
        %s633 = sand.u32 %s10, 1
        %s634 = smul.addr %s633, 32
        %s635 = scalar_lea.vmem [#allocation1], %s634
        %s636 = sand.u32 %s49, 1
        %s637 = sand.u32 %s49, 1
        %s638 = smul.addr %s637, 2
        %s639 = scalar_lea.vmem [#allocation3], %s638
        %s640 = smul.u32 4, %s16
        %s641 = sadd.s32 %s17, %s640
        %s642 = smul.addr %s15, 4
        %s643 = sadd.s32 %s641, %s642
        %s644 = smul.addr %s643, 8
        %s645 = scalar_lea.vmem %s1, %s644
        // Predicated region
        $region62: #{custom-call.69} parent=53 // pred_check
          _
        $region63: #{custom-call.69} parent=53 // pred_check_branch
          %647 = sbr.rel (0) target = $region65
        $region64: #{custom-call.69} parent=53 // pred_region
          // Predicated region
          $region66: #{custom-call.69} parent=64 // pred_check
            _
          $region67: #{custom-call.69} parent=64 // pred_check_branch
            %649 = sbr.rel (0) target = $region69
          $region68: #{custom-call.69} parent=64 // pred_region
            // Predicated region
            $region81: #{custom-call.69} parent=68 // pred_check
              _
            $region82: #{custom-call.69} parent=68 // pred_check_branch
              %671 = sbr.rel (0) target = $region84
            $region83: #{custom-call.69} parent=68 // pred_region
              loop: start=0, step=1, limit=1
              $region85: #{custom-call.69} parent=83 // loop_pre_header
                _
              $region86: #{custom-call.69} parent=83 // loop_header
                %s673 = sphi 0, %s677
                %p674 = scmp.ge.s32.totalorder %s673, 1
                %s678 = sphi %s635, %s635
                %s679 = sphi %s645, %s645
              $region87: #{custom-call.69} parent=83 // loop_header_branch
                %676 = sbr.rel (%p674) target = $region91
              $region88: #{custom-call.69} parent=83 // loop_body
                %v680 = vld [vmem:[%s678] sm:$0xff]
                %681 = vst [vmem:[%s679] sm:$0xff] %v680
                %v682 = vld [vmem:[%s678 + $0x8] sm:$0xff]
                %683 = vst [vmem:[%s679 + $0x8] sm:$0xff] %v682
                %v684 = vld [vmem:[%s678 + $0x10] sm:$0xff]
                %685 = vst [vmem:[%s679 + $0x10] sm:$0xff] %v684
                %v686 = vld [vmem:[%s678 + $0x18] sm:$0xff]
                %687 = vst [vmem:[%s679 + $0x18] sm:$0xff] %v686
              $region89: #{custom-call.69} parent=83 // loop_footer
                %s677 = sadd.s32 1, %s673
              $region90: #{custom-call.69} parent=83 // loop_footer_branch
                %672 = sbr.rel target = $region86
              $region91: #{custom-call.69} parent=83 // loop_exit
                _
            $region84: #{custom-call.69} parent=68 // pred_fallthru
              _
            // Predicated region
            $region92: #{custom-call.69} parent=68 // pred_check
              _
            $region93: #{custom-call.69} parent=68 // pred_check_branch
              %689 = sbr.rel target = $region95
            $region94: #{custom-call.69} parent=68 // pred_region
              _
            $region95: #{custom-call.69} parent=68 // pred_fallthru
              _
          $region69: #{custom-call.69} parent=64 // pred_fallthru
            _
          // Predicated region
          $region70: #{custom-call.69} parent=64 // pred_check
            _
          $region71: #{custom-call.69} parent=64 // pred_check_branch
            %651 = sbr.rel target = $region73
          $region72: #{custom-call.69} parent=64 // pred_region
            %s653 = ssub.s32 256, 1
            loop: start=0, step=1, limit=1
            $region74: #{custom-call.69} parent=72 // loop_pre_header
              _
            $region75: #{custom-call.69} parent=72 // loop_header
              %s655 = sphi 0, %s659
              %p656 = scmp.ge.s32.totalorder %s655, 1
              %s660 = sphi %s635, %s635
              %s661 = sphi %s645, %s645
            $region76: #{custom-call.69} parent=72 // loop_header_branch
              %658 = sbr.rel (%p656) target = $region80
            $region77: #{custom-call.69} parent=72 // loop_body
              %v662 = vld [vmem:[%s660] sm:%s653]
              %663 = vst [vmem:[%s661] sm:%s653] %v662
              %v664 = vld [vmem:[%s660 + $0x8] sm:%s653]
              %665 = vst [vmem:[%s661 + $0x8] sm:%s653] %v664
              %v666 = vld [vmem:[%s660 + $0x10] sm:%s653]
              %667 = vst [vmem:[%s661 + $0x10] sm:%s653] %v666
              %v668 = vld [vmem:[%s660 + $0x18] sm:%s653]
              %669 = vst [vmem:[%s661 + $0x18] sm:%s653] %v668
            $region78: #{custom-call.69} parent=72 // loop_footer
              %s659 = sadd.s32 1, %s655
            $region79: #{custom-call.69} parent=72 // loop_footer_branch
              %654 = sbr.rel target = $region75
            $region80: #{custom-call.69} parent=72 // loop_exit
              _
          $region73: #{custom-call.69} parent=64 // pred_fallthru
            _
        $region65: #{custom-call.69} parent=53 // pred_fallthru
          _
        %690 = vnop
        // Predicated region
        $region96: #{custom-call.69} parent=53 // pred_check
          %p691 = pneg %p59
        $region97: #{custom-call.69} parent=53 // pred_check_branch
          %693 = sbr.rel (%p691) target = $region99
        $region98: #{custom-call.69} parent=53 // pred_region
          %p694 = scmp.lt.s32.totalorder %s15, 0
          %s695 = ssub.s32 0, %s15
          %s696 = scalar_select %p694, %s695, %s15
          %s697 = sshrl.u32 %s696, 3
          %s698 = ssub.s32 0, %s697
          %s699 = scalar_select %p694, %s698, %s697
          %s700 = smul.addr %s699, 2
          %s701 = scalar_lea.vmem %s2, %s700
          // Predicated region
          $region100: #{custom-call.69} parent=98 // pred_check
            _
          $region101: #{custom-call.69} parent=98 // pred_check_branch
            %703 = sbr.rel (0) target = $region103
          $region102: #{custom-call.69} parent=98 // pred_region
            // Predicated region
            $region104: #{custom-call.69} parent=102 // pred_check
              _
            $region105: #{custom-call.69} parent=102 // pred_check_branch
              %705 = sbr.rel target = $region107
            $region106: #{custom-call.69} parent=102 // pred_region
              // Predicated region
              $region119: #{custom-call.69} parent=106 // pred_check
                _
              $region120: #{custom-call.69} parent=106 // pred_check_branch
                %721 = sbr.rel (0) target = $region122
              $region121: #{custom-call.69} parent=106 // pred_region
                %s723 = ssub.s32 4, 1
                loop: start=0, step=1, limit=1
                $region123: #{custom-call.69} parent=121 // loop_pre_header
                  _
                $region124: #{custom-call.69} parent=121 // loop_header
                  %s725 = sphi 0, %s729
                  %p726 = scmp.ge.s32.totalorder %s725, 1
                  %s730 = sphi %s639, %s639
                  %s731 = sphi %s701, %s701
                $region125: #{custom-call.69} parent=121 // loop_header_branch
                  %728 = sbr.rel (%p726) target = $region129
                $region126: #{custom-call.69} parent=121 // loop_body
                  %v732 = vld [vmem:[%s730] sm:%s723]
                  %733 = vst [vmem:[%s731] sm:%s723] %v732
                $region127: #{custom-call.69} parent=121 // loop_footer
                  %s729 = sadd.s32 1, %s725
                $region128: #{custom-call.69} parent=121 // loop_footer_branch
                  %724 = sbr.rel target = $region124
                $region129: #{custom-call.69} parent=121 // loop_exit
                  _
              $region122: #{custom-call.69} parent=106 // pred_fallthru
                _
            $region107: #{custom-call.69} parent=102 // pred_fallthru
              _
            // Predicated region
            $region108: #{custom-call.69} parent=102 // pred_check
              _
            $region109: #{custom-call.69} parent=102 // pred_check_branch
              %707 = sbr.rel (0) target = $region111
            $region110: #{custom-call.69} parent=102 // pred_region
              %s709 = ssub.s32 4, 1
              loop: start=0, step=1, limit=1
              $region112: #{custom-call.69} parent=110 // loop_pre_header
                _
              $region113: #{custom-call.69} parent=110 // loop_header
                %s711 = sphi 0, %s715
                %p712 = scmp.ge.s32.totalorder %s711, 1
                %s716 = sphi %s639, %s639
                %s717 = sphi %s701, %s701
              $region114: #{custom-call.69} parent=110 // loop_header_branch
                %714 = sbr.rel (%p712) target = $region118
              $region115: #{custom-call.69} parent=110 // loop_body
                %v718 = vld [vmem:[%s716] sm:%s709]
                %719 = vst [vmem:[%s717] sm:%s709] %v718
              $region116: #{custom-call.69} parent=110 // loop_footer
                %s715 = sadd.s32 1, %s711
              $region117: #{custom-call.69} parent=110 // loop_footer_branch
                %710 = sbr.rel target = $region113
              $region118: #{custom-call.69} parent=110 // loop_exit
                _
            $region111: #{custom-call.69} parent=102 // pred_fallthru
              _
          $region103: #{custom-call.69} parent=98 // pred_fallthru
            _
          %734 = vnop
        $region99: #{custom-call.69} parent=53 // pred_fallthru
          _
      $region54: #{custom-call.69} parent=5 // pred_fallthru
        _
      %p735 = scmp.le.s32.totalorder 2, %s5
      // Predicated region
      $region130: #{custom-call.69} parent=5 // pred_check
        %p736 = pneg %p735
      $region131: #{custom-call.69} parent=5 // pred_check_branch
        %738 = sbr.rel (%p736) target = $region133
      $region132: #{custom-call.69} parent=5 // pred_region
        %s739 = ssub.s32 %s5, 2
        %s740 = sand.u32 %s11, 1
        %s741 = sand.u32 %s11, 1
        %s742 = smul.addr %s741, 32
        %s743 = scalar_lea.vmem [#allocation1], %s742
        // Predicated region
        $region134: #{custom-call.69} parent=132 // pred_check
          %p744 = pneg %p65
        $region135: #{custom-call.69} parent=132 // pred_check_branch
          %746 = sbr.rel (%p744) target = $region137
        $region136: #{custom-call.69} parent=132 // pred_region
          %s747 = sand.u32 %s50, 1
          %s748 = sand.u32 %s50, 1
          %s749 = smul.addr %s748, 2
          %s750 = scalar_lea.vmem [#allocation3], %s749
        $region137: #{custom-call.69} parent=132 // pred_fallthru
          _
      $region133: #{custom-call.69} parent=5 // pred_fallthru
        _
    $region6: #{custom-call.69} parent=1 // loop_footer
      %s9 = sadd.s32 1, %s5
    $region7: #{custom-call.69} parent=1 // loop_footer_branch
      %4 = sbr.rel target = $region3
    $region8: #{custom-call.69} parent=1 // loop_exit
      _

// kernel: custom-call.70
$region0: #{custom-call.70}
  %s0 = inlined_call_operand.vmem [shape: f32[2,16,16], index: 0, kind: input, shape index: {}]
  %s1 = inlined_call_operand.vmem [shape: f32[2,16,16], index: 1, kind: output, shape index: {}]
  $region1: #{custom-call.70} parent=0
    #allocation0 [shape = 'u8[16384]{0}', space=vmem, size = 0x4000, scoped, tag = 'operand span for operand 0']
    #allocation1 [shape = 'u8[16384]{0}', space=vmem, size = 0x4000, scoped, tag = 'operand span for operand 1']
    loop: start=0, step=1, limit=4
    $region2: #{custom-call.70} parent=1 // loop_pre_header
      _
    $region3: #{custom-call.70} parent=1 // loop_header
      %s3 = sphi 0, %s7
      %p4 = scmp.ge.s32.totalorder %s3, 4
    $region4: #{custom-call.70} parent=1 // loop_header_branch
      %6 = sbr.rel (%p4) target = $region8
    $region5: #{custom-call.70} parent=1 // loop_body
      %s8 = ssub.s32 %s3, 1
      %s9 = ssub.s32 %s3, 2
      %s10 = sadd.s32 %s3, 1
      %p11 = scmp.le.s32.totalorder 1, %s3
      %p12 = scmp.lt.s32.totalorder %s3, 3
      %p13 = pnand %p11, %p12
      %p14 = pneg %p13
      // Predicated region
      $region9: #{custom-call.70} parent=5 // pred_check
        _
      $region10: #{custom-call.70} parent=5 // pred_check_branch
        %16 = sbr.rel (%p13) target = $region12
      $region11: #{custom-call.70} parent=5 // pred_region
        %s17 = ssub.s32 %s3, 1
      $region12: #{custom-call.70} parent=5 // pred_fallthru
        _
      %p18 = scmp.lt.s32.totalorder %s3, 2
      // Predicated region
      $region13: #{custom-call.70} parent=5 // pred_check
        %p19 = pneg %p18
      $region14: #{custom-call.70} parent=5 // pred_check_branch
        %21 = sbr.rel (%p19) target = $region16
      $region15: #{custom-call.70} parent=5 // pred_region
        %s22 = sand.u32 %s3, 1
        %s23 = sand.u32 %s3, 1
        %s24 = smul.addr %s23, 16
        %s25 = scalar_lea.vmem [#allocation0], %s24
        %s26 = smul.addr %s3, 16
        %s27 = scalar_lea.vmem %s0, %s26
        // Predicated region
        $region17: #{custom-call.70} parent=15 // pred_check
          _
        $region18: #{custom-call.70} parent=15 // pred_check_branch
          %29 = sbr.rel (0) target = $region20
        $region19: #{custom-call.70} parent=15 // pred_region
          // Predicated region
          $region21: #{custom-call.70} parent=19 // pred_check
            _
          $region22: #{custom-call.70} parent=19 // pred_check_branch
            %31 = sbr.rel (0) target = $region24
          $region23: #{custom-call.70} parent=19 // pred_region
            loop: start=0, step=1, limit=1
            $region25: #{custom-call.70} parent=23 // loop_pre_header
              _
            $region26: #{custom-call.70} parent=23 // loop_header
              %s33 = sphi 0, %s37
              %p34 = scmp.ge.s32.totalorder %s33, 1
              %s38 = sphi %s27, %s27
              %s39 = sphi %s25, %s25
            $region27: #{custom-call.70} parent=23 // loop_header_branch
              %36 = sbr.rel (%p34) target = $region31
            $region28: #{custom-call.70} parent=23 // loop_body
              %v40 = vld [vmem:[%s38] sm:$0xff]
              %41 = vst [vmem:[%s39] sm:$0xff] %v40
              %v42 = vld [vmem:[%s38 + $0x8] sm:$0xff]
              %43 = vst [vmem:[%s39 + $0x8] sm:$0xff] %v42
            $region29: #{custom-call.70} parent=23 // loop_footer
              %s37 = sadd.s32 1, %s33
            $region30: #{custom-call.70} parent=23 // loop_footer_branch
              %32 = sbr.rel target = $region26
            $region31: #{custom-call.70} parent=23 // loop_exit
              _
          $region24: #{custom-call.70} parent=19 // pred_fallthru
            _
          // Predicated region
          $region32: #{custom-call.70} parent=19 // pred_check
            _
          $region33: #{custom-call.70} parent=19 // pred_check_branch
            %45 = sbr.rel target = $region35
          $region34: #{custom-call.70} parent=19 // pred_region
            _
          $region35: #{custom-call.70} parent=19 // pred_fallthru
            _
        $region20: #{custom-call.70} parent=15 // pred_fallthru
          _
        %46 = vnop
      $region16: #{custom-call.70} parent=5 // pred_fallthru
        _
      %p47 = scmp.le.s32.totalorder 1, %s3
      %p48 = scmp.lt.s32.totalorder %s3, 3
      %p49 = pnand %p47, %p48
      %p50 = pneg %p49
      // Predicated region
      $region36: #{custom-call.70} parent=5 // pred_check
        _
      $region37: #{custom-call.70} parent=5 // pred_check_branch
        %52 = sbr.rel (%p49) target = $region39
      $region38: #{custom-call.70} parent=5 // pred_region
        %s53 = ssub.s32 %s3, 1
        %s54 = sand.u32 %s8, 1
        %s55 = sand.u32 %s8, 1
        %s56 = smul.addr %s55, 16
        %s57 = scalar_lea.vmem [#allocation0], %s56
        %s58 = sand.u32 %s8, 1
        %s59 = sand.u32 %s8, 1
        %s60 = smul.addr %s59, 16
        %s61 = scalar_lea.vmem [#allocation0], %s60
        %s62 = sand.u32 %s8, 1
        %s63 = sand.u32 %s8, 1
        %s64 = smul.addr %s63, 16
        %s65 = scalar_lea.vmem [#allocation1], %s64
        %v66 = vlaneseq
        %v67 = vand.u32 %v66, 127
        %v68 = vlaneseq
        %v69 = vshrl.u32 %v68, 7
        %vm71 = vcmp.eq.s32.totalorder %v67, %v69
        %v72 = vld [vmem:[%s57] sm:$0xff]
        %v73 = vlaneseq
        %v74 = vand.u32 %v73, 127
        %vm75 = vcmp.eq.s32.totalorder %v74, 0
        %v76 = vsel %vm75, %v72, 1.0
        %v77 = vsel %vm71, %v76, 0.0
        %v78 = vlaneseq
        %v79 = vand.u32 %v78, 127
        %v80 = vlaneseq
        %v81 = vshrl.u32 %v80, 7
        %v82 = vadd.s32 %v81, 8
        %vm83 = vcmp.eq.s32.totalorder %v79, %v82
        %v84 = vsel %vm83, 1.0, 0.0
        %s85 = scalar_lea.vmem %s57, 1 [#allocation0]
        %v86 = vld [vmem:[%s85] ss:$0 sm:$0xff]
        %vm87 = vcmask 130048
        %v88 = vsel %vm87, %v86, 0.0
        %v89 = vlaneseq
        %v90 = vand.u32 %v89, 127
        %vm91 = vcmp.eq.s32.totalorder %v90, 1
        %v92 = vmul.f32 %v88, %v77
        %93 = vadd.xlane.f32.xlu0 %v92
        %v94 = vpop.xlane.xlu0 %93
        %v95 = vsel %vm91, %v94, %v77
        %s96 = scalar_lea.vmem %s57, 2 [#allocation0]
        %v97 = vld [vmem:[%s96] ss:$0 sm:$0xff]
        %vm98 = vcmask 130048
        %v99 = vsel %vm98, %v97, 0.0
        %v100 = vlaneseq
        %v101 = vand.u32 %v100, 127
        %vm102 = vcmp.eq.s32.totalorder %v101, 2
        %v103 = vmul.f32 %v99, %v95
        %104 = vadd.xlane.f32.xlu0 %v103
        %v105 = vpop.xlane.xlu0 %104
        %v106 = vsel %vm102, %v105, %v95
        %s107 = scalar_lea.vmem %s57, 3 [#allocation0]
        %v108 = vld [vmem:[%s107] ss:$0 sm:$0xff]
        %vm109 = vcmask 130048
        %v110 = vsel %vm109, %v108, 0.0
        %v111 = vlaneseq
        %v112 = vand.u32 %v111, 127
        %vm113 = vcmp.eq.s32.totalorder %v112, 3
        %v114 = vmul.f32 %v110, %v106
        %115 = vadd.xlane.f32.xlu0 %v114
        %v116 = vpop.xlane.xlu0 %115
        %v117 = vsel %vm113, %v116, %v106
        %s118 = scalar_lea.vmem %s57, 4 [#allocation0]
        %v119 = vld [vmem:[%s118] ss:$0 sm:$0xff]
        %vm120 = vcmask 130048
        %v121 = vsel %vm120, %v119, 0.0
        %v122 = vlaneseq
        %v123 = vand.u32 %v122, 127
        %vm124 = vcmp.eq.s32.totalorder %v123, 4
        %v125 = vmul.f32 %v121, %v117
        %126 = vadd.xlane.f32.xlu0 %v125
        %v127 = vpop.xlane.xlu0 %126
        %v128 = vsel %vm124, %v127, %v117
        %s129 = scalar_lea.vmem %s57, 5 [#allocation0]
        %v130 = vld [vmem:[%s129] ss:$0 sm:$0xff]
        %vm131 = vcmask 130048
        %v132 = vsel %vm131, %v130, 0.0
        %v133 = vlaneseq
        %v134 = vand.u32 %v133, 127
        %vm135 = vcmp.eq.s32.totalorder %v134, 5
        %v136 = vmul.f32 %v132, %v128
        %137 = vadd.xlane.f32.xlu0 %v136
        %v138 = vpop.xlane.xlu0 %137
        %v139 = vsel %vm135, %v138, %v128
        %s140 = scalar_lea.vmem %s57, 6 [#allocation0]
        %v141 = vld [vmem:[%s140] ss:$0 sm:$0xff]
        %vm142 = vcmask 130048
        %v143 = vsel %vm142, %v141, 0.0
        %v144 = vlaneseq
        %v145 = vand.u32 %v144, 127
        %vm146 = vcmp.eq.s32.totalorder %v145, 6
        %v147 = vmul.f32 %v143, %v139
        %148 = vadd.xlane.f32.xlu0 %v147
        %v149 = vpop.xlane.xlu0 %148
        %v150 = vsel %vm146, %v149, %v139
        %s151 = scalar_lea.vmem %s57, 7 [#allocation0]
        %v152 = vld [vmem:[%s151] ss:$0 sm:$0xff]
        %vm153 = vcmask 130048
        %v154 = vsel %vm153, %v152, 0.0
        %v155 = vlaneseq
        %v156 = vand.u32 %v155, 127
        %vm157 = vcmp.eq.s32.totalorder %v156, 7
        %v158 = vmul.f32 %v154, %v150
        %159 = vadd.xlane.f32.xlu0 %v158
        %v160 = vpop.xlane.xlu0 %159
        %v161 = vsel %vm157, %v160, %v150
        %s162 = scalar_lea.vmem %s57, 8 [#allocation0]
        %v163 = vld [vmem:[%s162] ss:$0 sm:$0xff]
        %vm164 = vcmask 130048
        %v165 = vsel %vm164, %v163, 0.0
        %v166 = vlaneseq
        %v167 = vand.u32 %v166, 127
        %vm168 = vcmp.eq.s32.totalorder %v167, 8
        %v169 = vmul.f32 %v165, %v161
        %170 = vadd.xlane.f32.xlu0 %v169
        %v171 = vpop.xlane.xlu0 %170
        %v172 = vsel %vm168, %v171, %v161
        %v173 = vmul.f32 %v165, %v84
        %174 = vadd.xlane.f32.xlu0 %v173
        %v175 = vpop.xlane.xlu0 %174
        %v176 = vsel %vm168, %v175, %v84
        %s177 = scalar_lea.vmem %s57, 9 [#allocation0]
        %v178 = vld [vmem:[%s177] ss:$0 sm:$0xff]
        %vm179 = vcmask 130048
        %v180 = vsel %vm179, %v178, 0.0
        %v181 = vlaneseq
        %v182 = vand.u32 %v181, 127
        %vm183 = vcmp.eq.s32.totalorder %v182, 9
        %v184 = vmul.f32 %v180, %v172
        %185 = vadd.xlane.f32.xlu0 %v184
        %v186 = vpop.xlane.xlu0 %185
        %v187 = vsel %vm183, %v186, %v172
        %v188 = vmul.f32 %v180, %v176
        %189 = vadd.xlane.f32.xlu0 %v188
        %v190 = vpop.xlane.xlu0 %189
        %v191 = vsel %vm183, %v190, %v176
        %s192 = scalar_lea.vmem %s57, 10 [#allocation0]
        %v193 = vld [vmem:[%s192] ss:$0 sm:$0xff]
        %vm194 = vcmask 130048
        %v195 = vsel %vm194, %v193, 0.0
        %v196 = vlaneseq
        %v197 = vand.u32 %v196, 127
        %vm198 = vcmp.eq.s32.totalorder %v197, 10
        %v199 = vmul.f32 %v195, %v187
        %200 = vadd.xlane.f32.xlu0 %v199
        %v201 = vpop.xlane.xlu0 %200
        %v202 = vsel %vm198, %v201, %v187
        %v203 = vmul.f32 %v195, %v191
        %204 = vadd.xlane.f32.xlu0 %v203
        %v205 = vpop.xlane.xlu0 %204
        %v206 = vsel %vm198, %v205, %v191
        %s207 = scalar_lea.vmem %s57, 11 [#allocation0]
        %v208 = vld [vmem:[%s207] ss:$0 sm:$0xff]
        %vm209 = vcmask 130048
        %v210 = vsel %vm209, %v208, 0.0
        %v211 = vlaneseq
        %v212 = vand.u32 %v211, 127
        %vm213 = vcmp.eq.s32.totalorder %v212, 11
        %v214 = vmul.f32 %v210, %v202
        %215 = vadd.xlane.f32.xlu0 %v214
        %v216 = vpop.xlane.xlu0 %215
        %v217 = vsel %vm213, %v216, %v202
        %v218 = vmul.f32 %v210, %v206
        %219 = vadd.xlane.f32.xlu0 %v218
        %v220 = vpop.xlane.xlu0 %219
        %v221 = vsel %vm213, %v220, %v206
        %s222 = scalar_lea.vmem %s57, 12 [#allocation0]
        %v223 = vld [vmem:[%s222] ss:$0 sm:$0xff]
        %vm224 = vcmask 130048
        %v225 = vsel %vm224, %v223, 0.0
        %v226 = vlaneseq
        %v227 = vand.u32 %v226, 127
        %vm228 = vcmp.eq.s32.totalorder %v227, 12
        %v229 = vmul.f32 %v225, %v217
        %230 = vadd.xlane.f32.xlu0 %v229
        %v231 = vpop.xlane.xlu0 %230
        %v232 = vsel %vm228, %v231, %v217
        %v233 = vmul.f32 %v225, %v221
        %234 = vadd.xlane.f32.xlu0 %v233
        %v235 = vpop.xlane.xlu0 %234
        %v236 = vsel %vm228, %v235, %v221
        %s237 = scalar_lea.vmem %s57, 13 [#allocation0]
        %v238 = vld [vmem:[%s237] ss:$0 sm:$0xff]
        %vm239 = vcmask 130048
        %v240 = vsel %vm239, %v238, 0.0
        %v241 = vlaneseq
        %v242 = vand.u32 %v241, 127
        %vm243 = vcmp.eq.s32.totalorder %v242, 13
        %v244 = vmul.f32 %v240, %v232
        %245 = vadd.xlane.f32.xlu0 %v244
        %v246 = vpop.xlane.xlu0 %245
        %v247 = vsel %vm243, %v246, %v232
        %v248 = vmul.f32 %v240, %v236
        %249 = vadd.xlane.f32.xlu0 %v248
        %v250 = vpop.xlane.xlu0 %249
        %v251 = vsel %vm243, %v250, %v236
        %s252 = scalar_lea.vmem %s57, 14 [#allocation0]
        %v253 = vld [vmem:[%s252] ss:$0 sm:$0xff]
        %vm254 = vcmask 130048
        %v255 = vsel %vm254, %v253, 0.0
        %v256 = vlaneseq
        %v257 = vand.u32 %v256, 127
        %vm258 = vcmp.eq.s32.totalorder %v257, 14
        %v259 = vmul.f32 %v255, %v247
        %260 = vadd.xlane.f32.xlu0 %v259
        %v261 = vpop.xlane.xlu0 %260
        %v262 = vsel %vm258, %v261, %v247
        %v263 = vmul.f32 %v255, %v251
        %264 = vadd.xlane.f32.xlu0 %v263
        %v265 = vpop.xlane.xlu0 %264
        %v266 = vsel %vm258, %v265, %v251
        %s267 = scalar_lea.vmem %s57, 15 [#allocation0]
        %v268 = vld [vmem:[%s267] ss:$0 sm:$0xff]
        %vm269 = vcmask 130048
        %v270 = vsel %vm269, %v268, 0.0
        %v271 = vlaneseq
        %v272 = vand.u32 %v271, 127
        %vm273 = vcmp.eq.s32.totalorder %v272, 15
        %v274 = vmul.f32 %v270, %v262
        %275 = vadd.xlane.f32.xlu0 %v274
        %v276 = vpop.xlane.xlu0 %275
        %v277 = vsel %vm273, %v276, %v262
        %v278 = vmul.f32 %v270, %v266
        %279 = vadd.xlane.f32.xlu0 %v278
        %v280 = vpop.xlane.xlu0 %279
        %v281 = vsel %vm273, %v280, %v266
        %282 = vst [vmem:[%s65] sm:$0xff] %v277
        %s283 = scalar_lea.vmem %s65, 8 [#allocation1]
        %284 = vst [vmem:[%s283] sm:$0xff] %v281
        %s285 = sand.u32 %s8, 1
        %s286 = sand.u32 %s8, 1
        %s287 = smul.addr %s286, 16
        %s288 = scalar_lea.vmem [#allocation1], %s287
        %s289 = smul.addr %s8, 16
        %s290 = scalar_lea.vmem %s1, %s289
        // Predicated region
        $region40: #{custom-call.70} parent=38 // pred_check
          _
        $region41: #{custom-call.70} parent=38 // pred_check_branch
          %292 = sbr.rel (0) target = $region43
        $region42: #{custom-call.70} parent=38 // pred_region
          // Predicated region
          $region44: #{custom-call.70} parent=42 // pred_check
            _
          $region45: #{custom-call.70} parent=42 // pred_check_branch
            %294 = sbr.rel (0) target = $region47
          $region46: #{custom-call.70} parent=42 // pred_region
            loop: start=0, step=1, limit=1
            $region48: #{custom-call.70} parent=46 // loop_pre_header
              _
            $region49: #{custom-call.70} parent=46 // loop_header
              %s296 = sphi 0, %s300
              %p297 = scmp.ge.s32.totalorder %s296, 1
              %s301 = sphi %s288, %s288
              %s302 = sphi %s290, %s290
            $region50: #{custom-call.70} parent=46 // loop_header_branch
              %299 = sbr.rel (%p297) target = $region54
            $region51: #{custom-call.70} parent=46 // loop_body
              %v303 = vld [vmem:[%s301] sm:$0xff]
              %304 = vst [vmem:[%s302] sm:$0xff] %v303
              %v305 = vld [vmem:[%s301 + $0x8] sm:$0xff]
              %306 = vst [vmem:[%s302 + $0x8] sm:$0xff] %v305
            $region52: #{custom-call.70} parent=46 // loop_footer
              %s300 = sadd.s32 1, %s296
            $region53: #{custom-call.70} parent=46 // loop_footer_branch
              %295 = sbr.rel target = $region49
            $region54: #{custom-call.70} parent=46 // loop_exit
              _
          $region47: #{custom-call.70} parent=42 // pred_fallthru
            _
          // Predicated region
          $region55: #{custom-call.70} parent=42 // pred_check
            _
          $region56: #{custom-call.70} parent=42 // pred_check_branch
            %308 = sbr.rel target = $region58
          $region57: #{custom-call.70} parent=42 // pred_region
            _
          $region58: #{custom-call.70} parent=42 // pred_fallthru
            _
        $region43: #{custom-call.70} parent=38 // pred_fallthru
          _
        %309 = vnop
      $region39: #{custom-call.70} parent=5 // pred_fallthru
        _
      %p310 = scmp.le.s32.totalorder 2, %s3
      // Predicated region
      $region59: #{custom-call.70} parent=5 // pred_check
        %p311 = pneg %p310
      $region60: #{custom-call.70} parent=5 // pred_check_branch
        %313 = sbr.rel (%p311) target = $region62
      $region61: #{custom-call.70} parent=5 // pred_region
        %s314 = ssub.s32 %s3, 2
        %s315 = sand.u32 %s9, 1
        %s316 = sand.u32 %s9, 1
        %s317 = smul.addr %s316, 16
        %s318 = scalar_lea.vmem [#allocation1], %s317
      $region62: #{custom-call.70} parent=5 // pred_fallthru
        _
    $region6: #{custom-call.70} parent=1 // loop_footer
      %s7 = sadd.s32 1, %s3
    $region7: #{custom-call.70} parent=1 // loop_footer_branch
      %2 = sbr.rel target = $region3
    $region8: #{custom-call.70} parent=1 // loop_exit
      _

// kernel: custom-call.62
$region0: #{custom-call.62}
  %s0 = inlined_call_operand.hbm [shape: pred[2], index: 0, kind: output, shape index: {}]

// kernel: custom-call.67
$region0: #{custom-call.67}
  %s0 = inlined_call_operand.vmem [shape: f32[2,16,16], index: 0, kind: input, shape index: {}]
  %s1 = inlined_call_operand.vmem [shape: f32[2,16,16], index: 1, kind: output, shape index: {}]
  $region1: #{custom-call.67} parent=0
    #allocation0 [shape = 'u8[16384]{0}', space=vmem, size = 0x4000, scoped, tag = 'operand span for operand 0']
    #allocation1 [shape = 'u8[16384]{0}', space=vmem, size = 0x4000, scoped, tag = 'operand span for operand 1']
    loop: start=0, step=1, limit=4
    $region2: #{custom-call.67} parent=1 // loop_pre_header
      _
    $region3: #{custom-call.67} parent=1 // loop_header
      %s3 = sphi 0, %s7
      %p4 = scmp.ge.s32.totalorder %s3, 4
      %s10 = sphi 0, %s29
      %s11 = sphi 0, %s25
      %s12 = sphi 0, %s21
      %s13 = sphi 0, %s10
      %s14 = sphi 0, %s11
      %s15 = sphi 0, %s12
      %s16 = sphi 0, %s13
      %s17 = sphi 0, %s14
      %s18 = sphi 0, %s15
    $region4: #{custom-call.67} parent=1 // loop_header_branch
      %6 = sbr.rel (%p4) target = $region8
    $region5: #{custom-call.67} parent=1 // loop_body
      %s8 = ssub.s32 %s3, 1
      %s9 = ssub.s32 %s3, 2
      %s19 = sadd.s32 1, %s12
      %p20 = scmp.ge.s32.totalorder %s19, 1
      %s21 = scalar_select %p20, 0, %s19
      %s22 = sadd.s32 1, %s11
      %s23 = scalar_select %p20, %s22, %s11
      %p24 = scmp.ge.s32.totalorder %s23, 1
      %s25 = scalar_select %p24, 0, %s23
      %s26 = sadd.s32 1, %s10
      %s27 = scalar_select %p24, %s26, %s10
      %p28 = scmp.ge.s32.totalorder %s27, 2
      %s29 = scalar_select %p28, 0, %s27
      %p30 = scmp.le.s32.totalorder 1, %s3
      %p31 = scmp.lt.s32.totalorder %s3, 3
      %p32 = pnand %p30, %p31
      %p33 = pneg %p32
      // Predicated region
      $region9: #{custom-call.67} parent=5 // pred_check
        _
      $region10: #{custom-call.67} parent=5 // pred_check_branch
        %35 = sbr.rel (%p32) target = $region12
      $region11: #{custom-call.67} parent=5 // pred_region
        %s36 = ssub.s32 %s3, 1
      $region12: #{custom-call.67} parent=5 // pred_fallthru
        _
      %p37 = scmp.lt.s32.totalorder %s3, 2
      // Predicated region
      $region13: #{custom-call.67} parent=5 // pred_check
        %p38 = pneg %p37
      $region14: #{custom-call.67} parent=5 // pred_check_branch
        %40 = sbr.rel (%p38) target = $region16
      $region15: #{custom-call.67} parent=5 // pred_region
        %s41 = sand.u32 %s3, 1
        %s42 = sand.u32 %s3, 1
        %s43 = smul.addr %s42, 16
        %s44 = scalar_lea.vmem [#allocation0], %s43
        %s45 = sadd.s32 %s12, %s11
        %s46 = smul.addr %s10, 2
        %s47 = sadd.s32 %s45, %s46
        %s48 = smul.addr %s47, 8
        %s49 = scalar_lea.vmem %s0, %s48
        // Predicated region
        $region17: #{custom-call.67} parent=15 // pred_check
          _
        $region18: #{custom-call.67} parent=15 // pred_check_branch
          %51 = sbr.rel (0) target = $region20
        $region19: #{custom-call.67} parent=15 // pred_region
          // Predicated region
          $region21: #{custom-call.67} parent=19 // pred_check
            _
          $region22: #{custom-call.67} parent=19 // pred_check_branch
            %53 = sbr.rel (0) target = $region24
          $region23: #{custom-call.67} parent=19 // pred_region
            // Predicated region
            $region36: #{custom-call.67} parent=23 // pred_check
              _
            $region37: #{custom-call.67} parent=23 // pred_check_branch
              %71 = sbr.rel (0) target = $region39
            $region38: #{custom-call.67} parent=23 // pred_region
              loop: start=0, step=1, limit=1
              $region40: #{custom-call.67} parent=38 // loop_pre_header
                _
              $region41: #{custom-call.67} parent=38 // loop_header
                %s73 = sphi 0, %s77
                %p74 = scmp.ge.s32.totalorder %s73, 1
                %s78 = sphi %s49, %s49
                %s79 = sphi %s44, %s44
              $region42: #{custom-call.67} parent=38 // loop_header_branch
                %76 = sbr.rel (%p74) target = $region46
              $region43: #{custom-call.67} parent=38 // loop_body
                %v80 = vld [vmem:[%s78] sm:$0xff]
                %81 = vst [vmem:[%s79] sm:$0xff] %v80
                %v82 = vld [vmem:[%s78 + $0x8] sm:$0xff]
                %83 = vst [vmem:[%s79 + $0x8] sm:$0xff] %v82
              $region44: #{custom-call.67} parent=38 // loop_footer
                %s77 = sadd.s32 1, %s73
              $region45: #{custom-call.67} parent=38 // loop_footer_branch
                %72 = sbr.rel target = $region41
              $region46: #{custom-call.67} parent=38 // loop_exit
                _
            $region39: #{custom-call.67} parent=23 // pred_fallthru
              _
            // Predicated region
            $region47: #{custom-call.67} parent=23 // pred_check
              _
            $region48: #{custom-call.67} parent=23 // pred_check_branch
              %85 = sbr.rel target = $region50
            $region49: #{custom-call.67} parent=23 // pred_region
              _
            $region50: #{custom-call.67} parent=23 // pred_fallthru
              _
          $region24: #{custom-call.67} parent=19 // pred_fallthru
            _
          // Predicated region
          $region25: #{custom-call.67} parent=19 // pred_check
            _
          $region26: #{custom-call.67} parent=19 // pred_check_branch
            %55 = sbr.rel target = $region28
          $region27: #{custom-call.67} parent=19 // pred_region
            %s57 = ssub.s32 256, 1
            loop: start=0, step=1, limit=1
            $region29: #{custom-call.67} parent=27 // loop_pre_header
              _
            $region30: #{custom-call.67} parent=27 // loop_header
              %s59 = sphi 0, %s63
              %p60 = scmp.ge.s32.totalorder %s59, 1
              %s64 = sphi %s49, %s49
              %s65 = sphi %s44, %s44
            $region31: #{custom-call.67} parent=27 // loop_header_branch
              %62 = sbr.rel (%p60) target = $region35
            $region32: #{custom-call.67} parent=27 // loop_body
              %v66 = vld [vmem:[%s64] sm:%s57]
              %67 = vst [vmem:[%s65] sm:%s57] %v66
              %v68 = vld [vmem:[%s64 + $0x8] sm:%s57]
              %69 = vst [vmem:[%s65 + $0x8] sm:%s57] %v68
            $region33: #{custom-call.67} parent=27 // loop_footer
              %s63 = sadd.s32 1, %s59
            $region34: #{custom-call.67} parent=27 // loop_footer_branch
              %58 = sbr.rel target = $region30
            $region35: #{custom-call.67} parent=27 // loop_exit
              _
          $region28: #{custom-call.67} parent=19 // pred_fallthru
            _
        $region20: #{custom-call.67} parent=15 // pred_fallthru
          _
        %86 = vnop
      $region16: #{custom-call.67} parent=5 // pred_fallthru
        _
      %p87 = scmp.le.s32.totalorder 1, %s3
      %p88 = scmp.lt.s32.totalorder %s3, 3
      %p89 = pnand %p87, %p88
      %p90 = pneg %p89
      // Predicated region
      $region51: #{custom-call.67} parent=5 // pred_check
        _
      $region52: #{custom-call.67} parent=5 // pred_check_branch
        %92 = sbr.rel (%p89) target = $region54
      $region53: #{custom-call.67} parent=5 // pred_region
        %s93 = ssub.s32 %s3, 1
        %s94 = sand.u32 %s8, 1
        %s95 = sand.u32 %s8, 1
        %s96 = smul.addr %s95, 16
        %s97 = scalar_lea.vmem [#allocation0], %s96
        %s98 = sand.u32 %s8, 1
        %s99 = sand.u32 %s8, 1
        %s100 = smul.addr %s99, 16
        %s101 = scalar_lea.vmem [#allocation0], %s100
        %s102 = sand.u32 %s8, 1
        %s103 = sand.u32 %s8, 1
        %s104 = smul.addr %s103, 16
        %s105 = scalar_lea.vmem [#allocation1], %s104
        %106 = vst [vmem:[%s105] sm:$0xff] 0.0
        %s107 = scalar_lea.vmem %s105, 8 [#allocation1]
        %108 = vst [vmem:[%s107] sm:$0xff] 0.0
        %vm109 = vcmask 7168
        %v110 = vld [vmem:[%s105] ss:$0 sm:$0xff]
        %v111 = vld [vmem:[%s97] ss:$0 sm:$0xff]
        %v112 = vmul.f32 %v110, %v110
        %113 = vadd.xlane.f32.xlu0 %v112
        %v114 = vpop.xlane.xlu0 %113
        %v115 = vsub.f32 %v111, %v114
        %v116 = vrsqrt.pop %v115
        %v117 = vmul.f32 %v116, %v115
        %v118 = vmul.f32 %v117, %v116
        %v119 = vmul.f32 0.5, %v118
        %v120 = vsub.f32 1.5, %v119
        %v121 = vmul.f32 %v116, %v120
        %vm122 = vweird.f32 %v115
        %vm123 = vweird.f32 %v116
        %vm124 = vmor %vm122, %vm123
        %v125 = vsel %vm124, %v116, %v121
        %v126 = vld [vmem:[%s97] sm:$0xff]
        %v127 = vld [vmem:[%s105] sm:$0xff]
        %v128 = vmul.f32 %v127, %v110
        %129 = vadd.xlane.f32.xlu0 %v128
        %v130 = vpop.xlane.xlu0 %129
        %v131 = vsub.f32 %v126, %v130
        %v132 = vmul.f32 %v131, %v125
        %v133 = vsel %vm109, %v132, 0.0
        %v134 = vadd.f32 %v127, %v133
        %135 = vst [vmem:[%s105] sm:$0xff] %v134
        %s136 = scalar_lea.vmem %s97, 8 [#allocation0]
        %v137 = vld [vmem:[%s136] sm:$0xff]
        %s138 = scalar_lea.vmem %s105, 8 [#allocation1]
        %v139 = vld [vmem:[%s138] sm:$0xff]
        %v140 = vmul.f32 %v139, %v110
        %141 = vadd.xlane.f32.xlu0 %v140
        %v142 = vpop.xlane.xlu0 %141
        %v143 = vsub.f32 %v137, %v142
        %v144 = vmul.f32 %v143, %v125
        %v145 = vsel %vm109, %v144, 0.0
        %v146 = vadd.f32 %v139, %v145
        %s147 = scalar_lea.vmem %s105, 8 [#allocation1]
        %148 = vst [vmem:[%s147] sm:$0xff] %v146
        %vm149 = vcmask 15368
        %s150 = scalar_lea.vmem %s105, 1 [#allocation1]
        %v151 = vld [vmem:[%s150] ss:$0 sm:$0xff]
        %s152 = scalar_lea.vmem %s97, 1 [#allocation0]
        %v153 = vld [vmem:[%s152] ss:$0 sm:$0xff]
        %v154 = vmul.f32 %v151, %v151
        %155 = vadd.xlane.f32.xlu0 %v154
        %v156 = vpop.xlane.xlu0 %155
        %v157 = vsub.f32 %v153, %v156
        %v158 = vrsqrt.pop %v157
        %v159 = vmul.f32 %v158, %v157
        %v160 = vmul.f32 %v159, %v158
        %v161 = vmul.f32 0.5, %v160
        %v162 = vsub.f32 1.5, %v161
        %v163 = vmul.f32 %v158, %v162
        %vm164 = vweird.f32 %v157
        %vm165 = vweird.f32 %v158
        %vm166 = vmor %vm164, %vm165
        %v167 = vsel %vm166, %v158, %v163
        %v168 = vld [vmem:[%s97] sm:$0xff]
        %v169 = vld [vmem:[%s105] sm:$0xff]
        %v170 = vmul.f32 %v169, %v151
        %171 = vadd.xlane.f32.xlu0 %v170
        %v172 = vpop.xlane.xlu0 %171
        %v173 = vsub.f32 %v168, %v172
        %v174 = vmul.f32 %v173, %v167
        %vm175 = vcmask 1047553
        %vm176 = vmand %vm149, %vm175
        %v177 = vsel %vm176, %v174, 0.0
        %v178 = vadd.f32 %v169, %v177
        %179 = vst [vmem:[%s105] sm:$0xff] %v178
        %s180 = scalar_lea.vmem %s97, 8 [#allocation0]
        %v181 = vld [vmem:[%s180] sm:$0xff]
        %s182 = scalar_lea.vmem %s105, 8 [#allocation1]
        %v183 = vld [vmem:[%s182] sm:$0xff]
        %v184 = vmul.f32 %v183, %v151
        %185 = vadd.xlane.f32.xlu0 %v184
        %v186 = vpop.xlane.xlu0 %185
        %v187 = vsub.f32 %v181, %v186
        %v188 = vmul.f32 %v187, %v167
        %v189 = vsel %vm149, %v188, 0.0
        %v190 = vadd.f32 %v183, %v189
        %s191 = scalar_lea.vmem %s105, 8 [#allocation1]
        %192 = vst [vmem:[%s191] sm:$0xff] %v190
        %vm193 = vcmask 23568
        %s194 = scalar_lea.vmem %s105, 2 [#allocation1]
        %v195 = vld [vmem:[%s194] ss:$0 sm:$0xff]
        %s196 = scalar_lea.vmem %s97, 2 [#allocation0]
        %v197 = vld [vmem:[%s196] ss:$0 sm:$0xff]
        %v198 = vmul.f32 %v195, %v195
        %199 = vadd.xlane.f32.xlu0 %v198
        %v200 = vpop.xlane.xlu0 %199
        %v201 = vsub.f32 %v197, %v200
        %v202 = vrsqrt.pop %v201
        %v203 = vmul.f32 %v202, %v201
        %v204 = vmul.f32 %v203, %v202
        %v205 = vmul.f32 0.5, %v204
        %v206 = vsub.f32 1.5, %v205
        %v207 = vmul.f32 %v202, %v206
        %vm208 = vweird.f32 %v201
        %vm209 = vweird.f32 %v202
        %vm210 = vmor %vm208, %vm209
        %v211 = vsel %vm210, %v202, %v207
        %v212 = vld [vmem:[%s97] sm:$0xff]
        %v213 = vld [vmem:[%s105] sm:$0xff]
        %v214 = vmul.f32 %v213, %v195
        %215 = vadd.xlane.f32.xlu0 %v214
        %v216 = vpop.xlane.xlu0 %215
        %v217 = vsub.f32 %v212, %v216
        %v218 = vmul.f32 %v217, %v211
        %vm219 = vcmask 1047554
        %vm220 = vmand %vm193, %vm219
        %v221 = vsel %vm220, %v218, 0.0
        %v222 = vadd.f32 %v213, %v221
        %223 = vst [vmem:[%s105] sm:$0xff] %v222
        %s224 = scalar_lea.vmem %s97, 8 [#allocation0]
        %v225 = vld [vmem:[%s224] sm:$0xff]
        %s226 = scalar_lea.vmem %s105, 8 [#allocation1]
        %v227 = vld [vmem:[%s226] sm:$0xff]
        %v228 = vmul.f32 %v227, %v195
        %229 = vadd.xlane.f32.xlu0 %v228
        %v230 = vpop.xlane.xlu0 %229
        %v231 = vsub.f32 %v225, %v230
        %v232 = vmul.f32 %v231, %v211
        %v233 = vsel %vm193, %v232, 0.0
        %v234 = vadd.f32 %v227, %v233
        %s235 = scalar_lea.vmem %s105, 8 [#allocation1]
        %236 = vst [vmem:[%s235] sm:$0xff] %v234
        %vm237 = vcmask 31768
        %s238 = scalar_lea.vmem %s105, 3 [#allocation1]
        %v239 = vld [vmem:[%s238] ss:$0 sm:$0xff]
        %s240 = scalar_lea.vmem %s97, 3 [#allocation0]
        %v241 = vld [vmem:[%s240] ss:$0 sm:$0xff]
        %v242 = vmul.f32 %v239, %v239
        %243 = vadd.xlane.f32.xlu0 %v242
        %v244 = vpop.xlane.xlu0 %243
        %v245 = vsub.f32 %v241, %v244
        %v246 = vrsqrt.pop %v245
        %v247 = vmul.f32 %v246, %v245
        %v248 = vmul.f32 %v247, %v246
        %v249 = vmul.f32 0.5, %v248
        %v250 = vsub.f32 1.5, %v249
        %v251 = vmul.f32 %v246, %v250
        %vm252 = vweird.f32 %v245
        %vm253 = vweird.f32 %v246
        %vm254 = vmor %vm252, %vm253
        %v255 = vsel %vm254, %v246, %v251
        %v256 = vld [vmem:[%s97] sm:$0xff]
        %v257 = vld [vmem:[%s105] sm:$0xff]
        %v258 = vmul.f32 %v257, %v239
        %259 = vadd.xlane.f32.xlu0 %v258
        %v260 = vpop.xlane.xlu0 %259
        %v261 = vsub.f32 %v256, %v260
        %v262 = vmul.f32 %v261, %v255
        %vm263 = vcmask 1047555
        %vm264 = vmand %vm237, %vm263
        %v265 = vsel %vm264, %v262, 0.0
        %v266 = vadd.f32 %v257, %v265
        %267 = vst [vmem:[%s105] sm:$0xff] %v266
        %s268 = scalar_lea.vmem %s97, 8 [#allocation0]
        %v269 = vld [vmem:[%s268] sm:$0xff]
        %s270 = scalar_lea.vmem %s105, 8 [#allocation1]
        %v271 = vld [vmem:[%s270] sm:$0xff]
        %v272 = vmul.f32 %v271, %v239
        %273 = vadd.xlane.f32.xlu0 %v272
        %v274 = vpop.xlane.xlu0 %273
        %v275 = vsub.f32 %v269, %v274
        %v276 = vmul.f32 %v275, %v255
        %v277 = vsel %vm237, %v276, 0.0
        %v278 = vadd.f32 %v271, %v277
        %s279 = scalar_lea.vmem %s105, 8 [#allocation1]
        %280 = vst [vmem:[%s279] sm:$0xff] %v278
        %vm281 = vcmask 39968
        %s282 = scalar_lea.vmem %s105, 4 [#allocation1]
        %v283 = vld [vmem:[%s282] ss:$0 sm:$0xff]
        %s284 = scalar_lea.vmem %s97, 4 [#allocation0]
        %v285 = vld [vmem:[%s284] ss:$0 sm:$0xff]
        %v286 = vmul.f32 %v283, %v283
        %287 = vadd.xlane.f32.xlu0 %v286
        %v288 = vpop.xlane.xlu0 %287
        %v289 = vsub.f32 %v285, %v288
        %v290 = vrsqrt.pop %v289
        %v291 = vmul.f32 %v290, %v289
        %v292 = vmul.f32 %v291, %v290
        %v293 = vmul.f32 0.5, %v292
        %v294 = vsub.f32 1.5, %v293
        %v295 = vmul.f32 %v290, %v294
        %vm296 = vweird.f32 %v289
        %vm297 = vweird.f32 %v290
        %vm298 = vmor %vm296, %vm297
        %v299 = vsel %vm298, %v290, %v295
        %v300 = vld [vmem:[%s97] sm:$0xff]
        %v301 = vld [vmem:[%s105] sm:$0xff]
        %v302 = vmul.f32 %v301, %v283
        %303 = vadd.xlane.f32.xlu0 %v302
        %v304 = vpop.xlane.xlu0 %303
        %v305 = vsub.f32 %v300, %v304
        %v306 = vmul.f32 %v305, %v299
        %vm307 = vcmask 1047556
        %vm308 = vmand %vm281, %vm307
        %v309 = vsel %vm308, %v306, 0.0
        %v310 = vadd.f32 %v301, %v309
        %311 = vst [vmem:[%s105] sm:$0xff] %v310
        %s312 = scalar_lea.vmem %s97, 8 [#allocation0]
        %v313 = vld [vmem:[%s312] sm:$0xff]
        %s314 = scalar_lea.vmem %s105, 8 [#allocation1]
        %v315 = vld [vmem:[%s314] sm:$0xff]
        %v316 = vmul.f32 %v315, %v283
        %317 = vadd.xlane.f32.xlu0 %v316
        %v318 = vpop.xlane.xlu0 %317
        %v319 = vsub.f32 %v313, %v318
        %v320 = vmul.f32 %v319, %v299
        %v321 = vsel %vm281, %v320, 0.0
        %v322 = vadd.f32 %v315, %v321
        %s323 = scalar_lea.vmem %s105, 8 [#allocation1]
        %324 = vst [vmem:[%s323] sm:$0xff] %v322
        %vm325 = vcmask 48168
        %s326 = scalar_lea.vmem %s105, 5 [#allocation1]
        %v327 = vld [vmem:[%s326] ss:$0 sm:$0xff]
        %s328 = scalar_lea.vmem %s97, 5 [#allocation0]
        %v329 = vld [vmem:[%s328] ss:$0 sm:$0xff]
        %v330 = vmul.f32 %v327, %v327
        %331 = vadd.xlane.f32.xlu0 %v330
        %v332 = vpop.xlane.xlu0 %331
        %v333 = vsub.f32 %v329, %v332
        %v334 = vrsqrt.pop %v333
        %v335 = vmul.f32 %v334, %v333
        %v336 = vmul.f32 %v335, %v334
        %v337 = vmul.f32 0.5, %v336
        %v338 = vsub.f32 1.5, %v337
        %v339 = vmul.f32 %v334, %v338
        %vm340 = vweird.f32 %v333
        %vm341 = vweird.f32 %v334
        %vm342 = vmor %vm340, %vm341
        %v343 = vsel %vm342, %v334, %v339
        %v344 = vld [vmem:[%s97] sm:$0xff]
        %v345 = vld [vmem:[%s105] sm:$0xff]
        %v346 = vmul.f32 %v345, %v327
        %347 = vadd.xlane.f32.xlu0 %v346
        %v348 = vpop.xlane.xlu0 %347
        %v349 = vsub.f32 %v344, %v348
        %v350 = vmul.f32 %v349, %v343
        %vm351 = vcmask 1047557
        %vm352 = vmand %vm325, %vm351
        %v353 = vsel %vm352, %v350, 0.0
        %v354 = vadd.f32 %v345, %v353
        %355 = vst [vmem:[%s105] sm:$0xff] %v354
        %s356 = scalar_lea.vmem %s97, 8 [#allocation0]
        %v357 = vld [vmem:[%s356] sm:$0xff]
        %s358 = scalar_lea.vmem %s105, 8 [#allocation1]
        %v359 = vld [vmem:[%s358] sm:$0xff]
        %v360 = vmul.f32 %v359, %v327
        %361 = vadd.xlane.f32.xlu0 %v360
        %v362 = vpop.xlane.xlu0 %361
        %v363 = vsub.f32 %v357, %v362
        %v364 = vmul.f32 %v363, %v343
        %v365 = vsel %vm325, %v364, 0.0
        %v366 = vadd.f32 %v359, %v365
        %s367 = scalar_lea.vmem %s105, 8 [#allocation1]
        %368 = vst [vmem:[%s367] sm:$0xff] %v366
        %vm369 = vcmask 56368
        %s370 = scalar_lea.vmem %s105, 6 [#allocation1]
        %v371 = vld [vmem:[%s370] ss:$0 sm:$0xff]
        %s372 = scalar_lea.vmem %s97, 6 [#allocation0]
        %v373 = vld [vmem:[%s372] ss:$0 sm:$0xff]
        %v374 = vmul.f32 %v371, %v371
        %375 = vadd.xlane.f32.xlu0 %v374
        %v376 = vpop.xlane.xlu0 %375
        %v377 = vsub.f32 %v373, %v376
        %v378 = vrsqrt.pop %v377
        %v379 = vmul.f32 %v378, %v377
        %v380 = vmul.f32 %v379, %v378
        %v381 = vmul.f32 0.5, %v380
        %v382 = vsub.f32 1.5, %v381
        %v383 = vmul.f32 %v378, %v382
        %vm384 = vweird.f32 %v377
        %vm385 = vweird.f32 %v378
        %vm386 = vmor %vm384, %vm385
        %v387 = vsel %vm386, %v378, %v383
        %v388 = vld [vmem:[%s97] sm:$0xff]
        %v389 = vld [vmem:[%s105] sm:$0xff]
        %v390 = vmul.f32 %v389, %v371
        %391 = vadd.xlane.f32.xlu0 %v390
        %v392 = vpop.xlane.xlu0 %391
        %v393 = vsub.f32 %v388, %v392
        %v394 = vmul.f32 %v393, %v387
        %vm395 = vcmask 1047558
        %vm396 = vmand %vm369, %vm395
        %v397 = vsel %vm396, %v394, 0.0
        %v398 = vadd.f32 %v389, %v397
        %399 = vst [vmem:[%s105] sm:$0xff] %v398
        %s400 = scalar_lea.vmem %s97, 8 [#allocation0]
        %v401 = vld [vmem:[%s400] sm:$0xff]
        %s402 = scalar_lea.vmem %s105, 8 [#allocation1]
        %v403 = vld [vmem:[%s402] sm:$0xff]
        %v404 = vmul.f32 %v403, %v371
        %405 = vadd.xlane.f32.xlu0 %v404
        %v406 = vpop.xlane.xlu0 %405
        %v407 = vsub.f32 %v401, %v406
        %v408 = vmul.f32 %v407, %v387
        %v409 = vsel %vm369, %v408, 0.0
        %v410 = vadd.f32 %v403, %v409
        %s411 = scalar_lea.vmem %s105, 8 [#allocation1]
        %412 = vst [vmem:[%s411] sm:$0xff] %v410
        %vm413 = vcmask 64568
        %s414 = scalar_lea.vmem %s105, 7 [#allocation1]
        %v415 = vld [vmem:[%s414] ss:$0 sm:$0xff]
        %s416 = scalar_lea.vmem %s97, 7 [#allocation0]
        %v417 = vld [vmem:[%s416] ss:$0 sm:$0xff]
        %v418 = vmul.f32 %v415, %v415
        %419 = vadd.xlane.f32.xlu0 %v418
        %v420 = vpop.xlane.xlu0 %419
        %v421 = vsub.f32 %v417, %v420
        %v422 = vrsqrt.pop %v421
        %v423 = vmul.f32 %v422, %v421
        %v424 = vmul.f32 %v423, %v422
        %v425 = vmul.f32 0.5, %v424
        %v426 = vsub.f32 1.5, %v425
        %v427 = vmul.f32 %v422, %v426
        %vm428 = vweird.f32 %v421
        %vm429 = vweird.f32 %v422
        %vm430 = vmor %vm428, %vm429
        %v431 = vsel %vm430, %v422, %v427
        %v432 = vld [vmem:[%s97] sm:$0xff]
        %v433 = vld [vmem:[%s105] sm:$0xff]
        %v434 = vmul.f32 %v433, %v415
        %435 = vadd.xlane.f32.xlu0 %v434
        %v436 = vpop.xlane.xlu0 %435
        %v437 = vsub.f32 %v432, %v436
        %v438 = vmul.f32 %v437, %v431
        %vm439 = vcmask 1047559
        %vm440 = vmand %vm413, %vm439
        %v441 = vsel %vm440, %v438, 0.0
        %v442 = vadd.f32 %v433, %v441
        %443 = vst [vmem:[%s105] sm:$0xff] %v442
        %s444 = scalar_lea.vmem %s97, 8 [#allocation0]
        %v445 = vld [vmem:[%s444] sm:$0xff]
        %s446 = scalar_lea.vmem %s105, 8 [#allocation1]
        %v447 = vld [vmem:[%s446] sm:$0xff]
        %v448 = vmul.f32 %v447, %v415
        %449 = vadd.xlane.f32.xlu0 %v448
        %v450 = vpop.xlane.xlu0 %449
        %v451 = vsub.f32 %v445, %v450
        %v452 = vmul.f32 %v451, %v431
        %v453 = vsel %vm413, %v452, 0.0
        %v454 = vadd.f32 %v447, %v453
        %s455 = scalar_lea.vmem %s105, 8 [#allocation1]
        %456 = vst [vmem:[%s455] sm:$0xff] %v454
        %vm457 = vcmask 72768
        %s458 = scalar_lea.vmem %s105, 8 [#allocation1]
        %v459 = vld [vmem:[%s458] ss:$0 sm:$0xff]
        %s460 = scalar_lea.vmem %s97, 8 [#allocation0]
        %v461 = vld [vmem:[%s460] ss:$0 sm:$0xff]
        %v462 = vmul.f32 %v459, %v459
        %463 = vadd.xlane.f32.xlu0 %v462
        %v464 = vpop.xlane.xlu0 %463
        %v465 = vsub.f32 %v461, %v464
        %v466 = vrsqrt.pop %v465
        %v467 = vmul.f32 %v466, %v465
        %v468 = vmul.f32 %v467, %v466
        %v469 = vmul.f32 0.5, %v468
        %v470 = vsub.f32 1.5, %v469
        %v471 = vmul.f32 %v466, %v470
        %vm472 = vweird.f32 %v465
        %vm473 = vweird.f32 %v466
        %vm474 = vmor %vm472, %vm473
        %v475 = vsel %vm474, %v466, %v471
        %s476 = scalar_lea.vmem %s97, 8 [#allocation0]
        %v477 = vld [vmem:[%s476] sm:$0xff]
        %s478 = scalar_lea.vmem %s105, 8 [#allocation1]
        %v479 = vld [vmem:[%s478] sm:$0xff]
        %v480 = vmul.f32 %v479, %v459
        %481 = vadd.xlane.f32.xlu0 %v480
        %v482 = vpop.xlane.xlu0 %481
        %v483 = vsub.f32 %v477, %v482
        %v484 = vmul.f32 %v483, %v475
        %v485 = vsel %vm457, %v484, 0.0
        %v486 = vadd.f32 %v479, %v485
        %s487 = scalar_lea.vmem %s105, 8 [#allocation1]
        %488 = vst [vmem:[%s487] sm:$0xff] %v486
        %vm489 = vcmask 80968
        %s490 = scalar_lea.vmem %s105, 9 [#allocation1]
        %v491 = vld [vmem:[%s490] ss:$0 sm:$0xff]
        %s492 = scalar_lea.vmem %s97, 9 [#allocation0]
        %v493 = vld [vmem:[%s492] ss:$0 sm:$0xff]
        %v494 = vmul.f32 %v491, %v491
        %495 = vadd.xlane.f32.xlu0 %v494
        %v496 = vpop.xlane.xlu0 %495
        %v497 = vsub.f32 %v493, %v496
        %v498 = vrsqrt.pop %v497
        %v499 = vmul.f32 %v498, %v497
        %v500 = vmul.f32 %v499, %v498
        %v501 = vmul.f32 0.5, %v500
        %v502 = vsub.f32 1.5, %v501
        %v503 = vmul.f32 %v498, %v502
        %vm504 = vweird.f32 %v497
        %vm505 = vweird.f32 %v498
        %vm506 = vmor %vm504, %vm505
        %v507 = vsel %vm506, %v498, %v503
        %s508 = scalar_lea.vmem %s97, 8 [#allocation0]
        %v509 = vld [vmem:[%s508] sm:$0xff]
        %s510 = scalar_lea.vmem %s105, 8 [#allocation1]
        %v511 = vld [vmem:[%s510] sm:$0xff]
        %v512 = vmul.f32 %v511, %v491
        %513 = vadd.xlane.f32.xlu0 %v512
        %v514 = vpop.xlane.xlu0 %513
        %v515 = vsub.f32 %v509, %v514
        %v516 = vmul.f32 %v515, %v507
        %vm517 = vcmask 1047553
        %vm518 = vmand %vm489, %vm517
        %v519 = vsel %vm518, %v516, 0.0
        %v520 = vadd.f32 %v511, %v519
        %s521 = scalar_lea.vmem %s105, 8 [#allocation1]
        %522 = vst [vmem:[%s521] sm:$0xff] %v520
        %vm523 = vcmask 89168
        %s524 = scalar_lea.vmem %s105, 10 [#allocation1]
        %v525 = vld [vmem:[%s524] ss:$0 sm:$0xff]
        %s526 = scalar_lea.vmem %s97, 10 [#allocation0]
        %v527 = vld [vmem:[%s526] ss:$0 sm:$0xff]
        %v528 = vmul.f32 %v525, %v525
        %529 = vadd.xlane.f32.xlu0 %v528
        %v530 = vpop.xlane.xlu0 %529
        %v531 = vsub.f32 %v527, %v530
        %v532 = vrsqrt.pop %v531
        %v533 = vmul.f32 %v532, %v531
        %v534 = vmul.f32 %v533, %v532
        %v535 = vmul.f32 0.5, %v534
        %v536 = vsub.f32 1.5, %v535
        %v537 = vmul.f32 %v532, %v536
        %vm538 = vweird.f32 %v531
        %vm539 = vweird.f32 %v532
        %vm540 = vmor %vm538, %vm539
        %v541 = vsel %vm540, %v532, %v537
        %s542 = scalar_lea.vmem %s97, 8 [#allocation0]
        %v543 = vld [vmem:[%s542] sm:$0xff]
        %s544 = scalar_lea.vmem %s105, 8 [#allocation1]
        %v545 = vld [vmem:[%s544] sm:$0xff]
        %v546 = vmul.f32 %v545, %v525
        %547 = vadd.xlane.f32.xlu0 %v546
        %v548 = vpop.xlane.xlu0 %547
        %v549 = vsub.f32 %v543, %v548
        %v550 = vmul.f32 %v549, %v541
        %vm551 = vcmask 1047554
        %vm552 = vmand %vm523, %vm551
        %v553 = vsel %vm552, %v550, 0.0
        %v554 = vadd.f32 %v545, %v553
        %s555 = scalar_lea.vmem %s105, 8 [#allocation1]
        %556 = vst [vmem:[%s555] sm:$0xff] %v554
        %vm557 = vcmask 97368
        %s558 = scalar_lea.vmem %s105, 11 [#allocation1]
        %v559 = vld [vmem:[%s558] ss:$0 sm:$0xff]
        %s560 = scalar_lea.vmem %s97, 11 [#allocation0]
        %v561 = vld [vmem:[%s560] ss:$0 sm:$0xff]
        %v562 = vmul.f32 %v559, %v559
        %563 = vadd.xlane.f32.xlu0 %v562
        %v564 = vpop.xlane.xlu0 %563
        %v565 = vsub.f32 %v561, %v564
        %v566 = vrsqrt.pop %v565
        %v567 = vmul.f32 %v566, %v565
        %v568 = vmul.f32 %v567, %v566
        %v569 = vmul.f32 0.5, %v568
        %v570 = vsub.f32 1.5, %v569
        %v571 = vmul.f32 %v566, %v570
        %vm572 = vweird.f32 %v565
        %vm573 = vweird.f32 %v566
        %vm574 = vmor %vm572, %vm573
        %v575 = vsel %vm574, %v566, %v571
        %s576 = scalar_lea.vmem %s97, 8 [#allocation0]
        %v577 = vld [vmem:[%s576] sm:$0xff]
        %s578 = scalar_lea.vmem %s105, 8 [#allocation1]
        %v579 = vld [vmem:[%s578] sm:$0xff]
        %v580 = vmul.f32 %v579, %v559
        %581 = vadd.xlane.f32.xlu0 %v580
        %v582 = vpop.xlane.xlu0 %581
        %v583 = vsub.f32 %v577, %v582
        %v584 = vmul.f32 %v583, %v575
        %vm585 = vcmask 1047555
        %vm586 = vmand %vm557, %vm585
        %v587 = vsel %vm586, %v584, 0.0
        %v588 = vadd.f32 %v579, %v587
        %s589 = scalar_lea.vmem %s105, 8 [#allocation1]
        %590 = vst [vmem:[%s589] sm:$0xff] %v588
        %vm591 = vcmask 105568
        %s592 = scalar_lea.vmem %s105, 12 [#allocation1]
        %v593 = vld [vmem:[%s592] ss:$0 sm:$0xff]
        %s594 = scalar_lea.vmem %s97, 12 [#allocation0]
        %v595 = vld [vmem:[%s594] ss:$0 sm:$0xff]
        %v596 = vmul.f32 %v593, %v593
        %597 = vadd.xlane.f32.xlu0 %v596
        %v598 = vpop.xlane.xlu0 %597
        %v599 = vsub.f32 %v595, %v598
        %v600 = vrsqrt.pop %v599
        %v601 = vmul.f32 %v600, %v599
        %v602 = vmul.f32 %v601, %v600
        %v603 = vmul.f32 0.5, %v602
        %v604 = vsub.f32 1.5, %v603
        %v605 = vmul.f32 %v600, %v604
        %vm606 = vweird.f32 %v599
        %vm607 = vweird.f32 %v600
        %vm608 = vmor %vm606, %vm607
        %v609 = vsel %vm608, %v600, %v605
        %s610 = scalar_lea.vmem %s97, 8 [#allocation0]
        %v611 = vld [vmem:[%s610] sm:$0xff]
        %s612 = scalar_lea.vmem %s105, 8 [#allocation1]
        %v613 = vld [vmem:[%s612] sm:$0xff]
        %v614 = vmul.f32 %v613, %v593
        %615 = vadd.xlane.f32.xlu0 %v614
        %v616 = vpop.xlane.xlu0 %615
        %v617 = vsub.f32 %v611, %v616
        %v618 = vmul.f32 %v617, %v609
        %vm619 = vcmask 1047556
        %vm620 = vmand %vm591, %vm619
        %v621 = vsel %vm620, %v618, 0.0
        %v622 = vadd.f32 %v613, %v621
        %s623 = scalar_lea.vmem %s105, 8 [#allocation1]
        %624 = vst [vmem:[%s623] sm:$0xff] %v622
        %vm625 = vcmask 113768
        %s626 = scalar_lea.vmem %s105, 13 [#allocation1]
        %v627 = vld [vmem:[%s626] ss:$0 sm:$0xff]
        %s628 = scalar_lea.vmem %s97, 13 [#allocation0]
        %v629 = vld [vmem:[%s628] ss:$0 sm:$0xff]
        %v630 = vmul.f32 %v627, %v627
        %631 = vadd.xlane.f32.xlu0 %v630
        %v632 = vpop.xlane.xlu0 %631
        %v633 = vsub.f32 %v629, %v632
        %v634 = vrsqrt.pop %v633
        %v635 = vmul.f32 %v634, %v633
        %v636 = vmul.f32 %v635, %v634
        %v637 = vmul.f32 0.5, %v636
        %v638 = vsub.f32 1.5, %v637
        %v639 = vmul.f32 %v634, %v638
        %vm640 = vweird.f32 %v633
        %vm641 = vweird.f32 %v634
        %vm642 = vmor %vm640, %vm641
        %v643 = vsel %vm642, %v634, %v639
        %s644 = scalar_lea.vmem %s97, 8 [#allocation0]
        %v645 = vld [vmem:[%s644] sm:$0xff]
        %s646 = scalar_lea.vmem %s105, 8 [#allocation1]
        %v647 = vld [vmem:[%s646] sm:$0xff]
        %v648 = vmul.f32 %v647, %v627
        %649 = vadd.xlane.f32.xlu0 %v648
        %v650 = vpop.xlane.xlu0 %649
        %v651 = vsub.f32 %v645, %v650
        %v652 = vmul.f32 %v651, %v643
        %vm653 = vcmask 1047557
        %vm654 = vmand %vm625, %vm653
        %v655 = vsel %vm654, %v652, 0.0
        %v656 = vadd.f32 %v647, %v655
        %s657 = scalar_lea.vmem %s105, 8 [#allocation1]
        %658 = vst [vmem:[%s657] sm:$0xff] %v656
        %vm659 = vcmask 121968
        %s660 = scalar_lea.vmem %s105, 14 [#allocation1]
        %v661 = vld [vmem:[%s660] ss:$0 sm:$0xff]
        %s662 = scalar_lea.vmem %s97, 14 [#allocation0]
        %v663 = vld [vmem:[%s662] ss:$0 sm:$0xff]
        %v664 = vmul.f32 %v661, %v661
        %665 = vadd.xlane.f32.xlu0 %v664
        %v666 = vpop.xlane.xlu0 %665
        %v667 = vsub.f32 %v663, %v666
        %v668 = vrsqrt.pop %v667
        %v669 = vmul.f32 %v668, %v667
        %v670 = vmul.f32 %v669, %v668
        %v671 = vmul.f32 0.5, %v670
        %v672 = vsub.f32 1.5, %v671
        %v673 = vmul.f32 %v668, %v672
        %vm674 = vweird.f32 %v667
        %vm675 = vweird.f32 %v668
        %vm676 = vmor %vm674, %vm675
        %v677 = vsel %vm676, %v668, %v673
        %s678 = scalar_lea.vmem %s97, 8 [#allocation0]
        %v679 = vld [vmem:[%s678] sm:$0xff]
        %s680 = scalar_lea.vmem %s105, 8 [#allocation1]
        %v681 = vld [vmem:[%s680] sm:$0xff]
        %v682 = vmul.f32 %v681, %v661
        %683 = vadd.xlane.f32.xlu0 %v682
        %v684 = vpop.xlane.xlu0 %683
        %v685 = vsub.f32 %v679, %v684
        %v686 = vmul.f32 %v685, %v677
        %vm687 = vcmask 1047558
        %vm688 = vmand %vm659, %vm687
        %v689 = vsel %vm688, %v686, 0.0
        %v690 = vadd.f32 %v681, %v689
        %s691 = scalar_lea.vmem %s105, 8 [#allocation1]
        %692 = vst [vmem:[%s691] sm:$0xff] %v690
        %vm693 = vcmask 130168
        %s694 = scalar_lea.vmem %s105, 15 [#allocation1]
        %v695 = vld [vmem:[%s694] ss:$0 sm:$0xff]
        %s696 = scalar_lea.vmem %s97, 15 [#allocation0]
        %v697 = vld [vmem:[%s696] ss:$0 sm:$0xff]
        %v698 = vmul.f32 %v695, %v695
        %699 = vadd.xlane.f32.xlu0 %v698
        %v700 = vpop.xlane.xlu0 %699
        %v701 = vsub.f32 %v697, %v700
        %v702 = vrsqrt.pop %v701
        %v703 = vmul.f32 %v702, %v701
        %v704 = vmul.f32 %v703, %v702
        %v705 = vmul.f32 0.5, %v704
        %v706 = vsub.f32 1.5, %v705
        %v707 = vmul.f32 %v702, %v706
        %vm708 = vweird.f32 %v701
        %vm709 = vweird.f32 %v702
        %vm710 = vmor %vm708, %vm709
        %v711 = vsel %vm710, %v702, %v707
        %s712 = scalar_lea.vmem %s97, 8 [#allocation0]
        %v713 = vld [vmem:[%s712] sm:$0xff]
        %s714 = scalar_lea.vmem %s105, 8 [#allocation1]
        %v715 = vld [vmem:[%s714] sm:$0xff]
        %v716 = vmul.f32 %v715, %v695
        %717 = vadd.xlane.f32.xlu0 %v716
        %v718 = vpop.xlane.xlu0 %717
        %v719 = vsub.f32 %v713, %v718
        %v720 = vmul.f32 %v719, %v711
        %vm721 = vcmask 1047559
        %vm722 = vmand %vm693, %vm721
        %v723 = vsel %vm722, %v720, 0.0
        %v724 = vadd.f32 %v715, %v723
        %s725 = scalar_lea.vmem %s105, 8 [#allocation1]
        %726 = vst [vmem:[%s725] sm:$0xff] %v724
        %s727 = sand.u32 %s8, 1
        %s728 = sand.u32 %s8, 1
        %s729 = smul.addr %s728, 16
        %s730 = scalar_lea.vmem [#allocation1], %s729
        %s731 = sadd.s32 %s15, %s14
        %s732 = smul.addr %s13, 2
        %s733 = sadd.s32 %s731, %s732
        %s734 = smul.addr %s733, 8
        %s735 = scalar_lea.vmem %s1, %s734
        // Predicated region
        $region55: #{custom-call.67} parent=53 // pred_check
          _
        $region56: #{custom-call.67} parent=53 // pred_check_branch
          %737 = sbr.rel (0) target = $region58
        $region57: #{custom-call.67} parent=53 // pred_region
          // Predicated region
          $region59: #{custom-call.67} parent=57 // pred_check
            _
          $region60: #{custom-call.67} parent=57 // pred_check_branch
            %739 = sbr.rel (0) target = $region62
          $region61: #{custom-call.67} parent=57 // pred_region
            // Predicated region
            $region74: #{custom-call.67} parent=61 // pred_check
              _
            $region75: #{custom-call.67} parent=61 // pred_check_branch
              %757 = sbr.rel (0) target = $region77
            $region76: #{custom-call.67} parent=61 // pred_region
              loop: start=0, step=1, limit=1
              $region78: #{custom-call.67} parent=76 // loop_pre_header
                _
              $region79: #{custom-call.67} parent=76 // loop_header
                %s759 = sphi 0, %s763
                %p760 = scmp.ge.s32.totalorder %s759, 1
                %s764 = sphi %s730, %s730
                %s765 = sphi %s735, %s735
              $region80: #{custom-call.67} parent=76 // loop_header_branch
                %762 = sbr.rel (%p760) target = $region84
              $region81: #{custom-call.67} parent=76 // loop_body
                %v766 = vld [vmem:[%s764] sm:$0xff]
                %767 = vst [vmem:[%s765] sm:$0xff] %v766
                %v768 = vld [vmem:[%s764 + $0x8] sm:$0xff]
                %769 = vst [vmem:[%s765 + $0x8] sm:$0xff] %v768
              $region82: #{custom-call.67} parent=76 // loop_footer
                %s763 = sadd.s32 1, %s759
              $region83: #{custom-call.67} parent=76 // loop_footer_branch
                %758 = sbr.rel target = $region79
              $region84: #{custom-call.67} parent=76 // loop_exit
                _
            $region77: #{custom-call.67} parent=61 // pred_fallthru
              _
            // Predicated region
            $region85: #{custom-call.67} parent=61 // pred_check
              _
            $region86: #{custom-call.67} parent=61 // pred_check_branch
              %771 = sbr.rel target = $region88
            $region87: #{custom-call.67} parent=61 // pred_region
              _
            $region88: #{custom-call.67} parent=61 // pred_fallthru
              _
          $region62: #{custom-call.67} parent=57 // pred_fallthru
            _
          // Predicated region
          $region63: #{custom-call.67} parent=57 // pred_check
            _
          $region64: #{custom-call.67} parent=57 // pred_check_branch
            %741 = sbr.rel target = $region66
          $region65: #{custom-call.67} parent=57 // pred_region
            %s743 = ssub.s32 256, 1
            loop: start=0, step=1, limit=1
            $region67: #{custom-call.67} parent=65 // loop_pre_header
              _
            $region68: #{custom-call.67} parent=65 // loop_header
              %s745 = sphi 0, %s749
              %p746 = scmp.ge.s32.totalorder %s745, 1
              %s750 = sphi %s730, %s730
              %s751 = sphi %s735, %s735
            $region69: #{custom-call.67} parent=65 // loop_header_branch
              %748 = sbr.rel (%p746) target = $region73
            $region70: #{custom-call.67} parent=65 // loop_body
              %v752 = vld [vmem:[%s750] sm:%s743]
              %753 = vst [vmem:[%s751] sm:%s743] %v752
              %v754 = vld [vmem:[%s750 + $0x8] sm:%s743]
              %755 = vst [vmem:[%s751 + $0x8] sm:%s743] %v754
            $region71: #{custom-call.67} parent=65 // loop_footer
              %s749 = sadd.s32 1, %s745
            $region72: #{custom-call.67} parent=65 // loop_footer_branch
              %744 = sbr.rel target = $region68
            $region73: #{custom-call.67} parent=65 // loop_exit
              _
          $region66: #{custom-call.67} parent=57 // pred_fallthru
            _
        $region58: #{custom-call.67} parent=53 // pred_fallthru
          _
        %772 = vnop
      $region54: #{custom-call.67} parent=5 // pred_fallthru
        _
      %p773 = scmp.le.s32.totalorder 2, %s3
      // Predicated region
      $region89: #{custom-call.67} parent=5 // pred_check
        %p774 = pneg %p773
      $region90: #{custom-call.67} parent=5 // pred_check_branch
        %776 = sbr.rel (%p774) target = $region92
      $region91: #{custom-call.67} parent=5 // pred_region
        %s777 = ssub.s32 %s3, 2
        %s778 = sand.u32 %s9, 1
        %s779 = sand.u32 %s9, 1
        %s780 = smul.addr %s779, 16
        %s781 = scalar_lea.vmem [#allocation1], %s780
      $region92: #{custom-call.67} parent=5 // pred_fallthru
        _
    $region6: #{custom-call.67} parent=1 // loop_footer
      %s7 = sadd.s32 1, %s3
    $region7: #{custom-call.67} parent=1 // loop_footer_branch
      %2 = sbr.rel target = $region3
    $region8: #{custom-call.67} parent=1 // loop_exit
      _

// kernel: custom-call.68
$region0: #{custom-call.68}
  %s0 = inlined_call_operand.vmem [shape: f32[2,1,16,16], index: 0, kind: input, shape index: {}]
  %s1 = inlined_call_operand.vmem [shape: f32[2,1,16,16], index: 1, kind: output, shape index: {}]
  $region1: #{custom-call.68} parent=0
    #allocation0 [shape = 'u8[16384]{0}', space=vmem, size = 0x4000, scoped, tag = 'operand span for operand 0']
    #allocation1 [shape = 'u8[16384]{0}', space=vmem, size = 0x4000, scoped, tag = 'operand span for operand 1']
    loop: start=0, step=1, limit=4
    $region2: #{custom-call.68} parent=1 // loop_pre_header
      _
    $region3: #{custom-call.68} parent=1 // loop_header
      %s3 = sphi 0, %s7
      %p4 = scmp.ge.s32.totalorder %s3, 4
      %s10 = sphi 0, %s36
      %s11 = sphi 0, %s32
      %s12 = sphi 0, %s28
      %s13 = sphi 0, %s24
      %s14 = sphi 0, %s10
      %s15 = sphi 0, %s11
      %s16 = sphi 0, %s12
      %s17 = sphi 0, %s13
      %s18 = sphi 0, %s14
      %s19 = sphi 0, %s15
      %s20 = sphi 0, %s16
      %s21 = sphi 0, %s17
    $region4: #{custom-call.68} parent=1 // loop_header_branch
      %6 = sbr.rel (%p4) target = $region8
    $region5: #{custom-call.68} parent=1 // loop_body
      %s8 = ssub.s32 %s3, 1
      %s9 = ssub.s32 %s3, 2
      %s22 = sadd.s32 1, %s13
      %p23 = scmp.ge.s32.totalorder %s22, 1
      %s24 = scalar_select %p23, 0, %s22
      %s25 = sadd.s32 1, %s12
      %s26 = scalar_select %p23, %s25, %s12
      %p27 = scmp.ge.s32.totalorder %s26, 1
      %s28 = scalar_select %p27, 0, %s26
      %s29 = sadd.s32 1, %s11
      %s30 = scalar_select %p27, %s29, %s11
      %p31 = scmp.ge.s32.totalorder %s30, 1
      %s32 = scalar_select %p31, 0, %s30
      %s33 = sadd.s32 1, %s10
      %s34 = scalar_select %p31, %s33, %s10
      %p35 = scmp.ge.s32.totalorder %s34, 2
      %s36 = scalar_select %p35, 0, %s34
      %p37 = scmp.le.s32.totalorder 1, %s3
      %p38 = scmp.lt.s32.totalorder %s3, 3
      %p39 = pnand %p37, %p38
      %p40 = pneg %p39
      // Predicated region
      $region9: #{custom-call.68} parent=5 // pred_check
        _
      $region10: #{custom-call.68} parent=5 // pred_check_branch
        %42 = sbr.rel (%p39) target = $region12
      $region11: #{custom-call.68} parent=5 // pred_region
        %s43 = ssub.s32 %s3, 1
      $region12: #{custom-call.68} parent=5 // pred_fallthru
        _
      %p44 = scmp.lt.s32.totalorder %s3, 2
      // Predicated region
      $region13: #{custom-call.68} parent=5 // pred_check
        %p45 = pneg %p44
      $region14: #{custom-call.68} parent=5 // pred_check_branch
        %47 = sbr.rel (%p45) target = $region16
      $region15: #{custom-call.68} parent=5 // pred_region
        %s48 = sand.u32 %s3, 1
        %s49 = sand.u32 %s3, 1
        %s50 = smul.addr %s49, 16
        %s51 = scalar_lea.vmem [#allocation0], %s50
        %s52 = sadd.s32 %s13, %s12
        %s53 = smul.addr %s11, 2
        %s54 = sadd.s32 %s52, %s53
        %s55 = smul.addr %s10, 2
        %s56 = sadd.s32 %s54, %s55
        %s57 = smul.addr %s56, 8
        %s58 = scalar_lea.vmem %s0, %s57
        // Predicated region
        $region17: #{custom-call.68} parent=15 // pred_check
          _
        $region18: #{custom-call.68} parent=15 // pred_check_branch
          %60 = sbr.rel (0) target = $region20
        $region19: #{custom-call.68} parent=15 // pred_region
          // Predicated region
          $region21: #{custom-call.68} parent=19 // pred_check
            _
          $region22: #{custom-call.68} parent=19 // pred_check_branch
            %62 = sbr.rel (0) target = $region24
          $region23: #{custom-call.68} parent=19 // pred_region
            // Predicated region
            $region36: #{custom-call.68} parent=23 // pred_check
              _
            $region37: #{custom-call.68} parent=23 // pred_check_branch
              %80 = sbr.rel (0) target = $region39
            $region38: #{custom-call.68} parent=23 // pred_region
              loop: start=0, step=1, limit=1
              $region40: #{custom-call.68} parent=38 // loop_pre_header
                _
              $region41: #{custom-call.68} parent=38 // loop_header
                %s82 = sphi 0, %s86
                %p83 = scmp.ge.s32.totalorder %s82, 1
                %s87 = sphi %s58, %s58
                %s88 = sphi %s51, %s51
              $region42: #{custom-call.68} parent=38 // loop_header_branch
                %85 = sbr.rel (%p83) target = $region46
              $region43: #{custom-call.68} parent=38 // loop_body
                %v89 = vld [vmem:[%s87] sm:$0xff]
                %90 = vst [vmem:[%s88] sm:$0xff] %v89
                %v91 = vld [vmem:[%s87 + $0x8] sm:$0xff]
                %92 = vst [vmem:[%s88 + $0x8] sm:$0xff] %v91
              $region44: #{custom-call.68} parent=38 // loop_footer
                %s86 = sadd.s32 1, %s82
              $region45: #{custom-call.68} parent=38 // loop_footer_branch
                %81 = sbr.rel target = $region41
              $region46: #{custom-call.68} parent=38 // loop_exit
                _
            $region39: #{custom-call.68} parent=23 // pred_fallthru
              _
            // Predicated region
            $region47: #{custom-call.68} parent=23 // pred_check
              _
            $region48: #{custom-call.68} parent=23 // pred_check_branch
              %94 = sbr.rel target = $region50
            $region49: #{custom-call.68} parent=23 // pred_region
              _
            $region50: #{custom-call.68} parent=23 // pred_fallthru
              _
          $region24: #{custom-call.68} parent=19 // pred_fallthru
            _
          // Predicated region
          $region25: #{custom-call.68} parent=19 // pred_check
            _
          $region26: #{custom-call.68} parent=19 // pred_check_branch
            %64 = sbr.rel target = $region28
          $region27: #{custom-call.68} parent=19 // pred_region
            %s66 = ssub.s32 256, 1
            loop: start=0, step=1, limit=1
            $region29: #{custom-call.68} parent=27 // loop_pre_header
              _
            $region30: #{custom-call.68} parent=27 // loop_header
              %s68 = sphi 0, %s72
              %p69 = scmp.ge.s32.totalorder %s68, 1
              %s73 = sphi %s58, %s58
              %s74 = sphi %s51, %s51
            $region31: #{custom-call.68} parent=27 // loop_header_branch
              %71 = sbr.rel (%p69) target = $region35
            $region32: #{custom-call.68} parent=27 // loop_body
              %v75 = vld [vmem:[%s73] sm:%s66]
              %76 = vst [vmem:[%s74] sm:%s66] %v75
              %v77 = vld [vmem:[%s73 + $0x8] sm:%s66]
              %78 = vst [vmem:[%s74 + $0x8] sm:%s66] %v77
            $region33: #{custom-call.68} parent=27 // loop_footer
              %s72 = sadd.s32 1, %s68
            $region34: #{custom-call.68} parent=27 // loop_footer_branch
              %67 = sbr.rel target = $region30
            $region35: #{custom-call.68} parent=27 // loop_exit
              _
          $region28: #{custom-call.68} parent=19 // pred_fallthru
            _
        $region20: #{custom-call.68} parent=15 // pred_fallthru
          _
        %95 = vnop
      $region16: #{custom-call.68} parent=5 // pred_fallthru
        _
      %p96 = scmp.le.s32.totalorder 1, %s3
      %p97 = scmp.lt.s32.totalorder %s3, 3
      %p98 = pnand %p96, %p97
      %p99 = pneg %p98
      // Predicated region
      $region51: #{custom-call.68} parent=5 // pred_check
        _
      $region52: #{custom-call.68} parent=5 // pred_check_branch
        %101 = sbr.rel (%p98) target = $region54
      $region53: #{custom-call.68} parent=5 // pred_region
        #allocation2 [shape = 'f32[16,16]{1,0}', space=vmem, size = 0x2000, scoped, tag = 'rescaled input a']
        %s102 = ssub.s32 %s3, 1
        %s103 = sand.u32 %s8, 1
        %s104 = sand.u32 %s8, 1
        %s105 = smul.addr %s104, 16
        %s106 = scalar_lea.vmem [#allocation0], %s105
        %s107 = sand.u32 %s8, 1
        %s108 = sand.u32 %s8, 1
        %s109 = smul.addr %s108, 16
        %s110 = scalar_lea.vmem [#allocation0], %s109
        %s111 = sand.u32 %s8, 1
        %s112 = sand.u32 %s8, 1
        %s113 = smul.addr %s112, 16
        %s114 = scalar_lea.vmem [#allocation1], %s113
        %v115 = vlaneseq
        %v116 = vand.u32 %v115, 127
        %vm117 = vcmp.lt.s32.totalorder %v116, 16
        %v118 = vlaneseq
        %v119 = vshrl.u32 %v118, 7
        %vm121 = vcmp.eq.s32.totalorder %v119, %v116
        %v122 = vld [vmem:[%s106] sm:$0xff]
        %v123 = vsel %vm121, %v122, 0.0
        %124 = vadd.xlane.f32.xlu0 %v123
        %v125 = vpop.xlane.xlu0 %124
        %vm126 = vcmp.ge.s32.totalorder %v119, %v116
        %vm127 = vmand %vm126, %vm117
        %v128 = vsel %vm127, %v122, 0.0
        %v129 = vrcp.pop %v125
        %v130 = vmul.f32 %v125, %v129
        %v131 = vsub.f32 1.0, %v130
        %v132 = vmul.f32 %v129, %v131
        %v133 = vadd.f32 %v129, %v132
        %vm134 = vweird.f32 %v125
        %vm135 = vweird.f32 %v129
        %vm136 = vmor %vm134, %vm135
        %v137 = vsel %vm136, %v129, %v133
        %v138 = vand.u32 2147483647, %v125
        %vm139 = vcmp.eq.f32.partialorder %v138, 8.507059e+37
        %v140 = vand.u32 %v125, 2147483648
        %v141 = vor.u32 1.1754944e-38, %v140
        %v142 = vsel %vm139, %v141, %v137
        %v143 = vmul.f32 %v128, %v142
        %144 = vst [vmem:[#allocation2] sm:$0xff] %v143
        %s145 = scalar_lea.vmem %s106, 8 [#allocation0]
        %s146 = scalar_lea.vmem [#allocation2], 8
        %v147 = vlaneseq
        %v148 = vshrl.u32 %v147, 7
        %v149 = vadd.s32 %v148, 8
        %vm150 = vcmp.eq.s32.totalorder %v149, %v116
        %v151 = vld [vmem:[%s145] sm:$0xff]
        %v152 = vsel %vm150, %v151, 0.0
        %153 = vadd.xlane.f32.xlu0 %v152
        %v154 = vpop.xlane.xlu0 %153
        %vm155 = vcmp.ge.s32.totalorder %v149, %v116
        %vm156 = vmand %vm155, %vm117
        %v157 = vsel %vm156, %v151, 0.0
        %v158 = vrcp.pop %v154
        %v159 = vmul.f32 %v154, %v158
        %v160 = vsub.f32 1.0, %v159
        %v161 = vmul.f32 %v158, %v160
        %v162 = vadd.f32 %v158, %v161
        %vm163 = vweird.f32 %v154
        %vm164 = vweird.f32 %v158
        %vm165 = vmor %vm163, %vm164
        %v166 = vsel %vm165, %v158, %v162
        %v167 = vand.u32 2147483647, %v154
        %vm168 = vcmp.eq.f32.partialorder %v167, 8.507059e+37
        %v169 = vand.u32 %v154, 2147483648
        %v170 = vor.u32 1.1754944e-38, %v169
        %v171 = vsel %vm168, %v170, %v166
        %v172 = vmul.f32 %v157, %v171
        %173 = vst [vmem:[%s146] sm:$0xff] %v172
        %v174 = vlaneseq
        %v175 = vand.u32 %v174, 127
        %v176 = vlaneseq
        %v177 = vshrl.u32 %v176, 7
        %vm179 = vcmp.eq.s32.totalorder %v175, %v177
        %v180 = vlaneseq
        %v181 = vand.u32 %v180, 127
        %vm182 = vcmp.eq.s32.totalorder %v181, 0
        %v183 = vsel %vm182, 1.0, -1.0
        %v184 = vsel %vm179, %v183, 0.0
        %v185 = vlaneseq
        %v186 = vand.u32 %v185, 127
        %v187 = vlaneseq
        %v188 = vshrl.u32 %v187, 7
        %v189 = vadd.s32 %v188, 8
        %vm190 = vcmp.eq.s32.totalorder %v186, %v189
        %v191 = vsel %vm190, -1.0, 0.0
        %s192 = scalar_lea.vmem [#allocation2], 1
        %v193 = vld [vmem:[%s192] ss:$0 sm:$0xff]
        %v194 = vxor.u32 %v193, 2147483648
        %v195 = vlaneseq
        %v196 = vand.u32 %v195, 127
        %vm197 = vcmp.eq.s32.totalorder %v196, 1
        %v198 = vmul.f32 %v194, %v184
        %199 = vadd.xlane.f32.xlu0 %v198
        %v200 = vpop.xlane.xlu0 %199
        %v201 = vsel %vm197, %v200, %v184
        %s202 = scalar_lea.vmem [#allocation2], 2
        %v203 = vld [vmem:[%s202] ss:$0 sm:$0xff]
        %v204 = vxor.u32 %v203, 2147483648
        %v205 = vlaneseq
        %v206 = vand.u32 %v205, 127
        %vm207 = vcmp.eq.s32.totalorder %v206, 2
        %v208 = vmul.f32 %v204, %v201
        %209 = vadd.xlane.f32.xlu0 %v208
        %v210 = vpop.xlane.xlu0 %209
        %v211 = vsel %vm207, %v210, %v201
        %s212 = scalar_lea.vmem [#allocation2], 3
        %v213 = vld [vmem:[%s212] ss:$0 sm:$0xff]
        %v214 = vxor.u32 %v213, 2147483648
        %v215 = vlaneseq
        %v216 = vand.u32 %v215, 127
        %vm217 = vcmp.eq.s32.totalorder %v216, 3
        %v218 = vmul.f32 %v214, %v211
        %219 = vadd.xlane.f32.xlu0 %v218
        %v220 = vpop.xlane.xlu0 %219
        %v221 = vsel %vm217, %v220, %v211
        %s222 = scalar_lea.vmem [#allocation2], 4
        %v223 = vld [vmem:[%s222] ss:$0 sm:$0xff]
        %v224 = vxor.u32 %v223, 2147483648
        %v225 = vlaneseq
        %v226 = vand.u32 %v225, 127
        %vm227 = vcmp.eq.s32.totalorder %v226, 4
        %v228 = vmul.f32 %v224, %v221
        %229 = vadd.xlane.f32.xlu0 %v228
        %v230 = vpop.xlane.xlu0 %229
        %v231 = vsel %vm227, %v230, %v221
        %s232 = scalar_lea.vmem [#allocation2], 5
        %v233 = vld [vmem:[%s232] ss:$0 sm:$0xff]
        %v234 = vxor.u32 %v233, 2147483648
        %v235 = vlaneseq
        %v236 = vand.u32 %v235, 127
        %vm237 = vcmp.eq.s32.totalorder %v236, 5
        %v238 = vmul.f32 %v234, %v231
        %239 = vadd.xlane.f32.xlu0 %v238
        %v240 = vpop.xlane.xlu0 %239
        %v241 = vsel %vm237, %v240, %v231
        %s242 = scalar_lea.vmem [#allocation2], 6
        %v243 = vld [vmem:[%s242] ss:$0 sm:$0xff]
        %v244 = vxor.u32 %v243, 2147483648
        %v245 = vlaneseq
        %v246 = vand.u32 %v245, 127
        %vm247 = vcmp.eq.s32.totalorder %v246, 6
        %v248 = vmul.f32 %v244, %v241
        %249 = vadd.xlane.f32.xlu0 %v248
        %v250 = vpop.xlane.xlu0 %249
        %v251 = vsel %vm247, %v250, %v241
        %s252 = scalar_lea.vmem [#allocation2], 7
        %v253 = vld [vmem:[%s252] ss:$0 sm:$0xff]
        %v254 = vxor.u32 %v253, 2147483648
        %v255 = vlaneseq
        %v256 = vand.u32 %v255, 127
        %vm257 = vcmp.eq.s32.totalorder %v256, 7
        %v258 = vmul.f32 %v254, %v251
        %259 = vadd.xlane.f32.xlu0 %v258
        %v260 = vpop.xlane.xlu0 %259
        %v261 = vsel %vm257, %v260, %v251
        %s262 = scalar_lea.vmem [#allocation2], 8
        %v263 = vld [vmem:[%s262] ss:$0 sm:$0xff]
        %v264 = vxor.u32 %v263, 2147483648
        %v265 = vlaneseq
        %v266 = vand.u32 %v265, 127
        %vm267 = vcmp.eq.s32.totalorder %v266, 8
        %v268 = vmul.f32 %v264, %v261
        %269 = vadd.xlane.f32.xlu0 %v268
        %v270 = vpop.xlane.xlu0 %269
        %v271 = vsel %vm267, %v270, %v261
        %v272 = vmul.f32 %v264, %v191
        %273 = vadd.xlane.f32.xlu0 %v272
        %v274 = vpop.xlane.xlu0 %273
        %v275 = vsel %vm267, %v274, %v191
        %s276 = scalar_lea.vmem [#allocation2], 9
        %v277 = vld [vmem:[%s276] ss:$0 sm:$0xff]
        %v278 = vxor.u32 %v277, 2147483648
        %v279 = vlaneseq
        %v280 = vand.u32 %v279, 127
        %vm281 = vcmp.eq.s32.totalorder %v280, 9
        %v282 = vmul.f32 %v278, %v271
        %283 = vadd.xlane.f32.xlu0 %v282
        %v284 = vpop.xlane.xlu0 %283
        %v285 = vsel %vm281, %v284, %v271
        %v286 = vmul.f32 %v278, %v275
        %287 = vadd.xlane.f32.xlu0 %v286
        %v288 = vpop.xlane.xlu0 %287
        %v289 = vsel %vm281, %v288, %v275
        %s290 = scalar_lea.vmem [#allocation2], 10
        %v291 = vld [vmem:[%s290] ss:$0 sm:$0xff]
        %v292 = vxor.u32 %v291, 2147483648
        %v293 = vlaneseq
        %v294 = vand.u32 %v293, 127
        %vm295 = vcmp.eq.s32.totalorder %v294, 10
        %v296 = vmul.f32 %v292, %v285
        %297 = vadd.xlane.f32.xlu0 %v296
        %v298 = vpop.xlane.xlu0 %297
        %v299 = vsel %vm295, %v298, %v285
        %v300 = vmul.f32 %v292, %v289
        %301 = vadd.xlane.f32.xlu0 %v300
        %v302 = vpop.xlane.xlu0 %301
        %v303 = vsel %vm295, %v302, %v289
        %s304 = scalar_lea.vmem [#allocation2], 11
        %v305 = vld [vmem:[%s304] ss:$0 sm:$0xff]
        %v306 = vxor.u32 %v305, 2147483648
        %v307 = vlaneseq
        %v308 = vand.u32 %v307, 127
        %vm309 = vcmp.eq.s32.totalorder %v308, 11
        %v310 = vmul.f32 %v306, %v299
        %311 = vadd.xlane.f32.xlu0 %v310
        %v312 = vpop.xlane.xlu0 %311
        %v313 = vsel %vm309, %v312, %v299
        %v314 = vmul.f32 %v306, %v303
        %315 = vadd.xlane.f32.xlu0 %v314
        %v316 = vpop.xlane.xlu0 %315
        %v317 = vsel %vm309, %v316, %v303
        %s318 = scalar_lea.vmem [#allocation2], 12
        %v319 = vld [vmem:[%s318] ss:$0 sm:$0xff]
        %v320 = vxor.u32 %v319, 2147483648
        %v321 = vlaneseq
        %v322 = vand.u32 %v321, 127
        %vm323 = vcmp.eq.s32.totalorder %v322, 12
        %v324 = vmul.f32 %v320, %v313
        %325 = vadd.xlane.f32.xlu0 %v324
        %v326 = vpop.xlane.xlu0 %325
        %v327 = vsel %vm323, %v326, %v313
        %v328 = vmul.f32 %v320, %v317
        %329 = vadd.xlane.f32.xlu0 %v328
        %v330 = vpop.xlane.xlu0 %329
        %v331 = vsel %vm323, %v330, %v317
        %s332 = scalar_lea.vmem [#allocation2], 13
        %v333 = vld [vmem:[%s332] ss:$0 sm:$0xff]
        %v334 = vxor.u32 %v333, 2147483648
        %v335 = vlaneseq
        %v336 = vand.u32 %v335, 127
        %vm337 = vcmp.eq.s32.totalorder %v336, 13
        %v338 = vmul.f32 %v334, %v327
        %339 = vadd.xlane.f32.xlu0 %v338
        %v340 = vpop.xlane.xlu0 %339
        %v341 = vsel %vm337, %v340, %v327
        %v342 = vmul.f32 %v334, %v331
        %343 = vadd.xlane.f32.xlu0 %v342
        %v344 = vpop.xlane.xlu0 %343
        %v345 = vsel %vm337, %v344, %v331
        %s346 = scalar_lea.vmem [#allocation2], 14
        %v347 = vld [vmem:[%s346] ss:$0 sm:$0xff]
        %v348 = vxor.u32 %v347, 2147483648
        %v349 = vlaneseq
        %v350 = vand.u32 %v349, 127
        %vm351 = vcmp.eq.s32.totalorder %v350, 14
        %v352 = vmul.f32 %v348, %v341
        %353 = vadd.xlane.f32.xlu0 %v352
        %v354 = vpop.xlane.xlu0 %353
        %v355 = vsel %vm351, %v354, %v341
        %v356 = vmul.f32 %v348, %v345
        %357 = vadd.xlane.f32.xlu0 %v356
        %v358 = vpop.xlane.xlu0 %357
        %v359 = vsel %vm351, %v358, %v345
        %s360 = scalar_lea.vmem [#allocation2], 15
        %v361 = vld [vmem:[%s360] ss:$0 sm:$0xff]
        %v362 = vxor.u32 %v361, 2147483648
        %v363 = vlaneseq
        %v364 = vand.u32 %v363, 127
        %vm365 = vcmp.eq.s32.totalorder %v364, 15
        %v366 = vmul.f32 %v362, %v355
        %367 = vadd.xlane.f32.xlu0 %v366
        %v368 = vpop.xlane.xlu0 %367
        %v369 = vsel %vm365, %v368, %v355
        %v370 = vmul.f32 %v362, %v359
        %371 = vadd.xlane.f32.xlu0 %v370
        %v372 = vpop.xlane.xlu0 %371
        %v373 = vsel %vm365, %v372, %v359
        %v374 = vrcp.pop %v125
        %v375 = vmul.f32 %v125, %v374
        %v376 = vsub.f32 1.0, %v375
        %v377 = vmul.f32 %v374, %v376
        %v378 = vadd.f32 %v374, %v377
        %vm379 = vweird.f32 %v125
        %vm380 = vweird.f32 %v374
        %vm381 = vmor %vm379, %vm380
        %v382 = vsel %vm381, %v374, %v378
        %v383 = vand.u32 2147483647, %v125
        %vm384 = vcmp.eq.f32.partialorder %v383, 8.507059e+37
        %v385 = vand.u32 %v125, 2147483648
        %v386 = vor.u32 1.1754944e-38, %v385
        %v387 = vsel %vm384, %v386, %v382
        %v388 = vmul.f32 %v369, %v387
        %vm389 = vweird.f32 %v125
        %v390 = vsel %vm389, %v369, %v388
        %391 = vst [vmem:[%s114] sm:$0xff] %v390
        %v392 = vrcp.pop %v154
        %v393 = vmul.f32 %v154, %v392
        %v394 = vsub.f32 1.0, %v393
        %v395 = vmul.f32 %v392, %v394
        %v396 = vadd.f32 %v392, %v395
        %vm397 = vweird.f32 %v154
        %vm398 = vweird.f32 %v392
        %vm399 = vmor %vm397, %vm398
        %v400 = vsel %vm399, %v392, %v396
        %v401 = vand.u32 2147483647, %v154
        %vm402 = vcmp.eq.f32.partialorder %v401, 8.507059e+37
        %v403 = vand.u32 %v154, 2147483648
        %v404 = vor.u32 1.1754944e-38, %v403
        %v405 = vsel %vm402, %v404, %v400
        %v406 = vmul.f32 %v373, %v405
        %vm407 = vweird.f32 %v154
        %v408 = vsel %vm407, %v373, %v406
        %s409 = scalar_lea.vmem %s114, 8 [#allocation1]
        %410 = vst [vmem:[%s409] sm:$0xff] %v408
        %s411 = sand.u32 %s8, 1
        %s412 = sand.u32 %s8, 1
        %s413 = smul.addr %s412, 16
        %s414 = scalar_lea.vmem [#allocation1], %s413
        %s415 = sadd.s32 %s17, %s16
        %s416 = smul.addr %s15, 2
        %s417 = sadd.s32 %s415, %s416
        %s418 = smul.addr %s14, 2
        %s419 = sadd.s32 %s417, %s418
        %s420 = smul.addr %s419, 8
        %s421 = scalar_lea.vmem %s1, %s420
        // Predicated region
        $region55: #{custom-call.68} parent=53 // pred_check
          _
        $region56: #{custom-call.68} parent=53 // pred_check_branch
          %423 = sbr.rel (0) target = $region58
        $region57: #{custom-call.68} parent=53 // pred_region
          // Predicated region
          $region59: #{custom-call.68} parent=57 // pred_check
            _
          $region60: #{custom-call.68} parent=57 // pred_check_branch
            %425 = sbr.rel (0) target = $region62
          $region61: #{custom-call.68} parent=57 // pred_region
            // Predicated region
            $region74: #{custom-call.68} parent=61 // pred_check
              _
            $region75: #{custom-call.68} parent=61 // pred_check_branch
              %443 = sbr.rel (0) target = $region77
            $region76: #{custom-call.68} parent=61 // pred_region
              loop: start=0, step=1, limit=1
              $region78: #{custom-call.68} parent=76 // loop_pre_header
                _
              $region79: #{custom-call.68} parent=76 // loop_header
                %s445 = sphi 0, %s449
                %p446 = scmp.ge.s32.totalorder %s445, 1
                %s450 = sphi %s414, %s414
                %s451 = sphi %s421, %s421
              $region80: #{custom-call.68} parent=76 // loop_header_branch
                %448 = sbr.rel (%p446) target = $region84
              $region81: #{custom-call.68} parent=76 // loop_body
                %v452 = vld [vmem:[%s450] sm:$0xff]
                %453 = vst [vmem:[%s451] sm:$0xff] %v452
                %v454 = vld [vmem:[%s450 + $0x8] sm:$0xff]
                %455 = vst [vmem:[%s451 + $0x8] sm:$0xff] %v454
              $region82: #{custom-call.68} parent=76 // loop_footer
                %s449 = sadd.s32 1, %s445
              $region83: #{custom-call.68} parent=76 // loop_footer_branch
                %444 = sbr.rel target = $region79
              $region84: #{custom-call.68} parent=76 // loop_exit
                _
            $region77: #{custom-call.68} parent=61 // pred_fallthru
              _
            // Predicated region
            $region85: #{custom-call.68} parent=61 // pred_check
              _
            $region86: #{custom-call.68} parent=61 // pred_check_branch
              %457 = sbr.rel target = $region88
            $region87: #{custom-call.68} parent=61 // pred_region
              _
            $region88: #{custom-call.68} parent=61 // pred_fallthru
              _
          $region62: #{custom-call.68} parent=57 // pred_fallthru
            _
          // Predicated region
          $region63: #{custom-call.68} parent=57 // pred_check
            _
          $region64: #{custom-call.68} parent=57 // pred_check_branch
            %427 = sbr.rel target = $region66
          $region65: #{custom-call.68} parent=57 // pred_region
            %s429 = ssub.s32 256, 1
            loop: start=0, step=1, limit=1
            $region67: #{custom-call.68} parent=65 // loop_pre_header
              _
            $region68: #{custom-call.68} parent=65 // loop_header
              %s431 = sphi 0, %s435
              %p432 = scmp.ge.s32.totalorder %s431, 1
              %s436 = sphi %s414, %s414
              %s437 = sphi %s421, %s421
            $region69: #{custom-call.68} parent=65 // loop_header_branch
              %434 = sbr.rel (%p432) target = $region73
            $region70: #{custom-call.68} parent=65 // loop_body
              %v438 = vld [vmem:[%s436] sm:%s429]
              %439 = vst [vmem:[%s437] sm:%s429] %v438
              %v440 = vld [vmem:[%s436 + $0x8] sm:%s429]
              %441 = vst [vmem:[%s437 + $0x8] sm:%s429] %v440
            $region71: #{custom-call.68} parent=65 // loop_footer
              %s435 = sadd.s32 1, %s431
            $region72: #{custom-call.68} parent=65 // loop_footer_branch
              %430 = sbr.rel target = $region68
            $region73: #{custom-call.68} parent=65 // loop_exit
              _
          $region66: #{custom-call.68} parent=57 // pred_fallthru
            _
        $region58: #{custom-call.68} parent=53 // pred_fallthru
          _
        %458 = vnop
      $region54: #{custom-call.68} parent=5 // pred_fallthru
        _
      %p459 = scmp.le.s32.totalorder 2, %s3
      // Predicated region
      $region89: #{custom-call.68} parent=5 // pred_check
        %p460 = pneg %p459
      $region90: #{custom-call.68} parent=5 // pred_check_branch
        %462 = sbr.rel (%p460) target = $region92
      $region91: #{custom-call.68} parent=5 // pred_region
        %s463 = ssub.s32 %s3, 2
        %s464 = sand.u32 %s9, 1
        %s465 = sand.u32 %s9, 1
        %s466 = smul.addr %s465, 16
        %s467 = scalar_lea.vmem [#allocation1], %s466
      $region92: #{custom-call.68} parent=5 // pred_fallthru
        _
    $region6: #{custom-call.68} parent=1 // loop_footer
      %s7 = sadd.s32 1, %s3
    $region7: #{custom-call.68} parent=1 // loop_footer_branch
      %2 = sbr.rel target = $region3
    $region8: #{custom-call.68} parent=1 // loop_exit
      _

// kernel: _forward.2
$region0: #{_forward.2}
  #allocation0 [shape = 'u32[]', space=smem, size = 0x4, offset = 0x4, fixed_abs, tag = 'smem constant byte address 0x4 - core index']
  #allocation1 [shape = 'u32[72,128]{1,0:T(1,128)}', space=vmem, size = 0x9000, scoped, tag = 'internal scratch']
  %s0 = inlined_call_operand.vmem [shape: f32[16,256], index: 0, kind: input, shape index: {}]
  %s1 = inlined_call_operand.vmem [shape: bf16[16,128], index: 1, kind: input, shape index: {}]
  %s2 = inlined_call_operand.vmem [shape: bf16[16,128], index: 2, kind: input, shape index: {}]
  %s3 = inlined_call_operand.vmem [shape: f32[16,4], index: 3, kind: input, shape index: {}]
  %s4 = inlined_call_operand.vmem [shape: f32[1,256], index: 4, kind: input, shape index: {}]
  %s5 = inlined_call_operand.vmem [shape: f32[16,256], index: 5, kind: output, shape index: {}]
  %s6 = sld [smem:[#allocation0]]
  $region30: #{_forward.2} parent=0
    _
  %s8 = ssub.s32 1, %s6
  %s9 = scalar_select 0, %s8, %s6
  // Predicated region
  $region2: #{_forward.2} parent=0 // pred_check
    _
  $region3: #{_forward.2} parent=0 // pred_check_branch
    %11 = sbr.rel (0) target = $region5
  $region4: #{_forward.2} parent=0 // pred_region
    _
  $region5: #{_forward.2} parent=0 // pred_fallthru
    _
  // Predicated region
  $region6: #{_forward.2} parent=0 // pred_check
    _
  $region7: #{_forward.2} parent=0 // pred_check_branch
    %13 = sbr.rel (0) target = $region9
  $region8: #{_forward.2} parent=0 // pred_region
    _
  $region9: #{_forward.2} parent=0 // pred_fallthru
    _
  // Predicated region
  $region10: #{_forward.2} parent=0 // pred_check
    _
  $region11: #{_forward.2} parent=0 // pred_check_branch
    %15 = sbr.rel (0) target = $region13
  $region12: #{_forward.2} parent=0 // pred_region
    _
  $region13: #{_forward.2} parent=0 // pred_fallthru
    _
  // Predicated region
  $region14: #{_forward.2} parent=0 // pred_check
    _
  $region15: #{_forward.2} parent=0 // pred_check_branch
    %17 = sbr.rel (0) target = $region17
  $region16: #{_forward.2} parent=0 // pred_region
    _
  $region17: #{_forward.2} parent=0 // pred_fallthru
    _
  // Predicated region
  $region18: #{_forward.2} parent=0 // pred_check
    _
  $region19: #{_forward.2} parent=0 // pred_check_branch
    %19 = sbr.rel (0) target = $region21
  $region20: #{_forward.2} parent=0 // pred_region
    _
  $region21: #{_forward.2} parent=0 // pred_fallthru
    _
  %v20 = vld [vmem:[%s0] sm:$0xff]
  %v21 = vld [vmem:[%s0 + $0x8] sm:$0xff]
  %v22 = vld [vmem:[%s0 + $0x10] sm:$0xff]
  %v23 = vld [vmem:[%s0 + $0x18] sm:$0xff]
  %v24 = vld [vmem:[%s4] sm:$0x3]
  %v25 = vld [vmem:[%s3] sm:$0xff]
  %v26 = vld [vmem:[%s3 + $0x8] sm:$0xff]
  %v27 = vld [vmem:[%s1] sm:$0xf]
  %v28 = vld [vmem:[%s1 + $0x4] sm:$0xf]
  %29 = vrot.lane.b32.xlu0 %v20, 3
  %v30 = vpop.permute.xlu0 %29
  %31 = vrot.lane.b32.xlu0 %v22, 3
  %v32 = vpop.permute.xlu0 %31
  %33 = vrot.lane.b32.xlu0 %v21, 3
  %v34 = vpop.permute.xlu0 %33
  %35 = vrot.lane.b32.xlu0 %v23, 3
  %v36 = vpop.permute.xlu0 %35
  %v37 = vlaneseq
  %v38 = vand.u32 %v37, 127
  %vm39 = vcmp.lt.s32.totalorder %v38, 3
  %v40 = vsel %vm39, %v30, %v34
  %v41 = vsel %vm39, %v32, %v36
  %v42 = vsel %vm39, %v34, %v30
  %v43 = vsel %vm39, %v36, %v32
  %44 = vrot.lane.b32.xlu0 %v20, 2
  %v45 = vpop.permute.xlu0 %44
  %46 = vrot.lane.b32.xlu0 %v22, 2
  %v47 = vpop.permute.xlu0 %46
  %48 = vrot.lane.b32.xlu0 %v21, 2
  %v49 = vpop.permute.xlu0 %48
  %50 = vrot.lane.b32.xlu0 %v23, 2
  %v51 = vpop.permute.xlu0 %50
  %vm52 = vcmp.lt.s32.totalorder %v38, 2
  %v53 = vsel %vm52, %v45, %v49
  %v54 = vsel %vm52, %v47, %v51
  %v55 = vsel %vm52, %v49, %v45
  %v56 = vsel %vm52, %v51, %v47
  %57 = vrot.lane.b32.xlu0 %v20, 1
  %v58 = vpop.permute.xlu0 %57
  %59 = vrot.lane.b32.xlu0 %v22, 1
  %v60 = vpop.permute.xlu0 %59
  %61 = vrot.lane.b32.xlu0 %v21, 1
  %v62 = vpop.permute.xlu0 %61
  %63 = vrot.lane.b32.xlu0 %v23, 1
  %v64 = vpop.permute.xlu0 %63
  %vm65 = vcmp.lt.s32.totalorder %v38, 1
  %v66 = vsel %vm65, %v58, %v62
  %v67 = vsel %vm65, %v60, %v64
  %v68 = vsel %vm65, %v62, %v58
  %v69 = vsel %vm65, %v64, %v60
  %70 = vrot.lane.b32.xlu0 %v20, 127
  %v71 = vpop.permute.xlu0 %70
  %72 = vrot.lane.b32.xlu0 %v22, 127
  %v73 = vpop.permute.xlu0 %72
  %74 = vrot.lane.b32.xlu0 %v21, 127
  %v75 = vpop.permute.xlu0 %74
  %76 = vrot.lane.b32.xlu0 %v23, 127
  %v77 = vpop.permute.xlu0 %76
  %vm78 = vcmp.lt.s32.totalorder %v38, 127
  %v79 = vsel %vm78, %v71, %v75
  %v80 = vsel %vm78, %v73, %v77
  %v81 = vsel %vm78, %v75, %v71
  %v82 = vsel %vm78, %v77, %v73
  %83 = vrot.lane.b32.xlu0 %v20, 126
  %v84 = vpop.permute.xlu0 %83
  %85 = vrot.lane.b32.xlu0 %v22, 126
  %v86 = vpop.permute.xlu0 %85
  %87 = vrot.lane.b32.xlu0 %v21, 126
  %v88 = vpop.permute.xlu0 %87
  %89 = vrot.lane.b32.xlu0 %v23, 126
  %v90 = vpop.permute.xlu0 %89
  %vm91 = vcmp.lt.s32.totalorder %v38, 126
  %v92 = vsel %vm91, %v84, %v88
  %v93 = vsel %vm91, %v86, %v90
  %v94 = vsel %vm91, %v88, %v84
  %v95 = vsel %vm91, %v90, %v86
  %96 = vrot.lane.b32.xlu0 %v20, 125
  %v97 = vpop.permute.xlu0 %96
  %98 = vrot.lane.b32.xlu0 %v22, 125
  %v99 = vpop.permute.xlu0 %98
  %100 = vrot.lane.b32.xlu0 %v21, 125
  %v101 = vpop.permute.xlu0 %100
  %102 = vrot.lane.b32.xlu0 %v23, 125
  %v103 = vpop.permute.xlu0 %102
  %vm104 = vcmp.lt.s32.totalorder %v38, 125
  %v105 = vsel %vm104, %v97, %v101
  %v106 = vsel %vm104, %v99, %v103
  %v107 = vsel %vm104, %v101, %v97
  %v108 = vsel %vm104, %v103, %v99
  %109 = vrot.lane.b32.xlu0 %v20, 124
  %v110 = vpop.permute.xlu0 %109
  %111 = vrot.lane.b32.xlu0 %v22, 124
  %v112 = vpop.permute.xlu0 %111
  %113 = vrot.lane.b32.xlu0 %v21, 124
  %v114 = vpop.permute.xlu0 %113
  %115 = vrot.lane.b32.xlu0 %v23, 124
  %v116 = vpop.permute.xlu0 %115
  %vm117 = vcmp.lt.s32.totalorder %v38, 124
  %v118 = vsel %vm117, %v110, %v114
  %v119 = vsel %vm117, %v112, %v116
  %v120 = vsel %vm117, %v114, %v110
  %v121 = vsel %vm117, %v116, %v112
  %v122 = vpack.c.bf16 %v43, %v42
  %v123 = vpack.c.bf16 %v41, %v40
  %v124 = vpack.c.bf16 %v56, %v55
  %v125 = vpack.c.bf16 %v54, %v53
  %v126 = vpack.c.bf16 %v69, %v68
  %v127 = vpack.c.bf16 %v67, %v66
  %v128 = vpack.c.bf16 %v22, %v20
  %v129 = vpack.c.bf16 %v23, %v21
  %v130 = vpack.c.bf16 %v80, %v79
  %v131 = vpack.c.bf16 %v82, %v81
  %v132 = vpack.c.bf16 %v93, %v92
  %v133 = vpack.c.bf16 %v95, %v94
  %v134 = vpack.c.bf16 %v106, %v105
  %v135 = vpack.c.bf16 %v108, %v107
  %v136 = vpack.c.bf16 %v119, %v118
  %v137 = vpack.c.bf16 %v121, %v120
  %v140 = vunpack.c.l.b16 %v27
  %v141 = vunpack.c.l.b16 %v28
  %v142 = vpack.c.b16 %v141, %v140
  %144 = vmatpush.bf16.msra.mxu0 %v136
  %145 = vmatpush.bf16.msra.mxu0 %v134
  %146 = vmatpush.bf16.msra.mxu0 %v132
  %147 = vmatpush.bf16.msra.mxu0 %v130
  %148 = vmatpush.bf16.msra.mxu0 %v128
  %149 = vmatpush.bf16.msra.mxu0 %v126
  %150 = vmatpush.bf16.msra.mxu0 %v124
  %151 = vmatpush.bf16.msra.mxu0 %v122
  %152 = vmatmul.bf16.gmra.mxu0 %v142
  %v153 = vpop.f32.mrf.mxu0
  %v154 = vadd.f32 0.0, %v153
  %v155 = vpop.f32.mrf.mxu0
  %v156 = vadd.f32 0.0, %v155
  %157 = vdwg.mxu0
  %158 = vmatpush.bf16.msra.mxu0 %v137
  %159 = vmatpush.bf16.msra.mxu0 %v135
  %160 = vmatpush.bf16.msra.mxu0 %v133
  %161 = vmatpush.bf16.msra.mxu0 %v131
  %162 = vmatpush.bf16.msra.mxu0 %v129
  %163 = vmatpush.bf16.msra.mxu0 %v127
  %164 = vmatpush.bf16.msra.mxu0 %v125
  %165 = vmatpush.bf16.msra.mxu0 %v123
  %166 = vmatmul.bf16.gmra.mxu0 %v142
  %v167 = vpop.f32.mrf.mxu0
  %v168 = vadd.f32 0.0, %v167
  %v169 = vpop.f32.mrf.mxu0
  %v170 = vadd.f32 0.0, %v169
  %171 = vdwg.mxu0
  %v173 = vperm.slane %v24, 0
  %v174 = vperm.slane %v24, 1
  %v177 = vmul.f32 %v154, %v173
  %v178 = vmul.f32 %v168, %v174
  %v179 = vmul.f32 %v156, %v173
  %v180 = vmul.f32 %v170, %v174
  %v181 = vadd.f32 %v177, %v178
  %182 = vadd.xlane.f32.xlu0 %v181
  %v183 = vpop.xlane.xlu0 %182
  %v184 = vadd.f32 %v179, %v180
  %185 = vadd.xlane.f32.xlu0 %v184
  %v186 = vpop.xlane.xlu0 %185
  %v187 = vmul.f32 %v177, %v177
  %v188 = vmul.f32 %v178, %v178
  %v189 = vmul.f32 %v179, %v179
  %v190 = vmul.f32 %v180, %v180
  %v191 = vadd.f32 %v187, %v188
  %192 = vadd.xlane.f32.xlu0 %v191
  %v193 = vpop.xlane.xlu0 %192
  %v194 = vadd.f32 %v189, %v190
  %195 = vadd.xlane.f32.xlu0 %v194
  %v196 = vpop.xlane.xlu0 %195
  %v197 = vmul.f32 %v183, 0.0078125
  %v198 = vmul.f32 %v186, 0.0078125
  %v199 = vmul.f32 %v193, 0.0078125
  %v200 = vmul.f32 %v196, 0.0078125
  %v201 = vmul.f32 %v197, %v197
  %v202 = vmul.f32 %v198, %v198
  %v203 = vsub.f32 %v199, %v201
  %v204 = vsub.f32 %v200, %v202
  %v205 = vadd.f32 %v203, 1e-05
  %v206 = vadd.f32 %v204, 1e-05
  %v207 = vrsqrt.pop %v205
  %v208 = vmul.f32 %v207, %v205
  %v209 = vmul.f32 %v208, %v207
  %v210 = vmul.f32 0.5, %v209
  %v211 = vsub.f32 1.5, %v210
  %v212 = vmul.f32 %v207, %v211
  %vm213 = vweird.f32 %v205
  %vm214 = vweird.f32 %v207
  %vm215 = vmor %vm213, %vm214
  %v216 = vsel %vm215, %v207, %v212
  %v217 = vrsqrt.pop %v206
  %v218 = vmul.f32 %v217, %v206
  %v219 = vmul.f32 %v218, %v217
  %v220 = vmul.f32 0.5, %v219
  %v221 = vsub.f32 1.5, %v220
  %v222 = vmul.f32 %v217, %v221
  %vm223 = vweird.f32 %v206
  %vm224 = vweird.f32 %v217
  %vm225 = vmor %vm223, %vm224
  %v226 = vsel %vm225, %v217, %v222
  %v227 = vmul.f32 %v25, %v216
  %v228 = vmul.f32 %v26, %v226
  %v229 = vmul.f32 %v197, %v227
  %v230 = vmul.f32 %v198, %v228
  %233 = vrot.lane.b32.xlu0 %v229, 1
  %v234 = vpop.permute.xlu0 %233
  %235 = vrot.lane.b32.xlu0 %v230, 1
  %v236 = vpop.permute.xlu0 %235
  %v239 = vsub.f32 %v25, %v234
  %v240 = vsub.f32 %v26, %v236
  %242 = vset.pattern.permute.xlu0 0
  %243 = vperm.xlu0 %242, %v227
  %v244 = vpop.permute.xlu0 %243
  %247 = vset.pattern.permute.xlu0 0
  %248 = vperm.xlu0 %247, %v228
  %v249 = vpop.permute.xlu0 %248
  %v251 = vmul.f32 %v177, %v244
  %v252 = vmul.f32 %v178, %v244
  %v253 = vmul.f32 %v179, %v249
  %v254 = vmul.f32 %v180, %v249
  %256 = vset.pattern.permute.xlu0 1
  %257 = vperm.xlu0 %256, %v239
  %v258 = vpop.permute.xlu0 %257
  %261 = vset.pattern.permute.xlu0 1
  %262 = vperm.xlu0 %261, %v240
  %v263 = vpop.permute.xlu0 %262
  %v265 = vadd.f32 %v251, %v258
  %v266 = vadd.f32 %v252, %v258
  %v267 = vadd.f32 %v253, %v263
  %v268 = vadd.f32 %v254, %v263
  %v269 = vmax.f32 %v265, 0.0
  %v270 = vmax.f32 %v266, 0.0
  %v271 = vmax.f32 %v267, 0.0
  %v272 = vmax.f32 %v268, 0.0
  %v273 = vmul.f32 %v269, %v173
  %v274 = vmul.f32 %v270, %v174
  %v275 = vmul.f32 %v271, %v173
  %v276 = vmul.f32 %v272, %v174
  %v277 = vld [vmem:[%s2] sm:$0xf]
  %v278 = vld [vmem:[%s2 + $0x4] sm:$0xf]
  %279 = vrot.lane.b32.xlu0 %v273, 3
  %v280 = vpop.permute.xlu0 %279
  %281 = vrot.lane.b32.xlu0 %v275, 3
  %v282 = vpop.permute.xlu0 %281
  %283 = vrot.lane.b32.xlu0 %v274, 3
  %v284 = vpop.permute.xlu0 %283
  %285 = vrot.lane.b32.xlu0 %v276, 3
  %v286 = vpop.permute.xlu0 %285
  %v287 = vsel %vm39, %v280, %v284
  %v288 = vsel %vm39, %v282, %v286
  %v289 = vsel %vm39, %v284, %v280
  %v290 = vsel %vm39, %v286, %v282
  %291 = vrot.lane.b32.xlu0 %v273, 2
  %v292 = vpop.permute.xlu0 %291
  %293 = vrot.lane.b32.xlu0 %v275, 2
  %v294 = vpop.permute.xlu0 %293
  %295 = vrot.lane.b32.xlu0 %v274, 2
  %v296 = vpop.permute.xlu0 %295
  %297 = vrot.lane.b32.xlu0 %v276, 2
  %v298 = vpop.permute.xlu0 %297
  %v299 = vsel %vm52, %v292, %v296
  %v300 = vsel %vm52, %v294, %v298
  %v301 = vsel %vm52, %v296, %v292
  %v302 = vsel %vm52, %v298, %v294
  %303 = vrot.lane.b32.xlu0 %v273, 1
  %v304 = vpop.permute.xlu0 %303
  %305 = vrot.lane.b32.xlu0 %v275, 1
  %v306 = vpop.permute.xlu0 %305
  %307 = vrot.lane.b32.xlu0 %v274, 1
  %v308 = vpop.permute.xlu0 %307
  %309 = vrot.lane.b32.xlu0 %v276, 1
  %v310 = vpop.permute.xlu0 %309
  %v311 = vsel %vm65, %v304, %v308
  %v312 = vsel %vm65, %v306, %v310
  %v313 = vsel %vm65, %v308, %v304
  %v314 = vsel %vm65, %v310, %v306
  %315 = vrot.lane.b32.xlu0 %v273, 127
  %v316 = vpop.permute.xlu0 %315
  %317 = vrot.lane.b32.xlu0 %v275, 127
  %v318 = vpop.permute.xlu0 %317
  %319 = vrot.lane.b32.xlu0 %v274, 127
  %v320 = vpop.permute.xlu0 %319
  %321 = vrot.lane.b32.xlu0 %v276, 127
  %v322 = vpop.permute.xlu0 %321
  %v323 = vsel %vm78, %v316, %v320
  %v324 = vsel %vm78, %v318, %v322
  %v325 = vsel %vm78, %v320, %v316
  %v326 = vsel %vm78, %v322, %v318
  %327 = vrot.lane.b32.xlu0 %v273, 126
  %v328 = vpop.permute.xlu0 %327
  %329 = vrot.lane.b32.xlu0 %v275, 126
  %v330 = vpop.permute.xlu0 %329
  %331 = vrot.lane.b32.xlu0 %v274, 126
  %v332 = vpop.permute.xlu0 %331
  %333 = vrot.lane.b32.xlu0 %v276, 126
  %v334 = vpop.permute.xlu0 %333
  %v335 = vsel %vm91, %v328, %v332
  %v336 = vsel %vm91, %v330, %v334
  %v337 = vsel %vm91, %v332, %v328
  %v338 = vsel %vm91, %v334, %v330
  %339 = vrot.lane.b32.xlu0 %v273, 125
  %v340 = vpop.permute.xlu0 %339
  %341 = vrot.lane.b32.xlu0 %v275, 125
  %v342 = vpop.permute.xlu0 %341
  %343 = vrot.lane.b32.xlu0 %v274, 125
  %v344 = vpop.permute.xlu0 %343
  %345 = vrot.lane.b32.xlu0 %v276, 125
  %v346 = vpop.permute.xlu0 %345
  %v347 = vsel %vm104, %v340, %v344
  %v348 = vsel %vm104, %v342, %v346
  %v349 = vsel %vm104, %v344, %v340
  %v350 = vsel %vm104, %v346, %v342
  %351 = vrot.lane.b32.xlu0 %v273, 124
  %v352 = vpop.permute.xlu0 %351
  %353 = vrot.lane.b32.xlu0 %v275, 124
  %v354 = vpop.permute.xlu0 %353
  %355 = vrot.lane.b32.xlu0 %v274, 124
  %v356 = vpop.permute.xlu0 %355
  %357 = vrot.lane.b32.xlu0 %v276, 124
  %v358 = vpop.permute.xlu0 %357
  %v359 = vsel %vm117, %v352, %v356
  %v360 = vsel %vm117, %v354, %v358
  %v361 = vsel %vm117, %v356, %v352
  %v362 = vsel %vm117, %v358, %v354
  %v363 = vpack.c.bf16 %v290, %v289
  %v364 = vpack.c.bf16 %v288, %v287
  %v365 = vpack.c.bf16 %v302, %v301
  %v366 = vpack.c.bf16 %v300, %v299
  %v367 = vpack.c.bf16 %v314, %v313
  %v368 = vpack.c.bf16 %v312, %v311
  %v369 = vpack.c.bf16 %v275, %v273
  %v370 = vpack.c.bf16 %v276, %v274
  %v371 = vpack.c.bf16 %v324, %v323
  %v372 = vpack.c.bf16 %v326, %v325
  %v373 = vpack.c.bf16 %v336, %v335
  %v374 = vpack.c.bf16 %v338, %v337
  %v375 = vpack.c.bf16 %v348, %v347
  %v376 = vpack.c.bf16 %v350, %v349
  %v377 = vpack.c.bf16 %v360, %v359
  %v378 = vpack.c.bf16 %v362, %v361
  %v381 = vunpack.c.l.b16 %v277
  %v382 = vunpack.c.l.b16 %v278
  %v383 = vpack.c.b16 %v382, %v381
  %385 = vmatpush.bf16.msra.mxu0 %v377
  %386 = vmatpush.bf16.msra.mxu0 %v375
  %387 = vmatpush.bf16.msra.mxu0 %v373
  %388 = vmatpush.bf16.msra.mxu0 %v371
  %389 = vmatpush.bf16.msra.mxu0 %v369
  %390 = vmatpush.bf16.msra.mxu0 %v367
  %391 = vmatpush.bf16.msra.mxu0 %v365
  %392 = vmatpush.bf16.msra.mxu0 %v363
  %393 = vmatmul.bf16.gmra.mxu0 %v383
  %v394 = vpop.f32.mrf.mxu0
  %v395 = vadd.f32 0.0, %v394
  %v396 = vpop.f32.mrf.mxu0
  %v397 = vadd.f32 0.0, %v396
  %398 = vdwg.mxu0
  %399 = vmatpush.bf16.msra.mxu0 %v378
  %400 = vmatpush.bf16.msra.mxu0 %v376
  %401 = vmatpush.bf16.msra.mxu0 %v374
  %402 = vmatpush.bf16.msra.mxu0 %v372
  %403 = vmatpush.bf16.msra.mxu0 %v370
  %404 = vmatpush.bf16.msra.mxu0 %v368
  %405 = vmatpush.bf16.msra.mxu0 %v366
  %406 = vmatpush.bf16.msra.mxu0 %v364
  %407 = vmatmul.bf16.gmra.mxu0 %v383
  %v408 = vpop.f32.mrf.mxu0
  %v409 = vadd.f32 0.0, %v408
  %v410 = vpop.f32.mrf.mxu0
  %v411 = vadd.f32 0.0, %v410
  %412 = vdwg.mxu0
  %v413 = vmul.f32 %v395, %v173
  %v414 = vmul.f32 %v409, %v174
  %v415 = vmul.f32 %v397, %v173
  %v416 = vmul.f32 %v411, %v174
  %v417 = vadd.f32 %v413, %v414
  %418 = vadd.xlane.f32.xlu0 %v417
  %v419 = vpop.xlane.xlu0 %418
  %v420 = vadd.f32 %v415, %v416
  %421 = vadd.xlane.f32.xlu0 %v420
  %v422 = vpop.xlane.xlu0 %421
  %v423 = vmul.f32 %v413, %v413
  %v424 = vmul.f32 %v414, %v414
  %v425 = vmul.f32 %v415, %v415
  %v426 = vmul.f32 %v416, %v416
  %v427 = vadd.f32 %v423, %v424
  %428 = vadd.xlane.f32.xlu0 %v427
  %v429 = vpop.xlane.xlu0 %428
  %v430 = vadd.f32 %v425, %v426
  %431 = vadd.xlane.f32.xlu0 %v430
  %v432 = vpop.xlane.xlu0 %431
  %v433 = vmul.f32 %v419, 0.0078125
  %v434 = vmul.f32 %v422, 0.0078125
  %v435 = vmul.f32 %v429, 0.0078125
  %v436 = vmul.f32 %v432, 0.0078125
  %v437 = vmul.f32 %v433, %v433
  %v438 = vmul.f32 %v434, %v434
  %v439 = vsub.f32 %v435, %v437
  %v440 = vsub.f32 %v436, %v438
  %v441 = vadd.f32 %v439, 1e-05
  %v442 = vadd.f32 %v440, 1e-05
  %v443 = vrsqrt.pop %v441
  %v444 = vmul.f32 %v443, %v441
  %v445 = vmul.f32 %v444, %v443
  %v446 = vmul.f32 0.5, %v445
  %v447 = vsub.f32 1.5, %v446
  %v448 = vmul.f32 %v443, %v447
  %vm449 = vweird.f32 %v441
  %vm450 = vweird.f32 %v443
  %vm451 = vmor %vm449, %vm450
  %v452 = vsel %vm451, %v443, %v448
  %v453 = vrsqrt.pop %v442
  %v454 = vmul.f32 %v453, %v442
  %v455 = vmul.f32 %v454, %v453
  %v456 = vmul.f32 0.5, %v455
  %v457 = vsub.f32 1.5, %v456
  %v458 = vmul.f32 %v453, %v457
  %vm459 = vweird.f32 %v442
  %vm460 = vweird.f32 %v453
  %vm461 = vmor %vm459, %vm460
  %v462 = vsel %vm461, %v453, %v458
  %v463 = vmul.f32 %v25, %v452
  %v464 = vmul.f32 %v26, %v462
  %v465 = vmul.f32 %v433, %v463
  %v466 = vmul.f32 %v434, %v464
  %469 = vrot.lane.b32.xlu0 %v465, 1
  %v470 = vpop.permute.xlu0 %469
  %471 = vrot.lane.b32.xlu0 %v466, 1
  %v472 = vpop.permute.xlu0 %471
  %v475 = vsub.f32 %v25, %v470
  %v476 = vsub.f32 %v26, %v472
  %478 = vset.pattern.permute.xlu0 2
  %479 = vperm.xlu0 %478, %v463
  %v480 = vpop.permute.xlu0 %479
  %483 = vset.pattern.permute.xlu0 2
  %484 = vperm.xlu0 %483, %v464
  %v485 = vpop.permute.xlu0 %484
  %v487 = vmul.f32 %v413, %v480
  %v488 = vmul.f32 %v414, %v480
  %v489 = vmul.f32 %v415, %v485
  %v490 = vmul.f32 %v416, %v485
  %492 = vset.pattern.permute.xlu0 3
  %493 = vperm.xlu0 %492, %v475
  %v494 = vpop.permute.xlu0 %493
  %497 = vset.pattern.permute.xlu0 3
  %498 = vperm.xlu0 %497, %v476
  %v499 = vpop.permute.xlu0 %498
  %v501 = vadd.f32 %v487, %v494
  %v502 = vadd.f32 %v488, %v494
  %v503 = vadd.f32 %v489, %v499
  %v504 = vadd.f32 %v490, %v499
  %v505 = vmax.f32 %v501, 0.0
  %v506 = vmax.f32 %v502, 0.0
  %v507 = vmax.f32 %v503, 0.0
  %v508 = vmax.f32 %v504, 0.0
  %v509 = vmul.f32 %v505, %v173
  %v510 = vmul.f32 %v506, %v174
  %v511 = vmul.f32 %v507, %v173
  %v512 = vmul.f32 %v508, %v174
  %513 = vst [vmem:[%s5] sm:$0xff] %v509
  %514 = vst [vmem:[%s5 + $0x8] sm:$0xff] %v510
  %515 = vst [vmem:[%s5 + $0x10] sm:$0xff] %v511
  %516 = vst [vmem:[%s5 + $0x18] sm:$0xff] %v512
  // Predicated region
  $region22: #{_forward.2} parent=0 // pred_check
    _
  $region23: #{_forward.2} parent=0 // pred_check_branch
    %518 = sbr.rel (0) target = $region25
  $region24: #{_forward.2} parent=0 // pred_region
    _
  $region25: #{_forward.2} parent=0 // pred_fallthru
    _
  // Predicated region
  $region26: #{_forward.2} parent=0 // pred_check
    _
  $region27: #{_forward.2} parent=0 // pred_check_branch
    %520 = sbr.rel (0) target = $region29
  $region28: #{_forward.2} parent=0 // pred_region
    _
  $region29: #{_forward.2} parent=0 // pred_fallthru
    _

// kernel: custom-call.34
$region0: #{custom-call.34}
  %s0 = inlined_call_operand.vmem [shape: f32[2,8,8], index: 0, kind: input, shape index: {}]
  %s1 = inlined_call_operand.vmem [shape: f32[2,8,8], index: 1, kind: input, shape index: {}]
  %s2 = inlined_call_operand.vmem [shape: f32[2,8,8], index: 2, kind: input, shape index: {}]
  %s3 = inlined_call_operand.vmem [shape: f32[2,8,8], index: 3, kind: input, shape index: {}]
  %s4 = inlined_call_operand.vmem [shape: f32[2,8], index: 4, kind: output, shape index: {0}]
  %s5 = inlined_call_operand.vmem [shape: f32[2,8], index: 5, kind: output, shape index: {1}]
  %s6 = inlined_call_operand.vmem [shape: f32[2,8,8], index: 6, kind: output, shape index: {2}]
  %s7 = inlined_call_operand.vmem [shape: f32[2,8,8], index: 7, kind: output, shape index: {3}]
  %s8 = inlined_call_operand.vmem [shape: f32[2,8,8], index: 8, kind: output, shape index: {4}]
  %s9 = inlined_call_operand.vmem [shape: f32[2,8,8], index: 9, kind: output, shape index: {5}]
  %10 = xla_tuple %s4, %s5, %s6, %s7, %s8, %s9
  $region1: #{custom-call.34} parent=0
    #allocation0 [shape = 'u8[8192]{0}', space=vmem, size = 0x2000, scoped, tag = 'operand span for operand 0']
    #allocation1 [shape = 'u8[8192]{0}', space=vmem, size = 0x2000, scoped, tag = 'operand span for operand 1']
    #allocation2 [shape = 'u8[8192]{0}', space=vmem, size = 0x2000, scoped, tag = 'operand span for operand 2']
    #allocation3 [shape = 'u8[8192]{0}', space=vmem, size = 0x2000, scoped, tag = 'operand span for operand 3']
    #allocation4 [shape = 'u8[4096]{0}', space=vmem, size = 0x1000, scoped, tag = 'operand span for operand 4']
    #allocation5 [shape = 'u8[2048]{0}', space=vmem, size = 0x800, scoped, tag = 'packed  for operand 4']
    #allocation6 [shape = 'u8[4096]{0}', space=vmem, size = 0x1000, scoped, tag = 'operand span for operand 5']
    #allocation7 [shape = 'u8[2048]{0}', space=vmem, size = 0x800, scoped, tag = 'packed  for operand 5']
    #allocation8 [shape = 'u8[8192]{0}', space=vmem, size = 0x2000, scoped, tag = 'operand span for operand 6']
    #allocation9 [shape = 'u8[8192]{0}', space=vmem, size = 0x2000, scoped, tag = 'operand span for operand 7']
    #allocation10 [shape = 'u8[8192]{0}', space=vmem, size = 0x2000, scoped, tag = 'operand span for operand 8']
    #allocation11 [shape = 'u8[8192]{0}', space=vmem, size = 0x2000, scoped, tag = 'operand span for operand 9']
    loop: start=0, step=1, limit=4
    $region2: #{custom-call.34} parent=1 // loop_pre_header
      _
    $region3: #{custom-call.34} parent=1 // loop_header
      %s12 = sphi 0, %s16
      %p13 = scmp.ge.s32.totalorder %s12, 4
      %s24 = sphi 0, %s26
      %s27 = sphi 0, %s24
      %s28 = sphi 0, %s27
      %s44 = sphi 0, %s28
      %s52 = sphi 0, %s54
      %s55 = sphi 0, %s52
      %s56 = sphi 0, %s55
      %s72 = sphi 0, %s56
    $region4: #{custom-call.34} parent=1 // loop_header_branch
      %15 = sbr.rel (%p13) target = $region8
    $region5: #{custom-call.34} parent=1 // loop_body
      %s17 = ssub.s32 %s12, 1
      %s18 = ssub.s32 %s12, 2
      %s19 = sadd.s32 %s12, 1
      %s20 = sshrl.u32 %s12, 3
      %s21 = sshrl.u32 %s19, 3
      %s22 = ssub.s32 %s20, %s21
      %p23 = scmp.eq.s32.totalorder %s22, 0
      %s25 = sadd.s32 %s24, 1
      %s26 = scalar_select %p23, %s24, %s25
      %p29 = pneg %p23
      %p30 = scmp.eq.s32.totalorder %s12, 1
      %p31 = por %p29, %p30
      %p32 = scmp.ne.s32.totalorder %s24, %s27
      %p33 = scmp.eq.s32.totalorder %s12, 0
      %p34 = por %p32, %p33
      %p35 = scmp.ne.s32.totalorder %s24, %s27
      %p36 = scmp.eq.s32.totalorder %s17, 1
      %p37 = por %p35, %p36
      %p38 = scmp.ne.s32.totalorder %s27, %s28
      %p39 = scmp.eq.s32.totalorder %s17, 0
      %p40 = por %p38, %p39
      %p41 = scmp.ne.s32.totalorder %s27, %s28
      %p42 = scmp.eq.s32.totalorder %s18, 1
      %p43 = por %p41, %p42
      %p45 = scmp.ne.s32.totalorder %s28, %s44
      %p46 = scmp.eq.s32.totalorder %s18, 0
      %p47 = por %p45, %p46
      %s48 = sshrl.u32 %s12, 3
      %s49 = sshrl.u32 %s19, 3
      %s50 = ssub.s32 %s48, %s49
      %p51 = scmp.eq.s32.totalorder %s50, 0
      %s53 = sadd.s32 %s52, 1
      %s54 = scalar_select %p51, %s52, %s53
      %p57 = pneg %p51
      %p58 = scmp.eq.s32.totalorder %s12, 1
      %p59 = por %p57, %p58
      %p60 = scmp.ne.s32.totalorder %s52, %s55
      %p61 = scmp.eq.s32.totalorder %s12, 0
      %p62 = por %p60, %p61
      %p63 = scmp.ne.s32.totalorder %s52, %s55
      %p64 = scmp.eq.s32.totalorder %s17, 1
      %p65 = por %p63, %p64
      %p66 = scmp.ne.s32.totalorder %s55, %s56
      %p67 = scmp.eq.s32.totalorder %s17, 0
      %p68 = por %p66, %p67
      %p69 = scmp.ne.s32.totalorder %s55, %s56
      %p70 = scmp.eq.s32.totalorder %s18, 1
      %p71 = por %p69, %p70
      %p73 = scmp.ne.s32.totalorder %s56, %s72
      %p74 = scmp.eq.s32.totalorder %s18, 0
      %p75 = por %p73, %p74
      %p76 = scmp.le.s32.totalorder 1, %s12
      %p77 = scmp.lt.s32.totalorder %s12, 3
      %p78 = pnand %p76, %p77
      %p79 = pneg %p78
      // Predicated region
      $region9: #{custom-call.34} parent=5 // pred_check
        _
      $region10: #{custom-call.34} parent=5 // pred_check_branch
        %81 = sbr.rel (%p78) target = $region12
      $region11: #{custom-call.34} parent=5 // pred_region
        %s82 = ssub.s32 %s12, 1
      $region12: #{custom-call.34} parent=5 // pred_fallthru
        _
      %p83 = scmp.lt.s32.totalorder %s12, 2
      // Predicated region
      $region13: #{custom-call.34} parent=5 // pred_check
        %p84 = pneg %p83
      $region14: #{custom-call.34} parent=5 // pred_check_branch
        %86 = sbr.rel (%p84) target = $region16
      $region15: #{custom-call.34} parent=5 // pred_region
        %s87 = sand.u32 %s12, 1
        %s88 = sand.u32 %s12, 1
        %s89 = smul.addr %s88, 8
        %s90 = scalar_lea.vmem [#allocation0], %s89
        %s91 = smul.addr %s12, 8
        %s92 = scalar_lea.vmem %s0, %s91
        // Predicated region
        $region17: #{custom-call.34} parent=15 // pred_check
          _
        $region18: #{custom-call.34} parent=15 // pred_check_branch
          %94 = sbr.rel (0) target = $region20
        $region19: #{custom-call.34} parent=15 // pred_region
          // Predicated region
          $region21: #{custom-call.34} parent=19 // pred_check
            _
          $region22: #{custom-call.34} parent=19 // pred_check_branch
            %96 = sbr.rel (0) target = $region24
          $region23: #{custom-call.34} parent=19 // pred_region
            // Predicated region
            $region36: #{custom-call.34} parent=23 // pred_check
              _
            $region37: #{custom-call.34} parent=23 // pred_check_branch
              %112 = sbr.rel (0) target = $region39
            $region38: #{custom-call.34} parent=23 // pred_region
              loop: start=0, step=1, limit=1
              $region40: #{custom-call.34} parent=38 // loop_pre_header
                _
              $region41: #{custom-call.34} parent=38 // loop_header
                %s114 = sphi 0, %s118
                %p115 = scmp.ge.s32.totalorder %s114, 1
                %s119 = sphi %s92, %s92
                %s120 = sphi %s90, %s90
              $region42: #{custom-call.34} parent=38 // loop_header_branch
                %117 = sbr.rel (%p115) target = $region46
              $region43: #{custom-call.34} parent=38 // loop_body
                %v121 = vld [vmem:[%s119] sm:$0xff]
                %122 = vst [vmem:[%s120] sm:$0xff] %v121
              $region44: #{custom-call.34} parent=38 // loop_footer
                %s118 = sadd.s32 1, %s114
              $region45: #{custom-call.34} parent=38 // loop_footer_branch
                %113 = sbr.rel target = $region41
              $region46: #{custom-call.34} parent=38 // loop_exit
                _
            $region39: #{custom-call.34} parent=23 // pred_fallthru
              _
            // Predicated region
            $region47: #{custom-call.34} parent=23 // pred_check
              _
            $region48: #{custom-call.34} parent=23 // pred_check_branch
              %124 = sbr.rel target = $region50
            $region49: #{custom-call.34} parent=23 // pred_region
              _
            $region50: #{custom-call.34} parent=23 // pred_fallthru
              _
          $region24: #{custom-call.34} parent=19 // pred_fallthru
            _
          // Predicated region
          $region25: #{custom-call.34} parent=19 // pred_check
            _
          $region26: #{custom-call.34} parent=19 // pred_check_branch
            %98 = sbr.rel target = $region28
          $region27: #{custom-call.34} parent=19 // pred_region
            %s100 = ssub.s32 256, 1
            loop: start=0, step=1, limit=1
            $region29: #{custom-call.34} parent=27 // loop_pre_header
              _
            $region30: #{custom-call.34} parent=27 // loop_header
              %s102 = sphi 0, %s106
              %p103 = scmp.ge.s32.totalorder %s102, 1
              %s107 = sphi %s92, %s92
              %s108 = sphi %s90, %s90
            $region31: #{custom-call.34} parent=27 // loop_header_branch
              %105 = sbr.rel (%p103) target = $region35
            $region32: #{custom-call.34} parent=27 // loop_body
              %v109 = vld [vmem:[%s107] sm:%s100]
              %110 = vst [vmem:[%s108] sm:%s100] %v109
            $region33: #{custom-call.34} parent=27 // loop_footer
              %s106 = sadd.s32 1, %s102
            $region34: #{custom-call.34} parent=27 // loop_footer_branch
              %101 = sbr.rel target = $region30
            $region35: #{custom-call.34} parent=27 // loop_exit
              _
          $region28: #{custom-call.34} parent=19 // pred_fallthru
            _
        $region20: #{custom-call.34} parent=15 // pred_fallthru
          _
        %125 = vnop
        %s126 = sand.u32 %s12, 1
        %s127 = sand.u32 %s12, 1
        %s128 = smul.addr %s127, 8
        %s129 = scalar_lea.vmem [#allocation1], %s128
        %s130 = smul.addr %s12, 8
        %s131 = scalar_lea.vmem %s1, %s130
        // Predicated region
        $region51: #{custom-call.34} parent=15 // pred_check
          _
        $region52: #{custom-call.34} parent=15 // pred_check_branch
          %133 = sbr.rel (0) target = $region54
        $region53: #{custom-call.34} parent=15 // pred_region
          // Predicated region
          $region55: #{custom-call.34} parent=53 // pred_check
            _
          $region56: #{custom-call.34} parent=53 // pred_check_branch
            %135 = sbr.rel (0) target = $region58
          $region57: #{custom-call.34} parent=53 // pred_region
            // Predicated region
            $region70: #{custom-call.34} parent=57 // pred_check
              _
            $region71: #{custom-call.34} parent=57 // pred_check_branch
              %151 = sbr.rel (0) target = $region73
            $region72: #{custom-call.34} parent=57 // pred_region
              loop: start=0, step=1, limit=1
              $region74: #{custom-call.34} parent=72 // loop_pre_header
                _
              $region75: #{custom-call.34} parent=72 // loop_header
                %s153 = sphi 0, %s157
                %p154 = scmp.ge.s32.totalorder %s153, 1
                %s158 = sphi %s131, %s131
                %s159 = sphi %s129, %s129
              $region76: #{custom-call.34} parent=72 // loop_header_branch
                %156 = sbr.rel (%p154) target = $region80
              $region77: #{custom-call.34} parent=72 // loop_body
                %v160 = vld [vmem:[%s158] sm:$0xff]
                %161 = vst [vmem:[%s159] sm:$0xff] %v160
              $region78: #{custom-call.34} parent=72 // loop_footer
                %s157 = sadd.s32 1, %s153
              $region79: #{custom-call.34} parent=72 // loop_footer_branch
                %152 = sbr.rel target = $region75
              $region80: #{custom-call.34} parent=72 // loop_exit
                _
            $region73: #{custom-call.34} parent=57 // pred_fallthru
              _
            // Predicated region
            $region81: #{custom-call.34} parent=57 // pred_check
              _
            $region82: #{custom-call.34} parent=57 // pred_check_branch
              %163 = sbr.rel target = $region84
            $region83: #{custom-call.34} parent=57 // pred_region
              _
            $region84: #{custom-call.34} parent=57 // pred_fallthru
              _
          $region58: #{custom-call.34} parent=53 // pred_fallthru
            _
          // Predicated region
          $region59: #{custom-call.34} parent=53 // pred_check
            _
          $region60: #{custom-call.34} parent=53 // pred_check_branch
            %137 = sbr.rel target = $region62
          $region61: #{custom-call.34} parent=53 // pred_region
            %s139 = ssub.s32 256, 1
            loop: start=0, step=1, limit=1
            $region63: #{custom-call.34} parent=61 // loop_pre_header
              _
            $region64: #{custom-call.34} parent=61 // loop_header
              %s141 = sphi 0, %s145
              %p142 = scmp.ge.s32.totalorder %s141, 1
              %s146 = sphi %s131, %s131
              %s147 = sphi %s129, %s129
            $region65: #{custom-call.34} parent=61 // loop_header_branch
              %144 = sbr.rel (%p142) target = $region69
            $region66: #{custom-call.34} parent=61 // loop_body
              %v148 = vld [vmem:[%s146] sm:%s139]
              %149 = vst [vmem:[%s147] sm:%s139] %v148
            $region67: #{custom-call.34} parent=61 // loop_footer
              %s145 = sadd.s32 1, %s141
            $region68: #{custom-call.34} parent=61 // loop_footer_branch
              %140 = sbr.rel target = $region64
            $region69: #{custom-call.34} parent=61 // loop_exit
              _
          $region62: #{custom-call.34} parent=53 // pred_fallthru
            _
        $region54: #{custom-call.34} parent=15 // pred_fallthru
          _
        %164 = vnop
        %s165 = sand.u32 %s12, 1
        %s166 = sand.u32 %s12, 1
        %s167 = smul.addr %s166, 8
        %s168 = scalar_lea.vmem [#allocation2], %s167
        %s169 = smul.addr %s12, 8
        %s170 = scalar_lea.vmem %s2, %s169
        // Predicated region
        $region85: #{custom-call.34} parent=15 // pred_check
          _
        $region86: #{custom-call.34} parent=15 // pred_check_branch
          %172 = sbr.rel (0) target = $region88
        $region87: #{custom-call.34} parent=15 // pred_region
          // Predicated region
          $region89: #{custom-call.34} parent=87 // pred_check
            _
          $region90: #{custom-call.34} parent=87 // pred_check_branch
            %174 = sbr.rel (0) target = $region92
          $region91: #{custom-call.34} parent=87 // pred_region
            // Predicated region
            $region104: #{custom-call.34} parent=91 // pred_check
              _
            $region105: #{custom-call.34} parent=91 // pred_check_branch
              %190 = sbr.rel (0) target = $region107
            $region106: #{custom-call.34} parent=91 // pred_region
              loop: start=0, step=1, limit=1
              $region108: #{custom-call.34} parent=106 // loop_pre_header
                _
              $region109: #{custom-call.34} parent=106 // loop_header
                %s192 = sphi 0, %s196
                %p193 = scmp.ge.s32.totalorder %s192, 1
                %s197 = sphi %s170, %s170
                %s198 = sphi %s168, %s168
              $region110: #{custom-call.34} parent=106 // loop_header_branch
                %195 = sbr.rel (%p193) target = $region114
              $region111: #{custom-call.34} parent=106 // loop_body
                %v199 = vld [vmem:[%s197] sm:$0xff]
                %200 = vst [vmem:[%s198] sm:$0xff] %v199
              $region112: #{custom-call.34} parent=106 // loop_footer
                %s196 = sadd.s32 1, %s192
              $region113: #{custom-call.34} parent=106 // loop_footer_branch
                %191 = sbr.rel target = $region109
              $region114: #{custom-call.34} parent=106 // loop_exit
                _
            $region107: #{custom-call.34} parent=91 // pred_fallthru
              _
            // Predicated region
            $region115: #{custom-call.34} parent=91 // pred_check
              _
            $region116: #{custom-call.34} parent=91 // pred_check_branch
              %202 = sbr.rel target = $region118
            $region117: #{custom-call.34} parent=91 // pred_region
              _
            $region118: #{custom-call.34} parent=91 // pred_fallthru
              _
          $region92: #{custom-call.34} parent=87 // pred_fallthru
            _
          // Predicated region
          $region93: #{custom-call.34} parent=87 // pred_check
            _
          $region94: #{custom-call.34} parent=87 // pred_check_branch
            %176 = sbr.rel target = $region96
          $region95: #{custom-call.34} parent=87 // pred_region
            %s178 = ssub.s32 256, 1
            loop: start=0, step=1, limit=1
            $region97: #{custom-call.34} parent=95 // loop_pre_header
              _
            $region98: #{custom-call.34} parent=95 // loop_header
              %s180 = sphi 0, %s184
              %p181 = scmp.ge.s32.totalorder %s180, 1
              %s185 = sphi %s170, %s170
              %s186 = sphi %s168, %s168
            $region99: #{custom-call.34} parent=95 // loop_header_branch
              %183 = sbr.rel (%p181) target = $region103
            $region100: #{custom-call.34} parent=95 // loop_body
              %v187 = vld [vmem:[%s185] sm:%s178]
              %188 = vst [vmem:[%s186] sm:%s178] %v187
            $region101: #{custom-call.34} parent=95 // loop_footer
              %s184 = sadd.s32 1, %s180
            $region102: #{custom-call.34} parent=95 // loop_footer_branch
              %179 = sbr.rel target = $region98
            $region103: #{custom-call.34} parent=95 // loop_exit
              _
          $region96: #{custom-call.34} parent=87 // pred_fallthru
            _
        $region88: #{custom-call.34} parent=15 // pred_fallthru
          _
        %203 = vnop
        %s204 = sand.u32 %s12, 1
        %s205 = sand.u32 %s12, 1
        %s206 = smul.addr %s205, 8
        %s207 = scalar_lea.vmem [#allocation3], %s206
        %s208 = smul.addr %s12, 8
        %s209 = scalar_lea.vmem %s3, %s208
        // Predicated region
        $region119: #{custom-call.34} parent=15 // pred_check
          _
        $region120: #{custom-call.34} parent=15 // pred_check_branch
          %211 = sbr.rel (0) target = $region122
        $region121: #{custom-call.34} parent=15 // pred_region
          // Predicated region
          $region123: #{custom-call.34} parent=121 // pred_check
            _
          $region124: #{custom-call.34} parent=121 // pred_check_branch
            %213 = sbr.rel (0) target = $region126
          $region125: #{custom-call.34} parent=121 // pred_region
            // Predicated region
            $region138: #{custom-call.34} parent=125 // pred_check
              _
            $region139: #{custom-call.34} parent=125 // pred_check_branch
              %229 = sbr.rel (0) target = $region141
            $region140: #{custom-call.34} parent=125 // pred_region
              loop: start=0, step=1, limit=1
              $region142: #{custom-call.34} parent=140 // loop_pre_header
                _
              $region143: #{custom-call.34} parent=140 // loop_header
                %s231 = sphi 0, %s235
                %p232 = scmp.ge.s32.totalorder %s231, 1
                %s236 = sphi %s209, %s209
                %s237 = sphi %s207, %s207
              $region144: #{custom-call.34} parent=140 // loop_header_branch
                %234 = sbr.rel (%p232) target = $region148
              $region145: #{custom-call.34} parent=140 // loop_body
                %v238 = vld [vmem:[%s236] sm:$0xff]
                %239 = vst [vmem:[%s237] sm:$0xff] %v238
              $region146: #{custom-call.34} parent=140 // loop_footer
                %s235 = sadd.s32 1, %s231
              $region147: #{custom-call.34} parent=140 // loop_footer_branch
                %230 = sbr.rel target = $region143
              $region148: #{custom-call.34} parent=140 // loop_exit
                _
            $region141: #{custom-call.34} parent=125 // pred_fallthru
              _
            // Predicated region
            $region149: #{custom-call.34} parent=125 // pred_check
              _
            $region150: #{custom-call.34} parent=125 // pred_check_branch
              %241 = sbr.rel target = $region152
            $region151: #{custom-call.34} parent=125 // pred_region
              _
            $region152: #{custom-call.34} parent=125 // pred_fallthru
              _
          $region126: #{custom-call.34} parent=121 // pred_fallthru
            _
          // Predicated region
          $region127: #{custom-call.34} parent=121 // pred_check
            _
          $region128: #{custom-call.34} parent=121 // pred_check_branch
            %215 = sbr.rel target = $region130
          $region129: #{custom-call.34} parent=121 // pred_region
            %s217 = ssub.s32 256, 1
            loop: start=0, step=1, limit=1
            $region131: #{custom-call.34} parent=129 // loop_pre_header
              _
            $region132: #{custom-call.34} parent=129 // loop_header
              %s219 = sphi 0, %s223
              %p220 = scmp.ge.s32.totalorder %s219, 1
              %s224 = sphi %s209, %s209
              %s225 = sphi %s207, %s207
            $region133: #{custom-call.34} parent=129 // loop_header_branch
              %222 = sbr.rel (%p220) target = $region137
            $region134: #{custom-call.34} parent=129 // loop_body
              %v226 = vld [vmem:[%s224] sm:%s217]
              %227 = vst [vmem:[%s225] sm:%s217] %v226
            $region135: #{custom-call.34} parent=129 // loop_footer
              %s223 = sadd.s32 1, %s219
            $region136: #{custom-call.34} parent=129 // loop_footer_branch
              %218 = sbr.rel target = $region132
            $region137: #{custom-call.34} parent=129 // loop_exit
              _
          $region130: #{custom-call.34} parent=121 // pred_fallthru
            _
        $region122: #{custom-call.34} parent=15 // pred_fallthru
          _
        %242 = vnop
      $region16: #{custom-call.34} parent=5 // pred_fallthru
        _
      %p243 = scmp.le.s32.totalorder 1, %s12
      %p244 = scmp.lt.s32.totalorder %s12, 3
      %p245 = pnand %p243, %p244
      %p246 = pneg %p245
      // Predicated region
      $region153: #{custom-call.34} parent=5 // pred_check
        _
      $region154: #{custom-call.34} parent=5 // pred_check_branch
        %248 = sbr.rel (%p245) target = $region156
      $region155: #{custom-call.34} parent=5 // pred_region
        #allocation12 [shape = 'f32[8,8]{1,0}', space=vmem, size = 0x1000, scoped, tag = 'a top-left matrix']
        #allocation13 [shape = 'f32[8,8]{1,0}', space=vmem, size = 0x1000, scoped, tag = 'a top-right matrix']
        #allocation14 [shape = 'f32[8,8]{1,0}', space=vmem, size = 0x1000, scoped, tag = 'a bottom-left matrix']
        #allocation15 [shape = 'f32[8,8]{1,0}', space=vmem, size = 0x1000, scoped, tag = 'a bottom-right matrix']
        %s249 = ssub.s32 %s12, 1
        %s250 = sand.u32 %s17, 1
        %s251 = sand.u32 %s17, 1
        %s252 = smul.addr %s251, 8
        %s253 = scalar_lea.vmem [#allocation0], %s252
        %s254 = sand.u32 %s17, 1
        %s255 = sand.u32 %s17, 1
        %s256 = smul.addr %s255, 8
        %s257 = scalar_lea.vmem [#allocation1], %s256
        %s258 = sand.u32 %s17, 1
        %s259 = sand.u32 %s17, 1
        %s260 = smul.addr %s259, 8
        %s261 = scalar_lea.vmem [#allocation2], %s260
        %s262 = sand.u32 %s17, 1
        %s263 = sand.u32 %s17, 1
        %s264 = smul.addr %s263, 8
        %s265 = scalar_lea.vmem [#allocation3], %s264
        %s266 = sand.u32 %s17, 1
        %s267 = sand.u32 %s17, 1
        %s268 = smul.addr %s267, 8
        %s269 = scalar_lea.vmem [#allocation0], %s268
        %s270 = sand.u32 %s17, 1
        %s271 = sand.u32 %s17, 1
        %s272 = smul.addr %s271, 8
        %s273 = scalar_lea.vmem [#allocation1], %s272
        %s274 = sand.u32 %s17, 1
        %s275 = sand.u32 %s17, 1
        %s276 = smul.addr %s275, 8
        %s277 = scalar_lea.vmem [#allocation2], %s276
        %s278 = sand.u32 %s17, 1
        %s279 = sand.u32 %s17, 1
        %s280 = smul.addr %s279, 8
        %s281 = scalar_lea.vmem [#allocation3], %s280
        %p282 = pneg %p40
        %p283 = pneg %p37
        %s284 = sand.u32 %s27, 1
        %s285 = sand.u32 %s27, 1
        %s286 = smul.addr %s285, 2
        %s287 = scalar_lea.vmem [#allocation5], %s286
        %p288 = pneg %p68
        %p289 = pneg %p65
        %s290 = sand.u32 %s55, 1
        %s291 = sand.u32 %s55, 1
        %s292 = smul.addr %s291, 2
        %s293 = scalar_lea.vmem [#allocation7], %s292
        %s294 = sand.u32 %s17, 1
        %s295 = sand.u32 %s17, 1
        %s296 = smul.addr %s295, 8
        %s297 = scalar_lea.vmem [#allocation8], %s296
        %s298 = sand.u32 %s17, 1
        %s299 = sand.u32 %s17, 1
        %s300 = smul.addr %s299, 8
        %s301 = scalar_lea.vmem [#allocation9], %s300
        %s302 = sand.u32 %s17, 1
        %s303 = sand.u32 %s17, 1
        %s304 = smul.addr %s303, 8
        %s305 = scalar_lea.vmem [#allocation10], %s304
        %s306 = sand.u32 %s17, 1
        %s307 = sand.u32 %s17, 1
        %s308 = smul.addr %s307, 8
        %s309 = scalar_lea.vmem [#allocation11], %s308
        %s310 = sshrl.u32 %s17, 3
        %s311 = sshrl.u32 %s17, 3
        %s312 = smov [#allocation12]
        %v313 = vld [vmem:[%s253] sm:$0xff]
        %314 = vst [vmem:[%s312] sm:$0xff] %v313
        %s315 = smov [#allocation13]
        %v316 = vld [vmem:[%s257] sm:$0xff]
        %317 = vst [vmem:[%s315] sm:$0xff] %v316
        %s318 = smov [#allocation14]
        %v319 = vld [vmem:[%s261] sm:$0xff]
        %320 = vst [vmem:[%s318] sm:$0xff] %v319
        %s321 = smov [#allocation15]
        %v322 = vld [vmem:[%s265] sm:$0xff]
        %323 = vst [vmem:[%s321] sm:$0xff] %v322
        %324 = vst [vmem:[%s297] sm:$0xff] 0.0
        %325 = vst [vmem:[%s301] sm:$0xff] 0.0
        %326 = vst [vmem:[%s305] sm:$0xff] 0.0
        %327 = vst [vmem:[%s309] sm:$0xff] 0.0
        %s328 = smov %s297
        %v329 = vlaneseq
        %v330 = vand.u32 %v329, 127
        %v331 = vmov %v330
        %v332 = vlaneseq
        %v333 = vshrl.u32 %v332, 7
        %v334 = vmov %v333
        %v335 = vld [vmem:[%s328] sm:$0xff]
        %vm338 = vcmp.eq.s32.totalorder %v334, %v331
        %v339 = vsel %vm338, 1.0, %v335
        %340 = vst [vmem:[%s328] sm:$0xff] %v339
        %s341 = smov %s309
        %v342 = vlaneseq
        %v343 = vand.u32 %v342, 127
        %v344 = vmov %v343
        %v345 = vlaneseq
        %v346 = vshrl.u32 %v345, 7
        %v347 = vmov %v346
        %v348 = vld [vmem:[%s341] sm:$0xff]
        %vm351 = vcmp.eq.s32.totalorder %v347, %v344
        %v352 = vsel %vm351, 1.0, %v348
        %353 = vst [vmem:[%s341] sm:$0xff] %v352
        // While loop
        $region157: #{custom-call.34} parent=155 // loop_pre_header
          _
        $region158: #{custom-call.34} parent=155 // loop_header
          %s355 = sphi 0, %s937
          %v356 = vlaneseq
          %v357 = vand.u32 %v356, 127
          %v358 = vmov %v357
          %v359 = vlaneseq
          %v360 = vshrl.u32 %v359, 7
          %v361 = vmov %v360
          %s362 = smov [#allocation12]
          %v363 = vlaneseq
          %v364 = vand.u32 %v363, 127
          %vm365 = vcmp.ge.s32.totalorder %v364, 0
          %vm366 = vcmp.lt.s32.totalorder %v364, 8
          %vm367 = vmand %vm365, %vm366
          %v368 = vld [vmem:[%s362] sm:$0xff]
          %v369 = vsel %vm367, %v368, 0.0
          %v370 = vmul.f32 %v369, %v369
          %vm373 = vcmp.eq.s32.totalorder %v361, %v358
          %v374 = vsel %vm373, 0.0, %v370
          %v375 = vlaneseq
          %v376 = vand.u32 %v375, 127
          %v377 = vmov %v376
          %v378 = vlaneseq
          %v379 = vshrl.u32 %v378, 7
          %v380 = vmov %v379
          %s381 = smov [#allocation13]
          %v382 = vlaneseq
          %v383 = vand.u32 %v382, 127
          %vm384 = vcmp.ge.s32.totalorder %v383, 0
          %vm385 = vcmp.lt.s32.totalorder %v383, 8
          %vm386 = vmand %vm384, %vm385
          %v387 = vld [vmem:[%s381] sm:$0xff]
          %v388 = vsel %vm386, %v387, 0.0
          %v389 = vmul.f32 %v388, %v388
          %v390 = vadd.f32 %v374, %v389
          %v391 = vadd.f32 %v370, %v389
          %v392 = vlaneseq
          %v393 = vand.u32 %v392, 127
          %v394 = vmov %v393
          %v395 = vlaneseq
          %v396 = vshrl.u32 %v395, 7
          %v397 = vmov %v396
          %s398 = smov [#allocation14]
          %v399 = vlaneseq
          %v400 = vand.u32 %v399, 127
          %vm401 = vcmp.ge.s32.totalorder %v400, 0
          %vm402 = vcmp.lt.s32.totalorder %v400, 8
          %vm403 = vmand %vm401, %vm402
          %v404 = vld [vmem:[%s398] sm:$0xff]
          %v405 = vsel %vm403, %v404, 0.0
          %v406 = vmul.f32 %v405, %v405
          %v407 = vadd.f32 %v390, %v406
          %v408 = vadd.f32 %v391, %v406
          %v409 = vlaneseq
          %v410 = vand.u32 %v409, 127
          %v411 = vmov %v410
          %v412 = vlaneseq
          %v413 = vshrl.u32 %v412, 7
          %v414 = vmov %v413
          %s415 = smov [#allocation15]
          %v416 = vlaneseq
          %v417 = vand.u32 %v416, 127
          %vm418 = vcmp.ge.s32.totalorder %v417, 0
          %vm419 = vcmp.lt.s32.totalorder %v417, 8
          %vm420 = vmand %vm418, %vm419
          %v421 = vld [vmem:[%s415] sm:$0xff]
          %v422 = vsel %vm420, %v421, 0.0
          %v423 = vmul.f32 %v422, %v422
          %vm426 = vcmp.eq.s32.totalorder %v414, %v411
          %v427 = vsel %vm426, 0.0, %v423
          %v428 = vadd.f32 %v407, %v427
          %v429 = vadd.f32 %v408, %v423
          %430 = vadd.xlane.f32.xlu0 %v429
          %v431 = vpop.xlane.xlu0 %430
          %v432 = vrot.slane %v431, 4
          %v433 = vadd.f32 %v431, %v432
          %v434 = vrot.slane %v433, 2
          %v435 = vadd.f32 %v433, %v434
          %v436 = vrot.slane %v435, 1
          %v437 = vadd.f32 %v435, %v436
          %438 = vadd.xlane.f32.xlu0 %v428
          %v439 = vpop.xlane.xlu0 %438
          %v440 = vrot.slane %v439, 4
          %v441 = vadd.f32 %v439, %v440
          %v442 = vrot.slane %v441, 2
          %v443 = vadd.f32 %v441, %v442
          %v444 = vrot.slane %v443, 1
          %v445 = vadd.f32 %v443, %v444
          %s446 = vtos %v445
          %s447 = vtos %v437
          %s448 = smul.f32 1e-10, %s447
          %p449 = scmp.le.f32.partialorder %s446, %s448
          %p450 = scmp.ge.s32.totalorder %s355, 15
          %p451 = por %p449, %p450
        $region159: #{custom-call.34} parent=155 // loop_header_branch
          %939 = sbr.rel (%p451) target = $region163
        $region160: #{custom-call.34} parent=155 // loop_body
          loop: start=0, step=1, limit=15
          $region164: #{custom-call.34} parent=160 // loop_pre_header
            _
          $region165: #{custom-call.34} parent=160 // loop_header
            %s453 = sphi 0, %s457
            %p454 = scmp.ge.s32.totalorder %s453, 15
          $region166: #{custom-call.34} parent=160 // loop_header_branch
            %456 = sbr.rel (%p454) target = $region170
          $region167: #{custom-call.34} parent=160 // loop_body
            #allocation16 [shape = 'f32[1024]{0}', space=vmem, size = 0x1000, scoped, tag = 'a_tl_diag vmem']
            #allocation17 [shape = 'f32[1024]{0}', space=vmem, size = 0x1000, scoped, tag = 'a_tr_diag vmem']
            #allocation18 [shape = 'f32[1024]{0}', space=vmem, size = 0x1000, scoped, tag = 'a_br_diag vmem']
            #allocation19 [shape = 'f32[1024]{0}', space=vmem, size = 0x1000, scoped, tag = 'rt1 vmem']
            #allocation20 [shape = 'f32[1024]{0}', space=vmem, size = 0x1000, scoped, tag = 'rt2 vmem']
            #allocation21 [shape = 'f32[1024]{0}', space=vmem, size = 0x1000, scoped, tag = 'c vmem']
            #allocation22 [shape = 'f32[1024]{0}', space=vmem, size = 0x1000, scoped, tag = 's vmem']
            #allocation23 [shape = 'f32[4096]{0}', space=vmem, size = 0x4000, scoped, tag = 'c broadcast']
            #allocation24 [shape = 'f32[4096]{0}', space=vmem, size = 0x4000, scoped, tag = 's broadcast']
            %s458 = smov [#allocation12]
            %s459 = smov [#allocation16]
            %v460 = vlaneseq
            %v461 = vand.u32 %v460, 127
            %v462 = vmov %v461
            %v463 = vlaneseq
            %v464 = vshrl.u32 %v463, 7
            %v465 = vmov %v464
            %v466 = vld [vmem:[%s458] sm:$0xff]
            %vm469 = vcmp.eq.s32.totalorder %v465, %v462
            %v470 = vsel %vm469, %v466, 0.0
            %v471 = vrot.slane %v470, 4
            %v472 = vadd.f32 %v470, %v471
            %v473 = vrot.slane %v472, 2
            %v474 = vadd.f32 %v472, %v473
            %v475 = vrot.slane %v474, 1
            %v476 = vadd.f32 %v474, %v475
            %477 = vst [vmem:[%s459] sm:$0x1] %v476
            %s478 = smov [#allocation13]
            %s479 = smov [#allocation17]
            %v480 = vlaneseq
            %v481 = vand.u32 %v480, 127
            %v482 = vmov %v481
            %v483 = vlaneseq
            %v484 = vshrl.u32 %v483, 7
            %v485 = vmov %v484
            %v486 = vld [vmem:[%s478] sm:$0xff]
            %vm489 = vcmp.eq.s32.totalorder %v485, %v482
            %v490 = vsel %vm489, %v486, 0.0
            %v491 = vrot.slane %v490, 4
            %v492 = vadd.f32 %v490, %v491
            %v493 = vrot.slane %v492, 2
            %v494 = vadd.f32 %v492, %v493
            %v495 = vrot.slane %v494, 1
            %v496 = vadd.f32 %v494, %v495
            %497 = vst [vmem:[%s479] sm:$0x1] %v496
            %s498 = smov [#allocation15]
            %s499 = smov [#allocation18]
            %v500 = vlaneseq
            %v501 = vand.u32 %v500, 127
            %v502 = vmov %v501
            %v503 = vlaneseq
            %v504 = vshrl.u32 %v503, 7
            %v505 = vmov %v504
            %v506 = vld [vmem:[%s498] sm:$0xff]
            %vm509 = vcmp.eq.s32.totalorder %v505, %v502
            %v510 = vsel %vm509, %v506, 0.0
            %v511 = vrot.slane %v510, 4
            %v512 = vadd.f32 %v510, %v511
            %v513 = vrot.slane %v512, 2
            %v514 = vadd.f32 %v512, %v513
            %v515 = vrot.slane %v514, 1
            %v516 = vadd.f32 %v514, %v515
            %517 = vst [vmem:[%s499] sm:$0x1] %v516
            %s518 = smov [#allocation21]
            %s519 = smov [#allocation22]
            %s520 = smov [#allocation16]
            %v521 = vld [vmem:[%s520] sm:$0xff]
            %s522 = smov [#allocation17]
            %v523 = vld [vmem:[%s522] sm:$0xff]
            %s524 = smov [#allocation18]
            %v525 = vld [vmem:[%s524] sm:$0xff]
            %v526 = vsub.f32 %v525, %v521
            %v527 = vmul.f32 2.0, %v523
            %v528 = vrcp.pop %v527
            %v529 = vmul.f32 %v527, %v528
            %v530 = vsub.f32 1.0, %v529
            %v531 = vmul.f32 %v528, %v530
            %v532 = vadd.f32 %v528, %v531
            %vm533 = vweird.f32 %v527
            %vm534 = vweird.f32 %v528
            %vm535 = vmor %vm533, %vm534
            %v536 = vsel %vm535, %v528, %v532
            %v537 = vand.u32 2147483647, %v527
            %vm538 = vcmp.eq.f32.partialorder %v537, 8.507059e+37
            %v539 = vand.u32 %v527, 2147483648
            %v540 = vor.u32 1.1754944e-38, %v539
            %v541 = vsel %vm538, %v540, %v536
            %v542 = vmul.f32 %v526, %v541
            %vm543 = vcmp.ge.f32.partialorder %v542, 0.0
            %v544 = vmul.f32 %v542, %v542
            %v545 = vadd.f32 1.0, %v544
            %v546 = vrsqrt.pop %v545
            %v547 = vmul.f32 %v546, %v545
            %v548 = vmul.f32 %v547, %v546
            %v549 = vmul.f32 0.5, %v548
            %v550 = vsub.f32 1.5, %v549
            %v551 = vmul.f32 %v546, %v550
            %v552 = vmul.f32 %v545, %v551
            %vm553 = vcmp.eq.f32.partialorder %v545, inf
            %v554 = vsel %vm553, %v545, %v552
            %vm555 = vcmp.eq.f32.partialorder %v545, 0.0
            %v556 = vand.u32 %v545, 2147483648
            %v557 = vsel %vm555, %v556, %v554
            %v558 = vxor.u32 %v557, 2147483648
            %v559 = vsel %vm543, %v557, %v558
            %v560 = vadd.f32 %v542, %v559
            %v561 = vrcp.pop %v560
            %v562 = vmul.f32 %v560, %v561
            %v563 = vsub.f32 1.0, %v562
            %v564 = vmul.f32 %v561, %v563
            %v565 = vadd.f32 %v561, %v564
            %vm566 = vweird.f32 %v560
            %vm567 = vweird.f32 %v561
            %vm568 = vmor %vm566, %vm567
            %v569 = vsel %vm568, %v561, %v565
            %v570 = vand.u32 2147483647, %v560
            %vm571 = vcmp.eq.f32.partialorder %v570, 8.507059e+37
            %v572 = vand.u32 %v560, 2147483648
            %v573 = vor.u32 1.1754944e-38, %v572
            %v574 = vsel %vm571, %v573, %v569
            %v575 = vand.u32 2147483647, %v521
            %v576 = vand.u32 2147483647, %v523
            %v577 = vand.u32 2147483647, %v525
            %v578 = vmin.f32 %v575, %v577
            %v579 = vmul.f32 1.1920929e-08, %v578
            %vm580 = vcmp.le.f32.partialorder %v576, %v579
            %v581 = vsel %vm580, 0.0, %v574
            %v582 = vmul.f32 %v581, %v581
            %v583 = vadd.f32 1.0, %v582
            %v584 = vrsqrt.pop %v583
            %v585 = vmul.f32 %v584, %v583
            %v586 = vmul.f32 %v585, %v584
            %v587 = vmul.f32 0.5, %v586
            %v588 = vsub.f32 1.5, %v587
            %v589 = vmul.f32 %v584, %v588
            %vm590 = vweird.f32 %v583
            %vm591 = vweird.f32 %v584
            %vm592 = vmor %vm590, %vm591
            %v593 = vsel %vm592, %v584, %v589
            %v594 = vmul.f32 %v581, %v593
            %v595 = vmul.f32 %v581, %v523
            %v596 = vsub.f32 %v521, %v595
            %v597 = vmul.f32 %v581, %v523
            %v598 = vadd.f32 %v525, %v597
            %s599 = smov [#allocation19]
            %600 = vst [vmem:[%s599] sm:$0xff] %v596
            %s601 = smov [#allocation20]
            %602 = vst [vmem:[%s601] sm:$0xff] %v598
            %s603 = smov %s518
            %604 = vst [vmem:[%s603] sm:$0xff] %v593
            %s605 = smov %s519
            %606 = vst [vmem:[%s605] sm:$0xff] %v594
            %s607 = smov [#allocation21]
            %v608 = vld [vmem:[%s607] ss:$0 sm:$0xff]
            %v609 = vlaneseq
            %v610 = vand.u32 %v609, 127
            %v611 = vmov %v610
            %v612 = vlaneseq
            %v613 = vshrl.u32 %v612, 7
            %v614 = vmov %v613
            %vm616 = vcmp.eq.s32.totalorder %v614, %v611
            %v617 = vsel %vm616, %v608, 0.0
            %618 = vadd.xlane.f32.xlu0 %v617
            %v619 = vpop.xlane.xlu0 %618
            %s620 = smov [#allocation23]
            %621 = vst [vmem:[%s620] sm:$0xff] %v619
            %s622 = smov [#allocation22]
            %v623 = vld [vmem:[%s622] ss:$0 sm:$0xff]
            %v624 = vlaneseq
            %v625 = vand.u32 %v624, 127
            %v626 = vmov %v625
            %v627 = vlaneseq
            %v628 = vshrl.u32 %v627, 7
            %v629 = vmov %v628
            %vm631 = vcmp.eq.s32.totalorder %v629, %v626
            %v632 = vsel %vm631, %v623, 0.0
            %633 = vadd.xlane.f32.xlu0 %v632
            %v634 = vpop.xlane.xlu0 %633
            %s635 = smov [#allocation24]
            %636 = vst [vmem:[%s635] sm:$0xff] %v634
            %s637 = smov [#allocation23]
            %v638 = vld [vmem:[%s637] sm:$0xff]
            %s639 = smov [#allocation24]
            %v640 = vld [vmem:[%s639] sm:$0xff]
            %s641 = smov [#allocation12]
            %s642 = smov [#allocation13]
            %s643 = smov [#allocation14]
            %s644 = smov [#allocation15]
            %v645 = vld [vmem:[%s641] sm:$0xff]
            %v646 = vld [vmem:[%s642] sm:$0xff]
            %v647 = vld [vmem:[%s643] sm:$0xff]
            %v648 = vld [vmem:[%s644] sm:$0xff]
            %v649 = vmul.f32 %v638, %v645
            %v650 = vmul.f32 %v640, %v647
            %v651 = vsub.f32 %v649, %v650
            %v652 = vmul.f32 %v638, %v646
            %v653 = vmul.f32 %v640, %v648
            %v654 = vsub.f32 %v652, %v653
            %v655 = vmul.f32 %v640, %v645
            %v656 = vmul.f32 %v638, %v647
            %v657 = vadd.f32 %v655, %v656
            %v658 = vmul.f32 %v640, %v646
            %v659 = vmul.f32 %v638, %v648
            %v660 = vadd.f32 %v658, %v659
            %661 = vst [vmem:[%s641] sm:$0xff] %v651
            %662 = vst [vmem:[%s642] sm:$0xff] %v654
            %663 = vst [vmem:[%s643] sm:$0xff] %v657
            %664 = vst [vmem:[%s644] sm:$0xff] %v660
            %s665 = smov [#allocation21]
            %v666 = vld [vmem:[%s665] ss:$0 sm:$0xff]
            %s667 = smov [#allocation22]
            %v668 = vld [vmem:[%s667] ss:$0 sm:$0xff]
            %s669 = smov [#allocation12]
            %s670 = smov [#allocation13]
            %s671 = smov [#allocation14]
            %s672 = smov [#allocation15]
            %v673 = vld [vmem:[%s669] sm:$0xff]
            %v674 = vld [vmem:[%s670] sm:$0xff]
            %v675 = vld [vmem:[%s671] sm:$0xff]
            %v676 = vld [vmem:[%s672] sm:$0xff]
            %v677 = vmul.f32 %v666, %v673
            %v678 = vmul.f32 %v668, %v674
            %v679 = vsub.f32 %v677, %v678
            %v680 = vmul.f32 %v668, %v673
            %v681 = vmul.f32 %v666, %v674
            %v682 = vadd.f32 %v680, %v681
            %v683 = vmul.f32 %v666, %v675
            %v684 = vmul.f32 %v668, %v676
            %v685 = vsub.f32 %v683, %v684
            %v686 = vmul.f32 %v668, %v675
            %v687 = vmul.f32 %v666, %v676
            %v688 = vadd.f32 %v686, %v687
            %689 = vst [vmem:[%s669] sm:$0xff] %v679
            %690 = vst [vmem:[%s670] sm:$0xff] %v682
            %691 = vst [vmem:[%s671] sm:$0xff] %v685
            %692 = vst [vmem:[%s672] sm:$0xff] %v688
            %s693 = smov [#allocation12]
            %s694 = smov [#allocation19]
            %v695 = vlaneseq
            %v696 = vand.u32 %v695, 127
            %v697 = vmov %v696
            %v698 = vlaneseq
            %v699 = vshrl.u32 %v698, 7
            %v700 = vmov %v699
            %v701 = vld [vmem:[%s694] ss:$0 sm:$0xff]
            %v702 = vld [vmem:[%s693] sm:$0xff]
            %vm705 = vcmp.eq.s32.totalorder %v700, %v697
            %v706 = vsel %vm705, %v701, %v702
            %707 = vst [vmem:[%s693] sm:$0xff] %v706
            %s708 = smov [#allocation13]
            %v709 = vlaneseq
            %v710 = vand.u32 %v709, 127
            %v711 = vmov %v710
            %v712 = vlaneseq
            %v713 = vshrl.u32 %v712, 7
            %v714 = vmov %v713
            %v715 = vld [vmem:[%s708] sm:$0xff]
            %vm718 = vcmp.eq.s32.totalorder %v714, %v711
            %v719 = vsel %vm718, 0.0, %v715
            %720 = vst [vmem:[%s708] sm:$0xff] %v719
            %s721 = smov [#allocation14]
            %v722 = vlaneseq
            %v723 = vand.u32 %v722, 127
            %v724 = vmov %v723
            %v725 = vlaneseq
            %v726 = vshrl.u32 %v725, 7
            %v727 = vmov %v726
            %v728 = vld [vmem:[%s721] sm:$0xff]
            %vm731 = vcmp.eq.s32.totalorder %v727, %v724
            %v732 = vsel %vm731, 0.0, %v728
            %733 = vst [vmem:[%s721] sm:$0xff] %v732
            %s734 = smov [#allocation15]
            %s735 = smov [#allocation20]
            %v736 = vlaneseq
            %v737 = vand.u32 %v736, 127
            %v738 = vmov %v737
            %v739 = vlaneseq
            %v740 = vshrl.u32 %v739, 7
            %v741 = vmov %v740
            %v742 = vld [vmem:[%s735] ss:$0 sm:$0xff]
            %v743 = vld [vmem:[%s734] sm:$0xff]
            %vm746 = vcmp.eq.s32.totalorder %v741, %v738
            %v747 = vsel %vm746, %v742, %v743
            %748 = vst [vmem:[%s734] sm:$0xff] %v747
            %s749 = smov [#allocation12]
            %s750 = smov [#allocation13]
            %v751 = vld [vmem:[%s750] sm:$0xff]
            %752 = vrot.lane.b32.xlu0 %v751, 1
            %v753 = vpop.permute.xlu0 %752
            %v754 = vld [vmem:[%s749] sm:$0xff]
            %v755 = vld [vmem:[%s749] sm:$0xff]
            %756 = vrot.lane.b32.xlu0 %v755, 1
            %v757 = vpop.permute.xlu0 %756
            %v758 = vlaneseq
            %v759 = vand.u32 %v758, 127
            %vm760 = vcmp.eq.s32.totalorder %v759, 0
            %v761 = vsel %vm760, %v755, %v757
            %v762 = vlaneseq
            %v763 = vand.u32 %v762, 127
            %vm764 = vcmp.eq.s32.totalorder %v763, 1
            %v765 = vsel %vm764, %v753, %v761
            %v766 = vlaneseq
            %v767 = vand.u32 %v766, 127
            %vm768 = vcmp.ge.s32.totalorder %v767, 0
            %vm769 = vcmp.lt.s32.totalorder %v767, 8
            %vm770 = vmand %vm768, %vm769
            %v771 = vsel %vm770, %v765, 0.0
            %v772 = vld [vmem:[%s750] sm:$0xff]
            %773 = vrot.lane.b32.xlu0 %v772, 127
            %v774 = vpop.permute.xlu0 %773
            %v775 = vlaneseq
            %v776 = vand.u32 %v775, 127
            %vm777 = vcmp.eq.s32.totalorder %v776, 7
            %v778 = vsel %vm777, %v754, %v774
            %779 = vst [vmem:[%s749] sm:$0xff] %v771
            %780 = vst [vmem:[%s750] sm:$0xff] %v778
            %s781 = smov [#allocation14]
            %s782 = smov [#allocation15]
            %v783 = vld [vmem:[%s782] sm:$0xff]
            %784 = vrot.lane.b32.xlu0 %v783, 1
            %v785 = vpop.permute.xlu0 %784
            %v786 = vld [vmem:[%s781] sm:$0xff]
            %v787 = vld [vmem:[%s781] sm:$0xff]
            %788 = vrot.lane.b32.xlu0 %v787, 1
            %v789 = vpop.permute.xlu0 %788
            %v790 = vlaneseq
            %v791 = vand.u32 %v790, 127
            %vm792 = vcmp.eq.s32.totalorder %v791, 0
            %v793 = vsel %vm792, %v787, %v789
            %v794 = vlaneseq
            %v795 = vand.u32 %v794, 127
            %vm796 = vcmp.eq.s32.totalorder %v795, 1
            %v797 = vsel %vm796, %v785, %v793
            %v798 = vlaneseq
            %v799 = vand.u32 %v798, 127
            %vm800 = vcmp.ge.s32.totalorder %v799, 0
            %vm801 = vcmp.lt.s32.totalorder %v799, 8
            %vm802 = vmand %vm800, %vm801
            %v803 = vsel %vm802, %v797, 0.0
            %v804 = vld [vmem:[%s782] sm:$0xff]
            %805 = vrot.lane.b32.xlu0 %v804, 127
            %v806 = vpop.permute.xlu0 %805
            %v807 = vlaneseq
            %v808 = vand.u32 %v807, 127
            %vm809 = vcmp.eq.s32.totalorder %v808, 7
            %v810 = vsel %vm809, %v786, %v806
            %811 = vst [vmem:[%s781] sm:$0xff] %v803
            %812 = vst [vmem:[%s782] sm:$0xff] %v810
            %s813 = smov [#allocation12]
            %s814 = smov [#allocation14]
            %v815 = vld [vmem:[%s813] ss:$0 sm:$0xff]
            %s817 = scalar_lea.vmem %s813, 4294967295
            %v818 = vld [vmem:[%s817] sm:$0xfe]
            %v819 = vlaneseq
            %v820 = vshrl.u32 %v819, 7
            %vm821 = vcmp.eq.s32.totalorder %v820, 0
            %v822 = vsel %vm821, %v815, %v818
            %s823 = scalar_lea.vmem %s813, 7
            %v824 = vld [vmem:[%s823] ss:$0 sm:$0xff]
            %825 = vst [vmem:[%s813] sm:$0xff] %v822
            %v826 = vld [vmem:[%s814] ss:$0 sm:$0xff]
            %s827 = scalar_lea.vmem %s813, 1
            %828 = vst [vmem:[%s827] sm:$0x1] %v826
            %s829 = scalar_lea.vmem %s814, 1
            %v830 = vld [vmem:[%s829] sm:$0x7f]
            %v831 = vlaneseq
            %v832 = vshrl.u32 %v831, 7
            %vm833 = vcmp.eq.s32.totalorder %v832, 7
            %v834 = vsel %vm833, %v824, %v830
            %v835 = vld [vmem:[%s814] ss:$0 sm:$0xff]
            %836 = vst [vmem:[%s814] sm:$0xff] %v834
            %s837 = smov [#allocation13]
            %s838 = smov [#allocation15]
            %v839 = vld [vmem:[%s837] ss:$0 sm:$0xff]
            %s841 = scalar_lea.vmem %s837, 4294967295
            %v842 = vld [vmem:[%s841] sm:$0xfe]
            %v843 = vlaneseq
            %v844 = vshrl.u32 %v843, 7
            %vm845 = vcmp.eq.s32.totalorder %v844, 0
            %v846 = vsel %vm845, %v839, %v842
            %s847 = scalar_lea.vmem %s837, 7
            %v848 = vld [vmem:[%s847] ss:$0 sm:$0xff]
            %849 = vst [vmem:[%s837] sm:$0xff] %v846
            %v850 = vld [vmem:[%s838] ss:$0 sm:$0xff]
            %s851 = scalar_lea.vmem %s837, 1
            %852 = vst [vmem:[%s851] sm:$0x1] %v850
            %s853 = scalar_lea.vmem %s838, 1
            %v854 = vld [vmem:[%s853] sm:$0x7f]
            %v855 = vlaneseq
            %v856 = vshrl.u32 %v855, 7
            %vm857 = vcmp.eq.s32.totalorder %v856, 7
            %v858 = vsel %vm857, %v848, %v854
            %v859 = vld [vmem:[%s838] ss:$0 sm:$0xff]
            %860 = vst [vmem:[%s838] sm:$0xff] %v858
            %s861 = smov [#allocation23]
            %v862 = vld [vmem:[%s861] sm:$0xff]
            %s863 = smov [#allocation24]
            %v864 = vld [vmem:[%s863] sm:$0xff]
            %s865 = smov %s297
            %s866 = smov %s301
            %s867 = smov %s305
            %s868 = smov %s309
            %v869 = vld [vmem:[%s865] sm:$0xff]
            %v870 = vld [vmem:[%s866] sm:$0xff]
            %v871 = vld [vmem:[%s867] sm:$0xff]
            %v872 = vld [vmem:[%s868] sm:$0xff]
            %v873 = vmul.f32 %v862, %v869
            %v874 = vmul.f32 %v864, %v871
            %v875 = vsub.f32 %v873, %v874
            %v876 = vmul.f32 %v862, %v870
            %v877 = vmul.f32 %v864, %v872
            %v878 = vsub.f32 %v876, %v877
            %v879 = vmul.f32 %v864, %v869
            %v880 = vmul.f32 %v862, %v871
            %v881 = vadd.f32 %v879, %v880
            %v882 = vmul.f32 %v864, %v870
            %v883 = vmul.f32 %v862, %v872
            %v884 = vadd.f32 %v882, %v883
            %885 = vst [vmem:[%s865] sm:$0xff] %v875
            %886 = vst [vmem:[%s866] sm:$0xff] %v878
            %887 = vst [vmem:[%s867] sm:$0xff] %v881
            %888 = vst [vmem:[%s868] sm:$0xff] %v884
            %s889 = smov %s297
            %s890 = smov %s305
            %v891 = vld [vmem:[%s889] ss:$0 sm:$0xff]
            %s893 = scalar_lea.vmem %s889, 4294967295
            %v894 = vld [vmem:[%s893] sm:$0xfe]
            %v895 = vlaneseq
            %v896 = vshrl.u32 %v895, 7
            %vm897 = vcmp.eq.s32.totalorder %v896, 0
            %v898 = vsel %vm897, %v891, %v894
            %s899 = scalar_lea.vmem %s889, 7
            %v900 = vld [vmem:[%s899] ss:$0 sm:$0xff]
            %901 = vst [vmem:[%s889] sm:$0xff] %v898
            %v902 = vld [vmem:[%s890] ss:$0 sm:$0xff]
            %s903 = scalar_lea.vmem %s889, 1
            %904 = vst [vmem:[%s903] sm:$0x1] %v902
            %s905 = scalar_lea.vmem %s890, 1
            %v906 = vld [vmem:[%s905] sm:$0x7f]
            %v907 = vlaneseq
            %v908 = vshrl.u32 %v907, 7
            %vm909 = vcmp.eq.s32.totalorder %v908, 7
            %v910 = vsel %vm909, %v900, %v906
            %v911 = vld [vmem:[%s890] ss:$0 sm:$0xff]
            %912 = vst [vmem:[%s890] sm:$0xff] %v910
            %s913 = smov %s301
            %s914 = smov %s309
            %v915 = vld [vmem:[%s913] ss:$0 sm:$0xff]
            %s917 = scalar_lea.vmem %s913, 4294967295
            %v918 = vld [vmem:[%s917] sm:$0xfe]
            %v919 = vlaneseq
            %v920 = vshrl.u32 %v919, 7
            %vm921 = vcmp.eq.s32.totalorder %v920, 0
            %v922 = vsel %vm921, %v915, %v918
            %s923 = scalar_lea.vmem %s913, 7
            %v924 = vld [vmem:[%s923] ss:$0 sm:$0xff]
            %925 = vst [vmem:[%s913] sm:$0xff] %v922
            %v926 = vld [vmem:[%s914] ss:$0 sm:$0xff]
            %s927 = scalar_lea.vmem %s913, 1
            %928 = vst [vmem:[%s927] sm:$0x1] %v926
            %s929 = scalar_lea.vmem %s914, 1
            %v930 = vld [vmem:[%s929] sm:$0x7f]
            %v931 = vlaneseq
            %v932 = vshrl.u32 %v931, 7
            %vm933 = vcmp.eq.s32.totalorder %v932, 7
            %v934 = vsel %vm933, %v924, %v930
            %v935 = vld [vmem:[%s914] ss:$0 sm:$0xff]
            %936 = vst [vmem:[%s914] sm:$0xff] %v934
          $region168: #{custom-call.34} parent=160 // loop_footer
            %s457 = sadd.s32 1, %s453
          $region169: #{custom-call.34} parent=160 // loop_footer_branch
            %452 = sbr.rel target = $region165
          $region170: #{custom-call.34} parent=160 // loop_exit
            _
          %s937 = sadd.s32 %s355, 1
        $region161: #{custom-call.34} parent=155 // loop_footer
          _
        $region162: #{custom-call.34} parent=155 // loop_footer_branch
          %354 = sbr.rel target = $region158
        $region163: #{custom-call.34} parent=155 // loop_exit
          _
        %s940 = sand.u32 %s17, 7
        %s941 = scalar_lea.vmem [#allocation4], %s940
        %s942 = sand.u32 %s17, 7
        %s943 = scalar_lea.vmem [#allocation6], %s942
        %s944 = smov [#allocation12]
        %s945 = smov %s941
        %v946 = vlaneseq
        %v947 = vand.u32 %v946, 127
        %v948 = vmov %v947
        %v949 = vlaneseq
        %v950 = vshrl.u32 %v949, 7
        %v951 = vmov %v950
        %v952 = vld [vmem:[%s944] sm:$0xff]
        %vm955 = vcmp.eq.s32.totalorder %v951, %v948
        %v956 = vsel %vm955, %v952, 0.0
        %v957 = vrot.slane %v956, 4
        %v958 = vadd.f32 %v956, %v957
        %v959 = vrot.slane %v958, 2
        %v960 = vadd.f32 %v958, %v959
        %v961 = vrot.slane %v960, 1
        %v962 = vadd.f32 %v960, %v961
        %963 = vst [vmem:[%s945] sm:$0x1] %v962
        %s964 = smov [#allocation15]
        %s965 = smov %s943
        %v966 = vlaneseq
        %v967 = vand.u32 %v966, 127
        %v968 = vmov %v967
        %v969 = vlaneseq
        %v970 = vshrl.u32 %v969, 7
        %v971 = vmov %v970
        %v972 = vld [vmem:[%s964] sm:$0xff]
        %vm975 = vcmp.eq.s32.totalorder %v971, %v968
        %v976 = vsel %vm975, %v972, 0.0
        %v977 = vrot.slane %v976, 4
        %v978 = vadd.f32 %v976, %v977
        %v979 = vrot.slane %v978, 2
        %v980 = vadd.f32 %v978, %v979
        %v981 = vrot.slane %v980, 1
        %v982 = vadd.f32 %v980, %v981
        %983 = vst [vmem:[%s965] sm:$0x1] %v982
        %s985 = ssub.s32 4, 1
        %v986 = vld [vmem:[#allocation4] sm:%s985]
        %s988 = ssub.s32 4, 1
        %989 = vst [vmem:[%s287] sm:%s988] %v986
        %s991 = ssub.s32 4, 1
        %v992 = vld [vmem:[#allocation6] sm:%s991]
        %s994 = ssub.s32 4, 1
        %995 = vst [vmem:[%s293] sm:%s994] %v992
        %s996 = sand.u32 %s27, 1
        %s997 = sand.u32 %s27, 1
        %s998 = smul.addr %s997, 2
        %s999 = scalar_lea.vmem [#allocation5], %s998
        %s1000 = sand.u32 %s55, 1
        %s1001 = sand.u32 %s55, 1
        %s1002 = smul.addr %s1001, 2
        %s1003 = scalar_lea.vmem [#allocation7], %s1002
        %s1004 = sand.u32 %s17, 1
        %s1005 = sand.u32 %s17, 1
        %s1006 = smul.addr %s1005, 8
        %s1007 = scalar_lea.vmem [#allocation8], %s1006
        %s1008 = sand.u32 %s17, 1
        %s1009 = sand.u32 %s17, 1
        %s1010 = smul.addr %s1009, 8
        %s1011 = scalar_lea.vmem [#allocation9], %s1010
        %s1012 = sand.u32 %s17, 1
        %s1013 = sand.u32 %s17, 1
        %s1014 = smul.addr %s1013, 8
        %s1015 = scalar_lea.vmem [#allocation10], %s1014
        %s1016 = sand.u32 %s17, 1
        %s1017 = sand.u32 %s17, 1
        %s1018 = smul.addr %s1017, 8
        %s1019 = scalar_lea.vmem [#allocation11], %s1018
        // Predicated region
        $region171: #{custom-call.34} parent=155 // pred_check
          %p1020 = pneg %p37
        $region172: #{custom-call.34} parent=155 // pred_check_branch
          %1022 = sbr.rel (%p1020) target = $region174
        $region173: #{custom-call.34} parent=155 // pred_region
          %s1023 = sshrl.u32 %s17, 3
          %s1024 = smul.addr %s1023, 2
          %s1025 = scalar_lea.vmem %s4, %s1024
          // Predicated region
          $region175: #{custom-call.34} parent=173 // pred_check
            _
          $region176: #{custom-call.34} parent=173 // pred_check_branch
            %1027 = sbr.rel (0) target = $region178
          $region177: #{custom-call.34} parent=173 // pred_region
            // Predicated region
            $region179: #{custom-call.34} parent=177 // pred_check
              _
            $region180: #{custom-call.34} parent=177 // pred_check_branch
              %1029 = sbr.rel target = $region182
            $region181: #{custom-call.34} parent=177 // pred_region
              // Predicated region
              $region194: #{custom-call.34} parent=181 // pred_check
                _
              $region195: #{custom-call.34} parent=181 // pred_check_branch
                %1045 = sbr.rel (0) target = $region197
              $region196: #{custom-call.34} parent=181 // pred_region
                %s1047 = ssub.s32 4, 1
                loop: start=0, step=1, limit=1
                $region198: #{custom-call.34} parent=196 // loop_pre_header
                  _
                $region199: #{custom-call.34} parent=196 // loop_header
                  %s1049 = sphi 0, %s1053
                  %p1050 = scmp.ge.s32.totalorder %s1049, 1
                  %s1054 = sphi %s999, %s999
                  %s1055 = sphi %s1025, %s1025
                $region200: #{custom-call.34} parent=196 // loop_header_branch
                  %1052 = sbr.rel (%p1050) target = $region204
                $region201: #{custom-call.34} parent=196 // loop_body
                  %v1056 = vld [vmem:[%s1054] sm:%s1047]
                  %1057 = vst [vmem:[%s1055] sm:%s1047] %v1056
                $region202: #{custom-call.34} parent=196 // loop_footer
                  %s1053 = sadd.s32 1, %s1049
                $region203: #{custom-call.34} parent=196 // loop_footer_branch
                  %1048 = sbr.rel target = $region199
                $region204: #{custom-call.34} parent=196 // loop_exit
                  _
              $region197: #{custom-call.34} parent=181 // pred_fallthru
                _
            $region182: #{custom-call.34} parent=177 // pred_fallthru
              _
            // Predicated region
            $region183: #{custom-call.34} parent=177 // pred_check
              _
            $region184: #{custom-call.34} parent=177 // pred_check_branch
              %1031 = sbr.rel (0) target = $region186
            $region185: #{custom-call.34} parent=177 // pred_region
              %s1033 = ssub.s32 4, 1
              loop: start=0, step=1, limit=1
              $region187: #{custom-call.34} parent=185 // loop_pre_header
                _
              $region188: #{custom-call.34} parent=185 // loop_header
                %s1035 = sphi 0, %s1039
                %p1036 = scmp.ge.s32.totalorder %s1035, 1
                %s1040 = sphi %s999, %s999
                %s1041 = sphi %s1025, %s1025
              $region189: #{custom-call.34} parent=185 // loop_header_branch
                %1038 = sbr.rel (%p1036) target = $region193
              $region190: #{custom-call.34} parent=185 // loop_body
                %v1042 = vld [vmem:[%s1040] sm:%s1033]
                %1043 = vst [vmem:[%s1041] sm:%s1033] %v1042
              $region191: #{custom-call.34} parent=185 // loop_footer
                %s1039 = sadd.s32 1, %s1035
              $region192: #{custom-call.34} parent=185 // loop_footer_branch
                %1034 = sbr.rel target = $region188
              $region193: #{custom-call.34} parent=185 // loop_exit
                _
            $region186: #{custom-call.34} parent=177 // pred_fallthru
              _
          $region178: #{custom-call.34} parent=173 // pred_fallthru
            _
          %1058 = vnop
        $region174: #{custom-call.34} parent=155 // pred_fallthru
          _
        // Predicated region
        $region205: #{custom-call.34} parent=155 // pred_check
          %p1059 = pneg %p65
        $region206: #{custom-call.34} parent=155 // pred_check_branch
          %1061 = sbr.rel (%p1059) target = $region208
        $region207: #{custom-call.34} parent=155 // pred_region
          %s1062 = sshrl.u32 %s17, 3
          %s1063 = smul.addr %s1062, 2
          %s1064 = scalar_lea.vmem %s5, %s1063
          // Predicated region
          $region209: #{custom-call.34} parent=207 // pred_check
            _
          $region210: #{custom-call.34} parent=207 // pred_check_branch
            %1066 = sbr.rel (0) target = $region212
          $region211: #{custom-call.34} parent=207 // pred_region
            // Predicated region
            $region213: #{custom-call.34} parent=211 // pred_check
              _
            $region214: #{custom-call.34} parent=211 // pred_check_branch
              %1068 = sbr.rel target = $region216
            $region215: #{custom-call.34} parent=211 // pred_region
              // Predicated region
              $region228: #{custom-call.34} parent=215 // pred_check
                _
              $region229: #{custom-call.34} parent=215 // pred_check_branch
                %1084 = sbr.rel (0) target = $region231
              $region230: #{custom-call.34} parent=215 // pred_region
                %s1086 = ssub.s32 4, 1
                loop: start=0, step=1, limit=1
                $region232: #{custom-call.34} parent=230 // loop_pre_header
                  _
                $region233: #{custom-call.34} parent=230 // loop_header
                  %s1088 = sphi 0, %s1092
                  %p1089 = scmp.ge.s32.totalorder %s1088, 1
                  %s1093 = sphi %s1003, %s1003
                  %s1094 = sphi %s1064, %s1064
                $region234: #{custom-call.34} parent=230 // loop_header_branch
                  %1091 = sbr.rel (%p1089) target = $region238
                $region235: #{custom-call.34} parent=230 // loop_body
                  %v1095 = vld [vmem:[%s1093] sm:%s1086]
                  %1096 = vst [vmem:[%s1094] sm:%s1086] %v1095
                $region236: #{custom-call.34} parent=230 // loop_footer
                  %s1092 = sadd.s32 1, %s1088
                $region237: #{custom-call.34} parent=230 // loop_footer_branch
                  %1087 = sbr.rel target = $region233
                $region238: #{custom-call.34} parent=230 // loop_exit
                  _
              $region231: #{custom-call.34} parent=215 // pred_fallthru
                _
            $region216: #{custom-call.34} parent=211 // pred_fallthru
              _
            // Predicated region
            $region217: #{custom-call.34} parent=211 // pred_check
              _
            $region218: #{custom-call.34} parent=211 // pred_check_branch
              %1070 = sbr.rel (0) target = $region220
            $region219: #{custom-call.34} parent=211 // pred_region
              %s1072 = ssub.s32 4, 1
              loop: start=0, step=1, limit=1
              $region221: #{custom-call.34} parent=219 // loop_pre_header
                _
              $region222: #{custom-call.34} parent=219 // loop_header
                %s1074 = sphi 0, %s1078
                %p1075 = scmp.ge.s32.totalorder %s1074, 1
                %s1079 = sphi %s1003, %s1003
                %s1080 = sphi %s1064, %s1064
              $region223: #{custom-call.34} parent=219 // loop_header_branch
                %1077 = sbr.rel (%p1075) target = $region227
              $region224: #{custom-call.34} parent=219 // loop_body
                %v1081 = vld [vmem:[%s1079] sm:%s1072]
                %1082 = vst [vmem:[%s1080] sm:%s1072] %v1081
              $region225: #{custom-call.34} parent=219 // loop_footer
                %s1078 = sadd.s32 1, %s1074
              $region226: #{custom-call.34} parent=219 // loop_footer_branch
                %1073 = sbr.rel target = $region222
              $region227: #{custom-call.34} parent=219 // loop_exit
                _
            $region220: #{custom-call.34} parent=211 // pred_fallthru
              _
          $region212: #{custom-call.34} parent=207 // pred_fallthru
            _
          %1097 = vnop
        $region208: #{custom-call.34} parent=155 // pred_fallthru
          _
        %s1098 = smul.addr %s17, 8
        %s1099 = scalar_lea.vmem %s6, %s1098
        // Predicated region
        $region239: #{custom-call.34} parent=155 // pred_check
          _
        $region240: #{custom-call.34} parent=155 // pred_check_branch
          %1101 = sbr.rel (0) target = $region242
        $region241: #{custom-call.34} parent=155 // pred_region
          // Predicated region
          $region243: #{custom-call.34} parent=241 // pred_check
            _
          $region244: #{custom-call.34} parent=241 // pred_check_branch
            %1103 = sbr.rel (0) target = $region246
          $region245: #{custom-call.34} parent=241 // pred_region
            // Predicated region
            $region258: #{custom-call.34} parent=245 // pred_check
              _
            $region259: #{custom-call.34} parent=245 // pred_check_branch
              %1119 = sbr.rel (0) target = $region261
            $region260: #{custom-call.34} parent=245 // pred_region
              loop: start=0, step=1, limit=1
              $region262: #{custom-call.34} parent=260 // loop_pre_header
                _
              $region263: #{custom-call.34} parent=260 // loop_header
                %s1121 = sphi 0, %s1125
                %p1122 = scmp.ge.s32.totalorder %s1121, 1
                %s1126 = sphi %s1007, %s1007
                %s1127 = sphi %s1099, %s1099
              $region264: #{custom-call.34} parent=260 // loop_header_branch
                %1124 = sbr.rel (%p1122) target = $region268
              $region265: #{custom-call.34} parent=260 // loop_body
                %v1128 = vld [vmem:[%s1126] sm:$0xff]
                %1129 = vst [vmem:[%s1127] sm:$0xff] %v1128
              $region266: #{custom-call.34} parent=260 // loop_footer
                %s1125 = sadd.s32 1, %s1121
              $region267: #{custom-call.34} parent=260 // loop_footer_branch
                %1120 = sbr.rel target = $region263
              $region268: #{custom-call.34} parent=260 // loop_exit
                _
            $region261: #{custom-call.34} parent=245 // pred_fallthru
              _
            // Predicated region
            $region269: #{custom-call.34} parent=245 // pred_check
              _
            $region270: #{custom-call.34} parent=245 // pred_check_branch
              %1131 = sbr.rel target = $region272
            $region271: #{custom-call.34} parent=245 // pred_region
              _
            $region272: #{custom-call.34} parent=245 // pred_fallthru
              _
          $region246: #{custom-call.34} parent=241 // pred_fallthru
            _
          // Predicated region
          $region247: #{custom-call.34} parent=241 // pred_check
            _
          $region248: #{custom-call.34} parent=241 // pred_check_branch
            %1105 = sbr.rel target = $region250
          $region249: #{custom-call.34} parent=241 // pred_region
            %s1107 = ssub.s32 256, 1
            loop: start=0, step=1, limit=1
            $region251: #{custom-call.34} parent=249 // loop_pre_header
              _
            $region252: #{custom-call.34} parent=249 // loop_header
              %s1109 = sphi 0, %s1113
              %p1110 = scmp.ge.s32.totalorder %s1109, 1
              %s1114 = sphi %s1007, %s1007
              %s1115 = sphi %s1099, %s1099
            $region253: #{custom-call.34} parent=249 // loop_header_branch
              %1112 = sbr.rel (%p1110) target = $region257
            $region254: #{custom-call.34} parent=249 // loop_body
              %v1116 = vld [vmem:[%s1114] sm:%s1107]
              %1117 = vst [vmem:[%s1115] sm:%s1107] %v1116
            $region255: #{custom-call.34} parent=249 // loop_footer
              %s1113 = sadd.s32 1, %s1109
            $region256: #{custom-call.34} parent=249 // loop_footer_branch
              %1108 = sbr.rel target = $region252
            $region257: #{custom-call.34} parent=249 // loop_exit
              _
          $region250: #{custom-call.34} parent=241 // pred_fallthru
            _
        $region242: #{custom-call.34} parent=155 // pred_fallthru
          _
        %1132 = vnop
        %s1133 = smul.addr %s17, 8
        %s1134 = scalar_lea.vmem %s7, %s1133
        // Predicated region
        $region273: #{custom-call.34} parent=155 // pred_check
          _
        $region274: #{custom-call.34} parent=155 // pred_check_branch
          %1136 = sbr.rel (0) target = $region276
        $region275: #{custom-call.34} parent=155 // pred_region
          // Predicated region
          $region277: #{custom-call.34} parent=275 // pred_check
            _
          $region278: #{custom-call.34} parent=275 // pred_check_branch
            %1138 = sbr.rel (0) target = $region280
          $region279: #{custom-call.34} parent=275 // pred_region
            // Predicated region
            $region292: #{custom-call.34} parent=279 // pred_check
              _
            $region293: #{custom-call.34} parent=279 // pred_check_branch
              %1154 = sbr.rel (0) target = $region295
            $region294: #{custom-call.34} parent=279 // pred_region
              loop: start=0, step=1, limit=1
              $region296: #{custom-call.34} parent=294 // loop_pre_header
                _
              $region297: #{custom-call.34} parent=294 // loop_header
                %s1156 = sphi 0, %s1160
                %p1157 = scmp.ge.s32.totalorder %s1156, 1
                %s1161 = sphi %s1011, %s1011
                %s1162 = sphi %s1134, %s1134
              $region298: #{custom-call.34} parent=294 // loop_header_branch
                %1159 = sbr.rel (%p1157) target = $region302
              $region299: #{custom-call.34} parent=294 // loop_body
                %v1163 = vld [vmem:[%s1161] sm:$0xff]
                %1164 = vst [vmem:[%s1162] sm:$0xff] %v1163
              $region300: #{custom-call.34} parent=294 // loop_footer
                %s1160 = sadd.s32 1, %s1156
              $region301: #{custom-call.34} parent=294 // loop_footer_branch
                %1155 = sbr.rel target = $region297
              $region302: #{custom-call.34} parent=294 // loop_exit
                _
            $region295: #{custom-call.34} parent=279 // pred_fallthru
              _
            // Predicated region
            $region303: #{custom-call.34} parent=279 // pred_check
              _
            $region304: #{custom-call.34} parent=279 // pred_check_branch
              %1166 = sbr.rel target = $region306
            $region305: #{custom-call.34} parent=279 // pred_region
              _
            $region306: #{custom-call.34} parent=279 // pred_fallthru
              _
          $region280: #{custom-call.34} parent=275 // pred_fallthru
            _
          // Predicated region
          $region281: #{custom-call.34} parent=275 // pred_check
            _
          $region282: #{custom-call.34} parent=275 // pred_check_branch
            %1140 = sbr.rel target = $region284
          $region283: #{custom-call.34} parent=275 // pred_region
            %s1142 = ssub.s32 256, 1
            loop: start=0, step=1, limit=1
            $region285: #{custom-call.34} parent=283 // loop_pre_header
              _
            $region286: #{custom-call.34} parent=283 // loop_header
              %s1144 = sphi 0, %s1148
              %p1145 = scmp.ge.s32.totalorder %s1144, 1
              %s1149 = sphi %s1011, %s1011
              %s1150 = sphi %s1134, %s1134
            $region287: #{custom-call.34} parent=283 // loop_header_branch
              %1147 = sbr.rel (%p1145) target = $region291
            $region288: #{custom-call.34} parent=283 // loop_body
              %v1151 = vld [vmem:[%s1149] sm:%s1142]
              %1152 = vst [vmem:[%s1150] sm:%s1142] %v1151
            $region289: #{custom-call.34} parent=283 // loop_footer
              %s1148 = sadd.s32 1, %s1144
            $region290: #{custom-call.34} parent=283 // loop_footer_branch
              %1143 = sbr.rel target = $region286
            $region291: #{custom-call.34} parent=283 // loop_exit
              _
          $region284: #{custom-call.34} parent=275 // pred_fallthru
            _
        $region276: #{custom-call.34} parent=155 // pred_fallthru
          _
        %1167 = vnop
        %s1168 = smul.addr %s17, 8
        %s1169 = scalar_lea.vmem %s8, %s1168
        // Predicated region
        $region307: #{custom-call.34} parent=155 // pred_check
          _
        $region308: #{custom-call.34} parent=155 // pred_check_branch
          %1171 = sbr.rel (0) target = $region310
        $region309: #{custom-call.34} parent=155 // pred_region
          // Predicated region
          $region311: #{custom-call.34} parent=309 // pred_check
            _
          $region312: #{custom-call.34} parent=309 // pred_check_branch
            %1173 = sbr.rel (0) target = $region314
          $region313: #{custom-call.34} parent=309 // pred_region
            // Predicated region
            $region326: #{custom-call.34} parent=313 // pred_check
              _
            $region327: #{custom-call.34} parent=313 // pred_check_branch
              %1189 = sbr.rel (0) target = $region329
            $region328: #{custom-call.34} parent=313 // pred_region
              loop: start=0, step=1, limit=1
              $region330: #{custom-call.34} parent=328 // loop_pre_header
                _
              $region331: #{custom-call.34} parent=328 // loop_header
                %s1191 = sphi 0, %s1195
                %p1192 = scmp.ge.s32.totalorder %s1191, 1
                %s1196 = sphi %s1015, %s1015
                %s1197 = sphi %s1169, %s1169
              $region332: #{custom-call.34} parent=328 // loop_header_branch
                %1194 = sbr.rel (%p1192) target = $region336
              $region333: #{custom-call.34} parent=328 // loop_body
                %v1198 = vld [vmem:[%s1196] sm:$0xff]
                %1199 = vst [vmem:[%s1197] sm:$0xff] %v1198
              $region334: #{custom-call.34} parent=328 // loop_footer
                %s1195 = sadd.s32 1, %s1191
              $region335: #{custom-call.34} parent=328 // loop_footer_branch
                %1190 = sbr.rel target = $region331
              $region336: #{custom-call.34} parent=328 // loop_exit
                _
            $region329: #{custom-call.34} parent=313 // pred_fallthru
              _
            // Predicated region
            $region337: #{custom-call.34} parent=313 // pred_check
              _
            $region338: #{custom-call.34} parent=313 // pred_check_branch
              %1201 = sbr.rel target = $region340
            $region339: #{custom-call.34} parent=313 // pred_region
              _
            $region340: #{custom-call.34} parent=313 // pred_fallthru
              _
          $region314: #{custom-call.34} parent=309 // pred_fallthru
            _
          // Predicated region
          $region315: #{custom-call.34} parent=309 // pred_check
            _
          $region316: #{custom-call.34} parent=309 // pred_check_branch
            %1175 = sbr.rel target = $region318
          $region317: #{custom-call.34} parent=309 // pred_region
            %s1177 = ssub.s32 256, 1
            loop: start=0, step=1, limit=1
            $region319: #{custom-call.34} parent=317 // loop_pre_header
              _
            $region320: #{custom-call.34} parent=317 // loop_header
              %s1179 = sphi 0, %s1183
              %p1180 = scmp.ge.s32.totalorder %s1179, 1
              %s1184 = sphi %s1015, %s1015
              %s1185 = sphi %s1169, %s1169
            $region321: #{custom-call.34} parent=317 // loop_header_branch
              %1182 = sbr.rel (%p1180) target = $region325
            $region322: #{custom-call.34} parent=317 // loop_body
              %v1186 = vld [vmem:[%s1184] sm:%s1177]
              %1187 = vst [vmem:[%s1185] sm:%s1177] %v1186
            $region323: #{custom-call.34} parent=317 // loop_footer
              %s1183 = sadd.s32 1, %s1179
            $region324: #{custom-call.34} parent=317 // loop_footer_branch
              %1178 = sbr.rel target = $region320
            $region325: #{custom-call.34} parent=317 // loop_exit
              _
          $region318: #{custom-call.34} parent=309 // pred_fallthru
            _
        $region310: #{custom-call.34} parent=155 // pred_fallthru
          _
        %1202 = vnop
        %s1203 = smul.addr %s17, 8
        %s1204 = scalar_lea.vmem %s9, %s1203
        // Predicated region
        $region341: #{custom-call.34} parent=155 // pred_check
          _
        $region342: #{custom-call.34} parent=155 // pred_check_branch
          %1206 = sbr.rel (0) target = $region344
        $region343: #{custom-call.34} parent=155 // pred_region
          // Predicated region
          $region345: #{custom-call.34} parent=343 // pred_check
            _
          $region346: #{custom-call.34} parent=343 // pred_check_branch
            %1208 = sbr.rel (0) target = $region348
          $region347: #{custom-call.34} parent=343 // pred_region
            // Predicated region
            $region360: #{custom-call.34} parent=347 // pred_check
              _
            $region361: #{custom-call.34} parent=347 // pred_check_branch
              %1224 = sbr.rel (0) target = $region363
            $region362: #{custom-call.34} parent=347 // pred_region
              loop: start=0, step=1, limit=1
              $region364: #{custom-call.34} parent=362 // loop_pre_header
                _
              $region365: #{custom-call.34} parent=362 // loop_header
                %s1226 = sphi 0, %s1230
                %p1227 = scmp.ge.s32.totalorder %s1226, 1
                %s1231 = sphi %s1019, %s1019
                %s1232 = sphi %s1204, %s1204
              $region366: #{custom-call.34} parent=362 // loop_header_branch
                %1229 = sbr.rel (%p1227) target = $region370
              $region367: #{custom-call.34} parent=362 // loop_body
                %v1233 = vld [vmem:[%s1231] sm:$0xff]
                %1234 = vst [vmem:[%s1232] sm:$0xff] %v1233
              $region368: #{custom-call.34} parent=362 // loop_footer
                %s1230 = sadd.s32 1, %s1226
              $region369: #{custom-call.34} parent=362 // loop_footer_branch
                %1225 = sbr.rel target = $region365
              $region370: #{custom-call.34} parent=362 // loop_exit
                _
            $region363: #{custom-call.34} parent=347 // pred_fallthru
              _
            // Predicated region
            $region371: #{custom-call.34} parent=347 // pred_check
              _
            $region372: #{custom-call.34} parent=347 // pred_check_branch
              %1236 = sbr.rel target = $region374
            $region373: #{custom-call.34} parent=347 // pred_region
              _
            $region374: #{custom-call.34} parent=347 // pred_fallthru
              _
          $region348: #{custom-call.34} parent=343 // pred_fallthru
            _
          // Predicated region
          $region349: #{custom-call.34} parent=343 // pred_check
            _
          $region350: #{custom-call.34} parent=343 // pred_check_branch
            %1210 = sbr.rel target = $region352
          $region351: #{custom-call.34} parent=343 // pred_region
            %s1212 = ssub.s32 256, 1
            loop: start=0, step=1, limit=1
            $region353: #{custom-call.34} parent=351 // loop_pre_header
              _
            $region354: #{custom-call.34} parent=351 // loop_header
              %s1214 = sphi 0, %s1218
              %p1215 = scmp.ge.s32.totalorder %s1214, 1
              %s1219 = sphi %s1019, %s1019
              %s1220 = sphi %s1204, %s1204
            $region355: #{custom-call.34} parent=351 // loop_header_branch
              %1217 = sbr.rel (%p1215) target = $region359
            $region356: #{custom-call.34} parent=351 // loop_body
              %v1221 = vld [vmem:[%s1219] sm:%s1212]
              %1222 = vst [vmem:[%s1220] sm:%s1212] %v1221
            $region357: #{custom-call.34} parent=351 // loop_footer
              %s1218 = sadd.s32 1, %s1214
            $region358: #{custom-call.34} parent=351 // loop_footer_branch
              %1213 = sbr.rel target = $region354
            $region359: #{custom-call.34} parent=351 // loop_exit
              _
          $region352: #{custom-call.34} parent=343 // pred_fallthru
            _
        $region344: #{custom-call.34} parent=155 // pred_fallthru
          _
        %1237 = vnop
      $region156: #{custom-call.34} parent=5 // pred_fallthru
        _
      %p1238 = scmp.le.s32.totalorder 2, %s12
      // Predicated region
      $region375: #{custom-call.34} parent=5 // pred_check
        %p1239 = pneg %p1238
      $region376: #{custom-call.34} parent=5 // pred_check_branch
        %1241 = sbr.rel (%p1239) target = $region378
      $region377: #{custom-call.34} parent=5 // pred_region
        %s1242 = ssub.s32 %s12, 2
        // Predicated region
        $region379: #{custom-call.34} parent=377 // pred_check
          %p1243 = pneg %p43
        $region380: #{custom-call.34} parent=377 // pred_check_branch
          %1245 = sbr.rel (%p1243) target = $region382
        $region381: #{custom-call.34} parent=377 // pred_region
          %s1246 = sand.u32 %s28, 1
          %s1247 = sand.u32 %s28, 1
          %s1248 = smul.addr %s1247, 2
          %s1249 = scalar_lea.vmem [#allocation5], %s1248
        $region382: #{custom-call.34} parent=377 // pred_fallthru
          _
        // Predicated region
        $region383: #{custom-call.34} parent=377 // pred_check
          %p1250 = pneg %p71
        $region384: #{custom-call.34} parent=377 // pred_check_branch
          %1252 = sbr.rel (%p1250) target = $region386
        $region385: #{custom-call.34} parent=377 // pred_region
          %s1253 = sand.u32 %s56, 1
          %s1254 = sand.u32 %s56, 1
          %s1255 = smul.addr %s1254, 2
          %s1256 = scalar_lea.vmem [#allocation7], %s1255
        $region386: #{custom-call.34} parent=377 // pred_fallthru
          _
        %s1257 = sand.u32 %s18, 1
        %s1258 = sand.u32 %s18, 1
        %s1259 = smul.addr %s1258, 8
        %s1260 = scalar_lea.vmem [#allocation8], %s1259
        %s1261 = sand.u32 %s18, 1
        %s1262 = sand.u32 %s18, 1
        %s1263 = smul.addr %s1262, 8
        %s1264 = scalar_lea.vmem [#allocation9], %s1263
        %s1265 = sand.u32 %s18, 1
        %s1266 = sand.u32 %s18, 1
        %s1267 = smul.addr %s1266, 8
        %s1268 = scalar_lea.vmem [#allocation10], %s1267
        %s1269 = sand.u32 %s18, 1
        %s1270 = sand.u32 %s18, 1
        %s1271 = smul.addr %s1270, 8
        %s1272 = scalar_lea.vmem [#allocation11], %s1271
      $region378: #{custom-call.34} parent=5 // pred_fallthru
        _
    $region6: #{custom-call.34} parent=1 // loop_footer
      %s16 = sadd.s32 1, %s12
    $region7: #{custom-call.34} parent=1 // loop_footer_branch
      %11 = sbr.rel target = $region3
    $region8: #{custom-call.34} parent=1 // loop_exit
      _

// kernel: reverse
$region0: #{reverse}
  %s0 = inlined_call_operand.vmem [shape: f32[2,16], index: 0, kind: input, shape index: {}]
  %s1 = inlined_call_operand.vmem [shape: f32[2,16], index: 1, kind: output, shape index: {}]
  %v2 = vlaneseq
  %v3 = vsub.s32 15, %v2
  %4 = vset.pattern.permute.xlu0 %v3
  $region1: #{reverse} parent=0
    #allocation0 [shape = 'u8[4096]{0}', space=vmem, size = 0x1000, scoped, tag = 'operand span for operand 0']
    #allocation1 [shape = 'u8[1024]{0}', space=vmem, size = 0x400, scoped, tag = 'packed  for operand 0']
    #allocation2 [shape = 'u8[4096]{0}', space=vmem, size = 0x1000, scoped, tag = 'operand span for operand 1']
    #allocation3 [shape = 'u8[1024]{0}', space=vmem, size = 0x400, scoped, tag = 'packed  for operand 1']
    // Predicated region
    $region2: #{reverse} parent=1 // pred_check
      _
    $region3: #{reverse} parent=1 // pred_check_branch
      %6 = sbr.rel (0) target = $region5
    $region4: #{reverse} parent=1 // pred_region
      // Predicated region
      $region6: #{reverse} parent=4 // pred_check
        _
      $region7: #{reverse} parent=4 // pred_check_branch
        %8 = sbr.rel target = $region9
      $region8: #{reverse} parent=4 // pred_region
        // Predicated region
        $region21: #{reverse} parent=8 // pred_check
          _
        $region22: #{reverse} parent=8 // pred_check_branch
          %24 = sbr.rel (0) target = $region24
        $region23: #{reverse} parent=8 // pred_region
          %s26 = ssub.s32 4, 1
          loop: start=0, step=1, limit=1
          $region25: #{reverse} parent=23 // loop_pre_header
            _
          $region26: #{reverse} parent=23 // loop_header
            %s28 = sphi 0, %s32
            %p29 = scmp.ge.s32.totalorder %s28, 1
            %s33 = sphi %s0, %s0
            %s34 = sphi [#allocation1], [#allocation1]
          $region27: #{reverse} parent=23 // loop_header_branch
            %31 = sbr.rel (%p29) target = $region31
          $region28: #{reverse} parent=23 // loop_body
            %v35 = vld [vmem:[%s33] sm:%s26]
            %36 = vst [vmem:[%s34] sm:%s26] %v35
          $region29: #{reverse} parent=23 // loop_footer
            %s32 = sadd.s32 1, %s28
          $region30: #{reverse} parent=23 // loop_footer_branch
            %27 = sbr.rel target = $region26
          $region31: #{reverse} parent=23 // loop_exit
            _
        $region24: #{reverse} parent=8 // pred_fallthru
          _
      $region9: #{reverse} parent=4 // pred_fallthru
        _
      // Predicated region
      $region10: #{reverse} parent=4 // pred_check
        _
      $region11: #{reverse} parent=4 // pred_check_branch
        %10 = sbr.rel (0) target = $region13
      $region12: #{reverse} parent=4 // pred_region
        %s12 = ssub.s32 4, 1
        loop: start=0, step=1, limit=1
        $region14: #{reverse} parent=12 // loop_pre_header
          _
        $region15: #{reverse} parent=12 // loop_header
          %s14 = sphi 0, %s18
          %p15 = scmp.ge.s32.totalorder %s14, 1
          %s19 = sphi %s0, %s0
          %s20 = sphi [#allocation1], [#allocation1]
        $region16: #{reverse} parent=12 // loop_header_branch
          %17 = sbr.rel (%p15) target = $region20
        $region17: #{reverse} parent=12 // loop_body
          %v21 = vld [vmem:[%s19] sm:%s12]
          %22 = vst [vmem:[%s20] sm:%s12] %v21
        $region18: #{reverse} parent=12 // loop_footer
          %s18 = sadd.s32 1, %s14
        $region19: #{reverse} parent=12 // loop_footer_branch
          %13 = sbr.rel target = $region15
        $region20: #{reverse} parent=12 // loop_exit
          _
      $region13: #{reverse} parent=4 // pred_fallthru
        _
    $region5: #{reverse} parent=1 // pred_fallthru
      _
    %37 = vnop
    %s39 = ssub.s32 4, 1
    %v40 = vld [vmem:[#allocation1] sm:%s39]
    %41 = vst [vmem:[#allocation0] sm:%s39] %v40
    %v42 = vld [vmem:[#allocation0] sm:$0xff]
    %43 = vperm.xlu0 %4, %v42
    %v44 = vpop.permute.xlu0 %43
    %45 = vst [vmem:[#allocation2] sm:$0xff] %v44
    %s47 = ssub.s32 4, 1
    %v48 = vld [vmem:[#allocation2] sm:%s47]
    %s50 = ssub.s32 4, 1
    %51 = vst [vmem:[#allocation3] sm:%s50] %v48
    // Predicated region
    $region32: #{reverse} parent=1 // pred_check
      _
    $region33: #{reverse} parent=1 // pred_check_branch
      %53 = sbr.rel (0) target = $region35
    $region34: #{reverse} parent=1 // pred_region
      // Predicated region
      $region36: #{reverse} parent=34 // pred_check
        _
      $region37: #{reverse} parent=34 // pred_check_branch
        %55 = sbr.rel target = $region39
      $region38: #{reverse} parent=34 // pred_region
        // Predicated region
        $region51: #{reverse} parent=38 // pred_check
          _
        $region52: #{reverse} parent=38 // pred_check_branch
          %71 = sbr.rel (0) target = $region54
        $region53: #{reverse} parent=38 // pred_region
          %s73 = ssub.s32 4, 1
          loop: start=0, step=1, limit=1
          $region55: #{reverse} parent=53 // loop_pre_header
            _
          $region56: #{reverse} parent=53 // loop_header
            %s75 = sphi 0, %s79
            %p76 = scmp.ge.s32.totalorder %s75, 1
            %s80 = sphi [#allocation3], [#allocation3]
            %s81 = sphi %s1, %s1
          $region57: #{reverse} parent=53 // loop_header_branch
            %78 = sbr.rel (%p76) target = $region61
          $region58: #{reverse} parent=53 // loop_body
            %v82 = vld [vmem:[%s80] sm:%s73]
            %83 = vst [vmem:[%s81] sm:%s73] %v82
          $region59: #{reverse} parent=53 // loop_footer
            %s79 = sadd.s32 1, %s75
          $region60: #{reverse} parent=53 // loop_footer_branch
            %74 = sbr.rel target = $region56
          $region61: #{reverse} parent=53 // loop_exit
            _
        $region54: #{reverse} parent=38 // pred_fallthru
          _
      $region39: #{reverse} parent=34 // pred_fallthru
        _
      // Predicated region
      $region40: #{reverse} parent=34 // pred_check
        _
      $region41: #{reverse} parent=34 // pred_check_branch
        %57 = sbr.rel (0) target = $region43
      $region42: #{reverse} parent=34 // pred_region
        %s59 = ssub.s32 4, 1
        loop: start=0, step=1, limit=1
        $region44: #{reverse} parent=42 // loop_pre_header
          _
        $region45: #{reverse} parent=42 // loop_header
          %s61 = sphi 0, %s65
          %p62 = scmp.ge.s32.totalorder %s61, 1
          %s66 = sphi [#allocation3], [#allocation3]
          %s67 = sphi %s1, %s1
        $region46: #{reverse} parent=42 // loop_header_branch
          %64 = sbr.rel (%p62) target = $region50
        $region47: #{reverse} parent=42 // loop_body
          %v68 = vld [vmem:[%s66] sm:%s59]
          %69 = vst [vmem:[%s67] sm:%s59] %v68
        $region48: #{reverse} parent=42 // loop_footer
          %s65 = sadd.s32 1, %s61
        $region49: #{reverse} parent=42 // loop_footer_branch
          %60 = sbr.rel target = $region45
        $region50: #{reverse} parent=42 // loop_exit
          _
      $region43: #{reverse} parent=34 // pred_fallthru
        _
    $region35: #{reverse} parent=1 // pred_fallthru
      _
    %84 = vnop

// kernel: _forward.3
$region0: #{_forward.3}
  #allocation0 [shape = 'u32[]', space=smem, size = 0x4, offset = 0x4, fixed_abs, tag = 'smem constant byte address 0x4 - core index']
  #allocation1 [shape = 'u32[72,128]{1,0:T(1,128)}', space=vmem, size = 0x9000, scoped, tag = 'internal scratch']
  %s0 = inlined_call_operand.vmem [shape: f32[8,512], index: 0, kind: input, shape index: {}]
  %s1 = inlined_call_operand.vmem [shape: bf16[16,64], index: 1, kind: input, shape index: {}]
  %s2 = inlined_call_operand.vmem [shape: bf16[32,256], index: 2, kind: input, shape index: {}]
  %s3 = inlined_call_operand.vmem [shape: f32[16,2], index: 3, kind: input, shape index: {}]
  %s4 = inlined_call_operand.vmem [shape: f32[32,2], index: 4, kind: input, shape index: {}]
  %s5 = inlined_call_operand.vmem [shape: f32[1,512], index: 5, kind: input, shape index: {}]
  %s6 = inlined_call_operand.vmem [shape: f32[1,512], index: 6, kind: input, shape index: {}]
  %s7 = inlined_call_operand.vmem [shape: f32[128,512], index: 7, kind: input, shape index: {}]
  %s8 = inlined_call_operand.vmem [shape: f32[4,128], index: 8, kind: input, shape index: {}]
  %s9 = inlined_call_operand.vmem [shape: f32[512,2], index: 9, kind: input, shape index: {}]
  %s10 = inlined_call_operand.vmem [shape: f32[4,1], index: 10, kind: input, shape index: {}]
  %s11 = inlined_call_operand.vmem [shape: f32[4,2], index: 11, kind: output, shape index: {}]
  %s12 = sld [smem:[#allocation0]]
  $region54: #{_forward.3} parent=0
    _
  %s14 = ssub.s32 1, %s12
  %s15 = scalar_select 0, %s14, %s12
  // Predicated region
  $region2: #{_forward.3} parent=0 // pred_check
    _
  $region3: #{_forward.3} parent=0 // pred_check_branch
    %17 = sbr.rel (0) target = $region5
  $region4: #{_forward.3} parent=0 // pred_region
    _
  $region5: #{_forward.3} parent=0 // pred_fallthru
    _
  // Predicated region
  $region6: #{_forward.3} parent=0 // pred_check
    _
  $region7: #{_forward.3} parent=0 // pred_check_branch
    %19 = sbr.rel (0) target = $region9
  $region8: #{_forward.3} parent=0 // pred_region
    _
  $region9: #{_forward.3} parent=0 // pred_fallthru
    _
  // Predicated region
  $region10: #{_forward.3} parent=0 // pred_check
    _
  $region11: #{_forward.3} parent=0 // pred_check_branch
    %21 = sbr.rel (0) target = $region13
  $region12: #{_forward.3} parent=0 // pred_region
    _
  $region13: #{_forward.3} parent=0 // pred_fallthru
    _
  // Predicated region
  $region14: #{_forward.3} parent=0 // pred_check
    _
  $region15: #{_forward.3} parent=0 // pred_check_branch
    %23 = sbr.rel (0) target = $region17
  $region16: #{_forward.3} parent=0 // pred_region
    _
  $region17: #{_forward.3} parent=0 // pred_fallthru
    _
  // Predicated region
  $region18: #{_forward.3} parent=0 // pred_check
    _
  $region19: #{_forward.3} parent=0 // pred_check_branch
    %25 = sbr.rel (0) target = $region21
  $region20: #{_forward.3} parent=0 // pred_region
    _
  $region21: #{_forward.3} parent=0 // pred_fallthru
    _
  // Predicated region
  $region22: #{_forward.3} parent=0 // pred_check
    _
  $region23: #{_forward.3} parent=0 // pred_check_branch
    %27 = sbr.rel (0) target = $region25
  $region24: #{_forward.3} parent=0 // pred_region
    _
  $region25: #{_forward.3} parent=0 // pred_fallthru
    _
  // Predicated region
  $region26: #{_forward.3} parent=0 // pred_check
    _
  $region27: #{_forward.3} parent=0 // pred_check_branch
    %29 = sbr.rel (0) target = $region29
  $region28: #{_forward.3} parent=0 // pred_region
    _
  $region29: #{_forward.3} parent=0 // pred_fallthru
    _
  // Predicated region
  $region30: #{_forward.3} parent=0 // pred_check
    _
  $region31: #{_forward.3} parent=0 // pred_check_branch
    %31 = sbr.rel (0) target = $region33
  $region32: #{_forward.3} parent=0 // pred_region
    _
  $region33: #{_forward.3} parent=0 // pred_fallthru
    _
  // Predicated region
  $region34: #{_forward.3} parent=0 // pred_check
    _
  $region35: #{_forward.3} parent=0 // pred_check_branch
    %33 = sbr.rel (0) target = $region37
  $region36: #{_forward.3} parent=0 // pred_region
    _
  $region37: #{_forward.3} parent=0 // pred_fallthru
    _
  // Predicated region
  $region38: #{_forward.3} parent=0 // pred_check
    _
  $region39: #{_forward.3} parent=0 // pred_check_branch
    %35 = sbr.rel (0) target = $region41
  $region40: #{_forward.3} parent=0 // pred_region
    _
  $region41: #{_forward.3} parent=0 // pred_fallthru
    _
  // Predicated region
  $region42: #{_forward.3} parent=0 // pred_check
    _
  $region43: #{_forward.3} parent=0 // pred_check_branch
    %37 = sbr.rel (0) target = $region45
  $region44: #{_forward.3} parent=0 // pred_region
    _
  $region45: #{_forward.3} parent=0 // pred_fallthru
    _
  %v39 = vld [vmem:[%s5] sm:$0xf]
  %v40 = vld [vmem:[%s6] sm:$0xf]
  %v41 = vld [vmem:[%s3] sm:$0xff]
  %v42 = vld [vmem:[%s3 + $0x8] sm:$0xff]
  %v43 = vld [vmem:[%s4] sm:$0xff]
  %v44 = vld [vmem:[%s4 + $0x8] sm:$0xff]
  %v45 = vld [vmem:[%s4 + $0x10] sm:$0xff]
  %v46 = vld [vmem:[%s4 + $0x18] sm:$0xff]
  %v47 = vld [vmem:[%s0] sm:$0xff]
  %v48 = vld [vmem:[%s0 + $0x8] sm:$0xff]
  %v49 = vld [vmem:[%s0 + $0x10] sm:$0xff]
  %v50 = vld [vmem:[%s0 + $0x18] sm:$0xff]
  %51 = vrot.lane.b32.xlu0 %v47, 112
  %v52 = vpop.permute.xlu0 %51
  %53 = vrot.lane.b32.xlu0 %v48, 112
  %v54 = vpop.permute.xlu0 %53
  %55 = vrot.lane.b32.xlu0 %v49, 112
  %v56 = vpop.permute.xlu0 %55
  %57 = vrot.lane.b32.xlu0 %v50, 112
  %v58 = vpop.permute.xlu0 %57
  %v59 = vlaneseq
  %v60 = vand.u32 %v59, 127
  %vm61 = vcmp.lt.s32.totalorder %v60, 112
  %v62 = vsel %vm61, %v56, %v58
  %v63 = vsel %vm61, %v54, %v56
  %v64 = vsel %vm61, %v52, %v54
  %v65 = vsel %vm61, %v58, %v52
  %66 = vrot.lane.b32.xlu0 %v47, 96
  %v67 = vpop.permute.xlu0 %66
  %68 = vrot.lane.b32.xlu0 %v48, 96
  %v69 = vpop.permute.xlu0 %68
  %70 = vrot.lane.b32.xlu0 %v49, 96
  %v71 = vpop.permute.xlu0 %70
  %72 = vrot.lane.b32.xlu0 %v50, 96
  %v73 = vpop.permute.xlu0 %72
  %vm74 = vcmp.lt.s32.totalorder %v60, 96
  %v75 = vsel %vm74, %v71, %v73
  %v76 = vsel %vm74, %v69, %v71
  %v77 = vsel %vm74, %v67, %v69
  %v78 = vsel %vm74, %v73, %v67
  %79 = vrot.lane.b32.xlu0 %v47, 80
  %v80 = vpop.permute.xlu0 %79
  %81 = vrot.lane.b32.xlu0 %v48, 80
  %v82 = vpop.permute.xlu0 %81
  %83 = vrot.lane.b32.xlu0 %v49, 80
  %v84 = vpop.permute.xlu0 %83
  %85 = vrot.lane.b32.xlu0 %v50, 80
  %v86 = vpop.permute.xlu0 %85
  %vm87 = vcmp.lt.s32.totalorder %v60, 80
  %v88 = vsel %vm87, %v84, %v86
  %v89 = vsel %vm87, %v82, %v84
  %v90 = vsel %vm87, %v80, %v82
  %v91 = vsel %vm87, %v86, %v80
  %92 = vrot.lane.b32.xlu0 %v47, 64
  %v93 = vpop.permute.xlu0 %92
  %94 = vrot.lane.b32.xlu0 %v48, 64
  %v95 = vpop.permute.xlu0 %94
  %96 = vrot.lane.b32.xlu0 %v49, 64
  %v97 = vpop.permute.xlu0 %96
  %98 = vrot.lane.b32.xlu0 %v50, 64
  %v99 = vpop.permute.xlu0 %98
  %vm100 = vcmp.lt.s32.totalorder %v60, 64
  %v101 = vsel %vm100, %v97, %v99
  %v102 = vsel %vm100, %v95, %v97
  %v103 = vsel %vm100, %v93, %v95
  %v104 = vsel %vm100, %v99, %v93
  %105 = vrot.lane.b32.xlu0 %v47, 48
  %v106 = vpop.permute.xlu0 %105
  %107 = vrot.lane.b32.xlu0 %v48, 48
  %v108 = vpop.permute.xlu0 %107
  %109 = vrot.lane.b32.xlu0 %v49, 48
  %v110 = vpop.permute.xlu0 %109
  %111 = vrot.lane.b32.xlu0 %v50, 48
  %v112 = vpop.permute.xlu0 %111
  %vm113 = vcmp.lt.s32.totalorder %v60, 48
  %v114 = vsel %vm113, %v110, %v112
  %v115 = vsel %vm113, %v108, %v110
  %v116 = vsel %vm113, %v106, %v108
  %v117 = vsel %vm113, %v112, %v106
  %118 = vrot.lane.b32.xlu0 %v47, 32
  %v119 = vpop.permute.xlu0 %118
  %120 = vrot.lane.b32.xlu0 %v48, 32
  %v121 = vpop.permute.xlu0 %120
  %122 = vrot.lane.b32.xlu0 %v49, 32
  %v123 = vpop.permute.xlu0 %122
  %124 = vrot.lane.b32.xlu0 %v50, 32
  %v125 = vpop.permute.xlu0 %124
  %vm126 = vcmp.lt.s32.totalorder %v60, 32
  %v127 = vsel %vm126, %v123, %v125
  %v128 = vsel %vm126, %v121, %v123
  %v129 = vsel %vm126, %v119, %v121
  %v130 = vsel %vm126, %v125, %v119
  %131 = vrot.lane.b32.xlu0 %v47, 16
  %v132 = vpop.permute.xlu0 %131
  %133 = vrot.lane.b32.xlu0 %v48, 16
  %v134 = vpop.permute.xlu0 %133
  %135 = vrot.lane.b32.xlu0 %v49, 16
  %v136 = vpop.permute.xlu0 %135
  %137 = vrot.lane.b32.xlu0 %v50, 16
  %v138 = vpop.permute.xlu0 %137
  %vm139 = vcmp.lt.s32.totalorder %v60, 16
  %v140 = vsel %vm139, %v136, %v138
  %v141 = vsel %vm139, %v134, %v136
  %v142 = vsel %vm139, %v132, %v134
  %v143 = vsel %vm139, %v138, %v132
  %v144 = vld [vmem:[%s1] sm:$0xf]
  %v145 = vld [vmem:[%s1 + $0x4] sm:$0xf]
  %v146 = vpack.c.bf16 %v64, %v47
  %v147 = vpack.c.bf16 %v63, %v48
  %v148 = vpack.c.bf16 %v62, %v49
  %v149 = vpack.c.bf16 %v65, %v50
  %v150 = vpack.c.bf16 %v90, %v77
  %v151 = vpack.c.bf16 %v89, %v76
  %v152 = vpack.c.bf16 %v88, %v75
  %v153 = vpack.c.bf16 %v91, %v78
  %v154 = vpack.c.bf16 %v116, %v103
  %v155 = vpack.c.bf16 %v115, %v102
  %v156 = vpack.c.bf16 %v114, %v101
  %v157 = vpack.c.bf16 %v117, %v104
  %v158 = vpack.c.bf16 %v142, %v129
  %v159 = vpack.c.bf16 %v141, %v128
  %v160 = vpack.c.bf16 %v140, %v127
  %v161 = vpack.c.bf16 %v143, %v130
  %v164 = vunpack.c.l.b16 %v144
  %v165 = vunpack.c.l.b16 %v145
  %v166 = vpack.c.b16 %v165, %v164
  %vm167 = vcmask 523264
  %v169 = vsel %vm167, %v166, 0
  %171 = vmatpush.bf16.msra.mxu0 0
  %172 = vmatpush.bf16.msra.mxu0 0
  %173 = vmatpush.bf16.msra.mxu0 0
  %174 = vmatpush.bf16.msra.mxu0 0
  %175 = vmatpush.bf16.msra.mxu0 %v158
  %176 = vmatpush.bf16.msra.mxu0 %v154
  %177 = vmatpush.bf16.msra.mxu0 %v150
  %178 = vmatpush.bf16.msra.mxu0 %v146
  %179 = vmatmul.bf16.gmra.mxu0 %v169
  %v180 = vpop.f32.mrf.mxu0
  %v181 = vadd.f32 0.0, %v180
  %v182 = vpop.f32.mrf.mxu0
  %v183 = vadd.f32 0.0, %v182
  %184 = vdwg.mxu0
  %185 = vmatpush.bf16.msra.mxu0 0
  %186 = vmatpush.bf16.msra.mxu0 0
  %187 = vmatpush.bf16.msra.mxu0 0
  %188 = vmatpush.bf16.msra.mxu0 0
  %189 = vmatpush.bf16.msra.mxu0 %v159
  %190 = vmatpush.bf16.msra.mxu0 %v155
  %191 = vmatpush.bf16.msra.mxu0 %v151
  %192 = vmatpush.bf16.msra.mxu0 %v147
  %193 = vmatmul.bf16.gmra.mxu0 %v169
  %v194 = vpop.f32.mrf.mxu0
  %v195 = vadd.f32 0.0, %v194
  %v196 = vpop.f32.mrf.mxu0
  %v197 = vadd.f32 0.0, %v196
  %198 = vdwg.mxu0
  %199 = vmatpush.bf16.msra.mxu0 0
  %200 = vmatpush.bf16.msra.mxu0 0
  %201 = vmatpush.bf16.msra.mxu0 0
  %202 = vmatpush.bf16.msra.mxu0 0
  %203 = vmatpush.bf16.msra.mxu0 %v160
  %204 = vmatpush.bf16.msra.mxu0 %v156
  %205 = vmatpush.bf16.msra.mxu0 %v152
  %206 = vmatpush.bf16.msra.mxu0 %v148
  %207 = vmatmul.bf16.gmra.mxu0 %v169
  %v208 = vpop.f32.mrf.mxu0
  %v209 = vadd.f32 0.0, %v208
  %v210 = vpop.f32.mrf.mxu0
  %v211 = vadd.f32 0.0, %v210
  %212 = vdwg.mxu0
  %213 = vmatpush.bf16.msra.mxu0 0
  %214 = vmatpush.bf16.msra.mxu0 0
  %215 = vmatpush.bf16.msra.mxu0 0
  %216 = vmatpush.bf16.msra.mxu0 0
  %217 = vmatpush.bf16.msra.mxu0 %v161
  %218 = vmatpush.bf16.msra.mxu0 %v157
  %219 = vmatpush.bf16.msra.mxu0 %v153
  %220 = vmatpush.bf16.msra.mxu0 %v149
  %221 = vmatmul.bf16.gmra.mxu0 %v169
  %v222 = vpop.f32.mrf.mxu0
  %v223 = vadd.f32 0.0, %v222
  %v224 = vpop.f32.mrf.mxu0
  %v225 = vadd.f32 0.0, %v224
  %226 = vdwg.mxu0
  %v228 = vperm.slane %v39, 0
  %v229 = vperm.slane %v39, 1
  %v230 = vperm.slane %v39, 2
  %v231 = vperm.slane %v39, 3
  %v236 = vmul.f32 %v181, %v228
  %v237 = vmul.f32 %v195, %v229
  %v238 = vmul.f32 %v209, %v230
  %v239 = vmul.f32 %v223, %v231
  %v240 = vmul.f32 %v183, %v228
  %v241 = vmul.f32 %v197, %v229
  %v242 = vmul.f32 %v211, %v230
  %v243 = vmul.f32 %v225, %v231
  %v244 = vadd.f32 %v236, %v237
  %v245 = vadd.f32 %v244, %v238
  %v246 = vadd.f32 %v245, %v239
  %247 = vadd.xlane.f32.xlu0 %v246
  %v248 = vpop.xlane.xlu0 %247
  %v249 = vadd.f32 %v240, %v241
  %v250 = vadd.f32 %v249, %v242
  %v251 = vadd.f32 %v250, %v243
  %252 = vadd.xlane.f32.xlu0 %v251
  %v253 = vpop.xlane.xlu0 %252
  %v254 = vmul.f32 %v236, %v236
  %v255 = vmul.f32 %v237, %v237
  %v256 = vmul.f32 %v238, %v238
  %v257 = vmul.f32 %v239, %v239
  %v258 = vmul.f32 %v240, %v240
  %v259 = vmul.f32 %v241, %v241
  %v260 = vmul.f32 %v242, %v242
  %v261 = vmul.f32 %v243, %v243
  %v262 = vadd.f32 %v254, %v255
  %v263 = vadd.f32 %v262, %v256
  %v264 = vadd.f32 %v263, %v257
  %265 = vadd.xlane.f32.xlu0 %v264
  %v266 = vpop.xlane.xlu0 %265
  %v267 = vadd.f32 %v258, %v259
  %v268 = vadd.f32 %v267, %v260
  %v269 = vadd.f32 %v268, %v261
  %270 = vadd.xlane.f32.xlu0 %v269
  %v271 = vpop.xlane.xlu0 %270
  %v272 = vmul.f32 %v248, 0.0061728396
  %v273 = vmul.f32 %v253, 0.0061728396
  %v274 = vmul.f32 %v266, 0.0061728396
  %v275 = vmul.f32 %v271, 0.0061728396
  %v276 = vmul.f32 %v272, %v272
  %v277 = vmul.f32 %v273, %v273
  %v278 = vsub.f32 %v274, %v276
  %v279 = vsub.f32 %v275, %v277
  %v280 = vadd.f32 %v278, 1e-05
  %v281 = vadd.f32 %v279, 1e-05
  %v282 = vrsqrt.pop %v280
  %v283 = vmul.f32 %v282, %v280
  %v284 = vmul.f32 %v283, %v282
  %v285 = vmul.f32 0.5, %v284
  %v286 = vsub.f32 1.5, %v285
  %v287 = vmul.f32 %v282, %v286
  %vm288 = vweird.f32 %v280
  %vm289 = vweird.f32 %v282
  %vm290 = vmor %vm288, %vm289
  %v291 = vsel %vm290, %v282, %v287
  %v292 = vrsqrt.pop %v281
  %v293 = vmul.f32 %v292, %v281
  %v294 = vmul.f32 %v293, %v292
  %v295 = vmul.f32 0.5, %v294
  %v296 = vsub.f32 1.5, %v295
  %v297 = vmul.f32 %v292, %v296
  %vm298 = vweird.f32 %v281
  %vm299 = vweird.f32 %v292
  %vm300 = vmor %vm298, %vm299
  %v301 = vsel %vm300, %v292, %v297
  %v302 = vmul.f32 %v41, %v291
  %v303 = vmul.f32 %v42, %v301
  %v304 = vmul.f32 %v272, %v302
  %v305 = vmul.f32 %v273, %v303
  %308 = vrot.lane.b32.xlu0 %v304, 1
  %v309 = vpop.permute.xlu0 %308
  %310 = vrot.lane.b32.xlu0 %v305, 1
  %v311 = vpop.permute.xlu0 %310
  %v314 = vsub.f32 %v41, %v309
  %v315 = vsub.f32 %v42, %v311
  %317 = vset.pattern.permute.xlu0 0
  %318 = vperm.xlu0 %317, %v302
  %v319 = vpop.permute.xlu0 %318
  %322 = vset.pattern.permute.xlu0 0
  %323 = vperm.xlu0 %322, %v303
  %v324 = vpop.permute.xlu0 %323
  %v326 = vmul.f32 %v236, %v319
  %v327 = vmul.f32 %v237, %v319
  %v328 = vmul.f32 %v238, %v319
  %v329 = vmul.f32 %v239, %v319
  %v330 = vmul.f32 %v240, %v324
  %v331 = vmul.f32 %v241, %v324
  %v332 = vmul.f32 %v242, %v324
  %v333 = vmul.f32 %v243, %v324
  %335 = vset.pattern.permute.xlu0 1
  %336 = vperm.xlu0 %335, %v314
  %v337 = vpop.permute.xlu0 %336
  %340 = vset.pattern.permute.xlu0 1
  %341 = vperm.xlu0 %340, %v315
  %v342 = vpop.permute.xlu0 %341
  %v344 = vadd.f32 %v326, %v337
  %v345 = vadd.f32 %v327, %v337
  %v346 = vadd.f32 %v328, %v337
  %v347 = vadd.f32 %v329, %v337
  %v348 = vadd.f32 %v330, %v342
  %v349 = vadd.f32 %v331, %v342
  %v350 = vadd.f32 %v332, %v342
  %v351 = vadd.f32 %v333, %v342
  %v352 = vmax.f32 %v344, 0.0
  %v353 = vmax.f32 %v345, 0.0
  %v354 = vmax.f32 %v346, 0.0
  %v355 = vmax.f32 %v347, 0.0
  %v356 = vmax.f32 %v348, 0.0
  %v357 = vmax.f32 %v349, 0.0
  %v358 = vmax.f32 %v350, 0.0
  %v359 = vmax.f32 %v351, 0.0
  %v360 = vmul.f32 %v352, %v228
  %v361 = vmul.f32 %v353, %v229
  %v362 = vmul.f32 %v354, %v230
  %v363 = vmul.f32 %v355, %v231
  %v364 = vmul.f32 %v356, %v228
  %v365 = vmul.f32 %v357, %v229
  %v366 = vmul.f32 %v358, %v230
  %v367 = vmul.f32 %v359, %v231
  %368 = vrot.lane.b32.xlu0 %v360, 127
  %v369 = vpop.permute.xlu0 %368
  %370 = vrot.lane.b32.xlu0 %v364, 127
  %v371 = vpop.permute.xlu0 %370
  %372 = vrot.lane.b32.xlu0 %v361, 127
  %v373 = vpop.permute.xlu0 %372
  %374 = vrot.lane.b32.xlu0 %v365, 127
  %v375 = vpop.permute.xlu0 %374
  %376 = vrot.lane.b32.xlu0 %v362, 127
  %v377 = vpop.permute.xlu0 %376
  %378 = vrot.lane.b32.xlu0 %v366, 127
  %v379 = vpop.permute.xlu0 %378
  %380 = vrot.lane.b32.xlu0 %v363, 127
  %v381 = vpop.permute.xlu0 %380
  %382 = vrot.lane.b32.xlu0 %v367, 127
  %v383 = vpop.permute.xlu0 %382
  %vm384 = vcmp.lt.s32.totalorder %v60, 127
  %v385 = vsel %vm384, %v377, %v381
  %v386 = vsel %vm384, %v379, %v383
  %v387 = vsel %vm384, %v373, %v377
  %v388 = vsel %vm384, %v375, %v379
  %v389 = vsel %vm384, %v369, %v373
  %v390 = vsel %vm384, %v371, %v375
  %v391 = vsel %vm384, %v381, %v369
  %v392 = vsel %vm384, %v383, %v371
  %393 = vrot.lane.b32.xlu0 %v360, 126
  %v394 = vpop.permute.xlu0 %393
  %395 = vrot.lane.b32.xlu0 %v364, 126
  %v396 = vpop.permute.xlu0 %395
  %397 = vrot.lane.b32.xlu0 %v361, 126
  %v398 = vpop.permute.xlu0 %397
  %399 = vrot.lane.b32.xlu0 %v365, 126
  %v400 = vpop.permute.xlu0 %399
  %401 = vrot.lane.b32.xlu0 %v362, 126
  %v402 = vpop.permute.xlu0 %401
  %403 = vrot.lane.b32.xlu0 %v366, 126
  %v404 = vpop.permute.xlu0 %403
  %405 = vrot.lane.b32.xlu0 %v363, 126
  %v406 = vpop.permute.xlu0 %405
  %407 = vrot.lane.b32.xlu0 %v367, 126
  %v408 = vpop.permute.xlu0 %407
  %vm409 = vcmp.lt.s32.totalorder %v60, 126
  %v410 = vsel %vm409, %v402, %v406
  %v411 = vsel %vm409, %v404, %v408
  %v412 = vsel %vm409, %v398, %v402
  %v413 = vsel %vm409, %v400, %v404
  %v414 = vsel %vm409, %v394, %v398
  %v415 = vsel %vm409, %v396, %v400
  %v416 = vsel %vm409, %v406, %v394
  %v417 = vsel %vm409, %v408, %v396
  %418 = vrot.lane.b32.xlu0 %v360, 125
  %v419 = vpop.permute.xlu0 %418
  %420 = vrot.lane.b32.xlu0 %v364, 125
  %v421 = vpop.permute.xlu0 %420
  %422 = vrot.lane.b32.xlu0 %v361, 125
  %v423 = vpop.permute.xlu0 %422
  %424 = vrot.lane.b32.xlu0 %v365, 125
  %v425 = vpop.permute.xlu0 %424
  %426 = vrot.lane.b32.xlu0 %v362, 125
  %v427 = vpop.permute.xlu0 %426
  %428 = vrot.lane.b32.xlu0 %v366, 125
  %v429 = vpop.permute.xlu0 %428
  %430 = vrot.lane.b32.xlu0 %v363, 125
  %v431 = vpop.permute.xlu0 %430
  %432 = vrot.lane.b32.xlu0 %v367, 125
  %v433 = vpop.permute.xlu0 %432
  %vm434 = vcmp.lt.s32.totalorder %v60, 125
  %v435 = vsel %vm434, %v427, %v431
  %v436 = vsel %vm434, %v429, %v433
  %v437 = vsel %vm434, %v423, %v427
  %v438 = vsel %vm434, %v425, %v429
  %v439 = vsel %vm434, %v419, %v423
  %v440 = vsel %vm434, %v421, %v425
  %v441 = vsel %vm434, %v431, %v419
  %v442 = vsel %vm434, %v433, %v421
  %443 = vrot.lane.b32.xlu0 %v360, 112
  %v444 = vpop.permute.xlu0 %443
  %445 = vrot.lane.b32.xlu0 %v364, 112
  %v446 = vpop.permute.xlu0 %445
  %447 = vrot.lane.b32.xlu0 %v389, 112
  %v448 = vpop.permute.xlu0 %447
  %449 = vrot.lane.b32.xlu0 %v390, 112
  %v450 = vpop.permute.xlu0 %449
  %451 = vrot.lane.b32.xlu0 %v414, 112
  %v452 = vpop.permute.xlu0 %451
  %453 = vrot.lane.b32.xlu0 %v415, 112
  %v454 = vpop.permute.xlu0 %453
  %455 = vrot.lane.b32.xlu0 %v439, 112
  %v456 = vpop.permute.xlu0 %455
  %457 = vrot.lane.b32.xlu0 %v440, 112
  %v458 = vpop.permute.xlu0 %457
  %459 = vrot.lane.b32.xlu0 %v361, 112
  %v460 = vpop.permute.xlu0 %459
  %461 = vrot.lane.b32.xlu0 %v365, 112
  %v462 = vpop.permute.xlu0 %461
  %463 = vrot.lane.b32.xlu0 %v387, 112
  %v464 = vpop.permute.xlu0 %463
  %465 = vrot.lane.b32.xlu0 %v388, 112
  %v466 = vpop.permute.xlu0 %465
  %467 = vrot.lane.b32.xlu0 %v412, 112
  %v468 = vpop.permute.xlu0 %467
  %469 = vrot.lane.b32.xlu0 %v413, 112
  %v470 = vpop.permute.xlu0 %469
  %471 = vrot.lane.b32.xlu0 %v437, 112
  %v472 = vpop.permute.xlu0 %471
  %473 = vrot.lane.b32.xlu0 %v438, 112
  %v474 = vpop.permute.xlu0 %473
  %475 = vrot.lane.b32.xlu0 %v362, 112
  %v476 = vpop.permute.xlu0 %475
  %477 = vrot.lane.b32.xlu0 %v366, 112
  %v478 = vpop.permute.xlu0 %477
  %479 = vrot.lane.b32.xlu0 %v385, 112
  %v480 = vpop.permute.xlu0 %479
  %481 = vrot.lane.b32.xlu0 %v386, 112
  %v482 = vpop.permute.xlu0 %481
  %483 = vrot.lane.b32.xlu0 %v410, 112
  %v484 = vpop.permute.xlu0 %483
  %485 = vrot.lane.b32.xlu0 %v411, 112
  %v486 = vpop.permute.xlu0 %485
  %487 = vrot.lane.b32.xlu0 %v435, 112
  %v488 = vpop.permute.xlu0 %487
  %489 = vrot.lane.b32.xlu0 %v436, 112
  %v490 = vpop.permute.xlu0 %489
  %491 = vrot.lane.b32.xlu0 %v363, 112
  %v492 = vpop.permute.xlu0 %491
  %493 = vrot.lane.b32.xlu0 %v367, 112
  %v494 = vpop.permute.xlu0 %493
  %495 = vrot.lane.b32.xlu0 %v391, 112
  %v496 = vpop.permute.xlu0 %495
  %497 = vrot.lane.b32.xlu0 %v392, 112
  %v498 = vpop.permute.xlu0 %497
  %499 = vrot.lane.b32.xlu0 %v416, 112
  %v500 = vpop.permute.xlu0 %499
  %501 = vrot.lane.b32.xlu0 %v417, 112
  %v502 = vpop.permute.xlu0 %501
  %503 = vrot.lane.b32.xlu0 %v441, 112
  %v504 = vpop.permute.xlu0 %503
  %505 = vrot.lane.b32.xlu0 %v442, 112
  %v506 = vpop.permute.xlu0 %505
  %v507 = vsel %vm61, %v476, %v492
  %v508 = vsel %vm61, %v478, %v494
  %v509 = vsel %vm61, %v480, %v496
  %v510 = vsel %vm61, %v482, %v498
  %v511 = vsel %vm61, %v484, %v500
  %v512 = vsel %vm61, %v486, %v502
  %v513 = vsel %vm61, %v488, %v504
  %v514 = vsel %vm61, %v490, %v506
  %v515 = vsel %vm61, %v460, %v476
  %v516 = vsel %vm61, %v462, %v478
  %v517 = vsel %vm61, %v464, %v480
  %v518 = vsel %vm61, %v466, %v482
  %v519 = vsel %vm61, %v468, %v484
  %v520 = vsel %vm61, %v470, %v486
  %v521 = vsel %vm61, %v472, %v488
  %v522 = vsel %vm61, %v474, %v490
  %v523 = vsel %vm61, %v444, %v460
  %v524 = vsel %vm61, %v446, %v462
  %v525 = vsel %vm61, %v448, %v464
  %v526 = vsel %vm61, %v450, %v466
  %v527 = vsel %vm61, %v452, %v468
  %v528 = vsel %vm61, %v454, %v470
  %v529 = vsel %vm61, %v456, %v472
  %v530 = vsel %vm61, %v458, %v474
  %v531 = vsel %vm61, %v492, %v444
  %v532 = vsel %vm61, %v494, %v446
  %v533 = vsel %vm61, %v496, %v448
  %v534 = vsel %vm61, %v498, %v450
  %v535 = vsel %vm61, %v500, %v452
  %v536 = vsel %vm61, %v502, %v454
  %v537 = vsel %vm61, %v504, %v456
  %v538 = vsel %vm61, %v506, %v458
  %539 = vrot.lane.b32.xlu0 %v360, 96
  %v540 = vpop.permute.xlu0 %539
  %541 = vrot.lane.b32.xlu0 %v364, 96
  %v542 = vpop.permute.xlu0 %541
  %543 = vrot.lane.b32.xlu0 %v389, 96
  %v544 = vpop.permute.xlu0 %543
  %545 = vrot.lane.b32.xlu0 %v390, 96
  %v546 = vpop.permute.xlu0 %545
  %547 = vrot.lane.b32.xlu0 %v414, 96
  %v548 = vpop.permute.xlu0 %547
  %549 = vrot.lane.b32.xlu0 %v415, 96
  %v550 = vpop.permute.xlu0 %549
  %551 = vrot.lane.b32.xlu0 %v439, 96
  %v552 = vpop.permute.xlu0 %551
  %553 = vrot.lane.b32.xlu0 %v440, 96
  %v554 = vpop.permute.xlu0 %553
  %555 = vrot.lane.b32.xlu0 %v361, 96
  %v556 = vpop.permute.xlu0 %555
  %557 = vrot.lane.b32.xlu0 %v365, 96
  %v558 = vpop.permute.xlu0 %557
  %559 = vrot.lane.b32.xlu0 %v387, 96
  %v560 = vpop.permute.xlu0 %559
  %561 = vrot.lane.b32.xlu0 %v388, 96
  %v562 = vpop.permute.xlu0 %561
  %563 = vrot.lane.b32.xlu0 %v412, 96
  %v564 = vpop.permute.xlu0 %563
  %565 = vrot.lane.b32.xlu0 %v413, 96
  %v566 = vpop.permute.xlu0 %565
  %567 = vrot.lane.b32.xlu0 %v437, 96
  %v568 = vpop.permute.xlu0 %567
  %569 = vrot.lane.b32.xlu0 %v438, 96
  %v570 = vpop.permute.xlu0 %569
  %571 = vrot.lane.b32.xlu0 %v362, 96
  %v572 = vpop.permute.xlu0 %571
  %573 = vrot.lane.b32.xlu0 %v366, 96
  %v574 = vpop.permute.xlu0 %573
  %575 = vrot.lane.b32.xlu0 %v385, 96
  %v576 = vpop.permute.xlu0 %575
  %577 = vrot.lane.b32.xlu0 %v386, 96
  %v578 = vpop.permute.xlu0 %577
  %579 = vrot.lane.b32.xlu0 %v410, 96
  %v580 = vpop.permute.xlu0 %579
  %581 = vrot.lane.b32.xlu0 %v411, 96
  %v582 = vpop.permute.xlu0 %581
  %583 = vrot.lane.b32.xlu0 %v435, 96
  %v584 = vpop.permute.xlu0 %583
  %585 = vrot.lane.b32.xlu0 %v436, 96
  %v586 = vpop.permute.xlu0 %585
  %587 = vrot.lane.b32.xlu0 %v363, 96
  %v588 = vpop.permute.xlu0 %587
  %589 = vrot.lane.b32.xlu0 %v367, 96
  %v590 = vpop.permute.xlu0 %589
  %591 = vrot.lane.b32.xlu0 %v391, 96
  %v592 = vpop.permute.xlu0 %591
  %593 = vrot.lane.b32.xlu0 %v392, 96
  %v594 = vpop.permute.xlu0 %593
  %595 = vrot.lane.b32.xlu0 %v416, 96
  %v596 = vpop.permute.xlu0 %595
  %597 = vrot.lane.b32.xlu0 %v417, 96
  %v598 = vpop.permute.xlu0 %597
  %599 = vrot.lane.b32.xlu0 %v441, 96
  %v600 = vpop.permute.xlu0 %599
  %601 = vrot.lane.b32.xlu0 %v442, 96
  %v602 = vpop.permute.xlu0 %601
  %v603 = vsel %vm74, %v572, %v588
  %v604 = vsel %vm74, %v574, %v590
  %v605 = vsel %vm74, %v576, %v592
  %v606 = vsel %vm74, %v578, %v594
  %v607 = vsel %vm74, %v580, %v596
  %v608 = vsel %vm74, %v582, %v598
  %v609 = vsel %vm74, %v584, %v600
  %v610 = vsel %vm74, %v586, %v602
  %v611 = vsel %vm74, %v556, %v572
  %v612 = vsel %vm74, %v558, %v574
  %v613 = vsel %vm74, %v560, %v576
  %v614 = vsel %vm74, %v562, %v578
  %v615 = vsel %vm74, %v564, %v580
  %v616 = vsel %vm74, %v566, %v582
  %v617 = vsel %vm74, %v568, %v584
  %v618 = vsel %vm74, %v570, %v586
  %v619 = vsel %vm74, %v540, %v556
  %v620 = vsel %vm74, %v542, %v558
  %v621 = vsel %vm74, %v544, %v560
  %v622 = vsel %vm74, %v546, %v562
  %v623 = vsel %vm74, %v548, %v564
  %v624 = vsel %vm74, %v550, %v566
  %v625 = vsel %vm74, %v552, %v568
  %v626 = vsel %vm74, %v554, %v570
  %v627 = vsel %vm74, %v588, %v540
  %v628 = vsel %vm74, %v590, %v542
  %v629 = vsel %vm74, %v592, %v544
  %v630 = vsel %vm74, %v594, %v546
  %v631 = vsel %vm74, %v596, %v548
  %v632 = vsel %vm74, %v598, %v550
  %v633 = vsel %vm74, %v600, %v552
  %v634 = vsel %vm74, %v602, %v554
  %635 = vrot.lane.b32.xlu0 %v360, 80
  %v636 = vpop.permute.xlu0 %635
  %637 = vrot.lane.b32.xlu0 %v364, 80
  %v638 = vpop.permute.xlu0 %637
  %639 = vrot.lane.b32.xlu0 %v389, 80
  %v640 = vpop.permute.xlu0 %639
  %641 = vrot.lane.b32.xlu0 %v390, 80
  %v642 = vpop.permute.xlu0 %641
  %643 = vrot.lane.b32.xlu0 %v414, 80
  %v644 = vpop.permute.xlu0 %643
  %645 = vrot.lane.b32.xlu0 %v415, 80
  %v646 = vpop.permute.xlu0 %645
  %647 = vrot.lane.b32.xlu0 %v439, 80
  %v648 = vpop.permute.xlu0 %647
  %649 = vrot.lane.b32.xlu0 %v440, 80
  %v650 = vpop.permute.xlu0 %649
  %651 = vrot.lane.b32.xlu0 %v361, 80
  %v652 = vpop.permute.xlu0 %651
  %653 = vrot.lane.b32.xlu0 %v365, 80
  %v654 = vpop.permute.xlu0 %653
  %655 = vrot.lane.b32.xlu0 %v387, 80
  %v656 = vpop.permute.xlu0 %655
  %657 = vrot.lane.b32.xlu0 %v388, 80
  %v658 = vpop.permute.xlu0 %657
  %659 = vrot.lane.b32.xlu0 %v412, 80
  %v660 = vpop.permute.xlu0 %659
  %661 = vrot.lane.b32.xlu0 %v413, 80
  %v662 = vpop.permute.xlu0 %661
  %663 = vrot.lane.b32.xlu0 %v437, 80
  %v664 = vpop.permute.xlu0 %663
  %665 = vrot.lane.b32.xlu0 %v438, 80
  %v666 = vpop.permute.xlu0 %665
  %667 = vrot.lane.b32.xlu0 %v362, 80
  %v668 = vpop.permute.xlu0 %667
  %669 = vrot.lane.b32.xlu0 %v366, 80
  %v670 = vpop.permute.xlu0 %669
  %671 = vrot.lane.b32.xlu0 %v385, 80
  %v672 = vpop.permute.xlu0 %671
  %673 = vrot.lane.b32.xlu0 %v386, 80
  %v674 = vpop.permute.xlu0 %673
  %675 = vrot.lane.b32.xlu0 %v410, 80
  %v676 = vpop.permute.xlu0 %675
  %677 = vrot.lane.b32.xlu0 %v411, 80
  %v678 = vpop.permute.xlu0 %677
  %679 = vrot.lane.b32.xlu0 %v435, 80
  %v680 = vpop.permute.xlu0 %679
  %681 = vrot.lane.b32.xlu0 %v436, 80
  %v682 = vpop.permute.xlu0 %681
  %683 = vrot.lane.b32.xlu0 %v363, 80
  %v684 = vpop.permute.xlu0 %683
  %685 = vrot.lane.b32.xlu0 %v367, 80
  %v686 = vpop.permute.xlu0 %685
  %687 = vrot.lane.b32.xlu0 %v391, 80
  %v688 = vpop.permute.xlu0 %687
  %689 = vrot.lane.b32.xlu0 %v392, 80
  %v690 = vpop.permute.xlu0 %689
  %691 = vrot.lane.b32.xlu0 %v416, 80
  %v692 = vpop.permute.xlu0 %691
  %693 = vrot.lane.b32.xlu0 %v417, 80
  %v694 = vpop.permute.xlu0 %693
  %695 = vrot.lane.b32.xlu0 %v441, 80
  %v696 = vpop.permute.xlu0 %695
  %697 = vrot.lane.b32.xlu0 %v442, 80
  %v698 = vpop.permute.xlu0 %697
  %v699 = vsel %vm87, %v668, %v684
  %v700 = vsel %vm87, %v670, %v686
  %v701 = vsel %vm87, %v672, %v688
  %v702 = vsel %vm87, %v674, %v690
  %v703 = vsel %vm87, %v676, %v692
  %v704 = vsel %vm87, %v678, %v694
  %v705 = vsel %vm87, %v680, %v696
  %v706 = vsel %vm87, %v682, %v698
  %v707 = vsel %vm87, %v652, %v668
  %v708 = vsel %vm87, %v654, %v670
  %v709 = vsel %vm87, %v656, %v672
  %v710 = vsel %vm87, %v658, %v674
  %v711 = vsel %vm87, %v660, %v676
  %v712 = vsel %vm87, %v662, %v678
  %v713 = vsel %vm87, %v664, %v680
  %v714 = vsel %vm87, %v666, %v682
  %v715 = vsel %vm87, %v636, %v652
  %v716 = vsel %vm87, %v638, %v654
  %v717 = vsel %vm87, %v640, %v656
  %v718 = vsel %vm87, %v642, %v658
  %v719 = vsel %vm87, %v644, %v660
  %v720 = vsel %vm87, %v646, %v662
  %v721 = vsel %vm87, %v648, %v664
  %v722 = vsel %vm87, %v650, %v666
  %v723 = vsel %vm87, %v684, %v636
  %v724 = vsel %vm87, %v686, %v638
  %v725 = vsel %vm87, %v688, %v640
  %v726 = vsel %vm87, %v690, %v642
  %v727 = vsel %vm87, %v692, %v644
  %v728 = vsel %vm87, %v694, %v646
  %v729 = vsel %vm87, %v696, %v648
  %v730 = vsel %vm87, %v698, %v650
  %v731 = vld [vmem:[%s2] sm:$0xff]
  %v732 = vld [vmem:[%s2 + $0x8] sm:$0xff]
  %v733 = vld [vmem:[%s2 + $0x10] sm:$0xff]
  %v734 = vld [vmem:[%s2 + $0x18] sm:$0xff]
  %v735 = vpack.c.bf16 %v364, %v360
  %v736 = vpack.c.bf16 %v365, %v361
  %v737 = vpack.c.bf16 %v366, %v362
  %v738 = vpack.c.bf16 %v367, %v363
  %v739 = vpack.c.bf16 %v390, %v389
  %v740 = vpack.c.bf16 %v388, %v387
  %v741 = vpack.c.bf16 %v386, %v385
  %v742 = vpack.c.bf16 %v392, %v391
  %v743 = vpack.c.bf16 %v415, %v414
  %v744 = vpack.c.bf16 %v413, %v412
  %v745 = vpack.c.bf16 %v411, %v410
  %v746 = vpack.c.bf16 %v417, %v416
  %v747 = vpack.c.bf16 %v440, %v439
  %v748 = vpack.c.bf16 %v438, %v437
  %v749 = vpack.c.bf16 %v436, %v435
  %v750 = vpack.c.bf16 %v442, %v441
  %v751 = vpack.c.bf16 %v524, %v523
  %v752 = vpack.c.bf16 %v516, %v515
  %v753 = vpack.c.bf16 %v508, %v507
  %v754 = vpack.c.bf16 %v532, %v531
  %v755 = vpack.c.bf16 %v526, %v525
  %v756 = vpack.c.bf16 %v518, %v517
  %v757 = vpack.c.bf16 %v510, %v509
  %v758 = vpack.c.bf16 %v534, %v533
  %v759 = vpack.c.bf16 %v528, %v527
  %v760 = vpack.c.bf16 %v520, %v519
  %v761 = vpack.c.bf16 %v512, %v511
  %v762 = vpack.c.bf16 %v536, %v535
  %v763 = vpack.c.bf16 %v530, %v529
  %v764 = vpack.c.bf16 %v522, %v521
  %v765 = vpack.c.bf16 %v514, %v513
  %v766 = vpack.c.bf16 %v538, %v537
  %v767 = vpack.c.bf16 %v620, %v619
  %v768 = vpack.c.bf16 %v612, %v611
  %v769 = vpack.c.bf16 %v604, %v603
  %v770 = vpack.c.bf16 %v628, %v627
  %v771 = vpack.c.bf16 %v622, %v621
  %v772 = vpack.c.bf16 %v614, %v613
  %v773 = vpack.c.bf16 %v606, %v605
  %v774 = vpack.c.bf16 %v630, %v629
  %v775 = vpack.c.bf16 %v624, %v623
  %v776 = vpack.c.bf16 %v616, %v615
  %v777 = vpack.c.bf16 %v608, %v607
  %v778 = vpack.c.bf16 %v632, %v631
  %v779 = vpack.c.bf16 %v626, %v625
  %v780 = vpack.c.bf16 %v618, %v617
  %v781 = vpack.c.bf16 %v610, %v609
  %v782 = vpack.c.bf16 %v634, %v633
  %v783 = vpack.c.bf16 %v716, %v715
  %v784 = vpack.c.bf16 %v708, %v707
  %v785 = vpack.c.bf16 %v700, %v699
  %v786 = vpack.c.bf16 %v724, %v723
  %v787 = vpack.c.bf16 %v718, %v717
  %v788 = vpack.c.bf16 %v710, %v709
  %v789 = vpack.c.bf16 %v702, %v701
  %v790 = vpack.c.bf16 %v726, %v725
  %v791 = vpack.c.bf16 %v720, %v719
  %v792 = vpack.c.bf16 %v712, %v711
  %v793 = vpack.c.bf16 %v704, %v703
  %v794 = vpack.c.bf16 %v728, %v727
  %v795 = vpack.c.bf16 %v722, %v721
  %v796 = vpack.c.bf16 %v714, %v713
  %v797 = vpack.c.bf16 %v706, %v705
  %v798 = vpack.c.bf16 %v730, %v729
  %v803 = vunpack.c.l.b16 %v731
  %v804 = vunpack.c.h.b16 %v731
  %v805 = vunpack.c.l.b16 %v732
  %v806 = vunpack.c.h.b16 %v732
  %v807 = vunpack.c.l.b16 %v733
  %v808 = vunpack.c.h.b16 %v733
  %v809 = vunpack.c.l.b16 %v734
  %v810 = vunpack.c.h.b16 %v734
  %v811 = vpack.c.b16 %v805, %v803
  %v812 = vpack.c.b16 %v806, %v804
  %v813 = vpack.c.b16 %v809, %v807
  %v814 = vpack.c.b16 %v810, %v808
  %819 = vmatpush.bf16.msra.mxu0 %v763
  %820 = vmatpush.bf16.msra.mxu0 %v759
  %821 = vmatpush.bf16.msra.mxu0 %v755
  %822 = vmatpush.bf16.msra.mxu0 %v751
  %823 = vmatpush.bf16.msra.mxu0 %v747
  %824 = vmatpush.bf16.msra.mxu0 %v743
  %825 = vmatpush.bf16.msra.mxu0 %v739
  %826 = vmatpush.bf16.msra.mxu0 %v735
  %827 = vmatmul.bf16.gmra.mxu0 %v811
  %v828 = vpop.f32.mrf.mxu0
  %v829 = vadd.f32 0.0, %v828
  %v830 = vpop.f32.mrf.mxu0
  %v831 = vadd.f32 0.0, %v830
  %832 = vmatmul.bf16.gmra.mxu0 %v813
  %v833 = vpop.f32.mrf.mxu0
  %v834 = vadd.f32 0.0, %v833
  %v835 = vpop.f32.mrf.mxu0
  %v836 = vadd.f32 0.0, %v835
  %837 = vdwg.mxu0
  %838 = vmatpush.bf16.msra.mxu0 %v795
  %839 = vmatpush.bf16.msra.mxu0 %v791
  %840 = vmatpush.bf16.msra.mxu0 %v787
  %841 = vmatpush.bf16.msra.mxu0 %v783
  %842 = vmatpush.bf16.msra.mxu0 %v779
  %843 = vmatpush.bf16.msra.mxu0 %v775
  %844 = vmatpush.bf16.msra.mxu0 %v771
  %845 = vmatpush.bf16.msra.mxu0 %v767
  %846 = vmatmul.bf16.gmra.mxu0 %v812
  %v847 = vpop.f32.mrf.mxu0
  %v848 = vadd.f32 %v829, %v847
  %v849 = vpop.f32.mrf.mxu0
  %v850 = vadd.f32 %v831, %v849
  %851 = vmatmul.bf16.gmra.mxu0 %v814
  %v852 = vpop.f32.mrf.mxu0
  %v853 = vadd.f32 %v834, %v852
  %v854 = vpop.f32.mrf.mxu0
  %v855 = vadd.f32 %v836, %v854
  %856 = vdwg.mxu0
  %857 = vmatpush.bf16.msra.mxu0 %v764
  %858 = vmatpush.bf16.msra.mxu0 %v760
  %859 = vmatpush.bf16.msra.mxu0 %v756
  %860 = vmatpush.bf16.msra.mxu0 %v752
  %861 = vmatpush.bf16.msra.mxu0 %v748
  %862 = vmatpush.bf16.msra.mxu0 %v744
  %863 = vmatpush.bf16.msra.mxu0 %v740
  %864 = vmatpush.bf16.msra.mxu0 %v736
  %865 = vmatmul.bf16.gmra.mxu0 %v811
  %v866 = vpop.f32.mrf.mxu0
  %v867 = vadd.f32 0.0, %v866
  %v868 = vpop.f32.mrf.mxu0
  %v869 = vadd.f32 0.0, %v868
  %870 = vmatmul.bf16.gmra.mxu0 %v813
  %v871 = vpop.f32.mrf.mxu0
  %v872 = vadd.f32 0.0, %v871
  %v873 = vpop.f32.mrf.mxu0
  %v874 = vadd.f32 0.0, %v873
  %875 = vdwg.mxu0
  %876 = vmatpush.bf16.msra.mxu0 %v796
  %877 = vmatpush.bf16.msra.mxu0 %v792
  %878 = vmatpush.bf16.msra.mxu0 %v788
  %879 = vmatpush.bf16.msra.mxu0 %v784
  %880 = vmatpush.bf16.msra.mxu0 %v780
  %881 = vmatpush.bf16.msra.mxu0 %v776
  %882 = vmatpush.bf16.msra.mxu0 %v772
  %883 = vmatpush.bf16.msra.mxu0 %v768
  %884 = vmatmul.bf16.gmra.mxu0 %v812
  %v885 = vpop.f32.mrf.mxu0
  %v886 = vadd.f32 %v867, %v885
  %v887 = vpop.f32.mrf.mxu0
  %v888 = vadd.f32 %v869, %v887
  %889 = vmatmul.bf16.gmra.mxu0 %v814
  %v890 = vpop.f32.mrf.mxu0
  %v891 = vadd.f32 %v872, %v890
  %v892 = vpop.f32.mrf.mxu0
  %v893 = vadd.f32 %v874, %v892
  %894 = vdwg.mxu0
  %895 = vmatpush.bf16.msra.mxu0 %v765
  %896 = vmatpush.bf16.msra.mxu0 %v761
  %897 = vmatpush.bf16.msra.mxu0 %v757
  %898 = vmatpush.bf16.msra.mxu0 %v753
  %899 = vmatpush.bf16.msra.mxu0 %v749
  %900 = vmatpush.bf16.msra.mxu0 %v745
  %901 = vmatpush.bf16.msra.mxu0 %v741
  %902 = vmatpush.bf16.msra.mxu0 %v737
  %903 = vmatmul.bf16.gmra.mxu0 %v811
  %v904 = vpop.f32.mrf.mxu0
  %v905 = vadd.f32 0.0, %v904
  %v906 = vpop.f32.mrf.mxu0
  %v907 = vadd.f32 0.0, %v906
  %908 = vmatmul.bf16.gmra.mxu0 %v813
  %v909 = vpop.f32.mrf.mxu0
  %v910 = vadd.f32 0.0, %v909
  %v911 = vpop.f32.mrf.mxu0
  %v912 = vadd.f32 0.0, %v911
  %913 = vdwg.mxu0
  %914 = vmatpush.bf16.msra.mxu0 %v797
  %915 = vmatpush.bf16.msra.mxu0 %v793
  %916 = vmatpush.bf16.msra.mxu0 %v789
  %917 = vmatpush.bf16.msra.mxu0 %v785
  %918 = vmatpush.bf16.msra.mxu0 %v781
  %919 = vmatpush.bf16.msra.mxu0 %v777
  %920 = vmatpush.bf16.msra.mxu0 %v773
  %921 = vmatpush.bf16.msra.mxu0 %v769
  %922 = vmatmul.bf16.gmra.mxu0 %v812
  %v923 = vpop.f32.mrf.mxu0
  %v924 = vadd.f32 %v905, %v923
  %v925 = vpop.f32.mrf.mxu0
  %v926 = vadd.f32 %v907, %v925
  %927 = vmatmul.bf16.gmra.mxu0 %v814
  %v928 = vpop.f32.mrf.mxu0
  %v929 = vadd.f32 %v910, %v928
  %v930 = vpop.f32.mrf.mxu0
  %v931 = vadd.f32 %v912, %v930
  %932 = vdwg.mxu0
  %933 = vmatpush.bf16.msra.mxu0 %v766
  %934 = vmatpush.bf16.msra.mxu0 %v762
  %935 = vmatpush.bf16.msra.mxu0 %v758
  %936 = vmatpush.bf16.msra.mxu0 %v754
  %937 = vmatpush.bf16.msra.mxu0 %v750
  %938 = vmatpush.bf16.msra.mxu0 %v746
  %939 = vmatpush.bf16.msra.mxu0 %v742
  %940 = vmatpush.bf16.msra.mxu0 %v738
  %941 = vmatmul.bf16.gmra.mxu0 %v811
  %v942 = vpop.f32.mrf.mxu0
  %v943 = vadd.f32 0.0, %v942
  %v944 = vpop.f32.mrf.mxu0
  %v945 = vadd.f32 0.0, %v944
  %946 = vmatmul.bf16.gmra.mxu0 %v813
  %v947 = vpop.f32.mrf.mxu0
  %v948 = vadd.f32 0.0, %v947
  %v949 = vpop.f32.mrf.mxu0
  %v950 = vadd.f32 0.0, %v949
  %951 = vdwg.mxu0
  %952 = vmatpush.bf16.msra.mxu0 %v798
  %953 = vmatpush.bf16.msra.mxu0 %v794
  %954 = vmatpush.bf16.msra.mxu0 %v790
  %955 = vmatpush.bf16.msra.mxu0 %v786
  %956 = vmatpush.bf16.msra.mxu0 %v782
  %957 = vmatpush.bf16.msra.mxu0 %v778
  %958 = vmatpush.bf16.msra.mxu0 %v774
  %959 = vmatpush.bf16.msra.mxu0 %v770
  %960 = vmatmul.bf16.gmra.mxu0 %v812
  %v961 = vpop.f32.mrf.mxu0
  %v962 = vadd.f32 %v943, %v961
  %v963 = vpop.f32.mrf.mxu0
  %v964 = vadd.f32 %v945, %v963
  %965 = vmatmul.bf16.gmra.mxu0 %v814
  %v966 = vpop.f32.mrf.mxu0
  %v967 = vadd.f32 %v948, %v966
  %v968 = vpop.f32.mrf.mxu0
  %v969 = vadd.f32 %v950, %v968
  %970 = vdwg.mxu0
  %v972 = vperm.slane %v40, 0
  %v973 = vperm.slane %v40, 1
  %v974 = vperm.slane %v40, 2
  %v975 = vperm.slane %v40, 3
  %v980 = vmul.f32 %v848, %v972
  %v981 = vmul.f32 %v886, %v973
  %v982 = vmul.f32 %v924, %v974
  %v983 = vmul.f32 %v962, %v975
  %v984 = vmul.f32 %v850, %v972
  %v985 = vmul.f32 %v888, %v973
  %v986 = vmul.f32 %v926, %v974
  %v987 = vmul.f32 %v964, %v975
  %v988 = vmul.f32 %v853, %v972
  %v989 = vmul.f32 %v891, %v973
  %v990 = vmul.f32 %v929, %v974
  %v991 = vmul.f32 %v967, %v975
  %v992 = vmul.f32 %v855, %v972
  %v993 = vmul.f32 %v893, %v973
  %v994 = vmul.f32 %v931, %v974
  %v995 = vmul.f32 %v969, %v975
  %v996 = vadd.f32 %v980, %v981
  %v997 = vadd.f32 %v996, %v982
  %v998 = vadd.f32 %v997, %v983
  %999 = vadd.xlane.f32.xlu0 %v998
  %v1000 = vpop.xlane.xlu0 %999
  %v1001 = vadd.f32 %v984, %v985
  %v1002 = vadd.f32 %v1001, %v986
  %v1003 = vadd.f32 %v1002, %v987
  %1004 = vadd.xlane.f32.xlu0 %v1003
  %v1005 = vpop.xlane.xlu0 %1004
  %v1006 = vadd.f32 %v988, %v989
  %v1007 = vadd.f32 %v1006, %v990
  %v1008 = vadd.f32 %v1007, %v991
  %1009 = vadd.xlane.f32.xlu0 %v1008
  %v1010 = vpop.xlane.xlu0 %1009
  %v1011 = vadd.f32 %v992, %v993
  %v1012 = vadd.f32 %v1011, %v994
  %v1013 = vadd.f32 %v1012, %v995
  %1014 = vadd.xlane.f32.xlu0 %v1013
  %v1015 = vpop.xlane.xlu0 %1014
  %v1016 = vmul.f32 %v980, %v980
  %v1017 = vmul.f32 %v981, %v981
  %v1018 = vmul.f32 %v982, %v982
  %v1019 = vmul.f32 %v983, %v983
  %v1020 = vmul.f32 %v984, %v984
  %v1021 = vmul.f32 %v985, %v985
  %v1022 = vmul.f32 %v986, %v986
  %v1023 = vmul.f32 %v987, %v987
  %v1024 = vmul.f32 %v988, %v988
  %v1025 = vmul.f32 %v989, %v989
  %v1026 = vmul.f32 %v990, %v990
  %v1027 = vmul.f32 %v991, %v991
  %v1028 = vmul.f32 %v992, %v992
  %v1029 = vmul.f32 %v993, %v993
  %v1030 = vmul.f32 %v994, %v994
  %v1031 = vmul.f32 %v995, %v995
  %v1032 = vadd.f32 %v1016, %v1017
  %v1033 = vadd.f32 %v1032, %v1018
  %v1034 = vadd.f32 %v1033, %v1019
  %1035 = vadd.xlane.f32.xlu0 %v1034
  %v1036 = vpop.xlane.xlu0 %1035
  %v1037 = vadd.f32 %v1020, %v1021
  %v1038 = vadd.f32 %v1037, %v1022
  %v1039 = vadd.f32 %v1038, %v1023
  %1040 = vadd.xlane.f32.xlu0 %v1039
  %v1041 = vpop.xlane.xlu0 %1040
  %v1042 = vadd.f32 %v1024, %v1025
  %v1043 = vadd.f32 %v1042, %v1026
  %v1044 = vadd.f32 %v1043, %v1027
  %1045 = vadd.xlane.f32.xlu0 %v1044
  %v1046 = vpop.xlane.xlu0 %1045
  %v1047 = vadd.f32 %v1028, %v1029
  %v1048 = vadd.f32 %v1047, %v1030
  %v1049 = vadd.f32 %v1048, %v1031
  %1050 = vadd.xlane.f32.xlu0 %v1049
  %v1051 = vpop.xlane.xlu0 %1050
  %v1052 = vmul.f32 %v1000, 0.013888889
  %v1053 = vmul.f32 %v1005, 0.013888889
  %v1054 = vmul.f32 %v1010, 0.013888889
  %v1055 = vmul.f32 %v1015, 0.013888889
  %v1056 = vmul.f32 %v1036, 0.013888889
  %v1057 = vmul.f32 %v1041, 0.013888889
  %v1058 = vmul.f32 %v1046, 0.013888889
  %v1059 = vmul.f32 %v1051, 0.013888889
  %v1060 = vmul.f32 %v1052, %v1052
  %v1061 = vmul.f32 %v1053, %v1053
  %v1062 = vmul.f32 %v1054, %v1054
  %v1063 = vmul.f32 %v1055, %v1055
  %v1064 = vsub.f32 %v1056, %v1060
  %v1065 = vsub.f32 %v1057, %v1061
  %v1066 = vsub.f32 %v1058, %v1062
  %v1067 = vsub.f32 %v1059, %v1063
  %v1068 = vadd.f32 %v1064, 1e-05
  %v1069 = vadd.f32 %v1065, 1e-05
  %v1070 = vadd.f32 %v1066, 1e-05
  %v1071 = vadd.f32 %v1067, 1e-05
  %v1072 = vrsqrt.pop %v1068
  %v1073 = vmul.f32 %v1072, %v1068
  %v1074 = vmul.f32 %v1073, %v1072
  %v1075 = vmul.f32 0.5, %v1074
  %v1076 = vsub.f32 1.5, %v1075
  %v1077 = vmul.f32 %v1072, %v1076
  %vm1078 = vweird.f32 %v1068
  %vm1079 = vweird.f32 %v1072
  %vm1080 = vmor %vm1078, %vm1079
  %v1081 = vsel %vm1080, %v1072, %v1077
  %v1082 = vrsqrt.pop %v1069
  %v1083 = vmul.f32 %v1082, %v1069
  %v1084 = vmul.f32 %v1083, %v1082
  %v1085 = vmul.f32 0.5, %v1084
  %v1086 = vsub.f32 1.5, %v1085
  %v1087 = vmul.f32 %v1082, %v1086
  %vm1088 = vweird.f32 %v1069
  %vm1089 = vweird.f32 %v1082
  %vm1090 = vmor %vm1088, %vm1089
  %v1091 = vsel %vm1090, %v1082, %v1087
  %v1092 = vrsqrt.pop %v1070
  %v1093 = vmul.f32 %v1092, %v1070
  %v1094 = vmul.f32 %v1093, %v1092
  %v1095 = vmul.f32 0.5, %v1094
  %v1096 = vsub.f32 1.5, %v1095
  %v1097 = vmul.f32 %v1092, %v1096
  %vm1098 = vweird.f32 %v1070
  %vm1099 = vweird.f32 %v1092
  %vm1100 = vmor %vm1098, %vm1099
  %v1101 = vsel %vm1100, %v1092, %v1097
  %v1102 = vrsqrt.pop %v1071
  %v1103 = vmul.f32 %v1102, %v1071
  %v1104 = vmul.f32 %v1103, %v1102
  %v1105 = vmul.f32 0.5, %v1104
  %v1106 = vsub.f32 1.5, %v1105
  %v1107 = vmul.f32 %v1102, %v1106
  %vm1108 = vweird.f32 %v1071
  %vm1109 = vweird.f32 %v1102
  %vm1110 = vmor %vm1108, %vm1109
  %v1111 = vsel %vm1110, %v1102, %v1107
  %v1112 = vmul.f32 %v43, %v1081
  %v1113 = vmul.f32 %v44, %v1091
  %v1114 = vmul.f32 %v45, %v1101
  %v1115 = vmul.f32 %v46, %v1111
  %v1116 = vmul.f32 %v1052, %v1112
  %v1117 = vmul.f32 %v1053, %v1113
  %v1118 = vmul.f32 %v1054, %v1114
  %v1119 = vmul.f32 %v1055, %v1115
  %1124 = vrot.lane.b32.xlu0 %v1116, 1
  %v1125 = vpop.permute.xlu0 %1124
  %1126 = vrot.lane.b32.xlu0 %v1117, 1
  %v1127 = vpop.permute.xlu0 %1126
  %1128 = vrot.lane.b32.xlu0 %v1118, 1
  %v1129 = vpop.permute.xlu0 %1128
  %1130 = vrot.lane.b32.xlu0 %v1119, 1
  %v1131 = vpop.permute.xlu0 %1130
  %v1136 = vsub.f32 %v43, %v1125
  %v1137 = vsub.f32 %v44, %v1127
  %v1138 = vsub.f32 %v45, %v1129
  %v1139 = vsub.f32 %v46, %v1131
  %1141 = vset.pattern.permute.xlu0 0
  %1142 = vperm.xlu0 %1141, %v1112
  %v1143 = vpop.permute.xlu0 %1142
  %1146 = vset.pattern.permute.xlu0 0
  %1147 = vperm.xlu0 %1146, %v1113
  %v1148 = vpop.permute.xlu0 %1147
  %1151 = vset.pattern.permute.xlu0 0
  %1152 = vperm.xlu0 %1151, %v1114
  %v1153 = vpop.permute.xlu0 %1152
  %1156 = vset.pattern.permute.xlu0 0
  %1157 = vperm.xlu0 %1156, %v1115
  %v1158 = vpop.permute.xlu0 %1157
  %v1160 = vmul.f32 %v980, %v1143
  %v1161 = vmul.f32 %v981, %v1143
  %v1162 = vmul.f32 %v982, %v1143
  %v1163 = vmul.f32 %v983, %v1143
  %v1164 = vmul.f32 %v984, %v1148
  %v1165 = vmul.f32 %v985, %v1148
  %v1166 = vmul.f32 %v986, %v1148
  %v1167 = vmul.f32 %v987, %v1148
  %v1168 = vmul.f32 %v988, %v1153
  %v1169 = vmul.f32 %v989, %v1153
  %v1170 = vmul.f32 %v990, %v1153
  %v1171 = vmul.f32 %v991, %v1153
  %v1172 = vmul.f32 %v992, %v1158
  %v1173 = vmul.f32 %v993, %v1158
  %v1174 = vmul.f32 %v994, %v1158
  %v1175 = vmul.f32 %v995, %v1158
  %1177 = vset.pattern.permute.xlu0 1
  %1178 = vperm.xlu0 %1177, %v1136
  %v1179 = vpop.permute.xlu0 %1178
  %1182 = vset.pattern.permute.xlu0 1
  %1183 = vperm.xlu0 %1182, %v1137
  %v1184 = vpop.permute.xlu0 %1183
  %1187 = vset.pattern.permute.xlu0 1
  %1188 = vperm.xlu0 %1187, %v1138
  %v1189 = vpop.permute.xlu0 %1188
  %1192 = vset.pattern.permute.xlu0 1
  %1193 = vperm.xlu0 %1192, %v1139
  %v1194 = vpop.permute.xlu0 %1193
  %v1196 = vadd.f32 %v1160, %v1179
  %v1197 = vadd.f32 %v1161, %v1179
  %v1198 = vadd.f32 %v1162, %v1179
  %v1199 = vadd.f32 %v1163, %v1179
  %v1200 = vadd.f32 %v1164, %v1184
  %v1201 = vadd.f32 %v1165, %v1184
  %v1202 = vadd.f32 %v1166, %v1184
  %v1203 = vadd.f32 %v1167, %v1184
  %v1204 = vadd.f32 %v1168, %v1189
  %v1205 = vadd.f32 %v1169, %v1189
  %v1206 = vadd.f32 %v1170, %v1189
  %v1207 = vadd.f32 %v1171, %v1189
  %v1208 = vadd.f32 %v1172, %v1194
  %v1209 = vadd.f32 %v1173, %v1194
  %v1210 = vadd.f32 %v1174, %v1194
  %v1211 = vadd.f32 %v1175, %v1194
  %v1212 = vmax.f32 %v1196, 0.0
  %v1213 = vmax.f32 %v1197, 0.0
  %v1214 = vmax.f32 %v1198, 0.0
  %v1215 = vmax.f32 %v1199, 0.0
  %v1216 = vmax.f32 %v1200, 0.0
  %v1217 = vmax.f32 %v1201, 0.0
  %v1218 = vmax.f32 %v1202, 0.0
  %v1219 = vmax.f32 %v1203, 0.0
  %v1220 = vmax.f32 %v1204, 0.0
  %v1221 = vmax.f32 %v1205, 0.0
  %v1222 = vmax.f32 %v1206, 0.0
  %v1223 = vmax.f32 %v1207, 0.0
  %v1224 = vmax.f32 %v1208, 0.0
  %v1225 = vmax.f32 %v1209, 0.0
  %v1226 = vmax.f32 %v1210, 0.0
  %v1227 = vmax.f32 %v1211, 0.0
  %v1228 = vmul.f32 %v1212, %v972
  %v1229 = vmul.f32 %v1213, %v973
  %v1230 = vmul.f32 %v1214, %v974
  %v1231 = vmul.f32 %v1215, %v975
  %v1232 = vmul.f32 %v1216, %v972
  %v1233 = vmul.f32 %v1217, %v973
  %v1234 = vmul.f32 %v1218, %v974
  %v1235 = vmul.f32 %v1219, %v975
  %v1236 = vmul.f32 %v1220, %v972
  %v1237 = vmul.f32 %v1221, %v973
  %v1238 = vmul.f32 %v1222, %v974
  %v1239 = vmul.f32 %v1223, %v975
  %v1240 = vmul.f32 %v1224, %v972
  %v1241 = vmul.f32 %v1225, %v973
  %v1242 = vmul.f32 %v1226, %v974
  %v1243 = vmul.f32 %v1227, %v975
  %v1244 = vld [vmem:[%s7] sm:$0xff]
  %v1245 = vld [vmem:[%s7 + $0x8] sm:$0xff]
  %v1246 = vld [vmem:[%s7 + $0x10] sm:$0xff]
  %v1247 = vld [vmem:[%s7 + $0x18] sm:$0xff]
  %v1248 = vld [vmem:[%s7 + $0x20] sm:$0xff]
  %v1249 = vld [vmem:[%s7 + $0x28] sm:$0xff]
  %v1250 = vld [vmem:[%s7 + $0x30] sm:$0xff]
  %v1251 = vld [vmem:[%s7 + $0x38] sm:$0xff]
  %v1252 = vld [vmem:[%s7 + $0x40] sm:$0xff]
  %v1253 = vld [vmem:[%s7 + $0x48] sm:$0xff]
  %v1254 = vld [vmem:[%s7 + $0x50] sm:$0xff]
  %v1255 = vld [vmem:[%s7 + $0x58] sm:$0xff]
  %v1256 = vld [vmem:[%s7 + $0x60] sm:$0xff]
  %v1257 = vld [vmem:[%s7 + $0x68] sm:$0xff]
  %v1258 = vld [vmem:[%s7 + $0x70] sm:$0xff]
  %v1259 = vld [vmem:[%s7 + $0x78] sm:$0xff]
  %v1260 = vld [vmem:[%s7 + $0x80] sm:$0xff]
  %v1261 = vld [vmem:[%s7 + $0x88] sm:$0xff]
  %v1262 = vld [vmem:[%s7 + $0x90] sm:$0xff]
  %v1263 = vld [vmem:[%s7 + $0x98] sm:$0xff]
  %v1264 = vld [vmem:[%s7 + $0xa0] sm:$0xff]
  %v1265 = vld [vmem:[%s7 + $0xa8] sm:$0xff]
  %v1266 = vld [vmem:[%s7 + $0xb0] sm:$0xff]
  %v1267 = vld [vmem:[%s7 + $0xb8] sm:$0xff]
  %v1268 = vld [vmem:[%s7 + $0xc0] sm:$0xff]
  %v1269 = vld [vmem:[%s7 + $0xc8] sm:$0xff]
  %v1270 = vld [vmem:[%s7 + $0xd0] sm:$0xff]
  %v1271 = vld [vmem:[%s7 + $0xd8] sm:$0xff]
  %v1272 = vld [vmem:[%s7 + $0xe0] sm:$0xff]
  %v1273 = vld [vmem:[%s7 + $0xe8] sm:$0xff]
  %v1274 = vld [vmem:[%s7 + $0xf0] sm:$0xff]
  %v1275 = vld [vmem:[%s7 + $0xf8] sm:$0xff]
  %v1276 = vld [vmem:[%s7 + $0x100] sm:$0xff]
  %v1277 = vld [vmem:[%s7 + $0x108] sm:$0xff]
  %v1278 = vld [vmem:[%s7 + $0x110] sm:$0xff]
  %v1279 = vld [vmem:[%s7 + $0x118] sm:$0xff]
  %v1280 = vld [vmem:[%s7 + $0x120] sm:$0xff]
  %v1281 = vld [vmem:[%s7 + $0x128] sm:$0xff]
  %v1282 = vld [vmem:[%s7 + $0x130] sm:$0xff]
  %v1283 = vld [vmem:[%s7 + $0x138] sm:$0xff]
  %v1284 = vld [vmem:[%s7 + $0x140] sm:$0xff]
  %v1285 = vld [vmem:[%s7 + $0x148] sm:$0xff]
  %v1286 = vld [vmem:[%s7 + $0x150] sm:$0xff]
  %v1287 = vld [vmem:[%s7 + $0x158] sm:$0xff]
  %v1288 = vld [vmem:[%s7 + $0x160] sm:$0xff]
  %v1289 = vld [vmem:[%s7 + $0x168] sm:$0xff]
  %v1290 = vld [vmem:[%s7 + $0x170] sm:$0xff]
  %v1291 = vld [vmem:[%s7 + $0x178] sm:$0xff]
  %v1292 = vld [vmem:[%s7 + $0x180] sm:$0xff]
  %v1293 = vld [vmem:[%s7 + $0x188] sm:$0xff]
  %v1294 = vld [vmem:[%s7 + $0x190] sm:$0xff]
  %v1295 = vld [vmem:[%s7 + $0x198] sm:$0xff]
  %v1296 = vld [vmem:[%s7 + $0x1a0] sm:$0xff]
  %v1297 = vld [vmem:[%s7 + $0x1a8] sm:$0xff]
  %v1298 = vld [vmem:[%s7 + $0x1b0] sm:$0xff]
  %v1299 = vld [vmem:[%s7 + $0x1b8] sm:$0xff]
  %v1300 = vld [vmem:[%s7 + $0x1c0] sm:$0xff]
  %v1301 = vld [vmem:[%s7 + $0x1c8] sm:$0xff]
  %v1302 = vld [vmem:[%s7 + $0x1d0] sm:$0xff]
  %v1303 = vld [vmem:[%s7 + $0x1d8] sm:$0xff]
  %v1304 = vld [vmem:[%s7 + $0x1e0] sm:$0xff]
  %v1305 = vld [vmem:[%s7 + $0x1e8] sm:$0xff]
  %v1306 = vld [vmem:[%s7 + $0x1f0] sm:$0xff]
  %v1307 = vld [vmem:[%s7 + $0x1f8] sm:$0xff]
  %v1308 = vmul.f32 %v1244, %v1228
  %v1309 = vmul.f32 %v1245, %v1229
  %v1310 = vmul.f32 %v1246, %v1230
  %v1311 = vmul.f32 %v1247, %v1231
  %v1312 = vmul.f32 %v1248, %v1232
  %v1313 = vmul.f32 %v1249, %v1233
  %v1314 = vmul.f32 %v1250, %v1234
  %v1315 = vmul.f32 %v1251, %v1235
  %v1316 = vmul.f32 %v1252, %v1236
  %v1317 = vmul.f32 %v1253, %v1237
  %v1318 = vmul.f32 %v1254, %v1238
  %v1319 = vmul.f32 %v1255, %v1239
  %v1320 = vmul.f32 %v1256, %v1240
  %v1321 = vmul.f32 %v1257, %v1241
  %v1322 = vmul.f32 %v1258, %v1242
  %v1323 = vmul.f32 %v1259, %v1243
  %v1324 = vmul.f32 %v1260, %v1228
  %v1325 = vmul.f32 %v1261, %v1229
  %v1326 = vmul.f32 %v1262, %v1230
  %v1327 = vmul.f32 %v1263, %v1231
  %v1328 = vmul.f32 %v1264, %v1232
  %v1329 = vmul.f32 %v1265, %v1233
  %v1330 = vmul.f32 %v1266, %v1234
  %v1331 = vmul.f32 %v1267, %v1235
  %v1332 = vmul.f32 %v1268, %v1236
  %v1333 = vmul.f32 %v1269, %v1237
  %v1334 = vmul.f32 %v1270, %v1238
  %v1335 = vmul.f32 %v1271, %v1239
  %v1336 = vmul.f32 %v1272, %v1240
  %v1337 = vmul.f32 %v1273, %v1241
  %v1338 = vmul.f32 %v1274, %v1242
  %v1339 = vmul.f32 %v1275, %v1243
  %v1340 = vmul.f32 %v1276, %v1228
  %v1341 = vmul.f32 %v1277, %v1229
  %v1342 = vmul.f32 %v1278, %v1230
  %v1343 = vmul.f32 %v1279, %v1231
  %v1344 = vmul.f32 %v1280, %v1232
  %v1345 = vmul.f32 %v1281, %v1233
  %v1346 = vmul.f32 %v1282, %v1234
  %v1347 = vmul.f32 %v1283, %v1235
  %v1348 = vmul.f32 %v1284, %v1236
  %v1349 = vmul.f32 %v1285, %v1237
  %v1350 = vmul.f32 %v1286, %v1238
  %v1351 = vmul.f32 %v1287, %v1239
  %v1352 = vmul.f32 %v1288, %v1240
  %v1353 = vmul.f32 %v1289, %v1241
  %v1354 = vmul.f32 %v1290, %v1242
  %v1355 = vmul.f32 %v1291, %v1243
  %v1356 = vmul.f32 %v1292, %v1228
  %v1357 = vmul.f32 %v1293, %v1229
  %v1358 = vmul.f32 %v1294, %v1230
  %v1359 = vmul.f32 %v1295, %v1231
  %v1360 = vmul.f32 %v1296, %v1232
  %v1361 = vmul.f32 %v1297, %v1233
  %v1362 = vmul.f32 %v1298, %v1234
  %v1363 = vmul.f32 %v1299, %v1235
  %v1364 = vmul.f32 %v1300, %v1236
  %v1365 = vmul.f32 %v1301, %v1237
  %v1366 = vmul.f32 %v1302, %v1238
  %v1367 = vmul.f32 %v1303, %v1239
  %v1368 = vmul.f32 %v1304, %v1240
  %v1369 = vmul.f32 %v1305, %v1241
  %v1370 = vmul.f32 %v1306, %v1242
  %v1371 = vmul.f32 %v1307, %v1243
  %v1372 = vld [vmem:[%s8] sm:$0xf]
  %1373 = vmatpush.msra.mxu0 %v1368
  %1374 = vmatpush.msra.mxu0 %v1364
  %1375 = vmatpush.msra.mxu0 %v1360
  %1376 = vmatpush.msra.mxu0 %v1356
  %1377 = vmatpush.msra.mxu0 %v1352
  %1378 = vmatpush.msra.mxu0 %v1348
  %1379 = vmatpush.msra.mxu0 %v1344
  %1380 = vmatpush.msra.mxu0 %v1340
  %1381 = vmatpush.msra.mxu0 %v1336
  %1382 = vmatpush.msra.mxu0 %v1332
  %1383 = vmatpush.msra.mxu0 %v1328
  %1384 = vmatpush.msra.mxu0 %v1324
  %1385 = vmatpush.msra.mxu0 %v1320
  %1386 = vmatpush.msra.mxu0 %v1316
  %1387 = vmatpush.msra.mxu0 %v1312
  %1388 = vmatpush.msra.mxu0 %v1308
  %1389 = vmatmul.f32.gmra.mxu0 %v1372
  %v1390 = vpop.f32.mrf.mxu0
  %v1391 = vadd.f32 0.0, %v1390
  %1392 = vdwg.mxu0
  %1393 = vmatpush.msra.mxu0 %v1369
  %1394 = vmatpush.msra.mxu0 %v1365
  %1395 = vmatpush.msra.mxu0 %v1361
  %1396 = vmatpush.msra.mxu0 %v1357
  %1397 = vmatpush.msra.mxu0 %v1353
  %1398 = vmatpush.msra.mxu0 %v1349
  %1399 = vmatpush.msra.mxu0 %v1345
  %1400 = vmatpush.msra.mxu0 %v1341
  %1401 = vmatpush.msra.mxu0 %v1337
  %1402 = vmatpush.msra.mxu0 %v1333
  %1403 = vmatpush.msra.mxu0 %v1329
  %1404 = vmatpush.msra.mxu0 %v1325
  %1405 = vmatpush.msra.mxu0 %v1321
  %1406 = vmatpush.msra.mxu0 %v1317
  %1407 = vmatpush.msra.mxu0 %v1313
  %1408 = vmatpush.msra.mxu0 %v1309
  %1409 = vmatmul.f32.gmra.mxu0 %v1372
  %v1410 = vpop.f32.mrf.mxu0
  %v1411 = vadd.f32 0.0, %v1410
  %1412 = vdwg.mxu0
  %1413 = vmatpush.msra.mxu0 %v1370
  %1414 = vmatpush.msra.mxu0 %v1366
  %1415 = vmatpush.msra.mxu0 %v1362
  %1416 = vmatpush.msra.mxu0 %v1358
  %1417 = vmatpush.msra.mxu0 %v1354
  %1418 = vmatpush.msra.mxu0 %v1350
  %1419 = vmatpush.msra.mxu0 %v1346
  %1420 = vmatpush.msra.mxu0 %v1342
  %1421 = vmatpush.msra.mxu0 %v1338
  %1422 = vmatpush.msra.mxu0 %v1334
  %1423 = vmatpush.msra.mxu0 %v1330
  %1424 = vmatpush.msra.mxu0 %v1326
  %1425 = vmatpush.msra.mxu0 %v1322
  %1426 = vmatpush.msra.mxu0 %v1318
  %1427 = vmatpush.msra.mxu0 %v1314
  %1428 = vmatpush.msra.mxu0 %v1310
  %1429 = vmatmul.f32.gmra.mxu0 %v1372
  %v1430 = vpop.f32.mrf.mxu0
  %v1431 = vadd.f32 0.0, %v1430
  %1432 = vdwg.mxu0
  %1433 = vmatpush.msra.mxu0 %v1371
  %1434 = vmatpush.msra.mxu0 %v1367
  %1435 = vmatpush.msra.mxu0 %v1363
  %1436 = vmatpush.msra.mxu0 %v1359
  %1437 = vmatpush.msra.mxu0 %v1355
  %1438 = vmatpush.msra.mxu0 %v1351
  %1439 = vmatpush.msra.mxu0 %v1347
  %1440 = vmatpush.msra.mxu0 %v1343
  %1441 = vmatpush.msra.mxu0 %v1339
  %1442 = vmatpush.msra.mxu0 %v1335
  %1443 = vmatpush.msra.mxu0 %v1331
  %1444 = vmatpush.msra.mxu0 %v1327
  %1445 = vmatpush.msra.mxu0 %v1323
  %1446 = vmatpush.msra.mxu0 %v1319
  %1447 = vmatpush.msra.mxu0 %v1315
  %1448 = vmatpush.msra.mxu0 %v1311
  %1449 = vmatmul.f32.gmra.mxu0 %v1372
  %v1450 = vpop.f32.mrf.mxu0
  %v1451 = vadd.f32 0.0, %v1450
  %1452 = vdwg.mxu0
  %v1453 = vld [vmem:[%s9] sm:$0xff]
  %v1454 = vld [vmem:[%s9 + $0x8] sm:$0xff]
  %v1455 = vld [vmem:[%s9 + $0x10] sm:$0xff]
  %v1456 = vld [vmem:[%s9 + $0x18] sm:$0xff]
  %v1457 = vld [vmem:[%s9 + $0x20] sm:$0xff]
  %v1458 = vld [vmem:[%s9 + $0x28] sm:$0xff]
  %v1459 = vld [vmem:[%s9 + $0x30] sm:$0xff]
  %v1460 = vld [vmem:[%s9 + $0x38] sm:$0xff]
  %v1461 = vld [vmem:[%s9 + $0x40] sm:$0xff]
  %v1462 = vld [vmem:[%s9 + $0x48] sm:$0xff]
  %v1463 = vld [vmem:[%s9 + $0x50] sm:$0xff]
  %v1464 = vld [vmem:[%s9 + $0x58] sm:$0xff]
  %v1465 = vld [vmem:[%s9 + $0x60] sm:$0xff]
  %v1466 = vld [vmem:[%s9 + $0x68] sm:$0xff]
  %v1467 = vld [vmem:[%s9 + $0x70] sm:$0xff]
  %v1468 = vld [vmem:[%s9 + $0x78] sm:$0xff]
  %v1469 = vld [vmem:[%s9 + $0x80] sm:$0xff]
  %v1470 = vld [vmem:[%s9 + $0x88] sm:$0xff]
  %v1471 = vld [vmem:[%s9 + $0x90] sm:$0xff]
  %v1472 = vld [vmem:[%s9 + $0x98] sm:$0xff]
  %v1473 = vld [vmem:[%s9 + $0xa0] sm:$0xff]
  %v1474 = vld [vmem:[%s9 + $0xa8] sm:$0xff]
  %v1475 = vld [vmem:[%s9 + $0xb0] sm:$0xff]
  %v1476 = vld [vmem:[%s9 + $0xb8] sm:$0xff]
  %v1477 = vld [vmem:[%s9 + $0xc0] sm:$0xff]
  %v1478 = vld [vmem:[%s9 + $0xc8] sm:$0xff]
  %v1479 = vld [vmem:[%s9 + $0xd0] sm:$0xff]
  %v1480 = vld [vmem:[%s9 + $0xd8] sm:$0xff]
  %v1481 = vld [vmem:[%s9 + $0xe0] sm:$0xff]
  %v1482 = vld [vmem:[%s9 + $0xe8] sm:$0xff]
  %v1483 = vld [vmem:[%s9 + $0xf0] sm:$0xff]
  %v1484 = vld [vmem:[%s9 + $0xf8] sm:$0xff]
  %v1485 = vld [vmem:[%s9 + $0x100] sm:$0xff]
  %v1486 = vld [vmem:[%s9 + $0x108] sm:$0xff]
  %v1487 = vld [vmem:[%s9 + $0x110] sm:$0xff]
  %v1488 = vld [vmem:[%s9 + $0x118] sm:$0xff]
  %v1489 = vld [vmem:[%s9 + $0x120] sm:$0xff]
  %v1490 = vld [vmem:[%s9 + $0x128] sm:$0xff]
  %v1491 = vld [vmem:[%s9 + $0x130] sm:$0xff]
  %v1492 = vld [vmem:[%s9 + $0x138] sm:$0xff]
  %v1493 = vld [vmem:[%s9 + $0x140] sm:$0xff]
  %v1494 = vld [vmem:[%s9 + $0x148] sm:$0xff]
  %v1495 = vld [vmem:[%s9 + $0x150] sm:$0xff]
  %v1496 = vld [vmem:[%s9 + $0x158] sm:$0xff]
  %v1497 = vld [vmem:[%s9 + $0x160] sm:$0xff]
  %v1498 = vld [vmem:[%s9 + $0x168] sm:$0xff]
  %v1499 = vld [vmem:[%s9 + $0x170] sm:$0xff]
  %v1500 = vld [vmem:[%s9 + $0x178] sm:$0xff]
  %v1501 = vld [vmem:[%s9 + $0x180] sm:$0xff]
  %v1502 = vld [vmem:[%s9 + $0x188] sm:$0xff]
  %v1503 = vld [vmem:[%s9 + $0x190] sm:$0xff]
  %v1504 = vld [vmem:[%s9 + $0x198] sm:$0xff]
  %v1505 = vld [vmem:[%s9 + $0x1a0] sm:$0xff]
  %v1506 = vld [vmem:[%s9 + $0x1a8] sm:$0xff]
  %v1507 = vld [vmem:[%s9 + $0x1b0] sm:$0xff]
  %v1508 = vld [vmem:[%s9 + $0x1b8] sm:$0xff]
  %v1509 = vld [vmem:[%s9 + $0x1c0] sm:$0xff]
  %v1510 = vld [vmem:[%s9 + $0x1c8] sm:$0xff]
  %v1511 = vld [vmem:[%s9 + $0x1d0] sm:$0xff]
  %v1512 = vld [vmem:[%s9 + $0x1d8] sm:$0xff]
  %v1513 = vld [vmem:[%s9 + $0x1e0] sm:$0xff]
  %v1514 = vld [vmem:[%s9 + $0x1e8] sm:$0xff]
  %v1515 = vld [vmem:[%s9 + $0x1f0] sm:$0xff]
  %v1516 = vld [vmem:[%s9 + $0x1f8] sm:$0xff]
  %v1517 = vld [vmem:[%s10] sm:$0xf]
  %1519 = vset.pattern.permute.xlu0 0
  %1520 = vperm.xlu0 %1519, %v1517
  %v1521 = vpop.permute.xlu0 %1520
  %1523 = vmatpush.msra.mxu0 %v1468
  %1524 = vmatpush.msra.mxu0 %v1467
  %1525 = vmatpush.msra.mxu0 %v1466
  %1526 = vmatpush.msra.mxu0 %v1465
  %1527 = vmatpush.msra.mxu0 %v1464
  %1528 = vmatpush.msra.mxu0 %v1463
  %1529 = vmatpush.msra.mxu0 %v1462
  %1530 = vmatpush.msra.mxu0 %v1461
  %1531 = vmatpush.msra.mxu0 %v1460
  %1532 = vmatpush.msra.mxu0 %v1459
  %1533 = vmatpush.msra.mxu0 %v1458
  %1534 = vmatpush.msra.mxu0 %v1457
  %1535 = vmatpush.msra.mxu0 %v1456
  %1536 = vmatpush.msra.mxu0 %v1455
  %1537 = vmatpush.msra.mxu0 %v1454
  %1538 = vmatpush.msra.mxu0 %v1453
  %1539 = vmatmul.f32.gmra.mxu0 %v1391
  %v1540 = vpop.f32.mrf.mxu0
  %v1541 = vadd.f32 %v1521, %v1540
  %1542 = vdwg.mxu0
  %1543 = vmatpush.msra.mxu0 %v1484
  %1544 = vmatpush.msra.mxu0 %v1483
  %1545 = vmatpush.msra.mxu0 %v1482
  %1546 = vmatpush.msra.mxu0 %v1481
  %1547 = vmatpush.msra.mxu0 %v1480
  %1548 = vmatpush.msra.mxu0 %v1479
  %1549 = vmatpush.msra.mxu0 %v1478
  %1550 = vmatpush.msra.mxu0 %v1477
  %1551 = vmatpush.msra.mxu0 %v1476
  %1552 = vmatpush.msra.mxu0 %v1475
  %1553 = vmatpush.msra.mxu0 %v1474
  %1554 = vmatpush.msra.mxu0 %v1473
  %1555 = vmatpush.msra.mxu0 %v1472
  %1556 = vmatpush.msra.mxu0 %v1471
  %1557 = vmatpush.msra.mxu0 %v1470
  %1558 = vmatpush.msra.mxu0 %v1469
  %1559 = vmatmul.f32.gmra.mxu0 %v1411
  %v1560 = vpop.f32.mrf.mxu0
  %v1561 = vadd.f32 %v1541, %v1560
  %1562 = vdwg.mxu0
  %1563 = vmatpush.msra.mxu0 %v1500
  %1564 = vmatpush.msra.mxu0 %v1499
  %1565 = vmatpush.msra.mxu0 %v1498
  %1566 = vmatpush.msra.mxu0 %v1497
  %1567 = vmatpush.msra.mxu0 %v1496
  %1568 = vmatpush.msra.mxu0 %v1495
  %1569 = vmatpush.msra.mxu0 %v1494
  %1570 = vmatpush.msra.mxu0 %v1493
  %1571 = vmatpush.msra.mxu0 %v1492
  %1572 = vmatpush.msra.mxu0 %v1491
  %1573 = vmatpush.msra.mxu0 %v1490
  %1574 = vmatpush.msra.mxu0 %v1489
  %1575 = vmatpush.msra.mxu0 %v1488
  %1576 = vmatpush.msra.mxu0 %v1487
  %1577 = vmatpush.msra.mxu0 %v1486
  %1578 = vmatpush.msra.mxu0 %v1485
  %1579 = vmatmul.f32.gmra.mxu0 %v1431
  %v1580 = vpop.f32.mrf.mxu0
  %v1581 = vadd.f32 %v1561, %v1580
  %1582 = vdwg.mxu0
  %1583 = vmatpush.msra.mxu0 %v1516
  %1584 = vmatpush.msra.mxu0 %v1515
  %1585 = vmatpush.msra.mxu0 %v1514
  %1586 = vmatpush.msra.mxu0 %v1513
  %1587 = vmatpush.msra.mxu0 %v1512
  %1588 = vmatpush.msra.mxu0 %v1511
  %1589 = vmatpush.msra.mxu0 %v1510
  %1590 = vmatpush.msra.mxu0 %v1509
  %1591 = vmatpush.msra.mxu0 %v1508
  %1592 = vmatpush.msra.mxu0 %v1507
  %1593 = vmatpush.msra.mxu0 %v1506
  %1594 = vmatpush.msra.mxu0 %v1505
  %1595 = vmatpush.msra.mxu0 %v1504
  %1596 = vmatpush.msra.mxu0 %v1503
  %1597 = vmatpush.msra.mxu0 %v1502
  %1598 = vmatpush.msra.mxu0 %v1501
  %1599 = vmatmul.f32.gmra.mxu0 %v1451
  %v1600 = vpop.f32.mrf.mxu0
  %v1601 = vadd.f32 %v1581, %v1600
  %1602 = vdwg.mxu0
  %vm1603 = vcmask 11264
  %1604 = vst.msk [vmem:[%s11] sm:$0xf] %vm1603, %v1601
  // Predicated region
  $region46: #{_forward.3} parent=0 // pred_check
    _
  $region47: #{_forward.3} parent=0 // pred_check_branch
    %1606 = sbr.rel (0) target = $region49
  $region48: #{_forward.3} parent=0 // pred_region
    _
  $region49: #{_forward.3} parent=0 // pred_fallthru
    _
  // Predicated region
  $region50: #{_forward.3} parent=0 // pred_check
    _
  $region51: #{_forward.3} parent=0 // pred_check_branch
    %1608 = sbr.rel (0) target = $region53
  $region52: #{_forward.3} parent=0 // pred_region
    _
  $region53: #{_forward.3} parent=0 // pred_fallthru
    _

</llo_original>
